<compile_context>
chip_gen: v7x
topology: tpu7x:2x2x1
jax: 0.10.0
libtpu: 0.0.40
codegen_flags: <defaults>
</compile_context>

<pallas_src>
import jax
import jax.numpy as jnp
from jax import lax
from jax.experimental import pallas as pl
from jax.experimental.pallas import tpu as pltpu

EMBED_SIZE = 128      # orig 512
HIDDEN_SIZE = 128     # orig 256   (2H = 256, lane-dense)
SEQ_LEN = 16
BATCH = 8


def _sigmoid(v):
    return 1.0 / (1.0 + jnp.exp(-v))


def word_attn_kernel(x_ref,
                     wih_f_ref, whh_f_ref, bih_f_ref, bhh_f_ref,
                     wih_b_ref, whh_b_ref, bih_b_ref, bhh_b_ref,
                     ww_ref, wb_ref, ctx_ref,
                     out_ref,
                     xpf_ref, xpb_ref, whf_ref, whb_ref):
    S, BT, E = x_ref.shape
    H = whh_f_ref.shape[0]          # hidden size per direction
    G = 3 * H                       # concatenated r|z|n gates

    # ---- batched input projections (M = S*BT): one big MXU matmul per dir ----
    x2 = x_ref[...].reshape(S * BT, E)
    xpf_ref[...] = (jnp.dot(x2, wih_f_ref[...],
                            preferred_element_type=jnp.float32)
                    + bih_f_ref[...]).reshape(S, BT, G)
    xpb_ref[...] = (jnp.dot(x2, wih_b_ref[...],
                            preferred_element_type=jnp.float32)
                    + bih_b_ref[...]).reshape(S, BT, G)

    whh_f = whh_f_ref[...]
    whh_b = whh_b_ref[...]
    # Hoist bias broadcasts out of the (unrolled) recurrence loop.
    bhh_f = jnp.broadcast_to(bhh_f_ref[...], (BT, G))
    bhh_b = jnp.broadcast_to(bhh_b_ref[...], (BT, G))

    def gru_cell(xp, h_prev, whh, bhh):
        # PyTorch GRU: r = s(xr + hr), z = s(xz + hz), n = tanh(xn + r*hn)
        hp = jnp.dot(h_prev, whh, preferred_element_type=jnp.float32) + bhh
        r = _sigmoid(xp[:, 0:H] + hp[:, 0:H])
        z = _sigmoid(xp[:, H:2 * H] + hp[:, H:2 * H])
        n = jnp.tanh(xp[:, 2 * H:3 * H] + r * hp[:, 2 * H:3 * H])
        return (1.0 - z) * n + z * h_prev

    def step(t, carry):
        h_f, h_b = carry
        # forward direction at time t
        h_f = gru_cell(xpf_ref[t], h_f, whh_f, bhh_f)
        whf_ref[t] = h_f
        # backward direction at time S-1-t
        tb = S - 1 - t
        h_b = gru_cell(xpb_ref[tb], h_b, whh_b, bhh_b)
        whb_ref[tb] = h_b
        return h_f, h_b

    h0 = jnp.zeros((BT, H), jnp.float32)
    lax.fori_loop(0, S, step, (h0, h0), unroll=True)

    # ---- word attention over the sequence ----
    whf = whf_ref[...]                          # (S, BT, H) forward hiddens
    whb = whb_ref[...]                          # (S, BT, H) backward hiddens
    whf2 = whf.reshape(S * BT, H)
    whb2 = whb.reshape(S * BT, H)

    # uit = tanh([h_f | h_b] @ W_word + b_word) as a split matmul so we never
    # materialize a lane-dim concatenation.
    uit = jnp.tanh(
        jnp.dot(whf2, ww_ref[0:H, :], preferred_element_type=jnp.float32)
        + jnp.dot(whb2, ww_ref[H:2 * H, :], preferred_element_type=jnp.float32)
        + wb_ref[...])                          # (S*BT, 2H)
    uit3 = uit.reshape(S, BT, 2 * H)

    # score[s, b] = tanh(<uit[s, b, :], context>)  -- lane reduce (XLU)
    ctx = ctx_ref[...][None]                    # (1, 1, 2H)
    score = jnp.tanh(jnp.sum(uit3 * ctx, axis=-1, keepdims=True))  # (S, BT, 1)

    # softmax over the sequence axis (== F.softmax on (B, S) along dim=1)
    m = jnp.max(score, axis=0, keepdims=True)
    e = jnp.exp(score - m)
    alpha = e / jnp.sum(e, axis=0, keepdims=True)                  # (S, BT, 1)

    # output[b, :] = sum_s alpha[s, b] * [h_f(s,b,:) | h_b(s,b,:)]
    out_ref[:, 0:H] = jnp.sum(whf * alpha, axis=0).astype(out_ref.dtype)
    out_ref[:, H:2 * H] = jnp.sum(whb * alpha, axis=0).astype(out_ref.dtype)


def word_att_net_forward(x, params):
    """x: (S, B, E) float32 (PyTorch GRU seq-first layout). Returns (B, 2H)."""
    S, B, E = x.shape
    H = HIDDEN_SIZE
    BT = B  # whole (small) batch in one grid step; tile BT for large B.

    def full_spec(arr):
        return pl.BlockSpec(arr.shape, lambda b, _n=arr.ndim: (0,) * _n)

    weight_names = ["wih_f", "whh_f", "bih_f", "bhh_f",
                    "wih_b", "whh_b", "bih_b", "bhh_b",
                    "word_w", "word_b", "ctx_w"]
    w_args = [params[name] for name in weight_names]

    in_specs = [pl.BlockSpec((S, BT, E), lambda b: (0, b, 0))]
    in_specs += [full_spec(w) for w in w_args]

    out = pl.pallas_call(
        word_attn_kernel,
        out_shape=jax.ShapeDtypeStruct((B, 2 * H), jnp.float32),
        grid_spec=pltpu.PrefetchScalarGridSpec(
            num_scalar_prefetch=0,
            grid=(B // BT,),
            in_specs=in_specs,
            out_specs=pl.BlockSpec((BT, 2 * H), lambda b: (b, 0)),
            scratch_shapes=[
                pltpu.VMEM((S, BT, 3 * H), jnp.float32),   # fwd input projections
                pltpu.VMEM((S, BT, 3 * H), jnp.float32),   # bwd input projections
                pltpu.VMEM((S, BT, H), jnp.float32),       # fwd hiddens
                pltpu.VMEM((S, BT, H), jnp.float32),       # bwd hiddens
            ],
        ),
        compiler_params=pltpu.CompilerParams(
            dimension_semantics=("parallel",)),
    )(x, *w_args)
    return out


def init_params(key):
    """Deterministic synthetic params matching WordAttNet (PyTorch layouts,
    pre-transposed for right-multiplication on TPU)."""
    H, E = HIDDEN_SIZE, EMBED_SIZE
    std = 0.05
    ks = jax.random.split(key, 11)

    def rnd(k, shape):
        return std * jax.random.normal(k, shape, jnp.float32)

    # nn.GRU(embed, hidden, bidirectional=True): weight_ih (3H, E), weight_hh
    # (3H, H), biases (3H,), gate order r|z|n — one set per direction.
    w_ih_f, w_hh_f = rnd(ks[0], (3 * H, E)), rnd(ks[1], (3 * H, H))
    b_ih_f, b_hh_f = rnd(ks[2], (3 * H,)), rnd(ks[3], (3 * H,))
    w_ih_b, w_hh_b = rnd(ks[4], (3 * H, E)), rnd(ks[5], (3 * H, H))
    b_ih_b, b_hh_b = rnd(ks[6], (3 * H,)), rnd(ks[7], (3 * H,))

    params = {
        "wih_f": w_ih_f.T, "whh_f": w_hh_f.T,
        "bih_f": b_ih_f[None, :], "bhh_f": b_hh_f[None, :],
        "wih_b": w_ih_b.T, "whh_b": w_hh_b.T,
        "bih_b": b_ih_b[None, :], "bhh_b": b_hh_b[None, :],
        # word_weight (2H, 2H), word_bias (1, 2H), context_weight (2H, 1)->(1, 2H)
        "word_w": rnd(ks[8], (2 * H, 2 * H)),
        "word_b": rnd(ks[9], (1, 2 * H)),
        "ctx_w": rnd(ks[10], (2 * H, 1)).T,
    }
    return params


if __name__ == "__main__":
    key = jax.random.PRNGKey(0)
    pkey, xkey = jax.random.split(key)
    params = init_params(pkey)

    x = jax.random.normal(xkey, (SEQ_LEN, BATCH, EMBED_SIZE), jnp.float32)

    out = word_att_net_forward(x, params)
    out = jax.block_until_ready(out)

    assert out.shape == (BATCH, 2 * HIDDEN_SIZE)
    assert out.dtype == jnp.float32
    assert bool(jnp.all(jnp.isfinite(out)))
    print("KERNEL_OK")
</pallas_src>

<mosaic_0001>
module attributes {stable_mosaic.version = 11 : i64} {
  func.func @word_attn_kernel(%arg0: i32, %arg1: memref<16x8x128xf32, #tpu.memory_space<vmem>>, %arg2: memref<128x384xf32, #tpu.memory_space<vmem>>, %arg3: memref<128x384xf32, #tpu.memory_space<vmem>>, %arg4: memref<1x384xf32, #tpu.memory_space<vmem>>, %arg5: memref<1x384xf32, #tpu.memory_space<vmem>>, %arg6: memref<128x384xf32, #tpu.memory_space<vmem>>, %arg7: memref<128x384xf32, #tpu.memory_space<vmem>>, %arg8: memref<1x384xf32, #tpu.memory_space<vmem>>, %arg9: memref<1x384xf32, #tpu.memory_space<vmem>>, %arg10: memref<256x256xf32, #tpu.memory_space<vmem>>, %arg11: memref<1x256xf32, #tpu.memory_space<vmem>>, %arg12: memref<1x256xf32, #tpu.memory_space<vmem>>, %arg13: memref<8x256xf32, #tpu.memory_space<vmem>>, %arg14: memref<16x8x384xf32, #tpu.memory_space<vmem>>, %arg15: memref<16x8x384xf32, #tpu.memory_space<vmem>>, %arg16: memref<16x8x128xf32, #tpu.memory_space<vmem>>, %arg17: memref<16x8x128xf32, #tpu.memory_space<vmem>>) attributes {dimension_semantics = [#tpu.dimension_semantics<parallel>], iteration_bounds = array<i64: 1>, scalar_prefetch = 0 : i64, scratch_operands = 4 : i64, tpu.core_type = #tpu.core_type<tc>, window_params = [{transform_indices = @transform_0, window_bounds = array<i64: 16, 8, 128>}, {pipeline_mode = #tpu.pipeline_mode<synchronous>, transform_indices = @transform_1, window_bounds = array<i64: 128, 384>}, {pipeline_mode = #tpu.pipeline_mode<synchronous>, transform_indices = @transform_2, window_bounds = array<i64: 128, 384>}, {pipeline_mode = #tpu.pipeline_mode<synchronous>, transform_indices = @transform_3, window_bounds = array<i64: 1, 384>}, {pipeline_mode = #tpu.pipeline_mode<synchronous>, transform_indices = @transform_4, window_bounds = array<i64: 1, 384>}, {pipeline_mode = #tpu.pipeline_mode<synchronous>, transform_indices = @transform_5, window_bounds = array<i64: 128, 384>}, {pipeline_mode = #tpu.pipeline_mode<synchronous>, transform_indices = @transform_6, window_bounds = array<i64: 128, 384>}, {pipeline_mode = #tpu.pipeline_mode<synchronous>, transform_indices = @transform_7, window_bounds = array<i64: 1, 384>}, {pipeline_mode = #tpu.pipeline_mode<synchronous>, transform_indices = @transform_8, window_bounds = array<i64: 1, 384>}, {pipeline_mode = #tpu.pipeline_mode<synchronous>, transform_indices = @transform_9, window_bounds = array<i64: 256, 256>}, {pipeline_mode = #tpu.pipeline_mode<synchronous>, transform_indices = @transform_10, window_bounds = array<i64: 1, 256>}, {pipeline_mode = #tpu.pipeline_mode<synchronous>, transform_indices = @transform_11, window_bounds = array<i64: 1, 256>}, {transform_indices = @transform_12, window_bounds = array<i64: 8, 256>}]} {
    %c0 = arith.constant 0 : index
    %c0_0 = arith.constant 0 : index
    %c0_1 = arith.constant 0 : index
    %0 = vector.load %arg1[%c0, %c0_0, %c0_1] : memref<16x8x128xf32, #tpu.memory_space<vmem>>, vector<16x8x128xf32>
    %1 = vector.shape_cast %0 : vector<16x8x128xf32> to vector<128x128xf32>
    %c0_2 = arith.constant 0 : index
    %c0_3 = arith.constant 0 : index
    %2 = vector.load %arg2[%c0_2, %c0_3] : memref<128x384xf32, #tpu.memory_space<vmem>>, vector<128x384xf32>
    %cst = arith.constant dense<0.000000e+00> : vector<128x384xf32>
    %3 = tpu.matmul %1, %2, %cst {dimension_numbers = #tpu.dot_dimension_numbers<[1], [0], [0], [1], [0, 0, 1, 1], [], []>} : vector<128x128xf32>, vector<128x384xf32>, vector<128x384xf32> -> vector<128x384xf32>
    %c0_4 = arith.constant 0 : index
    %c0_5 = arith.constant 0 : index
    %4 = vector.load %arg4[%c0_4, %c0_5] : memref<1x384xf32, #tpu.memory_space<vmem>>, vector<1x384xf32>
    %5 = vector.broadcast %4 : vector<1x384xf32> to vector<128x384xf32>
    %6 = arith.addf %3, %5 : vector<128x384xf32>
    %7 = vector.shape_cast %6 : vector<128x384xf32> to vector<16x8x384xf32>
    %c0_6 = arith.constant 0 : index
    %c0_7 = arith.constant 0 : index
    %c0_8 = arith.constant 0 : index
    %8 = vector.load %arg14[%c0_6, %c0_7, %c0_8] : memref<16x8x384xf32, #tpu.memory_space<vmem>>, vector<16x8x384xf32>
    tpu.vector_store %arg14[%c0_6, %c0_7, %c0_8], %7 {strides = array<i32>} : memref<16x8x384xf32, #tpu.memory_space<vmem>>, vector<16x8x384xf32>,
    %c0_9 = arith.constant 0 : index
    %c0_10 = arith.constant 0 : index
    %9 = vector.load %arg6[%c0_9, %c0_10] : memref<128x384xf32, #tpu.memory_space<vmem>>, vector<128x384xf32>
    %cst_11 = arith.constant dense<0.000000e+00> : vector<128x384xf32>
    %10 = tpu.matmul %1, %9, %cst_11 {dimension_numbers = #tpu.dot_dimension_numbers<[1], [0], [0], [1], [0, 0, 1, 1], [], []>} : vector<128x128xf32>, vector<128x384xf32>, vector<128x384xf32> -> vector<128x384xf32>
    %c0_12 = arith.constant 0 : index
    %c0_13 = arith.constant 0 : index
    %11 = vector.load %arg8[%c0_12, %c0_13] : memref<1x384xf32, #tpu.memory_space<vmem>>, vector<1x384xf32>
    %12 = vector.broadcast %11 : vector<1x384xf32> to vector<128x384xf32>
    %13 = arith.addf %10, %12 : vector<128x384xf32>
    %14 = vector.shape_cast %13 : vector<128x384xf32> to vector<16x8x384xf32>
    %c0_14 = arith.constant 0 : index
    %c0_15 = arith.constant 0 : index
    %c0_16 = arith.constant 0 : index
    %15 = vector.load %arg15[%c0_14, %c0_15, %c0_16] : memref<16x8x384xf32, #tpu.memory_space<vmem>>, vector<16x8x384xf32>
    tpu.vector_store %arg15[%c0_14, %c0_15, %c0_16], %14 {strides = array<i32>} : memref<16x8x384xf32, #tpu.memory_space<vmem>>, vector<16x8x384xf32>,
    %c0_17 = arith.constant 0 : index
    %c0_18 = arith.constant 0 : index
    %16 = vector.load %arg3[%c0_17, %c0_18] : memref<128x384xf32, #tpu.memory_space<vmem>>, vector<128x384xf32>
    %c0_19 = arith.constant 0 : index
    %c0_20 = arith.constant 0 : index
    %17 = vector.load %arg7[%c0_19, %c0_20] : memref<128x384xf32, #tpu.memory_space<vmem>>, vector<128x384xf32>
    %c0_21 = arith.constant 0 : index
    %c0_22 = arith.constant 0 : index
    %18 = vector.load %arg5[%c0_21, %c0_22] : memref<1x384xf32, #tpu.memory_space<vmem>>, vector<1x384xf32>
    %19 = vector.shape_cast %18 : vector<1x384xf32> to vector<1x384xf32>
    %20 = vector.broadcast %19 : vector<1x384xf32> to vector<8x384xf32>
    %c0_23 = arith.constant 0 : index
    %c0_24 = arith.constant 0 : index
    %21 = vector.load %arg9[%c0_23, %c0_24] : memref<1x384xf32, #tpu.memory_space<vmem>>, vector<1x384xf32>
    %22 = vector.shape_cast %21 : vector<1x384xf32> to vector<1x384xf32>
    %23 = vector.broadcast %22 : vector<1x384xf32> to vector<8x384xf32>
    %cst_25 = arith.constant 0.000000e+00 : f32
    %24 = vector.broadcast %cst_25 : f32 to vector<8x128xf32>
    %c0_i32 = arith.constant 0 : i32
    %25 = arith.index_cast %c0_i32 : i32 to index
    %c0_26 = arith.constant 0 : index
    %c0_27 = arith.constant 0 : index
    %26 = vector.load %arg14[%25, %c0_26, %c0_27] : memref<16x8x384xf32, #tpu.memory_space<vmem>>, vector<1x8x384xf32>
    %27 = vector.shape_cast %26 : vector<1x8x384xf32> to vector<8x384xf32>
    %cst_28 = arith.constant dense<0.000000e+00> : vector<8x384xf32>
    %28 = tpu.matmul %24, %16, %cst_28 {dimension_numbers = #tpu.dot_dimension_numbers<[1], [0], [0], [1], [0, 0, 1, 1], [], []>} : vector<8x128xf32>, vector<128x384xf32>, vector<8x384xf32> -> vector<8x384xf32>
    %29 = arith.addf %28, %20 : vector<8x384xf32>
    %30 = vector.extract_strided_slice %27 {offsets = [0, 0], sizes = [8, 128], strides = [1, 1]} : vector<8x384xf32> to vector<8x128xf32>
    %31 = vector.extract_strided_slice %29 {offsets = [0, 0], sizes = [8, 128], strides = [1, 1]} : vector<8x384xf32> to vector<8x128xf32>
    %32 = arith.addf %30, %31 : vector<8x128xf32>
    %cst_29 = arith.constant 0.000000e+00 : f32
    %33 = vector.broadcast %cst_29 : f32 to vector<8x128xf32>
    %34 = arith.subf %33, %32 : vector<8x128xf32>
    %35 = math.exp %34 : vector<8x128xf32>
    %cst_30 = arith.constant 1.000000e+00 : f32
    %36 = vector.broadcast %cst_30 : f32 to vector<8x128xf32>
    %37 = arith.addf %36, %35 : vector<8x128xf32>
    %cst_31 = arith.constant 1.000000e+00 : f32
    %38 = vector.broadcast %cst_31 : f32 to vector<8x128xf32>
    %39 = arith.divf %38, %37 : vector<8x128xf32>
    %40 = vector.extract_strided_slice %27 {offsets = [0, 128], sizes = [8, 128], strides = [1, 1]} : vector<8x384xf32> to vector<8x128xf32>
    %41 = vector.extract_strided_slice %29 {offsets = [0, 128], sizes = [8, 128], strides = [1, 1]} : vector<8x384xf32> to vector<8x128xf32>
    %42 = arith.addf %40, %41 : vector<8x128xf32>
    %cst_32 = arith.constant 0.000000e+00 : f32
    %43 = vector.broadcast %cst_32 : f32 to vector<8x128xf32>
    %44 = arith.subf %43, %42 : vector<8x128xf32>
    %45 = math.exp %44 : vector<8x128xf32>
    %cst_33 = arith.constant 1.000000e+00 : f32
    %46 = vector.broadcast %cst_33 : f32 to vector<8x128xf32>
    %47 = arith.addf %46, %45 : vector<8x128xf32>
    %cst_34 = arith.constant 1.000000e+00 : f32
    %48 = vector.broadcast %cst_34 : f32 to vector<8x128xf32>
    %49 = arith.divf %48, %47 : vector<8x128xf32>
    %50 = vector.extract_strided_slice %27 {offsets = [0, 256], sizes = [8, 128], strides = [1, 1]} : vector<8x384xf32> to vector<8x128xf32>
    %51 = vector.extract_strided_slice %29 {offsets = [0, 256], sizes = [8, 128], strides = [1, 1]} : vector<8x384xf32> to vector<8x128xf32>
    %52 = arith.mulf %39, %51 : vector<8x128xf32>
    %53 = arith.addf %50, %52 : vector<8x128xf32>
    %54 = math.tanh %53 : vector<8x128xf32>
    %cst_35 = arith.constant 1.000000e+00 : f32
    %55 = vector.broadcast %cst_35 : f32 to vector<8x128xf32>
    %56 = arith.subf %55, %49 : vector<8x128xf32>
    %57 = arith.mulf %56, %54 : vector<8x128xf32>
    %58 = arith.mulf %49, %24 : vector<8x128xf32>
    %59 = arith.addf %57, %58 : vector<8x128xf32>
    %60 = arith.index_cast %c0_i32 : i32 to index
    %c0_36 = arith.constant 0 : index
    %c0_37 = arith.constant 0 : index
    %61 = vector.load %arg16[%60, %c0_36, %c0_37] : memref<16x8x128xf32, #tpu.memory_space<vmem>>, vector<1x8x128xf32>
    %62 = vector.shape_cast %61 : vector<1x8x128xf32> to vector<8x128xf32>
    %63 = vector.shape_cast %59 : vector<8x128xf32> to vector<1x8x128xf32>
    tpu.vector_store %arg16[%60, %c0_36, %c0_37], %63 {strides = array<i32>} : memref<16x8x128xf32, #tpu.memory_space<vmem>>, vector<1x8x128xf32>,
    %c15_i32 = arith.constant 15 : i32
    %64 = arith.subi %c15_i32, %c0_i32 : i32
    %65 = arith.index_cast %64 : i32 to index
    %c0_38 = arith.constant 0 : index
    %c0_39 = arith.constant 0 : index
    %66 = vector.load %arg15[%65, %c0_38, %c0_39] : memref<16x8x384xf32, #tpu.memory_space<vmem>>, vector<1x8x384xf32>
    %67 = vector.shape_cast %66 : vector<1x8x384xf32> to vector<8x384xf32>
    %cst_40 = arith.constant dense<0.000000e+00> : vector<8x384xf32>
    %68 = tpu.matmul %24, %17, %cst_40 {dimension_numbers = #tpu.dot_dimension_numbers<[1], [0], [0], [1], [0, 0, 1, 1], [], []>} : vector<8x128xf32>, vector<128x384xf32>, vector<8x384xf32> -> vector<8x384xf32>
    %69 = arith.addf %68, %23 : vector<8x384xf32>
    %70 = vector.extract_strided_slice %67 {offsets = [0, 0], sizes = [8, 128], strides = [1, 1]} : vector<8x384xf32> to vector<8x128xf32>
    %71 = vector.extract_strided_slice %69 {offsets = [0, 0], sizes = [8, 128], strides = [1, 1]} : vector<8x384xf32> to vector<8x128xf32>
    %72 = arith.addf %70, %71 : vector<8x128xf32>
    %cst_41 = arith.constant 0.000000e+00 : f32
    %73 = vector.broadcast %cst_41 : f32 to vector<8x128xf32>
    %74 = arith.subf %73, %72 : vector<8x128xf32>
    %75 = math.exp %74 : vector<8x128xf32>
    %cst_42 = arith.constant 1.000000e+00 : f32
    %76 = vector.broadcast %cst_42 : f32 to vector<8x128xf32>
    %77 = arith.addf %76, %75 : vector<8x128xf32>
    %cst_43 = arith.constant 1.000000e+00 : f32
    %78 = vector.broadcast %cst_43 : f32 to vector<8x128xf32>
    %79 = arith.divf %78, %77 : vector<8x128xf32>
    %80 = vector.extract_strided_slice %67 {offsets = [0, 128], sizes = [8, 128], strides = [1, 1]} : vector<8x384xf32> to vector<8x128xf32>
    %81 = vector.extract_strided_slice %69 {offsets = [0, 128], sizes = [8, 128], strides = [1, 1]} : vector<8x384xf32> to vector<8x128xf32>
    %82 = arith.addf %80, %81 : vector<8x128xf32>
    %cst_44 = arith.constant 0.000000e+00 : f32
    %83 = vector.broadcast %cst_44 : f32 to vector<8x128xf32>
    %84 = arith.subf %83, %82 : vector<8x128xf32>
    %85 = math.exp %84 : vector<8x128xf32>
    %cst_45 = arith.constant 1.000000e+00 : f32
    %86 = vector.broadcast %cst_45 : f32 to vector<8x128xf32>
    %87 = arith.addf %86, %85 : vector<8x128xf32>
    %cst_46 = arith.constant 1.000000e+00 : f32
    %88 = vector.broadcast %cst_46 : f32 to vector<8x128xf32>
    %89 = arith.divf %88, %87 : vector<8x128xf32>
    %90 = vector.extract_strided_slice %67 {offsets = [0, 256], sizes = [8, 128], strides = [1, 1]} : vector<8x384xf32> to vector<8x128xf32>
    %91 = vector.extract_strided_slice %69 {offsets = [0, 256], sizes = [8, 128], strides = [1, 1]} : vector<8x384xf32> to vector<8x128xf32>
    %92 = arith.mulf %79, %91 : vector<8x128xf32>
    %93 = arith.addf %90, %92 : vector<8x128xf32>
    %94 = math.tanh %93 : vector<8x128xf32>
    %cst_47 = arith.constant 1.000000e+00 : f32
    %95 = vector.broadcast %cst_47 : f32 to vector<8x128xf32>
    %96 = arith.subf %95, %89 : vector<8x128xf32>
    %97 = arith.mulf %96, %94 : vector<8x128xf32>
    %98 = arith.mulf %89, %24 : vector<8x128xf32>
    %99 = arith.addf %97, %98 : vector<8x128xf32>
    %100 = arith.index_cast %64 : i32 to index
    %c0_48 = arith.constant 0 : index
    %c0_49 = arith.constant 0 : index
    %101 = vector.load %arg17[%100, %c0_48, %c0_49] : memref<16x8x128xf32, #tpu.memory_space<vmem>>, vector<1x8x128xf32>
    %102 = vector.shape_cast %101 : vector<1x8x128xf32> to vector<8x128xf32>
    %103 = vector.shape_cast %99 : vector<8x128xf32> to vector<1x8x128xf32>
    tpu.vector_store %arg17[%100, %c0_48, %c0_49], %103 {strides = array<i32>} : memref<16x8x128xf32, #tpu.memory_space<vmem>>, vector<1x8x128xf32>,
    %c1_i32 = arith.constant 1 : i32
    %104 = arith.index_cast %c1_i32 : i32 to index
    %c0_50 = arith.constant 0 : index
    %c0_51 = arith.constant 0 : index
    %105 = vector.load %arg14[%104, %c0_50, %c0_51] : memref<16x8x384xf32, #tpu.memory_space<vmem>>, vector<1x8x384xf32>
    %106 = vector.shape_cast %105 : vector<1x8x384xf32> to vector<8x384xf32>
    %cst_52 = arith.constant dense<0.000000e+00> : vector<8x384xf32>
    %107 = tpu.matmul %59, %16, %cst_52 {dimension_numbers = #tpu.dot_dimension_numbers<[1], [0], [0], [1], [0, 0, 1, 1], [], []>} : vector<8x128xf32>, vector<128x384xf32>, vector<8x384xf32> -> vector<8x384xf32>
    %108 = arith.addf %107, %20 : vector<8x384xf32>
    %109 = vector.extract_strided_slice %106 {offsets = [0, 0], sizes = [8, 128], strides = [1, 1]} : vector<8x384xf32> to vector<8x128xf32>
    %110 = vector.extract_strided_slice %108 {offsets = [0, 0], sizes = [8, 128], strides = [1, 1]} : vector<8x384xf32> to vector<8x128xf32>
    %111 = arith.addf %109, %110 : vector<8x128xf32>
    %cst_53 = arith.constant 0.000000e+00 : f32
    %112 = vector.broadcast %cst_53 : f32 to vector<8x128xf32>
    %113 = arith.subf %112, %111 : vector<8x128xf32>
    %114 = math.exp %113 : vector<8x128xf32>
    %cst_54 = arith.constant 1.000000e+00 : f32
    %115 = vector.broadcast %cst_54 : f32 to vector<8x128xf32>
    %116 = arith.addf %115, %114 : vector<8x128xf32>
    %cst_55 = arith.constant 1.000000e+00 : f32
    %117 = vector.broadcast %cst_55 : f32 to vector<8x128xf32>
    %118 = arith.divf %117, %116 : vector<8x128xf32>
    %119 = vector.extract_strided_slice %106 {offsets = [0, 128], sizes = [8, 128], strides = [1, 1]} : vector<8x384xf32> to vector<8x128xf32>
    %120 = vector.extract_strided_slice %108 {offsets = [0, 128], sizes = [8, 128], strides = [1, 1]} : vector<8x384xf32> to vector<8x128xf32>
    %121 = arith.addf %119, %120 : vector<8x128xf32>
    %cst_56 = arith.constant 0.000000e+00 : f32
    %122 = vector.broadcast %cst_56 : f32 to vector<8x128xf32>
    %123 = arith.subf %122, %121 : vector<8x128xf32>
    %124 = math.exp %123 : vector<8x128xf32>
    %cst_57 = arith.constant 1.000000e+00 : f32
    %125 = vector.broadcast %cst_57 : f32 to vector<8x128xf32>
    %126 = arith.addf %125, %124 : vector<8x128xf32>
    %cst_58 = arith.constant 1.000000e+00 : f32
    %127 = vector.broadcast %cst_58 : f32 to vector<8x128xf32>
    %128 = arith.divf %127, %126 : vector<8x128xf32>
    %129 = vector.extract_strided_slice %106 {offsets = [0, 256], sizes = [8, 128], strides = [1, 1]} : vector<8x384xf32> to vector<8x128xf32>
    %130 = vector.extract_strided_slice %108 {offsets = [0, 256], sizes = [8, 128], strides = [1, 1]} : vector<8x384xf32> to vector<8x128xf32>
    %131 = arith.mulf %118, %130 : vector<8x128xf32>
    %132 = arith.addf %129, %131 : vector<8x128xf32>
    %133 = math.tanh %132 : vector<8x128xf32>
    %cst_59 = arith.constant 1.000000e+00 : f32
    %134 = vector.broadcast %cst_59 : f32 to vector<8x128xf32>
    %135 = arith.subf %134, %128 : vector<8x128xf32>
    %136 = arith.mulf %135, %133 : vector<8x128xf32>
    %137 = arith.mulf %128, %59 : vector<8x128xf32>
    %138 = arith.addf %136, %137 : vector<8x128xf32>
    %139 = arith.index_cast %c1_i32 : i32 to index
    %c0_60 = arith.constant 0 : index
    %c0_61 = arith.constant 0 : index
    %140 = vector.load %arg16[%139, %c0_60, %c0_61] : memref<16x8x128xf32, #tpu.memory_space<vmem>>, vector<1x8x128xf32>
    %141 = vector.shape_cast %140 : vector<1x8x128xf32> to vector<8x128xf32>
    %142 = vector.shape_cast %138 : vector<8x128xf32> to vector<1x8x128xf32>
    tpu.vector_store %arg16[%139, %c0_60, %c0_61], %142 {strides = array<i32>} : memref<16x8x128xf32, #tpu.memory_space<vmem>>, vector<1x8x128xf32>,
    %c15_i32_62 = arith.constant 15 : i32
    %143 = arith.subi %c15_i32_62, %c1_i32 : i32
    %144 = arith.index_cast %143 : i32 to index
    %c0_63 = arith.constant 0 : index
    %c0_64 = arith.constant 0 : index
    %145 = vector.load %arg15[%144, %c0_63, %c0_64] : memref<16x8x384xf32, #tpu.memory_space<vmem>>, vector<1x8x384xf32>
    %146 = vector.shape_cast %145 : vector<1x8x384xf32> to vector<8x384xf32>
    %cst_65 = arith.constant dense<0.000000e+00> : vector<8x384xf32>
    %147 = tpu.matmul %99, %17, %cst_65 {dimension_numbers = #tpu.dot_dimension_numbers<[1], [0], [0], [1], [0, 0, 1, 1], [], []>} : vector<8x128xf32>, vector<128x384xf32>, vector<8x384xf32> -> vector<8x384xf32>
    %148 = arith.addf %147, %23 : vector<8x384xf32>
    %149 = vector.extract_strided_slice %146 {offsets = [0, 0], sizes = [8, 128], strides = [1, 1]} : vector<8x384xf32> to vector<8x128xf32>
    %150 = vector.extract_strided_slice %148 {offsets = [0, 0], sizes = [8, 128], strides = [1, 1]} : vector<8x384xf32> to vector<8x128xf32>
    %151 = arith.addf %149, %150 : vector<8x128xf32>
    %cst_66 = arith.constant 0.000000e+00 : f32
    %152 = vector.broadcast %cst_66 : f32 to vector<8x128xf32>
    %153 = arith.subf %152, %151 : vector<8x128xf32>
    %154 = math.exp %153 : vector<8x128xf32>
    %cst_67 = arith.constant 1.000000e+00 : f32
    %155 = vector.broadcast %cst_67 : f32 to vector<8x128xf32>
    %156 = arith.addf %155, %154 : vector<8x128xf32>
    %cst_68 = arith.constant 1.000000e+00 : f32
    %157 = vector.broadcast %cst_68 : f32 to vector<8x128xf32>
    %158 = arith.divf %157, %156 : vector<8x128xf32>
    %159 = vector.extract_strided_slice %146 {offsets = [0, 128], sizes = [8, 128], strides = [1, 1]} : vector<8x384xf32> to vector<8x128xf32>
    %160 = vector.extract_strided_slice %148 {offsets = [0, 128], sizes = [8, 128], strides = [1, 1]} : vector<8x384xf32> to vector<8x128xf32>
    %161 = arith.addf %159, %160 : vector<8x128xf32>
    %cst_69 = arith.constant 0.000000e+00 : f32
    %162 = vector.broadcast %cst_69 : f32 to vector<8x128xf32>
    %163 = arith.subf %162, %161 : vector<8x128xf32>
    %164 = math.exp %163 : vector<8x128xf32>
    %cst_70 = arith.constant 1.000000e+00 : f32
    %165 = vector.broadcast %cst_70 : f32 to vector<8x128xf32>
    %166 = arith.addf %165, %164 : vector<8x128xf32>
    %cst_71 = arith.constant 1.000000e+00 : f32
    %167 = vector.broadcast %cst_71 : f32 to vector<8x128xf32>
    %168 = arith.divf %167, %166 : vector<8x128xf32>
    %169 = vector.extract_strided_slice %146 {offsets = [0, 256], sizes = [8, 128], strides = [1, 1]} : vector<8x384xf32> to vector<8x128xf32>
    %170 = vector.extract_strided_slice %148 {offsets = [0, 256], sizes = [8, 128], strides = [1, 1]} : vector<8x384xf32> to vector<8x128xf32>
    %171 = arith.mulf %158, %170 : vector<8x128xf32>
    %172 = arith.addf %169, %171 : vector<8x128xf32>
    %173 = math.tanh %172 : vector<8x128xf32>
    %cst_72 = arith.constant 1.000000e+00 : f32
    %174 = vector.broadcast %cst_72 : f32 to vector<8x128xf32>
    %175 = arith.subf %174, %168 : vector<8x128xf32>
    %176 = arith.mulf %175, %173 : vector<8x128xf32>
    %177 = arith.mulf %168, %99 : vector<8x128xf32>
    %178 = arith.addf %176, %177 : vector<8x128xf32>
    %179 = arith.index_cast %143 : i32 to index
    %c0_73 = arith.constant 0 : index
    %c0_74 = arith.constant 0 : index
    %180 = vector.load %arg17[%179, %c0_73, %c0_74] : memref<16x8x128xf32, #tpu.memory_space<vmem>>, vector<1x8x128xf32>
    %181 = vector.shape_cast %180 : vector<1x8x128xf32> to vector<8x128xf32>
    %182 = vector.shape_cast %178 : vector<8x128xf32> to vector<1x8x128xf32>
    tpu.vector_store %arg17[%179, %c0_73, %c0_74], %182 {strides = array<i32>} : memref<16x8x128xf32, #tpu.memory_space<vmem>>, vector<1x8x128xf32>,
    %c2_i32 = arith.constant 2 : i32
    %183 = arith.index_cast %c2_i32 : i32 to index
    %c0_75 = arith.constant 0 : index
    %c0_76 = arith.constant 0 : index
    %184 = vector.load %arg14[%183, %c0_75, %c0_76] : memref<16x8x384xf32, #tpu.memory_space<vmem>>, vector<1x8x384xf32>
    %185 = vector.shape_cast %184 : vector<1x8x384xf32> to vector<8x384xf32>
    %cst_77 = arith.constant dense<0.000000e+00> : vector<8x384xf32>
    %186 = tpu.matmul %138, %16, %cst_77 {dimension_numbers = #tpu.dot_dimension_numbers<[1], [0], [0], [1], [0, 0, 1, 1], [], []>} : vector<8x128xf32>, vector<128x384xf32>, vector<8x384xf32> -> vector<8x384xf32>
    %187 = arith.addf %186, %20 : vector<8x384xf32>
    %188 = vector.extract_strided_slice %185 {offsets = [0, 0], sizes = [8, 128], strides = [1, 1]} : vector<8x384xf32> to vector<8x128xf32>
    %189 = vector.extract_strided_slice %187 {offsets = [0, 0], sizes = [8, 128], strides = [1, 1]} : vector<8x384xf32> to vector<8x128xf32>
    %190 = arith.addf %188, %189 : vector<8x128xf32>
    %cst_78 = arith.constant 0.000000e+00 : f32
    %191 = vector.broadcast %cst_78 : f32 to vector<8x128xf32>
    %192 = arith.subf %191, %190 : vector<8x128xf32>
    %193 = math.exp %192 : vector<8x128xf32>
    %cst_79 = arith.constant 1.000000e+00 : f32
    %194 = vector.broadcast %cst_79 : f32 to vector<8x128xf32>
    %195 = arith.addf %194, %193 : vector<8x128xf32>
    %cst_80 = arith.constant 1.000000e+00 : f32
    %196 = vector.broadcast %cst_80 : f32 to vector<8x128xf32>
    %197 = arith.divf %196, %195 : vector<8x128xf32>
    %198 = vector.extract_strided_slice %185 {offsets = [0, 128], sizes = [8, 128], strides = [1, 1]} : vector<8x384xf32> to vector<8x128xf32>
    %199 = vector.extract_strided_slice %187 {offsets = [0, 128], sizes = [8, 128], strides = [1, 1]} : vector<8x384xf32> to vector<8x128xf32>
    %200 = arith.addf %198, %199 : vector<8x128xf32>
    %cst_81 = arith.constant 0.000000e+00 : f32
    %201 = vector.broadcast %cst_81 : f32 to vector<8x128xf32>
    %202 = arith.subf %201, %200 : vector<8x128xf32>
    %203 = math.exp %202 : vector<8x128xf32>
    %cst_82 = arith.constant 1.000000e+00 : f32
    %204 = vector.broadcast %cst_82 : f32 to vector<8x128xf32>
    %205 = arith.addf %204, %203 : vector<8x128xf32>
    %cst_83 = arith.constant 1.000000e+00 : f32
    %206 = vector.broadcast %cst_83 : f32 to vector<8x128xf32>
    %207 = arith.divf %206, %205 : vector<8x128xf32>
    %208 = vector.extract_strided_slice %185 {offsets = [0, 256], sizes = [8, 128], strides = [1, 1]} : vector<8x384xf32> to vector<8x128xf32>
    %209 = vector.extract_strided_slice %187 {offsets = [0, 256], sizes = [8, 128], strides = [1, 1]} : vector<8x384xf32> to vector<8x128xf32>
    %210 = arith.mulf %197, %209 : vector<8x128xf32>
    %211 = arith.addf %208, %210 : vector<8x128xf32>
    %212 = math.tanh %211 : vector<8x128xf32>
    %cst_84 = arith.constant 1.000000e+00 : f32
    %213 = vector.broadcast %cst_84 : f32 to vector<8x128xf32>
    %214 = arith.subf %213, %207 : vector<8x128xf32>
    %215 = arith.mulf %214, %212 : vector<8x128xf32>
    %216 = arith.mulf %207, %138 : vector<8x128xf32>
    %217 = arith.addf %215, %216 : vector<8x128xf32>
    %218 = arith.index_cast %c2_i32 : i32 to index
    %c0_85 = arith.constant 0 : index
    %c0_86 = arith.constant 0 : index
    %219 = vector.load %arg16[%218, %c0_85, %c0_86] : memref<16x8x128xf32, #tpu.memory_space<vmem>>, vector<1x8x128xf32>
    %220 = vector.shape_cast %219 : vector<1x8x128xf32> to vector<8x128xf32>
    %221 = vector.shape_cast %217 : vector<8x128xf32> to vector<1x8x128xf32>
    tpu.vector_store %arg16[%218, %c0_85, %c0_86], %221 {strides = array<i32>} : memref<16x8x128xf32, #tpu.memory_space<vmem>>, vector<1x8x128xf32>,
    %c15_i32_87 = arith.constant 15 : i32
    %222 = arith.subi %c15_i32_87, %c2_i32 : i32
    %223 = arith.index_cast %222 : i32 to index
    %c0_88 = arith.constant 0 : index
    %c0_89 = arith.constant 0 : index
    %224 = vector.load %arg15[%223, %c0_88, %c0_89] : memref<16x8x384xf32, #tpu.memory_space<vmem>>, vector<1x8x384xf32>
    %225 = vector.shape_cast %224 : vector<1x8x384xf32> to vector<8x384xf32>
    %cst_90 = arith.constant dense<0.000000e+00> : vector<8x384xf32>
    %226 = tpu.matmul %178, %17, %cst_90 {dimension_numbers = #tpu.dot_dimension_numbers<[1], [0], [0], [1], [0, 0, 1, 1], [], []>} : vector<8x128xf32>, vector<128x384xf32>, vector<8x384xf32> -> vector<8x384xf32>
    %227 = arith.addf %226, %23 : vector<8x384xf32>
    %228 = vector.extract_strided_slice %225 {offsets = [0, 0], sizes = [8, 128], strides = [1, 1]} : vector<8x384xf32> to vector<8x128xf32>
    %229 = vector.extract_strided_slice %227 {offsets = [0, 0], sizes = [8, 128], strides = [1, 1]} : vector<8x384xf32> to vector<8x128xf32>
    %230 = arith.addf %228, %229 : vector<8x128xf32>
    %cst_91 = arith.constant 0.000000e+00 : f32
    %231 = vector.broadcast %cst_91 : f32 to vector<8x128xf32>
    %232 = arith.subf %231, %230 : vector<8x128xf32>
    %233 = math.exp %232 : vector<8x128xf32>
    %cst_92 = arith.constant 1.000000e+00 : f32
    %234 = vector.broadcast %cst_92 : f32 to vector<8x128xf32>
    %235 = arith.addf %234, %233 : vector<8x128xf32>
    %cst_93 = arith.constant 1.000000e+00 : f32
    %236 = vector.broadcast %cst_93 : f32 to vector<8x128xf32>
    %237 = arith.divf %236, %235 : vector<8x128xf32>
    %238 = vector.extract_strided_slice %225 {offsets = [0, 128], sizes = [8, 128], strides = [1, 1]} : vector<8x384xf32> to vector<8x128xf32>
    %239 = vector.extract_strided_slice %227 {offsets = [0, 128], sizes = [8, 128], strides = [1, 1]} : vector<8x384xf32> to vector<8x128xf32>
    %240 = arith.addf %238, %239 : vector<8x128xf32>
    %cst_94 = arith.constant 0.000000e+00 : f32
    %241 = vector.broadcast %cst_94 : f32 to vector<8x128xf32>
    %242 = arith.subf %241, %240 : vector<8x128xf32>
    %243 = math.exp %242 : vector<8x128xf32>
    %cst_95 = arith.constant 1.000000e+00 : f32
    %244 = vector.broadcast %cst_95 : f32 to vector<8x128xf32>
    %245 = arith.addf %244, %243 : vector<8x128xf32>
    %cst_96 = arith.constant 1.000000e+00 : f32
    %246 = vector.broadcast %cst_96 : f32 to vector<8x128xf32>
    %247 = arith.divf %246, %245 : vector<8x128xf32>
    %248 = vector.extract_strided_slice %225 {offsets = [0, 256], sizes = [8, 128], strides = [1, 1]} : vector<8x384xf32> to vector<8x128xf32>
    %249 = vector.extract_strided_slice %227 {offsets = [0, 256], sizes = [8, 128], strides = [1, 1]} : vector<8x384xf32> to vector<8x128xf32>
    %250 = arith.mulf %237, %249 : vector<8x128xf32>
    %251 = arith.addf %248, %250 : vector<8x128xf32>
    %252 = math.tanh %251 : vector<8x128xf32>
    %cst_97 = arith.constant 1.000000e+00 : f32
    %253 = vector.broadcast %cst_97 : f32 to vector<8x128xf32>
    %254 = arith.subf %253, %247 : vector<8x128xf32>
    %255 = arith.mulf %254, %252 : vector<8x128xf32>
    %256 = arith.mulf %247, %178 : vector<8x128xf32>
    %257 = arith.addf %255, %256 : vector<8x128xf32>
    %258 = arith.index_cast %222 : i32 to index
    %c0_98 = arith.constant 0 : index
    %c0_99 = arith.constant 0 : index
    %259 = vector.load %arg17[%258, %c0_98, %c0_99] : memref<16x8x128xf32, #tpu.memory_space<vmem>>, vector<1x8x128xf32>
    %260 = vector.shape_cast %259 : vector<1x8x128xf32> to vector<8x128xf32>
    %261 = vector.shape_cast %257 : vector<8x128xf32> to vector<1x8x128xf32>
    tpu.vector_store %arg17[%258, %c0_98, %c0_99], %261 {strides = array<i32>} : memref<16x8x128xf32, #tpu.memory_space<vmem>>, vector<1x8x128xf32>,
    %c3_i32 = arith.constant 3 : i32
    %262 = arith.index_cast %c3_i32 : i32 to index
    %c0_100 = arith.constant 0 : index
    %c0_101 = arith.constant 0 : index
    %263 = vector.load %arg14[%262, %c0_100, %c0_101] : memref<16x8x384xf32, #tpu.memory_space<vmem>>, vector<1x8x384xf32>
    %264 = vector.shape_cast %263 : vector<1x8x384xf32> to vector<8x384xf32>
    %cst_102 = arith.constant dense<0.000000e+00> : vector<8x384xf32>
    %265 = tpu.matmul %217, %16, %cst_102 {dimension_numbers = #tpu.dot_dimension_numbers<[1], [0], [0], [1], [0, 0, 1, 1], [], []>} : vector<8x128xf32>, vector<128x384xf32>, vector<8x384xf32> -> vector<8x384xf32>
    %266 = arith.addf %265, %20 : vector<8x384xf32>
    %267 = vector.extract_strided_slice %264 {offsets = [0, 0], sizes = [8, 128], strides = [1, 1]} : vector<8x384xf32> to vector<8x128xf32>
    %268 = vector.extract_strided_slice %266 {offsets = [0, 0], sizes = [8, 128], strides = [1, 1]} : vector<8x384xf32> to vector<8x128xf32>
    %269 = arith.addf %267, %268 : vector<8x128xf32>
    %cst_103 = arith.constant 0.000000e+00 : f32
    %270 = vector.broadcast %cst_103 : f32 to vector<8x128xf32>
    %271 = arith.subf %270, %269 : vector<8x128xf32>
    %272 = math.exp %271 : vector<8x128xf32>
    %cst_104 = arith.constant 1.000000e+00 : f32
    %273 = vector.broadcast %cst_104 : f32 to vector<8x128xf32>
    %274 = arith.addf %273, %272 : vector<8x128xf32>
    %cst_105 = arith.constant 1.000000e+00 : f32
    %275 = vector.broadcast %cst_105 : f32 to vector<8x128xf32>
    %276 = arith.divf %275, %274 : vector<8x128xf32>
    %277 = vector.extract_strided_slice %264 {offsets = [0, 128], sizes = [8, 128], strides = [1, 1]} : vector<8x384xf32> to vector<8x128xf32>
    %278 = vector.extract_strided_slice %266 {offsets = [0, 128], sizes = [8, 128], strides = [1, 1]} : vector<8x384xf32> to vector<8x128xf32>
    %279 = arith.addf %277, %278 : vector<8x128xf32>
    %cst_106 = arith.constant 0.000000e+00 : f32
    %280 = vector.broadcast %cst_106 : f32 to vector<8x128xf32>
    %281 = arith.subf %280, %279 : vector<8x128xf32>
    %282 = math.exp %281 : vector<8x128xf32>
    %cst_107 = arith.constant 1.000000e+00 : f32
    %283 = vector.broadcast %cst_107 : f32 to vector<8x128xf32>
    %284 = arith.addf %283, %282 : vector<8x128xf32>
    %cst_108 = arith.constant 1.000000e+00 : f32
    %285 = vector.broadcast %cst_108 : f32 to vector<8x128xf32>
    %286 = arith.divf %285, %284 : vector<8x128xf32>
    %287 = vector.extract_strided_slice %264 {offsets = [0, 256], sizes = [8, 128], strides = [1, 1]} : vector<8x384xf32> to vector<8x128xf32>
    %288 = vector.extract_strided_slice %266 {offsets = [0, 256], sizes = [8, 128], strides = [1, 1]} : vector<8x384xf32> to vector<8x128xf32>
    %289 = arith.mulf %276, %288 : vector<8x128xf32>
    %290 = arith.addf %287, %289 : vector<8x128xf32>
    %291 = math.tanh %290 : vector<8x128xf32>
    %cst_109 = arith.constant 1.000000e+00 : f32
    %292 = vector.broadcast %cst_109 : f32 to vector<8x128xf32>
    %293 = arith.subf %292, %286 : vector<8x128xf32>
    %294 = arith.mulf %293, %291 : vector<8x128xf32>
    %295 = arith.mulf %286, %217 : vector<8x128xf32>
    %296 = arith.addf %294, %295 : vector<8x128xf32>
    %297 = arith.index_cast %c3_i32 : i32 to index
    %c0_110 = arith.constant 0 : index
    %c0_111 = arith.constant 0 : index
    %298 = vector.load %arg16[%297, %c0_110, %c0_111] : memref<16x8x128xf32, #tpu.memory_space<vmem>>, vector<1x8x128xf32>
    %299 = vector.shape_cast %298 : vector<1x8x128xf32> to vector<8x128xf32>
    %300 = vector.shape_cast %296 : vector<8x128xf32> to vector<1x8x128xf32>
    tpu.vector_store %arg16[%297, %c0_110, %c0_111], %300 {strides = array<i32>} : memref<16x8x128xf32, #tpu.memory_space<vmem>>, vector<1x8x128xf32>,
    %c15_i32_112 = arith.constant 15 : i32
    %301 = arith.subi %c15_i32_112, %c3_i32 : i32
    %302 = arith.index_cast %301 : i32 to index
    %c0_113 = arith.constant 0 : index
    %c0_114 = arith.constant 0 : index
    %303 = vector.load %arg15[%302, %c0_113, %c0_114] : memref<16x8x384xf32, #tpu.memory_space<vmem>>, vector<1x8x384xf32>
    %304 = vector.shape_cast %303 : vector<1x8x384xf32> to vector<8x384xf32>
    %cst_115 = arith.constant dense<0.000000e+00> : vector<8x384xf32>
    %305 = tpu.matmul %257, %17, %cst_115 {dimension_numbers = #tpu.dot_dimension_numbers<[1], [0], [0], [1], [0, 0, 1, 1], [], []>} : vector<8x128xf32>, vector<128x384xf32>, vector<8x384xf32> -> vector<8x384xf32>
    %306 = arith.addf %305, %23 : vector<8x384xf32>
    %307 = vector.extract_strided_slice %304 {offsets = [0, 0], sizes = [8, 128], strides = [1, 1]} : vector<8x384xf32> to vector<8x128xf32>
    %308 = vector.extract_strided_slice %306 {offsets = [0, 0], sizes = [8, 128], strides = [1, 1]} : vector<8x384xf32> to vector<8x128xf32>
    %309 = arith.addf %307, %308 : vector<8x128xf32>
    %cst_116 = arith.constant 0.000000e+00 : f32
    %310 = vector.broadcast %cst_116 : f32 to vector<8x128xf32>
    %311 = arith.subf %310, %309 : vector<8x128xf32>
    %312 = math.exp %311 : vector<8x128xf32>
    %cst_117 = arith.constant 1.000000e+00 : f32
    %313 = vector.broadcast %cst_117 : f32 to vector<8x128xf32>
    %314 = arith.addf %313, %312 : vector<8x128xf32>
    %cst_118 = arith.constant 1.000000e+00 : f32
    %315 = vector.broadcast %cst_118 : f32 to vector<8x128xf32>
    %316 = arith.divf %315, %314 : vector<8x128xf32>
    %317 = vector.extract_strided_slice %304 {offsets = [0, 128], sizes = [8, 128], strides = [1, 1]} : vector<8x384xf32> to vector<8x128xf32>
    %318 = vector.extract_strided_slice %306 {offsets = [0, 128], sizes = [8, 128], strides = [1, 1]} : vector<8x384xf32> to vector<8x128xf32>
    %319 = arith.addf %317, %318 : vector<8x128xf32>
    %cst_119 = arith.constant 0.000000e+00 : f32
    %320 = vector.broadcast %cst_119 : f32 to vector<8x128xf32>
    %321 = arith.subf %320, %319 : vector<8x128xf32>
    %322 = math.exp %321 : vector<8x128xf32>
    %cst_120 = arith.constant 1.000000e+00 : f32
    %323 = vector.broadcast %cst_120 : f32 to vector<8x128xf32>
    %324 = arith.addf %323, %322 : vector<8x128xf32>
    %cst_121 = arith.constant 1.000000e+00 : f32
    %325 = vector.broadcast %cst_121 : f32 to vector<8x128xf32>
    %326 = arith.divf %325, %324 : vector<8x128xf32>
    %327 = vector.extract_strided_slice %304 {offsets = [0, 256], sizes = [8, 128], strides = [1, 1]} : vector<8x384xf32> to vector<8x128xf32>
    %328 = vector.extract_strided_slice %306 {offsets = [0, 256], sizes = [8, 128], strides = [1, 1]} : vector<8x384xf32> to vector<8x128xf32>
    %329 = arith.mulf %316, %328 : vector<8x128xf32>
    %330 = arith.addf %327, %329 : vector<8x128xf32>
    %331 = math.tanh %330 : vector<8x128xf32>
    %cst_122 = arith.constant 1.000000e+00 : f32
    %332 = vector.broadcast %cst_122 : f32 to vector<8x128xf32>
    %333 = arith.subf %332, %326 : vector<8x128xf32>
    %334 = arith.mulf %333, %331 : vector<8x128xf32>
    %335 = arith.mulf %326, %257 : vector<8x128xf32>
    %336 = arith.addf %334, %335 : vector<8x128xf32>
    %337 = arith.index_cast %301 : i32 to index
    %c0_123 = arith.constant 0 : index
    %c0_124 = arith.constant 0 : index
    %338 = vector.load %arg17[%337, %c0_123, %c0_124] : memref<16x8x128xf32, #tpu.memory_space<vmem>>, vector<1x8x128xf32>
    %339 = vector.shape_cast %338 : vector<1x8x128xf32> to vector<8x128xf32>
    %340 = vector.shape_cast %336 : vector<8x128xf32> to vector<1x8x128xf32>
    tpu.vector_store %arg17[%337, %c0_123, %c0_124], %340 {strides = array<i32>} : memref<16x8x128xf32, #tpu.memory_space<vmem>>, vector<1x8x128xf32>,
    %c4_i32 = arith.constant 4 : i32
    %341 = arith.index_cast %c4_i32 : i32 to index
    %c0_125 = arith.constant 0 : index
    %c0_126 = arith.constant 0 : index
    %342 = vector.load %arg14[%341, %c0_125, %c0_126] : memref<16x8x384xf32, #tpu.memory_space<vmem>>, vector<1x8x384xf32>
    %343 = vector.shape_cast %342 : vector<1x8x384xf32> to vector<8x384xf32>
    %cst_127 = arith.constant dense<0.000000e+00> : vector<8x384xf32>
    %344 = tpu.matmul %296, %16, %cst_127 {dimension_numbers = #tpu.dot_dimension_numbers<[1], [0], [0], [1], [0, 0, 1, 1], [], []>} : vector<8x128xf32>, vector<128x384xf32>, vector<8x384xf32> -> vector<8x384xf32>
    %345 = arith.addf %344, %20 : vector<8x384xf32>
    %346 = vector.extract_strided_slice %343 {offsets = [0, 0], sizes = [8, 128], strides = [1, 1]} : vector<8x384xf32> to vector<8x128xf32>
    %347 = vector.extract_strided_slice %345 {offsets = [0, 0], sizes = [8, 128], strides = [1, 1]} : vector<8x384xf32> to vector<8x128xf32>
    %348 = arith.addf %346, %347 : vector<8x128xf32>
    %cst_128 = arith.constant 0.000000e+00 : f32
    %349 = vector.broadcast %cst_128 : f32 to vector<8x128xf32>
    %350 = arith.subf %349, %348 : vector<8x128xf32>
    %351 = math.exp %350 : vector<8x128xf32>
    %cst_129 = arith.constant 1.000000e+00 : f32
    %352 = vector.broadcast %cst_129 : f32 to vector<8x128xf32>
    %353 = arith.addf %352, %351 : vector<8x128xf32>
    %cst_130 = arith.constant 1.000000e+00 : f32
    %354 = vector.broadcast %cst_130 : f32 to vector<8x128xf32>
    %355 = arith.divf %354, %353 : vector<8x128xf32>
    %356 = vector.extract_strided_slice %343 {offsets = [0, 128], sizes = [8, 128], strides = [1, 1]} : vector<8x384xf32> to vector<8x128xf32>
    %357 = vector.extract_strided_slice %345 {offsets = [0, 128], sizes = [8, 128], strides = [1, 1]} : vector<8x384xf32> to vector<8x128xf32>
    %358 = arith.addf %356, %357 : vector<8x128xf32>
    %cst_131 = arith.constant 0.000000e+00 : f32
    %359 = vector.broadcast %cst_131 : f32 to vector<8x128xf32>
    %360 = arith.subf %359, %358 : vector<8x128xf32>
    %361 = math.exp %360 : vector<8x128xf32>
    %cst_132 = arith.constant 1.000000e+00 : f32
    %362 = vector.broadcast %cst_132 : f32 to vector<8x128xf32>
    %363 = arith.addf %362, %361 : vector<8x128xf32>
    %cst_133 = arith.constant 1.000000e+00 : f32
    %364 = vector.broadcast %cst_133 : f32 to vector<8x128xf32>
    %365 = arith.divf %364, %363 : vector<8x128xf32>
    %366 = vector.extract_strided_slice %343 {offsets = [0, 256], sizes = [8, 128], strides = [1, 1]} : vector<8x384xf32> to vector<8x128xf32>
    %367 = vector.extract_strided_slice %345 {offsets = [0, 256], sizes = [8, 128], strides = [1, 1]} : vector<8x384xf32> to vector<8x128xf32>
    %368 = arith.mulf %355, %367 : vector<8x128xf32>
    %369 = arith.addf %366, %368 : vector<8x128xf32>
    %370 = math.tanh %369 : vector<8x128xf32>
    %cst_134 = arith.constant 1.000000e+00 : f32
    %371 = vector.broadcast %cst_134 : f32 to vector<8x128xf32>
    %372 = arith.subf %371, %365 : vector<8x128xf32>
    %373 = arith.mulf %372, %370 : vector<8x128xf32>
    %374 = arith.mulf %365, %296 : vector<8x128xf32>
    %375 = arith.addf %373, %374 : vector<8x128xf32>
    %376 = arith.index_cast %c4_i32 : i32 to index
    %c0_135 = arith.constant 0 : index
    %c0_136 = arith.constant 0 : index
    %377 = vector.load %arg16[%376, %c0_135, %c0_136] : memref<16x8x128xf32, #tpu.memory_space<vmem>>, vector<1x8x128xf32>
    %378 = vector.shape_cast %377 : vector<1x8x128xf32> to vector<8x128xf32>
    %379 = vector.shape_cast %375 : vector<8x128xf32> to vector<1x8x128xf32>
    tpu.vector_store %arg16[%376, %c0_135, %c0_136], %379 {strides = array<i32>} : memref<16x8x128xf32, #tpu.memory_space<vmem>>, vector<1x8x128xf32>,
    %c15_i32_137 = arith.constant 15 : i32
    %380 = arith.subi %c15_i32_137, %c4_i32 : i32
    %381 = arith.index_cast %380 : i32 to index
    %c0_138 = arith.constant 0 : index
    %c0_139 = arith.constant 0 : index
    %382 = vector.load %arg15[%381, %c0_138, %c0_139] : memref<16x8x384xf32, #tpu.memory_space<vmem>>, vector<1x8x384xf32>
    %383 = vector.shape_cast %382 : vector<1x8x384xf32> to vector<8x384xf32>
    %cst_140 = arith.constant dense<0.000000e+00> : vector<8x384xf32>
    %384 = tpu.matmul %336, %17, %cst_140 {dimension_numbers = #tpu.dot_dimension_numbers<[1], [0], [0], [1], [0, 0, 1, 1], [], []>} : vector<8x128xf32>, vector<128x384xf32>, vector<8x384xf32> -> vector<8x384xf32>
    %385 = arith.addf %384, %23 : vector<8x384xf32>
    %386 = vector.extract_strided_slice %383 {offsets = [0, 0], sizes = [8, 128], strides = [1, 1]} : vector<8x384xf32> to vector<8x128xf32>
    %387 = vector.extract_strided_slice %385 {offsets = [0, 0], sizes = [8, 128], strides = [1, 1]} : vector<8x384xf32> to vector<8x128xf32>
    %388 = arith.addf %386, %387 : vector<8x128xf32>
    %cst_141 = arith.constant 0.000000e+00 : f32
    %389 = vector.broadcast %cst_141 : f32 to vector<8x128xf32>
    %390 = arith.subf %389, %388 : vector<8x128xf32>
    %391 = math.exp %390 : vector<8x128xf32>
    %cst_142 = arith.constant 1.000000e+00 : f32
    %392 = vector.broadcast %cst_142 : f32 to vector<8x128xf32>
    %393 = arith.addf %392, %391 : vector<8x128xf32>
    %cst_143 = arith.constant 1.000000e+00 : f32
    %394 = vector.broadcast %cst_143 : f32 to vector<8x128xf32>
    %395 = arith.divf %394, %393 : vector<8x128xf32>
    %396 = vector.extract_strided_slice %383 {offsets = [0, 128], sizes = [8, 128], strides = [1, 1]} : vector<8x384xf32> to vector<8x128xf32>
    %397 = vector.extract_strided_slice %385 {offsets = [0, 128], sizes = [8, 128], strides = [1, 1]} : vector<8x384xf32> to vector<8x128xf32>
    %398 = arith.addf %396, %397 : vector<8x128xf32>
    %cst_144 = arith.constant 0.000000e+00 : f32
    %399 = vector.broadcast %cst_144 : f32 to vector<8x128xf32>
    %400 = arith.subf %399, %398 : vector<8x128xf32>
    %401 = math.exp %400 : vector<8x128xf32>
    %cst_145 = arith.constant 1.000000e+00 : f32
    %402 = vector.broadcast %cst_145 : f32 to vector<8x128xf32>
    %403 = arith.addf %402, %401 : vector<8x128xf32>
    %cst_146 = arith.constant 1.000000e+00 : f32
    %404 = vector.broadcast %cst_146 : f32 to vector<8x128xf32>
    %405 = arith.divf %404, %403 : vector<8x128xf32>
    %406 = vector.extract_strided_slice %383 {offsets = [0, 256], sizes = [8, 128], strides = [1, 1]} : vector<8x384xf32> to vector<8x128xf32>
    %407 = vector.extract_strided_slice %385 {offsets = [0, 256], sizes = [8, 128], strides = [1, 1]} : vector<8x384xf32> to vector<8x128xf32>
    %408 = arith.mulf %395, %407 : vector<8x128xf32>
    %409 = arith.addf %406, %408 : vector<8x128xf32>
    %410 = math.tanh %409 : vector<8x128xf32>
    %cst_147 = arith.constant 1.000000e+00 : f32
    %411 = vector.broadcast %cst_147 : f32 to vector<8x128xf32>
    %412 = arith.subf %411, %405 : vector<8x128xf32>
    %413 = arith.mulf %412, %410 : vector<8x128xf32>
    %414 = arith.mulf %405, %336 : vector<8x128xf32>
    %415 = arith.addf %413, %414 : vector<8x128xf32>
    %416 = arith.index_cast %380 : i32 to index
    %c0_148 = arith.constant 0 : index
    %c0_149 = arith.constant 0 : index
    %417 = vector.load %arg17[%416, %c0_148, %c0_149] : memref<16x8x128xf32, #tpu.memory_space<vmem>>, vector<1x8x128xf32>
    %418 = vector.shape_cast %417 : vector<1x8x128xf32> to vector<8x128xf32>
    %419 = vector.shape_cast %415 : vector<8x128xf32> to vector<1x8x128xf32>
    tpu.vector_store %arg17[%416, %c0_148, %c0_149], %419 {strides = array<i32>} : memref<16x8x128xf32, #tpu.memory_space<vmem>>, vector<1x8x128xf32>,
    %c5_i32 = arith.constant 5 : i32
    %420 = arith.index_cast %c5_i32 : i32 to index
    %c0_150 = arith.constant 0 : index
    %c0_151 = arith.constant 0 : index
    %421 = vector.load %arg14[%420, %c0_150, %c0_151] : memref<16x8x384xf32, #tpu.memory_space<vmem>>, vector<1x8x384xf32>
    %422 = vector.shape_cast %421 : vector<1x8x384xf32> to vector<8x384xf32>
    %cst_152 = arith.constant dense<0.000000e+00> : vector<8x384xf32>
    %423 = tpu.matmul %375, %16, %cst_152 {dimension_numbers = #tpu.dot_dimension_numbers<[1], [0], [0], [1], [0, 0, 1, 1], [], []>} : vector<8x128xf32>, vector<128x384xf32>, vector<8x384xf32> -> vector<8x384xf32>
    %424 = arith.addf %423, %20 : vector<8x384xf32>
    %425 = vector.extract_strided_slice %422 {offsets = [0, 0], sizes = [8, 128], strides = [1, 1]} : vector<8x384xf32> to vector<8x128xf32>
    %426 = vector.extract_strided_slice %424 {offsets = [0, 0], sizes = [8, 128], strides = [1, 1]} : vector<8x384xf32> to vector<8x128xf32>
    %427 = arith.addf %425, %426 : vector<8x128xf32>
    %cst_153 = arith.constant 0.000000e+00 : f32
    %428 = vector.broadcast %cst_153 : f32 to vector<8x128xf32>
    %429 = arith.subf %428, %427 : vector<8x128xf32>
    %430 = math.exp %429 : vector<8x128xf32>
    %cst_154 = arith.constant 1.000000e+00 : f32
    %431 = vector.broadcast %cst_154 : f32 to vector<8x128xf32>
    %432 = arith.addf %431, %430 : vector<8x128xf32>
    %cst_155 = arith.constant 1.000000e+00 : f32
    %433 = vector.broadcast %cst_155 : f32 to vector<8x128xf32>
    %434 = arith.divf %433, %432 : vector<8x128xf32>
    %435 = vector.extract_strided_slice %422 {offsets = [0, 128], sizes = [8, 128], strides = [1, 1]} : vector<8x384xf32> to vector<8x128xf32>
    %436 = vector.extract_strided_slice %424 {offsets = [0, 128], sizes = [8, 128], strides = [1, 1]} : vector<8x384xf32> to vector<8x128xf32>
    %437 = arith.addf %435, %436 : vector<8x128xf32>
    %cst_156 = arith.constant 0.000000e+00 : f32
    %438 = vector.broadcast %cst_156 : f32 to vector<8x128xf32>
    %439 = arith.subf %438, %437 : vector<8x128xf32>
    %440 = math.exp %439 : vector<8x128xf32>
    %cst_157 = arith.constant 1.000000e+00 : f32
    %441 = vector.broadcast %cst_157 : f32 to vector<8x128xf32>
    %442 = arith.addf %441, %440 : vector<8x128xf32>
    %cst_158 = arith.constant 1.000000e+00 : f32
    %443 = vector.broadcast %cst_158 : f32 to vector<8x128xf32>
    %444 = arith.divf %443, %442 : vector<8x128xf32>
    %445 = vector.extract_strided_slice %422 {offsets = [0, 256], sizes = [8, 128], strides = [1, 1]} : vector<8x384xf32> to vector<8x128xf32>
    %446 = vector.extract_strided_slice %424 {offsets = [0, 256], sizes = [8, 128], strides = [1, 1]} : vector<8x384xf32> to vector<8x128xf32>
    %447 = arith.mulf %434, %446 : vector<8x128xf32>
    %448 = arith.addf %445, %447 : vector<8x128xf32>
    %449 = math.tanh %448 : vector<8x128xf32>
    %cst_159 = arith.constant 1.000000e+00 : f32
    %450 = vector.broadcast %cst_159 : f32 to vector<8x128xf32>
    %451 = arith.subf %450, %444 : vector<8x128xf32>
    %452 = arith.mulf %451, %449 : vector<8x128xf32>
    %453 = arith.mulf %444, %375 : vector<8x128xf32>
    %454 = arith.addf %452, %453 : vector<8x128xf32>
    %455 = arith.index_cast %c5_i32 : i32 to index
    %c0_160 = arith.constant 0 : index
    %c0_161 = arith.constant 0 : index
    %456 = vector.load %arg16[%455, %c0_160, %c0_161] : memref<16x8x128xf32, #tpu.memory_space<vmem>>, vector<1x8x128xf32>
    %457 = vector.shape_cast %456 : vector<1x8x128xf32> to vector<8x128xf32>
    %458 = vector.shape_cast %454 : vector<8x128xf32> to vector<1x8x128xf32>
    tpu.vector_store %arg16[%455, %c0_160, %c0_161], %458 {strides = array<i32>} : memref<16x8x128xf32, #tpu.memory_space<vmem>>, vector<1x8x128xf32>,
    %c15_i32_162 = arith.constant 15 : i32
    %459 = arith.subi %c15_i32_162, %c5_i32 : i32
    %460 = arith.index_cast %459 : i32 to index
    %c0_163 = arith.constant 0 : index
    %c0_164 = arith.constant 0 : index
    %461 = vector.load %arg15[%460, %c0_163, %c0_164] : memref<16x8x384xf32, #tpu.memory_space<vmem>>, vector<1x8x384xf32>
    %462 = vector.shape_cast %461 : vector<1x8x384xf32> to vector<8x384xf32>
    %cst_165 = arith.constant dense<0.000000e+00> : vector<8x384xf32>
    %463 = tpu.matmul %415, %17, %cst_165 {dimension_numbers = #tpu.dot_dimension_numbers<[1], [0], [0], [1], [0, 0, 1, 1], [], []>} : vector<8x128xf32>, vector<128x384xf32>, vector<8x384xf32> -> vector<8x384xf32>
    %464 = arith.addf %463, %23 : vector<8x384xf32>
    %465 = vector.extract_strided_slice %462 {offsets = [0, 0], sizes = [8, 128], strides = [1, 1]} : vector<8x384xf32> to vector<8x128xf32>
    %466 = vector.extract_strided_slice %464 {offsets = [0, 0], sizes = [8, 128], strides = [1, 1]} : vector<8x384xf32> to vector<8x128xf32>
    %467 = arith.addf %465, %466 : vector<8x128xf32>
    %cst_166 = arith.constant 0.000000e+00 : f32
    %468 = vector.broadcast %cst_166 : f32 to vector<8x128xf32>
    %469 = arith.subf %468, %467 : vector<8x128xf32>
    %470 = math.exp %469 : vector<8x128xf32>
    %cst_167 = arith.constant 1.000000e+00 : f32
    %471 = vector.broadcast %cst_167 : f32 to vector<8x128xf32>
    %472 = arith.addf %471, %470 : vector<8x128xf32>
    %cst_168 = arith.constant 1.000000e+00 : f32
    %473 = vector.broadcast %cst_168 : f32 to vector<8x128xf32>
    %474 = arith.divf %473, %472 : vector<8x128xf32>
    %475 = vector.extract_strided_slice %462 {offsets = [0, 128], sizes = [8, 128], strides = [1, 1]} : vector<8x384xf32> to vector<8x128xf32>
    %476 = vector.extract_strided_slice %464 {offsets = [0, 128], sizes = [8, 128], strides = [1, 1]} : vector<8x384xf32> to vector<8x128xf32>
    %477 = arith.addf %475, %476 : vector<8x128xf32>
    %cst_169 = arith.constant 0.000000e+00 : f32
    %478 = vector.broadcast %cst_169 : f32 to vector<8x128xf32>
    %479 = arith.subf %478, %477 : vector<8x128xf32>
    %480 = math.exp %479 : vector<8x128xf32>
    %cst_170 = arith.constant 1.000000e+00 : f32
    %481 = vector.broadcast %cst_170 : f32 to vector<8x128xf32>
    %482 = arith.addf %481, %480 : vector<8x128xf32>
    %cst_171 = arith.constant 1.000000e+00 : f32
    %483 = vector.broadcast %cst_171 : f32 to vector<8x128xf32>
    %484 = arith.divf %483, %482 : vector<8x128xf32>
    %485 = vector.extract_strided_slice %462 {offsets = [0, 256], sizes = [8, 128], strides = [1, 1]} : vector<8x384xf32> to vector<8x128xf32>
    %486 = vector.extract_strided_slice %464 {offsets = [0, 256], sizes = [8, 128], strides = [1, 1]} : vector<8x384xf32> to vector<8x128xf32>
    %487 = arith.mulf %474, %486 : vector<8x128xf32>
    %488 = arith.addf %485, %487 : vector<8x128xf32>
    %489 = math.tanh %488 : vector<8x128xf32>
    %cst_172 = arith.constant 1.000000e+00 : f32
    %490 = vector.broadcast %cst_172 : f32 to vector<8x128xf32>
    %491 = arith.subf %490, %484 : vector<8x128xf32>
    %492 = arith.mulf %491, %489 : vector<8x128xf32>
    %493 = arith.mulf %484, %415 : vector<8x128xf32>
    %494 = arith.addf %492, %493 : vector<8x128xf32>
    %495 = arith.index_cast %459 : i32 to index
    %c0_173 = arith.constant 0 : index
    %c0_174 = arith.constant 0 : index
    %496 = vector.load %arg17[%495, %c0_173, %c0_174] : memref<16x8x128xf32, #tpu.memory_space<vmem>>, vector<1x8x128xf32>
    %497 = vector.shape_cast %496 : vector<1x8x128xf32> to vector<8x128xf32>
    %498 = vector.shape_cast %494 : vector<8x128xf32> to vector<1x8x128xf32>
    tpu.vector_store %arg17[%495, %c0_173, %c0_174], %498 {strides = array<i32>} : memref<16x8x128xf32, #tpu.memory_space<vmem>>, vector<1x8x128xf32>,
    %c6_i32 = arith.constant 6 : i32
    %499 = arith.index_cast %c6_i32 : i32 to index
    %c0_175 = arith.constant 0 : index
    %c0_176 = arith.constant 0 : index
    %500 = vector.load %arg14[%499, %c0_175, %c0_176] : memref<16x8x384xf32, #tpu.memory_space<vmem>>, vector<1x8x384xf32>
    %501 = vector.shape_cast %500 : vector<1x8x384xf32> to vector<8x384xf32>
    %cst_177 = arith.constant dense<0.000000e+00> : vector<8x384xf32>
    %502 = tpu.matmul %454, %16, %cst_177 {dimension_numbers = #tpu.dot_dimension_numbers<[1], [0], [0], [1], [0, 0, 1, 1], [], []>} : vector<8x128xf32>, vector<128x384xf32>, vector<8x384xf32> -> vector<8x384xf32>
    %503 = arith.addf %502, %20 : vector<8x384xf32>
    %504 = vector.extract_strided_slice %501 {offsets = [0, 0], sizes = [8, 128], strides = [1, 1]} : vector<8x384xf32> to vector<8x128xf32>
    %505 = vector.extract_strided_slice %503 {offsets = [0, 0], sizes = [8, 128], strides = [1, 1]} : vector<8x384xf32> to vector<8x128xf32>
    %506 = arith.addf %504, %505 : vector<8x128xf32>
    %cst_178 = arith.constant 0.000000e+00 : f32
    %507 = vector.broadcast %cst_178 : f32 to vector<8x128xf32>
    %508 = arith.subf %507, %506 : vector<8x128xf32>
    %509 = math.exp %508 : vector<8x128xf32>
    %cst_179 = arith.constant 1.000000e+00 : f32
    %510 = vector.broadcast %cst_179 : f32 to vector<8x128xf32>
    %511 = arith.addf %510, %509 : vector<8x128xf32>
    %cst_180 = arith.constant 1.000000e+00 : f32
    %512 = vector.broadcast %cst_180 : f32 to vector<8x128xf32>
    %513 = arith.divf %512, %511 : vector<8x128xf32>
    %514 = vector.extract_strided_slice %501 {offsets = [0, 128], sizes = [8, 128], strides = [1, 1]} : vector<8x384xf32> to vector<8x128xf32>
    %515 = vector.extract_strided_slice %503 {offsets = [0, 128], sizes = [8, 128], strides = [1, 1]} : vector<8x384xf32> to vector<8x128xf32>
    %516 = arith.addf %514, %515 : vector<8x128xf32>
    %cst_181 = arith.constant 0.000000e+00 : f32
    %517 = vector.broadcast %cst_181 : f32 to vector<8x128xf32>
    %518 = arith.subf %517, %516 : vector<8x128xf32>
    %519 = math.exp %518 : vector<8x128xf32>
    %cst_182 = arith.constant 1.000000e+00 : f32
    %520 = vector.broadcast %cst_182 : f32 to vector<8x128xf32>
    %521 = arith.addf %520, %519 : vector<8x128xf32>
    %cst_183 = arith.constant 1.000000e+00 : f32
    %522 = vector.broadcast %cst_183 : f32 to vector<8x128xf32>
    %523 = arith.divf %522, %521 : vector<8x128xf32>
    %524 = vector.extract_strided_slice %501 {offsets = [0, 256], sizes = [8, 128], strides = [1, 1]} : vector<8x384xf32> to vector<8x128xf32>
    %525 = vector.extract_strided_slice %503 {offsets = [0, 256], sizes = [8, 128], strides = [1, 1]} : vector<8x384xf32> to vector<8x128xf32>
    %526 = arith.mulf %513, %525 : vector<8x128xf32>
    %527 = arith.addf %524, %526 : vector<8x128xf32>
    %528 = math.tanh %527 : vector<8x128xf32>
    %cst_184 = arith.constant 1.000000e+00 : f32
    %529 = vector.broadcast %cst_184 : f32 to vector<8x128xf32>
    %530 = arith.subf %529, %523 : vector<8x128xf32>
    %531 = arith.mulf %530, %528 : vector<8x128xf32>
    %532 = arith.mulf %523, %454 : vector<8x128xf32>
    %533 = arith.addf %531, %532 : vector<8x128xf32>
    %534 = arith.index_cast %c6_i32 : i32 to index
    %c0_185 = arith.constant 0 : index
    %c0_186 = arith.constant 0 : index
    %535 = vector.load %arg16[%534, %c0_185, %c0_186] : memref<16x8x128xf32, #tpu.memory_space<vmem>>, vector<1x8x128xf32>
    %536 = vector.shape_cast %535 : vector<1x8x128xf32> to vector<8x128xf32>
    %537 = vector.shape_cast %533 : vector<8x128xf32> to vector<1x8x128xf32>
    tpu.vector_store %arg16[%534, %c0_185, %c0_186], %537 {strides = array<i32>} : memref<16x8x128xf32, #tpu.memory_space<vmem>>, vector<1x8x128xf32>,
    %c15_i32_187 = arith.constant 15 : i32
    %538 = arith.subi %c15_i32_187, %c6_i32 : i32
    %539 = arith.index_cast %538 : i32 to index
    %c0_188 = arith.constant 0 : index
    %c0_189 = arith.constant 0 : index
    %540 = vector.load %arg15[%539, %c0_188, %c0_189] : memref<16x8x384xf32, #tpu.memory_space<vmem>>, vector<1x8x384xf32>
    %541 = vector.shape_cast %540 : vector<1x8x384xf32> to vector<8x384xf32>
    %cst_190 = arith.constant dense<0.000000e+00> : vector<8x384xf32>
    %542 = tpu.matmul %494, %17, %cst_190 {dimension_numbers = #tpu.dot_dimension_numbers<[1], [0], [0], [1], [0, 0, 1, 1], [], []>} : vector<8x128xf32>, vector<128x384xf32>, vector<8x384xf32> -> vector<8x384xf32>
    %543 = arith.addf %542, %23 : vector<8x384xf32>
    %544 = vector.extract_strided_slice %541 {offsets = [0, 0], sizes = [8, 128], strides = [1, 1]} : vector<8x384xf32> to vector<8x128xf32>
    %545 = vector.extract_strided_slice %543 {offsets = [0, 0], sizes = [8, 128], strides = [1, 1]} : vector<8x384xf32> to vector<8x128xf32>
    %546 = arith.addf %544, %545 : vector<8x128xf32>
    %cst_191 = arith.constant 0.000000e+00 : f32
    %547 = vector.broadcast %cst_191 : f32 to vector<8x128xf32>
    %548 = arith.subf %547, %546 : vector<8x128xf32>
    %549 = math.exp %548 : vector<8x128xf32>
    %cst_192 = arith.constant 1.000000e+00 : f32
    %550 = vector.broadcast %cst_192 : f32 to vector<8x128xf32>
    %551 = arith.addf %550, %549 : vector<8x128xf32>
    %cst_193 = arith.constant 1.000000e+00 : f32
    %552 = vector.broadcast %cst_193 : f32 to vector<8x128xf32>
    %553 = arith.divf %552, %551 : vector<8x128xf32>
    %554 = vector.extract_strided_slice %541 {offsets = [0, 128], sizes = [8, 128], strides = [1, 1]} : vector<8x384xf32> to vector<8x128xf32>
    %555 = vector.extract_strided_slice %543 {offsets = [0, 128], sizes = [8, 128], strides = [1, 1]} : vector<8x384xf32> to vector<8x128xf32>
    %556 = arith.addf %554, %555 : vector<8x128xf32>
    %cst_194 = arith.constant 0.000000e+00 : f32
    %557 = vector.broadcast %cst_194 : f32 to vector<8x128xf32>
    %558 = arith.subf %557, %556 : vector<8x128xf32>
    %559 = math.exp %558 : vector<8x128xf32>
    %cst_195 = arith.constant 1.000000e+00 : f32
    %560 = vector.broadcast %cst_195 : f32 to vector<8x128xf32>
    %561 = arith.addf %560, %559 : vector<8x128xf32>
    %cst_196 = arith.constant 1.000000e+00 : f32
    %562 = vector.broadcast %cst_196 : f32 to vector<8x128xf32>
    %563 = arith.divf %562, %561 : vector<8x128xf32>
    %564 = vector.extract_strided_slice %541 {offsets = [0, 256], sizes = [8, 128], strides = [1, 1]} : vector<8x384xf32> to vector<8x128xf32>
    %565 = vector.extract_strided_slice %543 {offsets = [0, 256], sizes = [8, 128], strides = [1, 1]} : vector<8x384xf32> to vector<8x128xf32>
    %566 = arith.mulf %553, %565 : vector<8x128xf32>
    %567 = arith.addf %564, %566 : vector<8x128xf32>
    %568 = math.tanh %567 : vector<8x128xf32>
    %cst_197 = arith.constant 1.000000e+00 : f32
    %569 = vector.broadcast %cst_197 : f32 to vector<8x128xf32>
    %570 = arith.subf %569, %563 : vector<8x128xf32>
    %571 = arith.mulf %570, %568 : vector<8x128xf32>
    %572 = arith.mulf %563, %494 : vector<8x128xf32>
    %573 = arith.addf %571, %572 : vector<8x128xf32>
    %574 = arith.index_cast %538 : i32 to index
    %c0_198 = arith.constant 0 : index
    %c0_199 = arith.constant 0 : index
    %575 = vector.load %arg17[%574, %c0_198, %c0_199] : memref<16x8x128xf32, #tpu.memory_space<vmem>>, vector<1x8x128xf32>
    %576 = vector.shape_cast %575 : vector<1x8x128xf32> to vector<8x128xf32>
    %577 = vector.shape_cast %573 : vector<8x128xf32> to vector<1x8x128xf32>
    tpu.vector_store %arg17[%574, %c0_198, %c0_199], %577 {strides = array<i32>} : memref<16x8x128xf32, #tpu.memory_space<vmem>>, vector<1x8x128xf32>,
    %c7_i32 = arith.constant 7 : i32
    %578 = arith.index_cast %c7_i32 : i32 to index
    %c0_200 = arith.constant 0 : index
    %c0_201 = arith.constant 0 : index
    %579 = vector.load %arg14[%578, %c0_200, %c0_201] : memref<16x8x384xf32, #tpu.memory_space<vmem>>, vector<1x8x384xf32>
    %580 = vector.shape_cast %579 : vector<1x8x384xf32> to vector<8x384xf32>
    %cst_202 = arith.constant dense<0.000000e+00> : vector<8x384xf32>
    %581 = tpu.matmul %533, %16, %cst_202 {dimension_numbers = #tpu.dot_dimension_numbers<[1], [0], [0], [1], [0, 0, 1, 1], [], []>} : vector<8x128xf32>, vector<128x384xf32>, vector<8x384xf32> -> vector<8x384xf32>
    %582 = arith.addf %581, %20 : vector<8x384xf32>
    %583 = vector.extract_strided_slice %580 {offsets = [0, 0], sizes = [8, 128], strides = [1, 1]} : vector<8x384xf32> to vector<8x128xf32>
    %584 = vector.extract_strided_slice %582 {offsets = [0, 0], sizes = [8, 128], strides = [1, 1]} : vector<8x384xf32> to vector<8x128xf32>
    %585 = arith.addf %583, %584 : vector<8x128xf32>
    %cst_203 = arith.constant 0.000000e+00 : f32
    %586 = vector.broadcast %cst_203 : f32 to vector<8x128xf32>
    %587 = arith.subf %586, %585 : vector<8x128xf32>
    %588 = math.exp %587 : vector<8x128xf32>
    %cst_204 = arith.constant 1.000000e+00 : f32
    %589 = vector.broadcast %cst_204 : f32 to vector<8x128xf32>
    %590 = arith.addf %589, %588 : vector<8x128xf32>
    %cst_205 = arith.constant 1.000000e+00 : f32
    %591 = vector.broadcast %cst_205 : f32 to vector<8x128xf32>
    %592 = arith.divf %591, %590 : vector<8x128xf32>
    %593 = vector.extract_strided_slice %580 {offsets = [0, 128], sizes = [8, 128], strides = [1, 1]} : vector<8x384xf32> to vector<8x128xf32>
    %594 = vector.extract_strided_slice %582 {offsets = [0, 128], sizes = [8, 128], strides = [1, 1]} : vector<8x384xf32> to vector<8x128xf32>
    %595 = arith.addf %593, %594 : vector<8x128xf32>
    %cst_206 = arith.constant 0.000000e+00 : f32
    %596 = vector.broadcast %cst_206 : f32 to vector<8x128xf32>
    %597 = arith.subf %596, %595 : vector<8x128xf32>
    %598 = math.exp %597 : vector<8x128xf32>
    %cst_207 = arith.constant 1.000000e+00 : f32
    %599 = vector.broadcast %cst_207 : f32 to vector<8x128xf32>
    %600 = arith.addf %599, %598 : vector<8x128xf32>
    %cst_208 = arith.constant 1.000000e+00 : f32
    %601 = vector.broadcast %cst_208 : f32 to vector<8x128xf32>
    %602 = arith.divf %601, %600 : vector<8x128xf32>
    %603 = vector.extract_strided_slice %580 {offsets = [0, 256], sizes = [8, 128], strides = [1, 1]} : vector<8x384xf32> to vector<8x128xf32>
    %604 = vector.extract_strided_slice %582 {offsets = [0, 256], sizes = [8, 128], strides = [1, 1]} : vector<8x384xf32> to vector<8x128xf32>
    %605 = arith.mulf %592, %604 : vector<8x128xf32>
    %606 = arith.addf %603, %605 : vector<8x128xf32>
    %607 = math.tanh %606 : vector<8x128xf32>
    %cst_209 = arith.constant 1.000000e+00 : f32
    %608 = vector.broadcast %cst_209 : f32 to vector<8x128xf32>
    %609 = arith.subf %608, %602 : vector<8x128xf32>
    %610 = arith.mulf %609, %607 : vector<8x128xf32>
    %611 = arith.mulf %602, %533 : vector<8x128xf32>
    %612 = arith.addf %610, %611 : vector<8x128xf32>
    %613 = arith.index_cast %c7_i32 : i32 to index
    %c0_210 = arith.constant 0 : index
    %c0_211 = arith.constant 0 : index
    %614 = vector.load %arg16[%613, %c0_210, %c0_211] : memref<16x8x128xf32, #tpu.memory_space<vmem>>, vector<1x8x128xf32>
    %615 = vector.shape_cast %614 : vector<1x8x128xf32> to vector<8x128xf32>
    %616 = vector.shape_cast %612 : vector<8x128xf32> to vector<1x8x128xf32>
    tpu.vector_store %arg16[%613, %c0_210, %c0_211], %616 {strides = array<i32>} : memref<16x8x128xf32, #tpu.memory_space<vmem>>, vector<1x8x128xf32>,
    %c15_i32_212 = arith.constant 15 : i32
    %617 = arith.subi %c15_i32_212, %c7_i32 : i32
    %618 = arith.index_cast %617 : i32 to index
    %c0_213 = arith.constant 0 : index
    %c0_214 = arith.constant 0 : index
    %619 = vector.load %arg15[%618, %c0_213, %c0_214] : memref<16x8x384xf32, #tpu.memory_space<vmem>>, vector<1x8x384xf32>
    %620 = vector.shape_cast %619 : vector<1x8x384xf32> to vector<8x384xf32>
    %cst_215 = arith.constant dense<0.000000e+00> : vector<8x384xf32>
    %621 = tpu.matmul %573, %17, %cst_215 {dimension_numbers = #tpu.dot_dimension_numbers<[1], [0], [0], [1], [0, 0, 1, 1], [], []>} : vector<8x128xf32>, vector<128x384xf32>, vector<8x384xf32> -> vector<8x384xf32>
    %622 = arith.addf %621, %23 : vector<8x384xf32>
    %623 = vector.extract_strided_slice %620 {offsets = [0, 0], sizes = [8, 128], strides = [1, 1]} : vector<8x384xf32> to vector<8x128xf32>
    %624 = vector.extract_strided_slice %622 {offsets = [0, 0], sizes = [8, 128], strides = [1, 1]} : vector<8x384xf32> to vector<8x128xf32>
    %625 = arith.addf %623, %624 : vector<8x128xf32>
    %cst_216 = arith.constant 0.000000e+00 : f32
    %626 = vector.broadcast %cst_216 : f32 to vector<8x128xf32>
    %627 = arith.subf %626, %625 : vector<8x128xf32>
    %628 = math.exp %627 : vector<8x128xf32>
    %cst_217 = arith.constant 1.000000e+00 : f32
    %629 = vector.broadcast %cst_217 : f32 to vector<8x128xf32>
    %630 = arith.addf %629, %628 : vector<8x128xf32>
    %cst_218 = arith.constant 1.000000e+00 : f32
    %631 = vector.broadcast %cst_218 : f32 to vector<8x128xf32>
    %632 = arith.divf %631, %630 : vector<8x128xf32>
    %633 = vector.extract_strided_slice %620 {offsets = [0, 128], sizes = [8, 128], strides = [1, 1]} : vector<8x384xf32> to vector<8x128xf32>
    %634 = vector.extract_strided_slice %622 {offsets = [0, 128], sizes = [8, 128], strides = [1, 1]} : vector<8x384xf32> to vector<8x128xf32>
    %635 = arith.addf %633, %634 : vector<8x128xf32>
    %cst_219 = arith.constant 0.000000e+00 : f32
    %636 = vector.broadcast %cst_219 : f32 to vector<8x128xf32>
    %637 = arith.subf %636, %635 : vector<8x128xf32>
    %638 = math.exp %637 : vector<8x128xf32>
    %cst_220 = arith.constant 1.000000e+00 : f32
    %639 = vector.broadcast %cst_220 : f32 to vector<8x128xf32>
    %640 = arith.addf %639, %638 : vector<8x128xf32>
    %cst_221 = arith.constant 1.000000e+00 : f32
    %641 = vector.broadcast %cst_221 : f32 to vector<8x128xf32>
    %642 = arith.divf %641, %640 : vector<8x128xf32>
    %643 = vector.extract_strided_slice %620 {offsets = [0, 256], sizes = [8, 128], strides = [1, 1]} : vector<8x384xf32> to vector<8x128xf32>
    %644 = vector.extract_strided_slice %622 {offsets = [0, 256], sizes = [8, 128], strides = [1, 1]} : vector<8x384xf32> to vector<8x128xf32>
    %645 = arith.mulf %632, %644 : vector<8x128xf32>
    %646 = arith.addf %643, %645 : vector<8x128xf32>
    %647 = math.tanh %646 : vector<8x128xf32>
    %cst_222 = arith.constant 1.000000e+00 : f32
    %648 = vector.broadcast %cst_222 : f32 to vector<8x128xf32>
    %649 = arith.subf %648, %642 : vector<8x128xf32>
    %650 = arith.mulf %649, %647 : vector<8x128xf32>
    %651 = arith.mulf %642, %573 : vector<8x128xf32>
    %652 = arith.addf %650, %651 : vector<8x128xf32>
    %653 = arith.index_cast %617 : i32 to index
    %c0_223 = arith.constant 0 : index
    %c0_224 = arith.constant 0 : index
    %654 = vector.load %arg17[%653, %c0_223, %c0_224] : memref<16x8x128xf32, #tpu.memory_space<vmem>>, vector<1x8x128xf32>
    %655 = vector.shape_cast %654 : vector<1x8x128xf32> to vector<8x128xf32>
    %656 = vector.shape_cast %652 : vector<8x128xf32> to vector<1x8x128xf32>
    tpu.vector_store %arg17[%653, %c0_223, %c0_224], %656 {strides = array<i32>} : memref<16x8x128xf32, #tpu.memory_space<vmem>>, vector<1x8x128xf32>,
    %c8_i32 = arith.constant 8 : i32
    %657 = arith.index_cast %c8_i32 : i32 to index
    %c0_225 = arith.constant 0 : index
    %c0_226 = arith.constant 0 : index
    %658 = vector.load %arg14[%657, %c0_225, %c0_226] : memref<16x8x384xf32, #tpu.memory_space<vmem>>, vector<1x8x384xf32>
    %659 = vector.shape_cast %658 : vector<1x8x384xf32> to vector<8x384xf32>
    %cst_227 = arith.constant dense<0.000000e+00> : vector<8x384xf32>
    %660 = tpu.matmul %612, %16, %cst_227 {dimension_numbers = #tpu.dot_dimension_numbers<[1], [0], [0], [1], [0, 0, 1, 1], [], []>} : vector<8x128xf32>, vector<128x384xf32>, vector<8x384xf32> -> vector<8x384xf32>
    %661 = arith.addf %660, %20 : vector<8x384xf32>
    %662 = vector.extract_strided_slice %659 {offsets = [0, 0], sizes = [8, 128], strides = [1, 1]} : vector<8x384xf32> to vector<8x128xf32>
    %663 = vector.extract_strided_slice %661 {offsets = [0, 0], sizes = [8, 128], strides = [1, 1]} : vector<8x384xf32> to vector<8x128xf32>
    %664 = arith.addf %662, %663 : vector<8x128xf32>
    %cst_228 = arith.constant 0.000000e+00 : f32
    %665 = vector.broadcast %cst_228 : f32 to vector<8x128xf32>
    %666 = arith.subf %665, %664 : vector<8x128xf32>
    %667 = math.exp %666 : vector<8x128xf32>
    %cst_229 = arith.constant 1.000000e+00 : f32
    %668 = vector.broadcast %cst_229 : f32 to vector<8x128xf32>
    %669 = arith.addf %668, %667 : vector<8x128xf32>
    %cst_230 = arith.constant 1.000000e+00 : f32
    %670 = vector.broadcast %cst_230 : f32 to vector<8x128xf32>
    %671 = arith.divf %670, %669 : vector<8x128xf32>
    %672 = vector.extract_strided_slice %659 {offsets = [0, 128], sizes = [8, 128], strides = [1, 1]} : vector<8x384xf32> to vector<8x128xf32>
    %673 = vector.extract_strided_slice %661 {offsets = [0, 128], sizes = [8, 128], strides = [1, 1]} : vector<8x384xf32> to vector<8x128xf32>
    %674 = arith.addf %672, %673 : vector<8x128xf32>
    %cst_231 = arith.constant 0.000000e+00 : f32
    %675 = vector.broadcast %cst_231 : f32 to vector<8x128xf32>
    %676 = arith.subf %675, %674 : vector<8x128xf32>
    %677 = math.exp %676 : vector<8x128xf32>
    %cst_232 = arith.constant 1.000000e+00 : f32
    %678 = vector.broadcast %cst_232 : f32 to vector<8x128xf32>
    %679 = arith.addf %678, %677 : vector<8x128xf32>
    %cst_233 = arith.constant 1.000000e+00 : f32
    %680 = vector.broadcast %cst_233 : f32 to vector<8x128xf32>
    %681 = arith.divf %680, %679 : vector<8x128xf32>
    %682 = vector.extract_strided_slice %659 {offsets = [0, 256], sizes = [8, 128], strides = [1, 1]} : vector<8x384xf32> to vector<8x128xf32>
    %683 = vector.extract_strided_slice %661 {offsets = [0, 256], sizes = [8, 128], strides = [1, 1]} : vector<8x384xf32> to vector<8x128xf32>
    %684 = arith.mulf %671, %683 : vector<8x128xf32>
    %685 = arith.addf %682, %684 : vector<8x128xf32>
    %686 = math.tanh %685 : vector<8x128xf32>
    %cst_234 = arith.constant 1.000000e+00 : f32
    %687 = vector.broadcast %cst_234 : f32 to vector<8x128xf32>
    %688 = arith.subf %687, %681 : vector<8x128xf32>
    %689 = arith.mulf %688, %686 : vector<8x128xf32>
    %690 = arith.mulf %681, %612 : vector<8x128xf32>
    %691 = arith.addf %689, %690 : vector<8x128xf32>
    %692 = arith.index_cast %c8_i32 : i32 to index
    %c0_235 = arith.constant 0 : index
    %c0_236 = arith.constant 0 : index
    %693 = vector.load %arg16[%692, %c0_235, %c0_236] : memref<16x8x128xf32, #tpu.memory_space<vmem>>, vector<1x8x128xf32>
    %694 = vector.shape_cast %693 : vector<1x8x128xf32> to vector<8x128xf32>
    %695 = vector.shape_cast %691 : vector<8x128xf32> to vector<1x8x128xf32>
    tpu.vector_store %arg16[%692, %c0_235, %c0_236], %695 {strides = array<i32>} : memref<16x8x128xf32, #tpu.memory_space<vmem>>, vector<1x8x128xf32>,
    %c15_i32_237 = arith.constant 15 : i32
    %696 = arith.subi %c15_i32_237, %c8_i32 : i32
    %697 = arith.index_cast %696 : i32 to index
    %c0_238 = arith.constant 0 : index
    %c0_239 = arith.constant 0 : index
    %698 = vector.load %arg15[%697, %c0_238, %c0_239] : memref<16x8x384xf32, #tpu.memory_space<vmem>>, vector<1x8x384xf32>
    %699 = vector.shape_cast %698 : vector<1x8x384xf32> to vector<8x384xf32>
    %cst_240 = arith.constant dense<0.000000e+00> : vector<8x384xf32>
    %700 = tpu.matmul %652, %17, %cst_240 {dimension_numbers = #tpu.dot_dimension_numbers<[1], [0], [0], [1], [0, 0, 1, 1], [], []>} : vector<8x128xf32>, vector<128x384xf32>, vector<8x384xf32> -> vector<8x384xf32>
    %701 = arith.addf %700, %23 : vector<8x384xf32>
    %702 = vector.extract_strided_slice %699 {offsets = [0, 0], sizes = [8, 128], strides = [1, 1]} : vector<8x384xf32> to vector<8x128xf32>
    %703 = vector.extract_strided_slice %701 {offsets = [0, 0], sizes = [8, 128], strides = [1, 1]} : vector<8x384xf32> to vector<8x128xf32>
    %704 = arith.addf %702, %703 : vector<8x128xf32>
    %cst_241 = arith.constant 0.000000e+00 : f32
    %705 = vector.broadcast %cst_241 : f32 to vector<8x128xf32>
    %706 = arith.subf %705, %704 : vector<8x128xf32>
    %707 = math.exp %706 : vector<8x128xf32>
    %cst_242 = arith.constant 1.000000e+00 : f32
    %708 = vector.broadcast %cst_242 : f32 to vector<8x128xf32>
    %709 = arith.addf %708, %707 : vector<8x128xf32>
    %cst_243 = arith.constant 1.000000e+00 : f32
    %710 = vector.broadcast %cst_243 : f32 to vector<8x128xf32>
    %711 = arith.divf %710, %709 : vector<8x128xf32>
    %712 = vector.extract_strided_slice %699 {offsets = [0, 128], sizes = [8, 128], strides = [1, 1]} : vector<8x384xf32> to vector<8x128xf32>
    %713 = vector.extract_strided_slice %701 {offsets = [0, 128], sizes = [8, 128], strides = [1, 1]} : vector<8x384xf32> to vector<8x128xf32>
    %714 = arith.addf %712, %713 : vector<8x128xf32>
    %cst_244 = arith.constant 0.000000e+00 : f32
    %715 = vector.broadcast %cst_244 : f32 to vector<8x128xf32>
    %716 = arith.subf %715, %714 : vector<8x128xf32>
    %717 = math.exp %716 : vector<8x128xf32>
    %cst_245 = arith.constant 1.000000e+00 : f32
    %718 = vector.broadcast %cst_245 : f32 to vector<8x128xf32>
    %719 = arith.addf %718, %717 : vector<8x128xf32>
    %cst_246 = arith.constant 1.000000e+00 : f32
    %720 = vector.broadcast %cst_246 : f32 to vector<8x128xf32>
    %721 = arith.divf %720, %719 : vector<8x128xf32>
    %722 = vector.extract_strided_slice %699 {offsets = [0, 256], sizes = [8, 128], strides = [1, 1]} : vector<8x384xf32> to vector<8x128xf32>
    %723 = vector.extract_strided_slice %701 {offsets = [0, 256], sizes = [8, 128], strides = [1, 1]} : vector<8x384xf32> to vector<8x128xf32>
    %724 = arith.mulf %711, %723 : vector<8x128xf32>
    %725 = arith.addf %722, %724 : vector<8x128xf32>
    %726 = math.tanh %725 : vector<8x128xf32>
    %cst_247 = arith.constant 1.000000e+00 : f32
    %727 = vector.broadcast %cst_247 : f32 to vector<8x128xf32>
    %728 = arith.subf %727, %721 : vector<8x128xf32>
    %729 = arith.mulf %728, %726 : vector<8x128xf32>
    %730 = arith.mulf %721, %652 : vector<8x128xf32>
    %731 = arith.addf %729, %730 : vector<8x128xf32>
    %732 = arith.index_cast %696 : i32 to index
    %c0_248 = arith.constant 0 : index
    %c0_249 = arith.constant 0 : index
    %733 = vector.load %arg17[%732, %c0_248, %c0_249] : memref<16x8x128xf32, #tpu.memory_space<vmem>>, vector<1x8x128xf32>
    %734 = vector.shape_cast %733 : vector<1x8x128xf32> to vector<8x128xf32>
    %735 = vector.shape_cast %731 : vector<8x128xf32> to vector<1x8x128xf32>
    tpu.vector_store %arg17[%732, %c0_248, %c0_249], %735 {strides = array<i32>} : memref<16x8x128xf32, #tpu.memory_space<vmem>>, vector<1x8x128xf32>,
    %c9_i32 = arith.constant 9 : i32
    %736 = arith.index_cast %c9_i32 : i32 to index
    %c0_250 = arith.constant 0 : index
    %c0_251 = arith.constant 0 : index
    %737 = vector.load %arg14[%736, %c0_250, %c0_251] : memref<16x8x384xf32, #tpu.memory_space<vmem>>, vector<1x8x384xf32>
    %738 = vector.shape_cast %737 : vector<1x8x384xf32> to vector<8x384xf32>
    %cst_252 = arith.constant dense<0.000000e+00> : vector<8x384xf32>
    %739 = tpu.matmul %691, %16, %cst_252 {dimension_numbers = #tpu.dot_dimension_numbers<[1], [0], [0], [1], [0, 0, 1, 1], [], []>} : vector<8x128xf32>, vector<128x384xf32>, vector<8x384xf32> -> vector<8x384xf32>
    %740 = arith.addf %739, %20 : vector<8x384xf32>
    %741 = vector.extract_strided_slice %738 {offsets = [0, 0], sizes = [8, 128], strides = [1, 1]} : vector<8x384xf32> to vector<8x128xf32>
    %742 = vector.extract_strided_slice %740 {offsets = [0, 0], sizes = [8, 128], strides = [1, 1]} : vector<8x384xf32> to vector<8x128xf32>
    %743 = arith.addf %741, %742 : vector<8x128xf32>
    %cst_253 = arith.constant 0.000000e+00 : f32
    %744 = vector.broadcast %cst_253 : f32 to vector<8x128xf32>
    %745 = arith.subf %744, %743 : vector<8x128xf32>
    %746 = math.exp %745 : vector<8x128xf32>
    %cst_254 = arith.constant 1.000000e+00 : f32
    %747 = vector.broadcast %cst_254 : f32 to vector<8x128xf32>
    %748 = arith.addf %747, %746 : vector<8x128xf32>
    %cst_255 = arith.constant 1.000000e+00 : f32
    %749 = vector.broadcast %cst_255 : f32 to vector<8x128xf32>
    %750 = arith.divf %749, %748 : vector<8x128xf32>
    %751 = vector.extract_strided_slice %738 {offsets = [0, 128], sizes = [8, 128], strides = [1, 1]} : vector<8x384xf32> to vector<8x128xf32>
    %752 = vector.extract_strided_slice %740 {offsets = [0, 128], sizes = [8, 128], strides = [1, 1]} : vector<8x384xf32> to vector<8x128xf32>
    %753 = arith.addf %751, %752 : vector<8x128xf32>
    %cst_256 = arith.constant 0.000000e+00 : f32
    %754 = vector.broadcast %cst_256 : f32 to vector<8x128xf32>
    %755 = arith.subf %754, %753 : vector<8x128xf32>
    %756 = math.exp %755 : vector<8x128xf32>
    %cst_257 = arith.constant 1.000000e+00 : f32
    %757 = vector.broadcast %cst_257 : f32 to vector<8x128xf32>
    %758 = arith.addf %757, %756 : vector<8x128xf32>
    %cst_258 = arith.constant 1.000000e+00 : f32
    %759 = vector.broadcast %cst_258 : f32 to vector<8x128xf32>
    %760 = arith.divf %759, %758 : vector<8x128xf32>
    %761 = vector.extract_strided_slice %738 {offsets = [0, 256], sizes = [8, 128], strides = [1, 1]} : vector<8x384xf32> to vector<8x128xf32>
    %762 = vector.extract_strided_slice %740 {offsets = [0, 256], sizes = [8, 128], strides = [1, 1]} : vector<8x384xf32> to vector<8x128xf32>
    %763 = arith.mulf %750, %762 : vector<8x128xf32>
    %764 = arith.addf %761, %763 : vector<8x128xf32>
    %765 = math.tanh %764 : vector<8x128xf32>
    %cst_259 = arith.constant 1.000000e+00 : f32
    %766 = vector.broadcast %cst_259 : f32 to vector<8x128xf32>
    %767 = arith.subf %766, %760 : vector<8x128xf32>
    %768 = arith.mulf %767, %765 : vector<8x128xf32>
    %769 = arith.mulf %760, %691 : vector<8x128xf32>
    %770 = arith.addf %768, %769 : vector<8x128xf32>
    %771 = arith.index_cast %c9_i32 : i32 to index
    %c0_260 = arith.constant 0 : index
    %c0_261 = arith.constant 0 : index
    %772 = vector.load %arg16[%771, %c0_260, %c0_261] : memref<16x8x128xf32, #tpu.memory_space<vmem>>, vector<1x8x128xf32>
    %773 = vector.shape_cast %772 : vector<1x8x128xf32> to vector<8x128xf32>
    %774 = vector.shape_cast %770 : vector<8x128xf32> to vector<1x8x128xf32>
    tpu.vector_store %arg16[%771, %c0_260, %c0_261], %774 {strides = array<i32>} : memref<16x8x128xf32, #tpu.memory_space<vmem>>, vector<1x8x128xf32>,
    %c15_i32_262 = arith.constant 15 : i32
    %775 = arith.subi %c15_i32_262, %c9_i32 : i32
    %776 = arith.index_cast %775 : i32 to index
    %c0_263 = arith.constant 0 : index
    %c0_264 = arith.constant 0 : index
    %777 = vector.load %arg15[%776, %c0_263, %c0_264] : memref<16x8x384xf32, #tpu.memory_space<vmem>>, vector<1x8x384xf32>
    %778 = vector.shape_cast %777 : vector<1x8x384xf32> to vector<8x384xf32>
    %cst_265 = arith.constant dense<0.000000e+00> : vector<8x384xf32>
    %779 = tpu.matmul %731, %17, %cst_265 {dimension_numbers = #tpu.dot_dimension_numbers<[1], [0], [0], [1], [0, 0, 1, 1], [], []>} : vector<8x128xf32>, vector<128x384xf32>, vector<8x384xf32> -> vector<8x384xf32>
    %780 = arith.addf %779, %23 : vector<8x384xf32>
    %781 = vector.extract_strided_slice %778 {offsets = [0, 0], sizes = [8, 128], strides = [1, 1]} : vector<8x384xf32> to vector<8x128xf32>
    %782 = vector.extract_strided_slice %780 {offsets = [0, 0], sizes = [8, 128], strides = [1, 1]} : vector<8x384xf32> to vector<8x128xf32>
    %783 = arith.addf %781, %782 : vector<8x128xf32>
    %cst_266 = arith.constant 0.000000e+00 : f32
    %784 = vector.broadcast %cst_266 : f32 to vector<8x128xf32>
    %785 = arith.subf %784, %783 : vector<8x128xf32>
    %786 = math.exp %785 : vector<8x128xf32>
    %cst_267 = arith.constant 1.000000e+00 : f32
    %787 = vector.broadcast %cst_267 : f32 to vector<8x128xf32>
    %788 = arith.addf %787, %786 : vector<8x128xf32>
    %cst_268 = arith.constant 1.000000e+00 : f32
    %789 = vector.broadcast %cst_268 : f32 to vector<8x128xf32>
    %790 = arith.divf %789, %788 : vector<8x128xf32>
    %791 = vector.extract_strided_slice %778 {offsets = [0, 128], sizes = [8, 128], strides = [1, 1]} : vector<8x384xf32> to vector<8x128xf32>
    %792 = vector.extract_strided_slice %780 {offsets = [0, 128], sizes = [8, 128], strides = [1, 1]} : vector<8x384xf32> to vector<8x128xf32>
    %793 = arith.addf %791, %792 : vector<8x128xf32>
    %cst_269 = arith.constant 0.000000e+00 : f32
    %794 = vector.broadcast %cst_269 : f32 to vector<8x128xf32>
    %795 = arith.subf %794, %793 : vector<8x128xf32>
    %796 = math.exp %795 : vector<8x128xf32>
    %cst_270 = arith.constant 1.000000e+00 : f32
    %797 = vector.broadcast %cst_270 : f32 to vector<8x128xf32>
    %798 = arith.addf %797, %796 : vector<8x128xf32>
    %cst_271 = arith.constant 1.000000e+00 : f32
    %799 = vector.broadcast %cst_271 : f32 to vector<8x128xf32>
    %800 = arith.divf %799, %798 : vector<8x128xf32>
    %801 = vector.extract_strided_slice %778 {offsets = [0, 256], sizes = [8, 128], strides = [1, 1]} : vector<8x384xf32> to vector<8x128xf32>
    %802 = vector.extract_strided_slice %780 {offsets = [0, 256], sizes = [8, 128], strides = [1, 1]} : vector<8x384xf32> to vector<8x128xf32>
    %803 = arith.mulf %790, %802 : vector<8x128xf32>
    %804 = arith.addf %801, %803 : vector<8x128xf32>
    %805 = math.tanh %804 : vector<8x128xf32>
    %cst_272 = arith.constant 1.000000e+00 : f32
    %806 = vector.broadcast %cst_272 : f32 to vector<8x128xf32>
    %807 = arith.subf %806, %800 : vector<8x128xf32>
    %808 = arith.mulf %807, %805 : vector<8x128xf32>
    %809 = arith.mulf %800, %731 : vector<8x128xf32>
    %810 = arith.addf %808, %809 : vector<8x128xf32>
    %811 = arith.index_cast %775 : i32 to index
    %c0_273 = arith.constant 0 : index
    %c0_274 = arith.constant 0 : index
    %812 = vector.load %arg17[%811, %c0_273, %c0_274] : memref<16x8x128xf32, #tpu.memory_space<vmem>>, vector<1x8x128xf32>
    %813 = vector.shape_cast %812 : vector<1x8x128xf32> to vector<8x128xf32>
    %814 = vector.shape_cast %810 : vector<8x128xf32> to vector<1x8x128xf32>
    tpu.vector_store %arg17[%811, %c0_273, %c0_274], %814 {strides = array<i32>} : memref<16x8x128xf32, #tpu.memory_space<vmem>>, vector<1x8x128xf32>,
    %c10_i32 = arith.constant 10 : i32
    %815 = arith.index_cast %c10_i32 : i32 to index
    %c0_275 = arith.constant 0 : index
    %c0_276 = arith.constant 0 : index
    %816 = vector.load %arg14[%815, %c0_275, %c0_276] : memref<16x8x384xf32, #tpu.memory_space<vmem>>, vector<1x8x384xf32>
    %817 = vector.shape_cast %816 : vector<1x8x384xf32> to vector<8x384xf32>
    %cst_277 = arith.constant dense<0.000000e+00> : vector<8x384xf32>
    %818 = tpu.matmul %770, %16, %cst_277 {dimension_numbers = #tpu.dot_dimension_numbers<[1], [0], [0], [1], [0, 0, 1, 1], [], []>} : vector<8x128xf32>, vector<128x384xf32>, vector<8x384xf32> -> vector<8x384xf32>
    %819 = arith.addf %818, %20 : vector<8x384xf32>
    %820 = vector.extract_strided_slice %817 {offsets = [0, 0], sizes = [8, 128], strides = [1, 1]} : vector<8x384xf32> to vector<8x128xf32>
    %821 = vector.extract_strided_slice %819 {offsets = [0, 0], sizes = [8, 128], strides = [1, 1]} : vector<8x384xf32> to vector<8x128xf32>
    %822 = arith.addf %820, %821 : vector<8x128xf32>
    %cst_278 = arith.constant 0.000000e+00 : f32
    %823 = vector.broadcast %cst_278 : f32 to vector<8x128xf32>
    %824 = arith.subf %823, %822 : vector<8x128xf32>
    %825 = math.exp %824 : vector<8x128xf32>
    %cst_279 = arith.constant 1.000000e+00 : f32
    %826 = vector.broadcast %cst_279 : f32 to vector<8x128xf32>
    %827 = arith.addf %826, %825 : vector<8x128xf32>
    %cst_280 = arith.constant 1.000000e+00 : f32
    %828 = vector.broadcast %cst_280 : f32 to vector<8x128xf32>
    %829 = arith.divf %828, %827 : vector<8x128xf32>
    %830 = vector.extract_strided_slice %817 {offsets = [0, 128], sizes = [8, 128], strides = [1, 1]} : vector<8x384xf32> to vector<8x128xf32>
    %831 = vector.extract_strided_slice %819 {offsets = [0, 128], sizes = [8, 128], strides = [1, 1]} : vector<8x384xf32> to vector<8x128xf32>
    %832 = arith.addf %830, %831 : vector<8x128xf32>
    %cst_281 = arith.constant 0.000000e+00 : f32
    %833 = vector.broadcast %cst_281 : f32 to vector<8x128xf32>
    %834 = arith.subf %833, %832 : vector<8x128xf32>
    %835 = math.exp %834 : vector<8x128xf32>
    %cst_282 = arith.constant 1.000000e+00 : f32
    %836 = vector.broadcast %cst_282 : f32 to vector<8x128xf32>
    %837 = arith.addf %836, %835 : vector<8x128xf32>
    %cst_283 = arith.constant 1.000000e+00 : f32
    %838 = vector.broadcast %cst_283 : f32 to vector<8x128xf32>
    %839 = arith.divf %838, %837 : vector<8x128xf32>
    %840 = vector.extract_strided_slice %817 {offsets = [0, 256], sizes = [8, 128], strides = [1, 1]} : vector<8x384xf32> to vector<8x128xf32>
    %841 = vector.extract_strided_slice %819 {offsets = [0, 256], sizes = [8, 128], strides = [1, 1]} : vector<8x384xf32> to vector<8x128xf32>
    %842 = arith.mulf %829, %841 : vector<8x128xf32>
    %843 = arith.addf %840, %842 : vector<8x128xf32>
    %844 = math.tanh %843 : vector<8x128xf32>
    %cst_284 = arith.constant 1.000000e+00 : f32
    %845 = vector.broadcast %cst_284 : f32 to vector<8x128xf32>
    %846 = arith.subf %845, %839 : vector<8x128xf32>
    %847 = arith.mulf %846, %844 : vector<8x128xf32>
    %848 = arith.mulf %839, %770 : vector<8x128xf32>
    %849 = arith.addf %847, %848 : vector<8x128xf32>
    %850 = arith.index_cast %c10_i32 : i32 to index
    %c0_285 = arith.constant 0 : index
    %c0_286 = arith.constant 0 : index
    %851 = vector.load %arg16[%850, %c0_285, %c0_286] : memref<16x8x128xf32, #tpu.memory_space<vmem>>, vector<1x8x128xf32>
    %852 = vector.shape_cast %851 : vector<1x8x128xf32> to vector<8x128xf32>
    %853 = vector.shape_cast %849 : vector<8x128xf32> to vector<1x8x128xf32>
    tpu.vector_store %arg16[%850, %c0_285, %c0_286], %853 {strides = array<i32>} : memref<16x8x128xf32, #tpu.memory_space<vmem>>, vector<1x8x128xf32>,
    %c15_i32_287 = arith.constant 15 : i32
    %854 = arith.subi %c15_i32_287, %c10_i32 : i32
    %855 = arith.index_cast %854 : i32 to index
    %c0_288 = arith.constant 0 : index
    %c0_289 = arith.constant 0 : index
    %856 = vector.load %arg15[%855, %c0_288, %c0_289] : memref<16x8x384xf32, #tpu.memory_space<vmem>>, vector<1x8x384xf32>
    %857 = vector.shape_cast %856 : vector<1x8x384xf32> to vector<8x384xf32>
    %cst_290 = arith.constant dense<0.000000e+00> : vector<8x384xf32>
    %858 = tpu.matmul %810, %17, %cst_290 {dimension_numbers = #tpu.dot_dimension_numbers<[1], [0], [0], [1], [0, 0, 1, 1], [], []>} : vector<8x128xf32>, vector<128x384xf32>, vector<8x384xf32> -> vector<8x384xf32>
    %859 = arith.addf %858, %23 : vector<8x384xf32>
    %860 = vector.extract_strided_slice %857 {offsets = [0, 0], sizes = [8, 128], strides = [1, 1]} : vector<8x384xf32> to vector<8x128xf32>
    %861 = vector.extract_strided_slice %859 {offsets = [0, 0], sizes = [8, 128], strides = [1, 1]} : vector<8x384xf32> to vector<8x128xf32>
    %862 = arith.addf %860, %861 : vector<8x128xf32>
    %cst_291 = arith.constant 0.000000e+00 : f32
    %863 = vector.broadcast %cst_291 : f32 to vector<8x128xf32>
    %864 = arith.subf %863, %862 : vector<8x128xf32>
    %865 = math.exp %864 : vector<8x128xf32>
    %cst_292 = arith.constant 1.000000e+00 : f32
    %866 = vector.broadcast %cst_292 : f32 to vector<8x128xf32>
    %867 = arith.addf %866, %865 : vector<8x128xf32>
    %cst_293 = arith.constant 1.000000e+00 : f32
    %868 = vector.broadcast %cst_293 : f32 to vector<8x128xf32>
    %869 = arith.divf %868, %867 : vector<8x128xf32>
    %870 = vector.extract_strided_slice %857 {offsets = [0, 128], sizes = [8, 128], strides = [1, 1]} : vector<8x384xf32> to vector<8x128xf32>
    %871 = vector.extract_strided_slice %859 {offsets = [0, 128], sizes = [8, 128], strides = [1, 1]} : vector<8x384xf32> to vector<8x128xf32>
    %872 = arith.addf %870, %871 : vector<8x128xf32>
    %cst_294 = arith.constant 0.000000e+00 : f32
    %873 = vector.broadcast %cst_294 : f32 to vector<8x128xf32>
    %874 = arith.subf %873, %872 : vector<8x128xf32>
    %875 = math.exp %874 : vector<8x128xf32>
    %cst_295 = arith.constant 1.000000e+00 : f32
    %876 = vector.broadcast %cst_295 : f32 to vector<8x128xf32>
    %877 = arith.addf %876, %875 : vector<8x128xf32>
    %cst_296 = arith.constant 1.000000e+00 : f32
    %878 = vector.broadcast %cst_296 : f32 to vector<8x128xf32>
    %879 = arith.divf %878, %877 : vector<8x128xf32>
    %880 = vector.extract_strided_slice %857 {offsets = [0, 256], sizes = [8, 128], strides = [1, 1]} : vector<8x384xf32> to vector<8x128xf32>
    %881 = vector.extract_strided_slice %859 {offsets = [0, 256], sizes = [8, 128], strides = [1, 1]} : vector<8x384xf32> to vector<8x128xf32>
    %882 = arith.mulf %869, %881 : vector<8x128xf32>
    %883 = arith.addf %880, %882 : vector<8x128xf32>
    %884 = math.tanh %883 : vector<8x128xf32>
    %cst_297 = arith.constant 1.000000e+00 : f32
    %885 = vector.broadcast %cst_297 : f32 to vector<8x128xf32>
    %886 = arith.subf %885, %879 : vector<8x128xf32>
    %887 = arith.mulf %886, %884 : vector<8x128xf32>
    %888 = arith.mulf %879, %810 : vector<8x128xf32>
    %889 = arith.addf %887, %888 : vector<8x128xf32>
    %890 = arith.index_cast %854 : i32 to index
    %c0_298 = arith.constant 0 : index
    %c0_299 = arith.constant 0 : index
    %891 = vector.load %arg17[%890, %c0_298, %c0_299] : memref<16x8x128xf32, #tpu.memory_space<vmem>>, vector<1x8x128xf32>
    %892 = vector.shape_cast %891 : vector<1x8x128xf32> to vector<8x128xf32>
    %893 = vector.shape_cast %889 : vector<8x128xf32> to vector<1x8x128xf32>
    tpu.vector_store %arg17[%890, %c0_298, %c0_299], %893 {strides = array<i32>} : memref<16x8x128xf32, #tpu.memory_space<vmem>>, vector<1x8x128xf32>,
    %c11_i32 = arith.constant 11 : i32
    %894 = arith.index_cast %c11_i32 : i32 to index
    %c0_300 = arith.constant 0 : index
    %c0_301 = arith.constant 0 : index
    %895 = vector.load %arg14[%894, %c0_300, %c0_301] : memref<16x8x384xf32, #tpu.memory_space<vmem>>, vector<1x8x384xf32>
    %896 = vector.shape_cast %895 : vector<1x8x384xf32> to vector<8x384xf32>
    %cst_302 = arith.constant dense<0.000000e+00> : vector<8x384xf32>
    %897 = tpu.matmul %849, %16, %cst_302 {dimension_numbers = #tpu.dot_dimension_numbers<[1], [0], [0], [1], [0, 0, 1, 1], [], []>} : vector<8x128xf32>, vector<128x384xf32>, vector<8x384xf32> -> vector<8x384xf32>
    %898 = arith.addf %897, %20 : vector<8x384xf32>
    %899 = vector.extract_strided_slice %896 {offsets = [0, 0], sizes = [8, 128], strides = [1, 1]} : vector<8x384xf32> to vector<8x128xf32>
    %900 = vector.extract_strided_slice %898 {offsets = [0, 0], sizes = [8, 128], strides = [1, 1]} : vector<8x384xf32> to vector<8x128xf32>
    %901 = arith.addf %899, %900 : vector<8x128xf32>
    %cst_303 = arith.constant 0.000000e+00 : f32
    %902 = vector.broadcast %cst_303 : f32 to vector<8x128xf32>
    %903 = arith.subf %902, %901 : vector<8x128xf32>
    %904 = math.exp %903 : vector<8x128xf32>
    %cst_304 = arith.constant 1.000000e+00 : f32
    %905 = vector.broadcast %cst_304 : f32 to vector<8x128xf32>
    %906 = arith.addf %905, %904 : vector<8x128xf32>
    %cst_305 = arith.constant 1.000000e+00 : f32
    %907 = vector.broadcast %cst_305 : f32 to vector<8x128xf32>
    %908 = arith.divf %907, %906 : vector<8x128xf32>
    %909 = vector.extract_strided_slice %896 {offsets = [0, 128], sizes = [8, 128], strides = [1, 1]} : vector<8x384xf32> to vector<8x128xf32>
    %910 = vector.extract_strided_slice %898 {offsets = [0, 128], sizes = [8, 128], strides = [1, 1]} : vector<8x384xf32> to vector<8x128xf32>
    %911 = arith.addf %909, %910 : vector<8x128xf32>
    %cst_306 = arith.constant 0.000000e+00 : f32
    %912 = vector.broadcast %cst_306 : f32 to vector<8x128xf32>
    %913 = arith.subf %912, %911 : vector<8x128xf32>
    %914 = math.exp %913 : vector<8x128xf32>
    %cst_307 = arith.constant 1.000000e+00 : f32
    %915 = vector.broadcast %cst_307 : f32 to vector<8x128xf32>
    %916 = arith.addf %915, %914 : vector<8x128xf32>
    %cst_308 = arith.constant 1.000000e+00 : f32
    %917 = vector.broadcast %cst_308 : f32 to vector<8x128xf32>
    %918 = arith.divf %917, %916 : vector<8x128xf32>
    %919 = vector.extract_strided_slice %896 {offsets = [0, 256], sizes = [8, 128], strides = [1, 1]} : vector<8x384xf32> to vector<8x128xf32>
    %920 = vector.extract_strided_slice %898 {offsets = [0, 256], sizes = [8, 128], strides = [1, 1]} : vector<8x384xf32> to vector<8x128xf32>
    %921 = arith.mulf %908, %920 : vector<8x128xf32>
    %922 = arith.addf %919, %921 : vector<8x128xf32>
    %923 = math.tanh %922 : vector<8x128xf32>
    %cst_309 = arith.constant 1.000000e+00 : f32
    %924 = vector.broadcast %cst_309 : f32 to vector<8x128xf32>
    %925 = arith.subf %924, %918 : vector<8x128xf32>
    %926 = arith.mulf %925, %923 : vector<8x128xf32>
    %927 = arith.mulf %918, %849 : vector<8x128xf32>
    %928 = arith.addf %926, %927 : vector<8x128xf32>
    %929 = arith.index_cast %c11_i32 : i32 to index
    %c0_310 = arith.constant 0 : index
    %c0_311 = arith.constant 0 : index
    %930 = vector.load %arg16[%929, %c0_310, %c0_311] : memref<16x8x128xf32, #tpu.memory_space<vmem>>, vector<1x8x128xf32>
    %931 = vector.shape_cast %930 : vector<1x8x128xf32> to vector<8x128xf32>
    %932 = vector.shape_cast %928 : vector<8x128xf32> to vector<1x8x128xf32>
    tpu.vector_store %arg16[%929, %c0_310, %c0_311], %932 {strides = array<i32>} : memref<16x8x128xf32, #tpu.memory_space<vmem>>, vector<1x8x128xf32>,
    %c15_i32_312 = arith.constant 15 : i32
    %933 = arith.subi %c15_i32_312, %c11_i32 : i32
    %934 = arith.index_cast %933 : i32 to index
    %c0_313 = arith.constant 0 : index
    %c0_314 = arith.constant 0 : index
    %935 = vector.load %arg15[%934, %c0_313, %c0_314] : memref<16x8x384xf32, #tpu.memory_space<vmem>>, vector<1x8x384xf32>
    %936 = vector.shape_cast %935 : vector<1x8x384xf32> to vector<8x384xf32>
    %cst_315 = arith.constant dense<0.000000e+00> : vector<8x384xf32>
    %937 = tpu.matmul %889, %17, %cst_315 {dimension_numbers = #tpu.dot_dimension_numbers<[1], [0], [0], [1], [0, 0, 1, 1], [], []>} : vector<8x128xf32>, vector<128x384xf32>, vector<8x384xf32> -> vector<8x384xf32>
    %938 = arith.addf %937, %23 : vector<8x384xf32>
    %939 = vector.extract_strided_slice %936 {offsets = [0, 0], sizes = [8, 128], strides = [1, 1]} : vector<8x384xf32> to vector<8x128xf32>
    %940 = vector.extract_strided_slice %938 {offsets = [0, 0], sizes = [8, 128], strides = [1, 1]} : vector<8x384xf32> to vector<8x128xf32>
    %941 = arith.addf %939, %940 : vector<8x128xf32>
    %cst_316 = arith.constant 0.000000e+00 : f32
    %942 = vector.broadcast %cst_316 : f32 to vector<8x128xf32>
    %943 = arith.subf %942, %941 : vector<8x128xf32>
    %944 = math.exp %943 : vector<8x128xf32>
    %cst_317 = arith.constant 1.000000e+00 : f32
    %945 = vector.broadcast %cst_317 : f32 to vector<8x128xf32>
    %946 = arith.addf %945, %944 : vector<8x128xf32>
    %cst_318 = arith.constant 1.000000e+00 : f32
    %947 = vector.broadcast %cst_318 : f32 to vector<8x128xf32>
    %948 = arith.divf %947, %946 : vector<8x128xf32>
    %949 = vector.extract_strided_slice %936 {offsets = [0, 128], sizes = [8, 128], strides = [1, 1]} : vector<8x384xf32> to vector<8x128xf32>
    %950 = vector.extract_strided_slice %938 {offsets = [0, 128], sizes = [8, 128], strides = [1, 1]} : vector<8x384xf32> to vector<8x128xf32>
    %951 = arith.addf %949, %950 : vector<8x128xf32>
    %cst_319 = arith.constant 0.000000e+00 : f32
    %952 = vector.broadcast %cst_319 : f32 to vector<8x128xf32>
    %953 = arith.subf %952, %951 : vector<8x128xf32>
    %954 = math.exp %953 : vector<8x128xf32>
    %cst_320 = arith.constant 1.000000e+00 : f32
    %955 = vector.broadcast %cst_320 : f32 to vector<8x128xf32>
    %956 = arith.addf %955, %954 : vector<8x128xf32>
    %cst_321 = arith.constant 1.000000e+00 : f32
    %957 = vector.broadcast %cst_321 : f32 to vector<8x128xf32>
    %958 = arith.divf %957, %956 : vector<8x128xf32>
    %959 = vector.extract_strided_slice %936 {offsets = [0, 256], sizes = [8, 128], strides = [1, 1]} : vector<8x384xf32> to vector<8x128xf32>
    %960 = vector.extract_strided_slice %938 {offsets = [0, 256], sizes = [8, 128], strides = [1, 1]} : vector<8x384xf32> to vector<8x128xf32>
    %961 = arith.mulf %948, %960 : vector<8x128xf32>
    %962 = arith.addf %959, %961 : vector<8x128xf32>
    %963 = math.tanh %962 : vector<8x128xf32>
    %cst_322 = arith.constant 1.000000e+00 : f32
    %964 = vector.broadcast %cst_322 : f32 to vector<8x128xf32>
    %965 = arith.subf %964, %958 : vector<8x128xf32>
    %966 = arith.mulf %965, %963 : vector<8x128xf32>
    %967 = arith.mulf %958, %889 : vector<8x128xf32>
    %968 = arith.addf %966, %967 : vector<8x128xf32>
    %969 = arith.index_cast %933 : i32 to index
    %c0_323 = arith.constant 0 : index
    %c0_324 = arith.constant 0 : index
    %970 = vector.load %arg17[%969, %c0_323, %c0_324] : memref<16x8x128xf32, #tpu.memory_space<vmem>>, vector<1x8x128xf32>
    %971 = vector.shape_cast %970 : vector<1x8x128xf32> to vector<8x128xf32>
    %972 = vector.shape_cast %968 : vector<8x128xf32> to vector<1x8x128xf32>
    tpu.vector_store %arg17[%969, %c0_323, %c0_324], %972 {strides = array<i32>} : memref<16x8x128xf32, #tpu.memory_space<vmem>>, vector<1x8x128xf32>,
    %c12_i32 = arith.constant 12 : i32
    %973 = arith.index_cast %c12_i32 : i32 to index
    %c0_325 = arith.constant 0 : index
    %c0_326 = arith.constant 0 : index
    %974 = vector.load %arg14[%973, %c0_325, %c0_326] : memref<16x8x384xf32, #tpu.memory_space<vmem>>, vector<1x8x384xf32>
    %975 = vector.shape_cast %974 : vector<1x8x384xf32> to vector<8x384xf32>
    %cst_327 = arith.constant dense<0.000000e+00> : vector<8x384xf32>
    %976 = tpu.matmul %928, %16, %cst_327 {dimension_numbers = #tpu.dot_dimension_numbers<[1], [0], [0], [1], [0, 0, 1, 1], [], []>} : vector<8x128xf32>, vector<128x384xf32>, vector<8x384xf32> -> vector<8x384xf32>
    %977 = arith.addf %976, %20 : vector<8x384xf32>
    %978 = vector.extract_strided_slice %975 {offsets = [0, 0], sizes = [8, 128], strides = [1, 1]} : vector<8x384xf32> to vector<8x128xf32>
    %979 = vector.extract_strided_slice %977 {offsets = [0, 0], sizes = [8, 128], strides = [1, 1]} : vector<8x384xf32> to vector<8x128xf32>
    %980 = arith.addf %978, %979 : vector<8x128xf32>
    %cst_328 = arith.constant 0.000000e+00 : f32
    %981 = vector.broadcast %cst_328 : f32 to vector<8x128xf32>
    %982 = arith.subf %981, %980 : vector<8x128xf32>
    %983 = math.exp %982 : vector<8x128xf32>
    %cst_329 = arith.constant 1.000000e+00 : f32
    %984 = vector.broadcast %cst_329 : f32 to vector<8x128xf32>
    %985 = arith.addf %984, %983 : vector<8x128xf32>
    %cst_330 = arith.constant 1.000000e+00 : f32
    %986 = vector.broadcast %cst_330 : f32 to vector<8x128xf32>
    %987 = arith.divf %986, %985 : vector<8x128xf32>
    %988 = vector.extract_strided_slice %975 {offsets = [0, 128], sizes = [8, 128], strides = [1, 1]} : vector<8x384xf32> to vector<8x128xf32>
    %989 = vector.extract_strided_slice %977 {offsets = [0, 128], sizes = [8, 128], strides = [1, 1]} : vector<8x384xf32> to vector<8x128xf32>
    %990 = arith.addf %988, %989 : vector<8x128xf32>
    %cst_331 = arith.constant 0.000000e+00 : f32
    %991 = vector.broadcast %cst_331 : f32 to vector<8x128xf32>
    %992 = arith.subf %991, %990 : vector<8x128xf32>
    %993 = math.exp %992 : vector<8x128xf32>
    %cst_332 = arith.constant 1.000000e+00 : f32
    %994 = vector.broadcast %cst_332 : f32 to vector<8x128xf32>
    %995 = arith.addf %994, %993 : vector<8x128xf32>
    %cst_333 = arith.constant 1.000000e+00 : f32
    %996 = vector.broadcast %cst_333 : f32 to vector<8x128xf32>
    %997 = arith.divf %996, %995 : vector<8x128xf32>
    %998 = vector.extract_strided_slice %975 {offsets = [0, 256], sizes = [8, 128], strides = [1, 1]} : vector<8x384xf32> to vector<8x128xf32>
    %999 = vector.extract_strided_slice %977 {offsets = [0, 256], sizes = [8, 128], strides = [1, 1]} : vector<8x384xf32> to vector<8x128xf32>
    %1000 = arith.mulf %987, %999 : vector<8x128xf32>
    %1001 = arith.addf %998, %1000 : vector<8x128xf32>
    %1002 = math.tanh %1001 : vector<8x128xf32>
    %cst_334 = arith.constant 1.000000e+00 : f32
    %1003 = vector.broadcast %cst_334 : f32 to vector<8x128xf32>
    %1004 = arith.subf %1003, %997 : vector<8x128xf32>
    %1005 = arith.mulf %1004, %1002 : vector<8x128xf32>
    %1006 = arith.mulf %997, %928 : vector<8x128xf32>
    %1007 = arith.addf %1005, %1006 : vector<8x128xf32>
    %1008 = arith.index_cast %c12_i32 : i32 to index
    %c0_335 = arith.constant 0 : index
    %c0_336 = arith.constant 0 : index
    %1009 = vector.load %arg16[%1008, %c0_335, %c0_336] : memref<16x8x128xf32, #tpu.memory_space<vmem>>, vector<1x8x128xf32>
    %1010 = vector.shape_cast %1009 : vector<1x8x128xf32> to vector<8x128xf32>
    %1011 = vector.shape_cast %1007 : vector<8x128xf32> to vector<1x8x128xf32>
    tpu.vector_store %arg16[%1008, %c0_335, %c0_336], %1011 {strides = array<i32>} : memref<16x8x128xf32, #tpu.memory_space<vmem>>, vector<1x8x128xf32>,
    %c15_i32_337 = arith.constant 15 : i32
    %1012 = arith.subi %c15_i32_337, %c12_i32 : i32
    %1013 = arith.index_cast %1012 : i32 to index
    %c0_338 = arith.constant 0 : index
    %c0_339 = arith.constant 0 : index
    %1014 = vector.load %arg15[%1013, %c0_338, %c0_339] : memref<16x8x384xf32, #tpu.memory_space<vmem>>, vector<1x8x384xf32>
    %1015 = vector.shape_cast %1014 : vector<1x8x384xf32> to vector<8x384xf32>
    %cst_340 = arith.constant dense<0.000000e+00> : vector<8x384xf32>
    %1016 = tpu.matmul %968, %17, %cst_340 {dimension_numbers = #tpu.dot_dimension_numbers<[1], [0], [0], [1], [0, 0, 1, 1], [], []>} : vector<8x128xf32>, vector<128x384xf32>, vector<8x384xf32> -> vector<8x384xf32>
    %1017 = arith.addf %1016, %23 : vector<8x384xf32>
    %1018 = vector.extract_strided_slice %1015 {offsets = [0, 0], sizes = [8, 128], strides = [1, 1]} : vector<8x384xf32> to vector<8x128xf32>
    %1019 = vector.extract_strided_slice %1017 {offsets = [0, 0], sizes = [8, 128], strides = [1, 1]} : vector<8x384xf32> to vector<8x128xf32>
    %1020 = arith.addf %1018, %1019 : vector<8x128xf32>
    %cst_341 = arith.constant 0.000000e+00 : f32
    %1021 = vector.broadcast %cst_341 : f32 to vector<8x128xf32>
    %1022 = arith.subf %1021, %1020 : vector<8x128xf32>
    %1023 = math.exp %1022 : vector<8x128xf32>
    %cst_342 = arith.constant 1.000000e+00 : f32
    %1024 = vector.broadcast %cst_342 : f32 to vector<8x128xf32>
    %1025 = arith.addf %1024, %1023 : vector<8x128xf32>
    %cst_343 = arith.constant 1.000000e+00 : f32
    %1026 = vector.broadcast %cst_343 : f32 to vector<8x128xf32>
    %1027 = arith.divf %1026, %1025 : vector<8x128xf32>
    %1028 = vector.extract_strided_slice %1015 {offsets = [0, 128], sizes = [8, 128], strides = [1, 1]} : vector<8x384xf32> to vector<8x128xf32>
    %1029 = vector.extract_strided_slice %1017 {offsets = [0, 128], sizes = [8, 128], strides = [1, 1]} : vector<8x384xf32> to vector<8x128xf32>
    %1030 = arith.addf %1028, %1029 : vector<8x128xf32>
    %cst_344 = arith.constant 0.000000e+00 : f32
    %1031 = vector.broadcast %cst_344 : f32 to vector<8x128xf32>
    %1032 = arith.subf %1031, %1030 : vector<8x128xf32>
    %1033 = math.exp %1032 : vector<8x128xf32>
    %cst_345 = arith.constant 1.000000e+00 : f32
    %1034 = vector.broadcast %cst_345 : f32 to vector<8x128xf32>
    %1035 = arith.addf %1034, %1033 : vector<8x128xf32>
    %cst_346 = arith.constant 1.000000e+00 : f32
    %1036 = vector.broadcast %cst_346 : f32 to vector<8x128xf32>
    %1037 = arith.divf %1036, %1035 : vector<8x128xf32>
    %1038 = vector.extract_strided_slice %1015 {offsets = [0, 256], sizes = [8, 128], strides = [1, 1]} : vector<8x384xf32> to vector<8x128xf32>
    %1039 = vector.extract_strided_slice %1017 {offsets = [0, 256], sizes = [8, 128], strides = [1, 1]} : vector<8x384xf32> to vector<8x128xf32>
    %1040 = arith.mulf %1027, %1039 : vector<8x128xf32>
    %1041 = arith.addf %1038, %1040 : vector<8x128xf32>
    %1042 = math.tanh %1041 : vector<8x128xf32>
    %cst_347 = arith.constant 1.000000e+00 : f32
    %1043 = vector.broadcast %cst_347 : f32 to vector<8x128xf32>
    %1044 = arith.subf %1043, %1037 : vector<8x128xf32>
    %1045 = arith.mulf %1044, %1042 : vector<8x128xf32>
    %1046 = arith.mulf %1037, %968 : vector<8x128xf32>
    %1047 = arith.addf %1045, %1046 : vector<8x128xf32>
    %1048 = arith.index_cast %1012 : i32 to index
    %c0_348 = arith.constant 0 : index
    %c0_349 = arith.constant 0 : index
    %1049 = vector.load %arg17[%1048, %c0_348, %c0_349] : memref<16x8x128xf32, #tpu.memory_space<vmem>>, vector<1x8x128xf32>
    %1050 = vector.shape_cast %1049 : vector<1x8x128xf32> to vector<8x128xf32>
    %1051 = vector.shape_cast %1047 : vector<8x128xf32> to vector<1x8x128xf32>
    tpu.vector_store %arg17[%1048, %c0_348, %c0_349], %1051 {strides = array<i32>} : memref<16x8x128xf32, #tpu.memory_space<vmem>>, vector<1x8x128xf32>,
    %c13_i32 = arith.constant 13 : i32
    %1052 = arith.index_cast %c13_i32 : i32 to index
    %c0_350 = arith.constant 0 : index
    %c0_351 = arith.constant 0 : index
    %1053 = vector.load %arg14[%1052, %c0_350, %c0_351] : memref<16x8x384xf32, #tpu.memory_space<vmem>>, vector<1x8x384xf32>
    %1054 = vector.shape_cast %1053 : vector<1x8x384xf32> to vector<8x384xf32>
    %cst_352 = arith.constant dense<0.000000e+00> : vector<8x384xf32>
    %1055 = tpu.matmul %1007, %16, %cst_352 {dimension_numbers = #tpu.dot_dimension_numbers<[1], [0], [0], [1], [0, 0, 1, 1], [], []>} : vector<8x128xf32>, vector<128x384xf32>, vector<8x384xf32> -> vector<8x384xf32>
    %1056 = arith.addf %1055, %20 : vector<8x384xf32>
    %1057 = vector.extract_strided_slice %1054 {offsets = [0, 0], sizes = [8, 128], strides = [1, 1]} : vector<8x384xf32> to vector<8x128xf32>
    %1058 = vector.extract_strided_slice %1056 {offsets = [0, 0], sizes = [8, 128], strides = [1, 1]} : vector<8x384xf32> to vector<8x128xf32>
    %1059 = arith.addf %1057, %1058 : vector<8x128xf32>
    %cst_353 = arith.constant 0.000000e+00 : f32
    %1060 = vector.broadcast %cst_353 : f32 to vector<8x128xf32>
    %1061 = arith.subf %1060, %1059 : vector<8x128xf32>
    %1062 = math.exp %1061 : vector<8x128xf32>
    %cst_354 = arith.constant 1.000000e+00 : f32
    %1063 = vector.broadcast %cst_354 : f32 to vector<8x128xf32>
    %1064 = arith.addf %1063, %1062 : vector<8x128xf32>
    %cst_355 = arith.constant 1.000000e+00 : f32
    %1065 = vector.broadcast %cst_355 : f32 to vector<8x128xf32>
    %1066 = arith.divf %1065, %1064 : vector<8x128xf32>
    %1067 = vector.extract_strided_slice %1054 {offsets = [0, 128], sizes = [8, 128], strides = [1, 1]} : vector<8x384xf32> to vector<8x128xf32>
    %1068 = vector.extract_strided_slice %1056 {offsets = [0, 128], sizes = [8, 128], strides = [1, 1]} : vector<8x384xf32> to vector<8x128xf32>
    %1069 = arith.addf %1067, %1068 : vector<8x128xf32>
    %cst_356 = arith.constant 0.000000e+00 : f32
    %1070 = vector.broadcast %cst_356 : f32 to vector<8x128xf32>
    %1071 = arith.subf %1070, %1069 : vector<8x128xf32>
    %1072 = math.exp %1071 : vector<8x128xf32>
    %cst_357 = arith.constant 1.000000e+00 : f32
    %1073 = vector.broadcast %cst_357 : f32 to vector<8x128xf32>
    %1074 = arith.addf %1073, %1072 : vector<8x128xf32>
    %cst_358 = arith.constant 1.000000e+00 : f32
    %1075 = vector.broadcast %cst_358 : f32 to vector<8x128xf32>
    %1076 = arith.divf %1075, %1074 : vector<8x128xf32>
    %1077 = vector.extract_strided_slice %1054 {offsets = [0, 256], sizes = [8, 128], strides = [1, 1]} : vector<8x384xf32> to vector<8x128xf32>
    %1078 = vector.extract_strided_slice %1056 {offsets = [0, 256], sizes = [8, 128], strides = [1, 1]} : vector<8x384xf32> to vector<8x128xf32>
    %1079 = arith.mulf %1066, %1078 : vector<8x128xf32>
    %1080 = arith.addf %1077, %1079 : vector<8x128xf32>
    %1081 = math.tanh %1080 : vector<8x128xf32>
    %cst_359 = arith.constant 1.000000e+00 : f32
    %1082 = vector.broadcast %cst_359 : f32 to vector<8x128xf32>
    %1083 = arith.subf %1082, %1076 : vector<8x128xf32>
    %1084 = arith.mulf %1083, %1081 : vector<8x128xf32>
    %1085 = arith.mulf %1076, %1007 : vector<8x128xf32>
    %1086 = arith.addf %1084, %1085 : vector<8x128xf32>
    %1087 = arith.index_cast %c13_i32 : i32 to index
    %c0_360 = arith.constant 0 : index
    %c0_361 = arith.constant 0 : index
    %1088 = vector.load %arg16[%1087, %c0_360, %c0_361] : memref<16x8x128xf32, #tpu.memory_space<vmem>>, vector<1x8x128xf32>
    %1089 = vector.shape_cast %1088 : vector<1x8x128xf32> to vector<8x128xf32>
    %1090 = vector.shape_cast %1086 : vector<8x128xf32> to vector<1x8x128xf32>
    tpu.vector_store %arg16[%1087, %c0_360, %c0_361], %1090 {strides = array<i32>} : memref<16x8x128xf32, #tpu.memory_space<vmem>>, vector<1x8x128xf32>,
    %c15_i32_362 = arith.constant 15 : i32
    %1091 = arith.subi %c15_i32_362, %c13_i32 : i32
    %1092 = arith.index_cast %1091 : i32 to index
    %c0_363 = arith.constant 0 : index
    %c0_364 = arith.constant 0 : index
    %1093 = vector.load %arg15[%1092, %c0_363, %c0_364] : memref<16x8x384xf32, #tpu.memory_space<vmem>>, vector<1x8x384xf32>
    %1094 = vector.shape_cast %1093 : vector<1x8x384xf32> to vector<8x384xf32>
    %cst_365 = arith.constant dense<0.000000e+00> : vector<8x384xf32>
    %1095 = tpu.matmul %1047, %17, %cst_365 {dimension_numbers = #tpu.dot_dimension_numbers<[1], [0], [0], [1], [0, 0, 1, 1], [], []>} : vector<8x128xf32>, vector<128x384xf32>, vector<8x384xf32> -> vector<8x384xf32>
    %1096 = arith.addf %1095, %23 : vector<8x384xf32>
    %1097 = vector.extract_strided_slice %1094 {offsets = [0, 0], sizes = [8, 128], strides = [1, 1]} : vector<8x384xf32> to vector<8x128xf32>
    %1098 = vector.extract_strided_slice %1096 {offsets = [0, 0], sizes = [8, 128], strides = [1, 1]} : vector<8x384xf32> to vector<8x128xf32>
    %1099 = arith.addf %1097, %1098 : vector<8x128xf32>
    %cst_366 = arith.constant 0.000000e+00 : f32
    %1100 = vector.broadcast %cst_366 : f32 to vector<8x128xf32>
    %1101 = arith.subf %1100, %1099 : vector<8x128xf32>
    %1102 = math.exp %1101 : vector<8x128xf32>
    %cst_367 = arith.constant 1.000000e+00 : f32
    %1103 = vector.broadcast %cst_367 : f32 to vector<8x128xf32>
    %1104 = arith.addf %1103, %1102 : vector<8x128xf32>
    %cst_368 = arith.constant 1.000000e+00 : f32
    %1105 = vector.broadcast %cst_368 : f32 to vector<8x128xf32>
    %1106 = arith.divf %1105, %1104 : vector<8x128xf32>
    %1107 = vector.extract_strided_slice %1094 {offsets = [0, 128], sizes = [8, 128], strides = [1, 1]} : vector<8x384xf32> to vector<8x128xf32>
    %1108 = vector.extract_strided_slice %1096 {offsets = [0, 128], sizes = [8, 128], strides = [1, 1]} : vector<8x384xf32> to vector<8x128xf32>
    %1109 = arith.addf %1107, %1108 : vector<8x128xf32>
    %cst_369 = arith.constant 0.000000e+00 : f32
    %1110 = vector.broadcast %cst_369 : f32 to vector<8x128xf32>
    %1111 = arith.subf %1110, %1109 : vector<8x128xf32>
    %1112 = math.exp %1111 : vector<8x128xf32>
    %cst_370 = arith.constant 1.000000e+00 : f32
    %1113 = vector.broadcast %cst_370 : f32 to vector<8x128xf32>
    %1114 = arith.addf %1113, %1112 : vector<8x128xf32>
    %cst_371 = arith.constant 1.000000e+00 : f32
    %1115 = vector.broadcast %cst_371 : f32 to vector<8x128xf32>
    %1116 = arith.divf %1115, %1114 : vector<8x128xf32>
    %1117 = vector.extract_strided_slice %1094 {offsets = [0, 256], sizes = [8, 128], strides = [1, 1]} : vector<8x384xf32> to vector<8x128xf32>
    %1118 = vector.extract_strided_slice %1096 {offsets = [0, 256], sizes = [8, 128], strides = [1, 1]} : vector<8x384xf32> to vector<8x128xf32>
    %1119 = arith.mulf %1106, %1118 : vector<8x128xf32>
    %1120 = arith.addf %1117, %1119 : vector<8x128xf32>
    %1121 = math.tanh %1120 : vector<8x128xf32>
    %cst_372 = arith.constant 1.000000e+00 : f32
    %1122 = vector.broadcast %cst_372 : f32 to vector<8x128xf32>
    %1123 = arith.subf %1122, %1116 : vector<8x128xf32>
    %1124 = arith.mulf %1123, %1121 : vector<8x128xf32>
    %1125 = arith.mulf %1116, %1047 : vector<8x128xf32>
    %1126 = arith.addf %1124, %1125 : vector<8x128xf32>
    %1127 = arith.index_cast %1091 : i32 to index
    %c0_373 = arith.constant 0 : index
    %c0_374 = arith.constant 0 : index
    %1128 = vector.load %arg17[%1127, %c0_373, %c0_374] : memref<16x8x128xf32, #tpu.memory_space<vmem>>, vector<1x8x128xf32>
    %1129 = vector.shape_cast %1128 : vector<1x8x128xf32> to vector<8x128xf32>
    %1130 = vector.shape_cast %1126 : vector<8x128xf32> to vector<1x8x128xf32>
    tpu.vector_store %arg17[%1127, %c0_373, %c0_374], %1130 {strides = array<i32>} : memref<16x8x128xf32, #tpu.memory_space<vmem>>, vector<1x8x128xf32>,
    %c14_i32 = arith.constant 14 : i32
    %1131 = arith.index_cast %c14_i32 : i32 to index
    %c0_375 = arith.constant 0 : index
    %c0_376 = arith.constant 0 : index
    %1132 = vector.load %arg14[%1131, %c0_375, %c0_376] : memref<16x8x384xf32, #tpu.memory_space<vmem>>, vector<1x8x384xf32>
    %1133 = vector.shape_cast %1132 : vector<1x8x384xf32> to vector<8x384xf32>
    %cst_377 = arith.constant dense<0.000000e+00> : vector<8x384xf32>
    %1134 = tpu.matmul %1086, %16, %cst_377 {dimension_numbers = #tpu.dot_dimension_numbers<[1], [0], [0], [1], [0, 0, 1, 1], [], []>} : vector<8x128xf32>, vector<128x384xf32>, vector<8x384xf32> -> vector<8x384xf32>
    %1135 = arith.addf %1134, %20 : vector<8x384xf32>
    %1136 = vector.extract_strided_slice %1133 {offsets = [0, 0], sizes = [8, 128], strides = [1, 1]} : vector<8x384xf32> to vector<8x128xf32>
    %1137 = vector.extract_strided_slice %1135 {offsets = [0, 0], sizes = [8, 128], strides = [1, 1]} : vector<8x384xf32> to vector<8x128xf32>
    %1138 = arith.addf %1136, %1137 : vector<8x128xf32>
    %cst_378 = arith.constant 0.000000e+00 : f32
    %1139 = vector.broadcast %cst_378 : f32 to vector<8x128xf32>
    %1140 = arith.subf %1139, %1138 : vector<8x128xf32>
    %1141 = math.exp %1140 : vector<8x128xf32>
    %cst_379 = arith.constant 1.000000e+00 : f32
    %1142 = vector.broadcast %cst_379 : f32 to vector<8x128xf32>
    %1143 = arith.addf %1142, %1141 : vector<8x128xf32>
    %cst_380 = arith.constant 1.000000e+00 : f32
    %1144 = vector.broadcast %cst_380 : f32 to vector<8x128xf32>
    %1145 = arith.divf %1144, %1143 : vector<8x128xf32>
    %1146 = vector.extract_strided_slice %1133 {offsets = [0, 128], sizes = [8, 128], strides = [1, 1]} : vector<8x384xf32> to vector<8x128xf32>
    %1147 = vector.extract_strided_slice %1135 {offsets = [0, 128], sizes = [8, 128], strides = [1, 1]} : vector<8x384xf32> to vector<8x128xf32>
    %1148 = arith.addf %1146, %1147 : vector<8x128xf32>
    %cst_381 = arith.constant 0.000000e+00 : f32
    %1149 = vector.broadcast %cst_381 : f32 to vector<8x128xf32>
    %1150 = arith.subf %1149, %1148 : vector<8x128xf32>
    %1151 = math.exp %1150 : vector<8x128xf32>
    %cst_382 = arith.constant 1.000000e+00 : f32
    %1152 = vector.broadcast %cst_382 : f32 to vector<8x128xf32>
    %1153 = arith.addf %1152, %1151 : vector<8x128xf32>
    %cst_383 = arith.constant 1.000000e+00 : f32
    %1154 = vector.broadcast %cst_383 : f32 to vector<8x128xf32>
    %1155 = arith.divf %1154, %1153 : vector<8x128xf32>
    %1156 = vector.extract_strided_slice %1133 {offsets = [0, 256], sizes = [8, 128], strides = [1, 1]} : vector<8x384xf32> to vector<8x128xf32>
    %1157 = vector.extract_strided_slice %1135 {offsets = [0, 256], sizes = [8, 128], strides = [1, 1]} : vector<8x384xf32> to vector<8x128xf32>
    %1158 = arith.mulf %1145, %1157 : vector<8x128xf32>
    %1159 = arith.addf %1156, %1158 : vector<8x128xf32>
    %1160 = math.tanh %1159 : vector<8x128xf32>
    %cst_384 = arith.constant 1.000000e+00 : f32
    %1161 = vector.broadcast %cst_384 : f32 to vector<8x128xf32>
    %1162 = arith.subf %1161, %1155 : vector<8x128xf32>
    %1163 = arith.mulf %1162, %1160 : vector<8x128xf32>
    %1164 = arith.mulf %1155, %1086 : vector<8x128xf32>
    %1165 = arith.addf %1163, %1164 : vector<8x128xf32>
    %1166 = arith.index_cast %c14_i32 : i32 to index
    %c0_385 = arith.constant 0 : index
    %c0_386 = arith.constant 0 : index
    %1167 = vector.load %arg16[%1166, %c0_385, %c0_386] : memref<16x8x128xf32, #tpu.memory_space<vmem>>, vector<1x8x128xf32>
    %1168 = vector.shape_cast %1167 : vector<1x8x128xf32> to vector<8x128xf32>
    %1169 = vector.shape_cast %1165 : vector<8x128xf32> to vector<1x8x128xf32>
    tpu.vector_store %arg16[%1166, %c0_385, %c0_386], %1169 {strides = array<i32>} : memref<16x8x128xf32, #tpu.memory_space<vmem>>, vector<1x8x128xf32>,
    %c15_i32_387 = arith.constant 15 : i32
    %1170 = arith.subi %c15_i32_387, %c14_i32 : i32
    %1171 = arith.index_cast %1170 : i32 to index
    %c0_388 = arith.constant 0 : index
    %c0_389 = arith.constant 0 : index
    %1172 = vector.load %arg15[%1171, %c0_388, %c0_389] : memref<16x8x384xf32, #tpu.memory_space<vmem>>, vector<1x8x384xf32>
    %1173 = vector.shape_cast %1172 : vector<1x8x384xf32> to vector<8x384xf32>
    %cst_390 = arith.constant dense<0.000000e+00> : vector<8x384xf32>
    %1174 = tpu.matmul %1126, %17, %cst_390 {dimension_numbers = #tpu.dot_dimension_numbers<[1], [0], [0], [1], [0, 0, 1, 1], [], []>} : vector<8x128xf32>, vector<128x384xf32>, vector<8x384xf32> -> vector<8x384xf32>
    %1175 = arith.addf %1174, %23 : vector<8x384xf32>
    %1176 = vector.extract_strided_slice %1173 {offsets = [0, 0], sizes = [8, 128], strides = [1, 1]} : vector<8x384xf32> to vector<8x128xf32>
    %1177 = vector.extract_strided_slice %1175 {offsets = [0, 0], sizes = [8, 128], strides = [1, 1]} : vector<8x384xf32> to vector<8x128xf32>
    %1178 = arith.addf %1176, %1177 : vector<8x128xf32>
    %cst_391 = arith.constant 0.000000e+00 : f32
    %1179 = vector.broadcast %cst_391 : f32 to vector<8x128xf32>
    %1180 = arith.subf %1179, %1178 : vector<8x128xf32>
    %1181 = math.exp %1180 : vector<8x128xf32>
    %cst_392 = arith.constant 1.000000e+00 : f32
    %1182 = vector.broadcast %cst_392 : f32 to vector<8x128xf32>
    %1183 = arith.addf %1182, %1181 : vector<8x128xf32>
    %cst_393 = arith.constant 1.000000e+00 : f32
    %1184 = vector.broadcast %cst_393 : f32 to vector<8x128xf32>
    %1185 = arith.divf %1184, %1183 : vector<8x128xf32>
    %1186 = vector.extract_strided_slice %1173 {offsets = [0, 128], sizes = [8, 128], strides = [1, 1]} : vector<8x384xf32> to vector<8x128xf32>
    %1187 = vector.extract_strided_slice %1175 {offsets = [0, 128], sizes = [8, 128], strides = [1, 1]} : vector<8x384xf32> to vector<8x128xf32>
    %1188 = arith.addf %1186, %1187 : vector<8x128xf32>
    %cst_394 = arith.constant 0.000000e+00 : f32
    %1189 = vector.broadcast %cst_394 : f32 to vector<8x128xf32>
    %1190 = arith.subf %1189, %1188 : vector<8x128xf32>
    %1191 = math.exp %1190 : vector<8x128xf32>
    %cst_395 = arith.constant 1.000000e+00 : f32
    %1192 = vector.broadcast %cst_395 : f32 to vector<8x128xf32>
    %1193 = arith.addf %1192, %1191 : vector<8x128xf32>
    %cst_396 = arith.constant 1.000000e+00 : f32
    %1194 = vector.broadcast %cst_396 : f32 to vector<8x128xf32>
    %1195 = arith.divf %1194, %1193 : vector<8x128xf32>
    %1196 = vector.extract_strided_slice %1173 {offsets = [0, 256], sizes = [8, 128], strides = [1, 1]} : vector<8x384xf32> to vector<8x128xf32>
    %1197 = vector.extract_strided_slice %1175 {offsets = [0, 256], sizes = [8, 128], strides = [1, 1]} : vector<8x384xf32> to vector<8x128xf32>
    %1198 = arith.mulf %1185, %1197 : vector<8x128xf32>
    %1199 = arith.addf %1196, %1198 : vector<8x128xf32>
    %1200 = math.tanh %1199 : vector<8x128xf32>
    %cst_397 = arith.constant 1.000000e+00 : f32
    %1201 = vector.broadcast %cst_397 : f32 to vector<8x128xf32>
    %1202 = arith.subf %1201, %1195 : vector<8x128xf32>
    %1203 = arith.mulf %1202, %1200 : vector<8x128xf32>
    %1204 = arith.mulf %1195, %1126 : vector<8x128xf32>
    %1205 = arith.addf %1203, %1204 : vector<8x128xf32>
    %1206 = arith.index_cast %1170 : i32 to index
    %c0_398 = arith.constant 0 : index
    %c0_399 = arith.constant 0 : index
    %1207 = vector.load %arg17[%1206, %c0_398, %c0_399] : memref<16x8x128xf32, #tpu.memory_space<vmem>>, vector<1x8x128xf32>
    %1208 = vector.shape_cast %1207 : vector<1x8x128xf32> to vector<8x128xf32>
    %1209 = vector.shape_cast %1205 : vector<8x128xf32> to vector<1x8x128xf32>
    tpu.vector_store %arg17[%1206, %c0_398, %c0_399], %1209 {strides = array<i32>} : memref<16x8x128xf32, #tpu.memory_space<vmem>>, vector<1x8x128xf32>,
    %c15_i32_400 = arith.constant 15 : i32
    %1210 = arith.index_cast %c15_i32_400 : i32 to index
    %c0_401 = arith.constant 0 : index
    %c0_402 = arith.constant 0 : index
    %1211 = vector.load %arg14[%1210, %c0_401, %c0_402] : memref<16x8x384xf32, #tpu.memory_space<vmem>>, vector<1x8x384xf32>
    %1212 = vector.shape_cast %1211 : vector<1x8x384xf32> to vector<8x384xf32>
    %cst_403 = arith.constant dense<0.000000e+00> : vector<8x384xf32>
    %1213 = tpu.matmul %1165, %16, %cst_403 {dimension_numbers = #tpu.dot_dimension_numbers<[1], [0], [0], [1], [0, 0, 1, 1], [], []>} : vector<8x128xf32>, vector<128x384xf32>, vector<8x384xf32> -> vector<8x384xf32>
    %1214 = arith.addf %1213, %20 : vector<8x384xf32>
    %1215 = vector.extract_strided_slice %1212 {offsets = [0, 0], sizes = [8, 128], strides = [1, 1]} : vector<8x384xf32> to vector<8x128xf32>
    %1216 = vector.extract_strided_slice %1214 {offsets = [0, 0], sizes = [8, 128], strides = [1, 1]} : vector<8x384xf32> to vector<8x128xf32>
    %1217 = arith.addf %1215, %1216 : vector<8x128xf32>
    %cst_404 = arith.constant 0.000000e+00 : f32
    %1218 = vector.broadcast %cst_404 : f32 to vector<8x128xf32>
    %1219 = arith.subf %1218, %1217 : vector<8x128xf32>
    %1220 = math.exp %1219 : vector<8x128xf32>
    %cst_405 = arith.constant 1.000000e+00 : f32
    %1221 = vector.broadcast %cst_405 : f32 to vector<8x128xf32>
    %1222 = arith.addf %1221, %1220 : vector<8x128xf32>
    %cst_406 = arith.constant 1.000000e+00 : f32
    %1223 = vector.broadcast %cst_406 : f32 to vector<8x128xf32>
    %1224 = arith.divf %1223, %1222 : vector<8x128xf32>
    %1225 = vector.extract_strided_slice %1212 {offsets = [0, 128], sizes = [8, 128], strides = [1, 1]} : vector<8x384xf32> to vector<8x128xf32>
    %1226 = vector.extract_strided_slice %1214 {offsets = [0, 128], sizes = [8, 128], strides = [1, 1]} : vector<8x384xf32> to vector<8x128xf32>
    %1227 = arith.addf %1225, %1226 : vector<8x128xf32>
    %cst_407 = arith.constant 0.000000e+00 : f32
    %1228 = vector.broadcast %cst_407 : f32 to vector<8x128xf32>
    %1229 = arith.subf %1228, %1227 : vector<8x128xf32>
    %1230 = math.exp %1229 : vector<8x128xf32>
    %cst_408 = arith.constant 1.000000e+00 : f32
    %1231 = vector.broadcast %cst_408 : f32 to vector<8x128xf32>
    %1232 = arith.addf %1231, %1230 : vector<8x128xf32>
    %cst_409 = arith.constant 1.000000e+00 : f32
    %1233 = vector.broadcast %cst_409 : f32 to vector<8x128xf32>
    %1234 = arith.divf %1233, %1232 : vector<8x128xf32>
    %1235 = vector.extract_strided_slice %1212 {offsets = [0, 256], sizes = [8, 128], strides = [1, 1]} : vector<8x384xf32> to vector<8x128xf32>
    %1236 = vector.extract_strided_slice %1214 {offsets = [0, 256], sizes = [8, 128], strides = [1, 1]} : vector<8x384xf32> to vector<8x128xf32>
    %1237 = arith.mulf %1224, %1236 : vector<8x128xf32>
    %1238 = arith.addf %1235, %1237 : vector<8x128xf32>
    %1239 = math.tanh %1238 : vector<8x128xf32>
    %cst_410 = arith.constant 1.000000e+00 : f32
    %1240 = vector.broadcast %cst_410 : f32 to vector<8x128xf32>
    %1241 = arith.subf %1240, %1234 : vector<8x128xf32>
    %1242 = arith.mulf %1241, %1239 : vector<8x128xf32>
    %1243 = arith.mulf %1234, %1165 : vector<8x128xf32>
    %1244 = arith.addf %1242, %1243 : vector<8x128xf32>
    %1245 = arith.index_cast %c15_i32_400 : i32 to index
    %c0_411 = arith.constant 0 : index
    %c0_412 = arith.constant 0 : index
    %1246 = vector.load %arg16[%1245, %c0_411, %c0_412] : memref<16x8x128xf32, #tpu.memory_space<vmem>>, vector<1x8x128xf32>
    %1247 = vector.shape_cast %1246 : vector<1x8x128xf32> to vector<8x128xf32>
    %1248 = vector.shape_cast %1244 : vector<8x128xf32> to vector<1x8x128xf32>
    tpu.vector_store %arg16[%1245, %c0_411, %c0_412], %1248 {strides = array<i32>} : memref<16x8x128xf32, #tpu.memory_space<vmem>>, vector<1x8x128xf32>,
    %c15_i32_413 = arith.constant 15 : i32
    %1249 = arith.subi %c15_i32_413, %c15_i32_400 : i32
    %1250 = arith.index_cast %1249 : i32 to index
    %c0_414 = arith.constant 0 : index
    %c0_415 = arith.constant 0 : index
    %1251 = vector.load %arg15[%1250, %c0_414, %c0_415] : memref<16x8x384xf32, #tpu.memory_space<vmem>>, vector<1x8x384xf32>
    %1252 = vector.shape_cast %1251 : vector<1x8x384xf32> to vector<8x384xf32>
    %cst_416 = arith.constant dense<0.000000e+00> : vector<8x384xf32>
    %1253 = tpu.matmul %1205, %17, %cst_416 {dimension_numbers = #tpu.dot_dimension_numbers<[1], [0], [0], [1], [0, 0, 1, 1], [], []>} : vector<8x128xf32>, vector<128x384xf32>, vector<8x384xf32> -> vector<8x384xf32>
    %1254 = arith.addf %1253, %23 : vector<8x384xf32>
    %1255 = vector.extract_strided_slice %1252 {offsets = [0, 0], sizes = [8, 128], strides = [1, 1]} : vector<8x384xf32> to vector<8x128xf32>
    %1256 = vector.extract_strided_slice %1254 {offsets = [0, 0], sizes = [8, 128], strides = [1, 1]} : vector<8x384xf32> to vector<8x128xf32>
    %1257 = arith.addf %1255, %1256 : vector<8x128xf32>
    %cst_417 = arith.constant 0.000000e+00 : f32
    %1258 = vector.broadcast %cst_417 : f32 to vector<8x128xf32>
    %1259 = arith.subf %1258, %1257 : vector<8x128xf32>
    %1260 = math.exp %1259 : vector<8x128xf32>
    %cst_418 = arith.constant 1.000000e+00 : f32
    %1261 = vector.broadcast %cst_418 : f32 to vector<8x128xf32>
    %1262 = arith.addf %1261, %1260 : vector<8x128xf32>
    %cst_419 = arith.constant 1.000000e+00 : f32
    %1263 = vector.broadcast %cst_419 : f32 to vector<8x128xf32>
    %1264 = arith.divf %1263, %1262 : vector<8x128xf32>
    %1265 = vector.extract_strided_slice %1252 {offsets = [0, 128], sizes = [8, 128], strides = [1, 1]} : vector<8x384xf32> to vector<8x128xf32>
    %1266 = vector.extract_strided_slice %1254 {offsets = [0, 128], sizes = [8, 128], strides = [1, 1]} : vector<8x384xf32> to vector<8x128xf32>
    %1267 = arith.addf %1265, %1266 : vector<8x128xf32>
    %cst_420 = arith.constant 0.000000e+00 : f32
    %1268 = vector.broadcast %cst_420 : f32 to vector<8x128xf32>
    %1269 = arith.subf %1268, %1267 : vector<8x128xf32>
    %1270 = math.exp %1269 : vector<8x128xf32>
    %cst_421 = arith.constant 1.000000e+00 : f32
    %1271 = vector.broadcast %cst_421 : f32 to vector<8x128xf32>
    %1272 = arith.addf %1271, %1270 : vector<8x128xf32>
    %cst_422 = arith.constant 1.000000e+00 : f32
    %1273 = vector.broadcast %cst_422 : f32 to vector<8x128xf32>
    %1274 = arith.divf %1273, %1272 : vector<8x128xf32>
    %1275 = vector.extract_strided_slice %1252 {offsets = [0, 256], sizes = [8, 128], strides = [1, 1]} : vector<8x384xf32> to vector<8x128xf32>
    %1276 = vector.extract_strided_slice %1254 {offsets = [0, 256], sizes = [8, 128], strides = [1, 1]} : vector<8x384xf32> to vector<8x128xf32>
    %1277 = arith.mulf %1264, %1276 : vector<8x128xf32>
    %1278 = arith.addf %1275, %1277 : vector<8x128xf32>
    %1279 = math.tanh %1278 : vector<8x128xf32>
    %cst_423 = arith.constant 1.000000e+00 : f32
    %1280 = vector.broadcast %cst_423 : f32 to vector<8x128xf32>
    %1281 = arith.subf %1280, %1274 : vector<8x128xf32>
    %1282 = arith.mulf %1281, %1279 : vector<8x128xf32>
    %1283 = arith.mulf %1274, %1205 : vector<8x128xf32>
    %1284 = arith.addf %1282, %1283 : vector<8x128xf32>
    %1285 = arith.index_cast %1249 : i32 to index
    %c0_424 = arith.constant 0 : index
    %c0_425 = arith.constant 0 : index
    %1286 = vector.load %arg17[%1285, %c0_424, %c0_425] : memref<16x8x128xf32, #tpu.memory_space<vmem>>, vector<1x8x128xf32>
    %1287 = vector.shape_cast %1286 : vector<1x8x128xf32> to vector<8x128xf32>
    %1288 = vector.shape_cast %1284 : vector<8x128xf32> to vector<1x8x128xf32>
    tpu.vector_store %arg17[%1285, %c0_424, %c0_425], %1288 {strides = array<i32>} : memref<16x8x128xf32, #tpu.memory_space<vmem>>, vector<1x8x128xf32>,
    %c16_i32 = arith.constant 16 : i32
    %c0_426 = arith.constant 0 : index
    %c0_427 = arith.constant 0 : index
    %c0_428 = arith.constant 0 : index
    %1289 = vector.load %arg16[%c0_426, %c0_427, %c0_428] : memref<16x8x128xf32, #tpu.memory_space<vmem>>, vector<16x8x128xf32>
    %c0_429 = arith.constant 0 : index
    %c0_430 = arith.constant 0 : index
    %c0_431 = arith.constant 0 : index
    %1290 = vector.load %arg17[%c0_429, %c0_430, %c0_431] : memref<16x8x128xf32, #tpu.memory_space<vmem>>, vector<16x8x128xf32>
    %1291 = vector.shape_cast %1289 : vector<16x8x128xf32> to vector<128x128xf32>
    %1292 = vector.shape_cast %1290 : vector<16x8x128xf32> to vector<128x128xf32>
    %c0_432 = arith.constant 0 : index
    %c0_433 = arith.constant 0 : index
    %1293 = vector.load %arg10[%c0_432, %c0_433] : memref<256x256xf32, #tpu.memory_space<vmem>>, vector<128x256xf32>
    %cst_434 = arith.constant dense<0.000000e+00> : vector<128x256xf32>
    %1294 = tpu.matmul %1291, %1293, %cst_434 {dimension_numbers = #tpu.dot_dimension_numbers<[1], [0], [0], [1], [0, 0, 1, 1], [], []>} : vector<128x128xf32>, vector<128x256xf32>, vector<128x256xf32> -> vector<128x256xf32>
    %c128 = arith.constant 128 : index
    %c0_435 = arith.constant 0 : index
    %1295 = vector.load %arg10[%c128, %c0_435] : memref<256x256xf32, #tpu.memory_space<vmem>>, vector<128x256xf32>
    %cst_436 = arith.constant dense<0.000000e+00> : vector<128x256xf32>
    %1296 = tpu.matmul %1292, %1295, %cst_436 {dimension_numbers = #tpu.dot_dimension_numbers<[1], [0], [0], [1], [0, 0, 1, 1], [], []>} : vector<128x128xf32>, vector<128x256xf32>, vector<128x256xf32> -> vector<128x256xf32>
    %1297 = arith.addf %1294, %1296 : vector<128x256xf32>
    %c0_437 = arith.constant 0 : index
    %c0_438 = arith.constant 0 : index
    %1298 = vector.load %arg11[%c0_437, %c0_438] : memref<1x256xf32, #tpu.memory_space<vmem>>, vector<1x256xf32>
    %1299 = vector.broadcast %1298 : vector<1x256xf32> to vector<128x256xf32>
    %1300 = arith.addf %1297, %1299 : vector<128x256xf32>
    %1301 = math.tanh %1300 : vector<128x256xf32>
    %1302 = vector.shape_cast %1301 : vector<128x256xf32> to vector<16x8x256xf32>
    %c0_439 = arith.constant 0 : index
    %c0_440 = arith.constant 0 : index
    %1303 = vector.load %arg12[%c0_439, %c0_440] : memref<1x256xf32, #tpu.memory_space<vmem>>, vector<1x256xf32>
    %1304 = vector.shape_cast %1303 : vector<1x256xf32> to vector<1x1x256xf32>
    %1305 = vector.broadcast %1304 : vector<1x1x256xf32> to vector<16x8x256xf32>
    %1306 = arith.mulf %1302, %1305 : vector<16x8x256xf32>
    %cst_441 = arith.constant dense<0.000000e+00> : vector<16x8xf32>
    %1307 = vector.multi_reduction <add>, %1306, %cst_441 [2] : vector<16x8x256xf32> to vector<16x8xf32>
    %1308 = vector.shape_cast %1307 : vector<16x8xf32> to vector<16x8x1xf32>
    %1309 = math.tanh %1308 : vector<16x8x1xf32>
    %cst_442 = arith.constant dense<0xFF800000> : vector<8x1xf32>
    %1310 = vector.multi_reduction <maximumf>, %1309, %cst_442 [0] : vector<16x8x1xf32> to vector<8x1xf32>
    %1311 = vector.shape_cast %1310 : vector<8x1xf32> to vector<1x8x1xf32>
    %1312 = vector.broadcast %1311 : vector<1x8x1xf32> to vector<16x8x1xf32>
    %1313 = arith.subf %1309, %1312 : vector<16x8x1xf32>
    %1314 = math.exp %1313 : vector<16x8x1xf32>
    %cst_443 = arith.constant dense<0.000000e+00> : vector<8x1xf32>
    %1315 = vector.multi_reduction <add>, %1314, %cst_443 [0] : vector<16x8x1xf32> to vector<8x1xf32>
    %1316 = vector.shape_cast %1315 : vector<8x1xf32> to vector<1x8x1xf32>
    %1317 = vector.broadcast %1316 : vector<1x8x1xf32> to vector<16x8x1xf32>
    %1318 = arith.divf %1314, %1317 : vector<16x8x1xf32>
    %1319 = vector.broadcast %1318 : vector<16x8x1xf32> to vector<16x8x128xf32>
    %1320 = arith.mulf %1289, %1319 : vector<16x8x128xf32>
    %cst_444 = arith.constant dense<0.000000e+00> : vector<8x128xf32>
    %1321 = vector.multi_reduction <add>, %1320, %cst_444 [0] : vector<16x8x128xf32> to vector<8x128xf32>
    %c0_445 = arith.constant 0 : index
    %c0_446 = arith.constant 0 : index
    %1322 = vector.load %arg13[%c0_445, %c0_446] : memref<8x256xf32, #tpu.memory_space<vmem>>, vector<8x128xf32>
    tpu.vector_store %arg13[%c0_445, %c0_446], %1321 {strides = array<i32>} : memref<8x256xf32, #tpu.memory_space<vmem>>, vector<8x128xf32>,
    %1323 = vector.broadcast %1318 : vector<16x8x1xf32> to vector<16x8x128xf32>
    %1324 = arith.mulf %1290, %1323 : vector<16x8x128xf32>
    %cst_447 = arith.constant dense<0.000000e+00> : vector<8x128xf32>
    %1325 = vector.multi_reduction <add>, %1324, %cst_447 [0] : vector<16x8x128xf32> to vector<8x128xf32>
    %c0_448 = arith.constant 0 : index
    %c128_449 = arith.constant 128 : index
    %1326 = vector.load %arg13[%c0_448, %c128_449] : memref<8x256xf32, #tpu.memory_space<vmem>>, vector<8x128xf32>
    tpu.vector_store %arg13[%c0_448, %c128_449], %1325 {strides = array<i32>} : memref<8x256xf32, #tpu.memory_space<vmem>>, vector<8x128xf32>,
    return
  }
  func.func @transform_0(%arg0: i32) -> (i32, i32, i32) {
    %c0_i32 = arith.constant 0 : i32
    %c0_i32_0 = arith.constant 0 : i32
    %c0_i32_1 = arith.constant 0 : i32
    return %c0_i32, %arg0, %c0_i32_0 : i32, i32, i32
  }
  func.func @transform_1(%arg0: i32) -> (i32, i32) {
    %c0_i32 = arith.constant 0 : i32
    %c0_i32_0 = arith.constant 0 : i32
    %c0_i32_1 = arith.constant 0 : i32
    return %c0_i32, %c0_i32_0 : i32, i32
  }
  func.func @transform_2(%arg0: i32) -> (i32, i32) {
    %c0_i32 = arith.constant 0 : i32
    %c0_i32_0 = arith.constant 0 : i32
    %c0_i32_1 = arith.constant 0 : i32
    return %c0_i32, %c0_i32_0 : i32, i32
  }
  func.func @transform_3(%arg0: i32) -> (i32, i32) {
    %c0_i32 = arith.constant 0 : i32
    %c0_i32_0 = arith.constant 0 : i32
    %c0_i32_1 = arith.constant 0 : i32
    return %c0_i32, %c0_i32_0 : i32, i32
  }
  func.func @transform_4(%arg0: i32) -> (i32, i32) {
    %c0_i32 = arith.constant 0 : i32
    %c0_i32_0 = arith.constant 0 : i32
    %c0_i32_1 = arith.constant 0 : i32
    return %c0_i32, %c0_i32_0 : i32, i32
  }
  func.func @transform_5(%arg0: i32) -> (i32, i32) {
    %c0_i32 = arith.constant 0 : i32
    %c0_i32_0 = arith.constant 0 : i32
    %c0_i32_1 = arith.constant 0 : i32
    return %c0_i32, %c0_i32_0 : i32, i32
  }
  func.func @transform_6(%arg0: i32) -> (i32, i32) {
    %c0_i32 = arith.constant 0 : i32
    %c0_i32_0 = arith.constant 0 : i32
    %c0_i32_1 = arith.constant 0 : i32
    return %c0_i32, %c0_i32_0 : i32, i32
  }
  func.func @transform_7(%arg0: i32) -> (i32, i32) {
    %c0_i32 = arith.constant 0 : i32
    %c0_i32_0 = arith.constant 0 : i32
    %c0_i32_1 = arith.constant 0 : i32
    return %c0_i32, %c0_i32_0 : i32, i32
  }
  func.func @transform_8(%arg0: i32) -> (i32, i32) {
    %c0_i32 = arith.constant 0 : i32
    %c0_i32_0 = arith.constant 0 : i32
    %c0_i32_1 = arith.constant 0 : i32
    return %c0_i32, %c0_i32_0 : i32, i32
  }
  func.func @transform_9(%arg0: i32) -> (i32, i32) {
    %c0_i32 = arith.constant 0 : i32
    %c0_i32_0 = arith.constant 0 : i32
    %c0_i32_1 = arith.constant 0 : i32
    return %c0_i32, %c0_i32_0 : i32, i32
  }
  func.func @transform_10(%arg0: i32) -> (i32, i32) {
    %c0_i32 = arith.constant 0 : i32
    %c0_i32_0 = arith.constant 0 : i32
    %c0_i32_1 = arith.constant 0 : i32
    return %c0_i32, %c0_i32_0 : i32, i32
  }
  func.func @transform_11(%arg0: i32) -> (i32, i32) {
    %c0_i32 = arith.constant 0 : i32
    %c0_i32_0 = arith.constant 0 : i32
    %c0_i32_1 = arith.constant 0 : i32
    return %c0_i32, %c0_i32_0 : i32, i32
  }
  func.func @transform_12(%arg0: i32) -> (i32, i32) {
    %c0_i32 = arith.constant 0 : i32
    %c0_i32_0 = arith.constant 0 : i32
    return %arg0, %c0_i32 : i32, i32
  }
}

</mosaic_0001>

<llo_original>
// kernel: tpu_custom_call.1
$region0: #{tpu_custom_call.1}
  #allocation0 [shape = 'u32[]', space=smem, size = 0x4, offset = 0x4, fixed_abs, tag = 'smem constant byte address 0x4 - core index']
  #allocation1 [shape = 'u32[144,128]{1,0:T(1,128)}', space=vmem, size = 0x12000, scoped, tag = 'internal scratch']
  #allocation2 [shape = 'f32[16,8,384]{2,1,0:T(8,128)}', space=vmem, size = 0x30000, scoped, tag = 'scratch operand']
  #allocation3 [shape = 'f32[16,8,384]{2,1,0:T(8,128)}', space=vmem, size = 0x30000, scoped, tag = 'scratch operand']
  #allocation4 [shape = 'f32[16,8,128]{2,1,0:T(8,128)}', space=vmem, size = 0x10000, scoped, tag = 'scratch operand']
  #allocation5 [shape = 'f32[16,8,128]{2,1,0:T(8,128)}', space=vmem, size = 0x10000, scoped, tag = 'scratch operand']
  %s0 = inlined_call_operand.hbm [shape: f32[16,8,128], index: 0, kind: input, shape index: {}]
  %s1 = inlined_call_operand.hbm [shape: f32[128,384], index: 1, kind: input, shape index: {}]
  %s2 = inlined_call_operand.hbm [shape: f32[128,384], index: 2, kind: input, shape index: {}]
  %s3 = inlined_call_operand.vmem [shape: f32[1,384], index: 3, kind: input, shape index: {}]
  %s4 = inlined_call_operand.vmem [shape: f32[1,384], index: 4, kind: input, shape index: {}]
  %s5 = inlined_call_operand.hbm [shape: f32[128,384], index: 5, kind: input, shape index: {}]
  %s6 = inlined_call_operand.hbm [shape: f32[128,384], index: 6, kind: input, shape index: {}]
  %s7 = inlined_call_operand.vmem [shape: f32[1,384], index: 7, kind: input, shape index: {}]
  %s8 = inlined_call_operand.vmem [shape: f32[1,384], index: 8, kind: input, shape index: {}]
  %s9 = inlined_call_operand.hbm [shape: f32[256,256], index: 9, kind: input, shape index: {}]
  %s10 = inlined_call_operand.vmem [shape: f32[1,256], index: 10, kind: input, shape index: {}]
  %s11 = inlined_call_operand.vmem [shape: f32[1,256], index: 11, kind: input, shape index: {}]
  %s12 = inlined_call_operand.hbm [shape: f32[8,256], index: 12, kind: output, shape index: {}]
  %s13 = sld [smem:[#allocation0]]
  $region82: #{tpu_custom_call.1} parent=0
    _
  %s15 = ssub.s32 1, %s13
  %s16 = scalar_select 0, %s15, %s13
  $region1: #{tpu_custom_call.1} parent=0
    #allocation6 [shape = 'u8[65536]{0}', space=vmem, size = 0x10000, scoped, tag = 'input window, operand 0, single buffered']
    #allocation7 [shape = 's32[1]{0}', space=sflag, size = 0x4, scoped, tag = 'scoped memory for tpu_custom_call.1']
    #allocation8 [shape = 's32[1]{0}', space=sflag, size = 0x4, scoped, tag = 'scoped memory for tpu_custom_call.1']
    #allocation9 [shape = 'u8[196608]{0}', space=vmem, size = 0x30000, scoped, tag = 'input window, operand 1, single buffered']
    #allocation10 [shape = 's32[1]{0}', space=sflag, size = 0x4, scoped, tag = 'scoped memory for tpu_custom_call.1']
    #allocation11 [shape = 'u8[196608]{0}', space=vmem, size = 0x30000, scoped, tag = 'input window, operand 2, single buffered']
    #allocation12 [shape = 'u8[196608]{0}', space=vmem, size = 0x30000, scoped, tag = 'input window, operand 5, single buffered']
    #allocation13 [shape = 's32[1]{0}', space=sflag, size = 0x4, scoped, tag = 'scoped memory for tpu_custom_call.1']
    #allocation14 [shape = 'u8[196608]{0}', space=vmem, size = 0x30000, scoped, tag = 'input window, operand 6, single buffered']
    #allocation15 [shape = 'u8[262144]{0}', space=vmem, size = 0x40000, scoped, tag = 'input window, operand 9, single buffered']
    #allocation16 [shape = 's32[1]{0}', space=sflag, size = 0x4, scoped, tag = 'scoped memory for tpu_custom_call.1']
    #allocation17 [shape = 'u8[8192]{0}', space=vmem, size = 0x2000, scoped, tag = 'output window, operand 0, single buffered']
    %17 = vsyncpa [#allocation7], 0
    %18 = vsyncpa [#allocation10], 0
    %19 = vsyncpa [#allocation13], 0
    %20 = vsyncpa [#allocation16], 0
    %21 = vsyncpa [#allocation8], 0
    // Predicated region
    $region2: #{tpu_custom_call.1} parent=1 // pred_check
      _
    $region3: #{tpu_custom_call.1} parent=1 // pred_check_branch
      %23 = sbr.rel (0) target = $region5
    $region4: #{tpu_custom_call.1} parent=1 // pred_region
      %s25 = ssub.s32 2048, 2048
      %26 = vsyncadd [#allocation7], %s25
      %s27 = sshll.u32 [#allocation6], 4
      %s28 = int_to_ptr.vmem [resolvable:$true] %s27
      %33 = dma.hbm_to_vmem [thread:$0]  %s0, 2048, %s28, [#allocation7], 128, 128, 8
    $region5: #{tpu_custom_call.1} parent=1 // pred_fallthru
      _
    // Predicated region
    $region6: #{tpu_custom_call.1} parent=1 // pred_check
      _
    $region7: #{tpu_custom_call.1} parent=1 // pred_check_branch
      %35 = sbr.rel (0) target = $region9
    $region8: #{tpu_custom_call.1} parent=1 // pred_region
      %s37 = ssub.s32 6144, 6144
      %38 = vsyncadd [#allocation10], %s37
      %s39 = sshll.u32 [#allocation9], 4
      %s40 = int_to_ptr.vmem [resolvable:$true] %s39
      %45 = dma.hbm_to_vmem [thread:$0]  %s1, 6144, %s40, [#allocation10], 384, 384, 24
    $region9: #{tpu_custom_call.1} parent=1 // pred_fallthru
      _
    // Predicated region
    $region10: #{tpu_custom_call.1} parent=1 // pred_check
      _
    $region11: #{tpu_custom_call.1} parent=1 // pred_check_branch
      %47 = sbr.rel (0) target = $region13
    $region12: #{tpu_custom_call.1} parent=1 // pred_region
      %s49 = ssub.s32 6144, 6144
      %50 = vsyncadd [#allocation10], %s49
      %s51 = sshll.u32 [#allocation11], 4
      %s52 = int_to_ptr.vmem [resolvable:$true] %s51
      %57 = dma.hbm_to_vmem [thread:$0]  %s2, 6144, %s52, [#allocation10], 384, 384, 24
    $region13: #{tpu_custom_call.1} parent=1 // pred_fallthru
      _
    // Predicated region
    $region14: #{tpu_custom_call.1} parent=1 // pred_check
      _
    $region15: #{tpu_custom_call.1} parent=1 // pred_check_branch
      %59 = sbr.rel (0) target = $region17
    $region16: #{tpu_custom_call.1} parent=1 // pred_region
      _
    $region17: #{tpu_custom_call.1} parent=1 // pred_fallthru
      _
    // Predicated region
    $region18: #{tpu_custom_call.1} parent=1 // pred_check
      _
    $region19: #{tpu_custom_call.1} parent=1 // pred_check_branch
      %61 = sbr.rel (0) target = $region21
    $region20: #{tpu_custom_call.1} parent=1 // pred_region
      _
    $region21: #{tpu_custom_call.1} parent=1 // pred_fallthru
      _
    // Predicated region
    $region22: #{tpu_custom_call.1} parent=1 // pred_check
      _
    $region23: #{tpu_custom_call.1} parent=1 // pred_check_branch
      %63 = sbr.rel (0) target = $region25
    $region24: #{tpu_custom_call.1} parent=1 // pred_region
      %s65 = ssub.s32 6144, 6144
      %66 = vsyncadd [#allocation13], %s65
      %s67 = sshll.u32 [#allocation12], 4
      %s68 = int_to_ptr.vmem [resolvable:$true] %s67
      %73 = dma.hbm_to_vmem [thread:$0]  %s5, 6144, %s68, [#allocation13], 384, 384, 24
    $region25: #{tpu_custom_call.1} parent=1 // pred_fallthru
      _
    // Predicated region
    $region26: #{tpu_custom_call.1} parent=1 // pred_check
      _
    $region27: #{tpu_custom_call.1} parent=1 // pred_check_branch
      %75 = sbr.rel (0) target = $region29
    $region28: #{tpu_custom_call.1} parent=1 // pred_region
      %s77 = ssub.s32 6144, 6144
      %78 = vsyncadd [#allocation13], %s77
      %s79 = sshll.u32 [#allocation14], 4
      %s80 = int_to_ptr.vmem [resolvable:$true] %s79
      %85 = dma.hbm_to_vmem [thread:$0]  %s6, 6144, %s80, [#allocation13], 384, 384, 24
    $region29: #{tpu_custom_call.1} parent=1 // pred_fallthru
      _
    // Predicated region
    $region30: #{tpu_custom_call.1} parent=1 // pred_check
      _
    $region31: #{tpu_custom_call.1} parent=1 // pred_check_branch
      %87 = sbr.rel (0) target = $region33
    $region32: #{tpu_custom_call.1} parent=1 // pred_region
      _
    $region33: #{tpu_custom_call.1} parent=1 // pred_fallthru
      _
    // Predicated region
    $region34: #{tpu_custom_call.1} parent=1 // pred_check
      _
    $region35: #{tpu_custom_call.1} parent=1 // pred_check_branch
      %89 = sbr.rel (0) target = $region37
    $region36: #{tpu_custom_call.1} parent=1 // pred_region
      _
    $region37: #{tpu_custom_call.1} parent=1 // pred_fallthru
      _
    // Predicated region
    $region38: #{tpu_custom_call.1} parent=1 // pred_check
      _
    $region39: #{tpu_custom_call.1} parent=1 // pred_check_branch
      %91 = sbr.rel (0) target = $region41
    $region40: #{tpu_custom_call.1} parent=1 // pred_region
      %s93 = ssub.s32 8192, 8192
      %94 = vsyncadd [#allocation16], %s93
      %s95 = sshll.u32 [#allocation15], 4
      %s96 = int_to_ptr.vmem [resolvable:$true] %s95
      %101 = dma.hbm_to_vmem [thread:$0]  %s9, 8192, %s96, [#allocation16], 256, 256, 16
    $region41: #{tpu_custom_call.1} parent=1 // pred_fallthru
      _
    // Predicated region
    $region42: #{tpu_custom_call.1} parent=1 // pred_check
      _
    $region43: #{tpu_custom_call.1} parent=1 // pred_check_branch
      %103 = sbr.rel (0) target = $region45
    $region44: #{tpu_custom_call.1} parent=1 // pred_region
      _
    $region45: #{tpu_custom_call.1} parent=1 // pred_fallthru
      _
    // Predicated region
    $region46: #{tpu_custom_call.1} parent=1 // pred_check
      _
    $region47: #{tpu_custom_call.1} parent=1 // pred_check_branch
      %105 = sbr.rel (0) target = $region49
    $region48: #{tpu_custom_call.1} parent=1 // pred_region
      _
    $region49: #{tpu_custom_call.1} parent=1 // pred_fallthru
      _
    // Predicated region
    $region50: #{tpu_custom_call.1} parent=1 // pred_check
      _
    $region51: #{tpu_custom_call.1} parent=1 // pred_check_branch
      %107 = sbr.rel (0) target = $region53
    $region52: #{tpu_custom_call.1} parent=1 // pred_region
      %108 = dma.done [#allocation7], 2048
    $region53: #{tpu_custom_call.1} parent=1 // pred_fallthru
      _
    // Predicated region
    $region54: #{tpu_custom_call.1} parent=1 // pred_check
      _
    $region55: #{tpu_custom_call.1} parent=1 // pred_check_branch
      %110 = sbr.rel (0) target = $region57
    $region56: #{tpu_custom_call.1} parent=1 // pred_region
      %111 = dma.done [#allocation10], 6144
    $region57: #{tpu_custom_call.1} parent=1 // pred_fallthru
      _
    // Predicated region
    $region58: #{tpu_custom_call.1} parent=1 // pred_check
      _
    $region59: #{tpu_custom_call.1} parent=1 // pred_check_branch
      %113 = sbr.rel (0) target = $region61
    $region60: #{tpu_custom_call.1} parent=1 // pred_region
      %114 = dma.done [#allocation10], 6144
    $region61: #{tpu_custom_call.1} parent=1 // pred_fallthru
      _
    // Predicated region
    $region62: #{tpu_custom_call.1} parent=1 // pred_check
      _
    $region63: #{tpu_custom_call.1} parent=1 // pred_check_branch
      %116 = sbr.rel (0) target = $region65
    $region64: #{tpu_custom_call.1} parent=1 // pred_region
      %117 = dma.done [#allocation13], 6144
    $region65: #{tpu_custom_call.1} parent=1 // pred_fallthru
      _
    // Predicated region
    $region66: #{tpu_custom_call.1} parent=1 // pred_check
      _
    $region67: #{tpu_custom_call.1} parent=1 // pred_check_branch
      %119 = sbr.rel (0) target = $region69
    $region68: #{tpu_custom_call.1} parent=1 // pred_region
      %120 = dma.done [#allocation13], 6144
    $region69: #{tpu_custom_call.1} parent=1 // pred_fallthru
      _
    // Predicated region
    $region70: #{tpu_custom_call.1} parent=1 // pred_check
      _
    $region71: #{tpu_custom_call.1} parent=1 // pred_check_branch
      %122 = sbr.rel (0) target = $region73
    $region72: #{tpu_custom_call.1} parent=1 // pred_region
      %123 = dma.done [#allocation16], 8192
    $region73: #{tpu_custom_call.1} parent=1 // pred_fallthru
      _
    %v124 = vld [vmem:[#allocation6] sm:$0xff]
    %v125 = vld [vmem:[#allocation6 + $0x8] sm:$0xff]
    %v126 = vld [vmem:[#allocation6 + $0x10] sm:$0xff]
    %v127 = vld [vmem:[#allocation6 + $0x18] sm:$0xff]
    %v128 = vld [vmem:[#allocation6 + $0x20] sm:$0xff]
    %v129 = vld [vmem:[#allocation6 + $0x28] sm:$0xff]
    %v130 = vld [vmem:[#allocation6 + $0x30] sm:$0xff]
    %v131 = vld [vmem:[#allocation6 + $0x38] sm:$0xff]
    %v132 = vld [vmem:[#allocation6 + $0x40] sm:$0xff]
    %v133 = vld [vmem:[#allocation6 + $0x48] sm:$0xff]
    %v134 = vld [vmem:[#allocation6 + $0x50] sm:$0xff]
    %v135 = vld [vmem:[#allocation6 + $0x58] sm:$0xff]
    %v136 = vld [vmem:[#allocation6 + $0x60] sm:$0xff]
    %v137 = vld [vmem:[#allocation6 + $0x68] sm:$0xff]
    %v138 = vld [vmem:[#allocation6 + $0x70] sm:$0xff]
    %v139 = vld [vmem:[#allocation6 + $0x78] sm:$0xff]
    %v140 = vld [vmem:[#allocation9] sm:$0xff]
    %v141 = vld [vmem:[#allocation9 + $0x8] sm:$0xff]
    %v142 = vld [vmem:[#allocation9 + $0x10] sm:$0xff]
    %v143 = vld [vmem:[#allocation9 + $0x18] sm:$0xff]
    %v144 = vld [vmem:[#allocation9 + $0x20] sm:$0xff]
    %v145 = vld [vmem:[#allocation9 + $0x28] sm:$0xff]
    %v146 = vld [vmem:[#allocation9 + $0x30] sm:$0xff]
    %v147 = vld [vmem:[#allocation9 + $0x38] sm:$0xff]
    %v148 = vld [vmem:[#allocation9 + $0x40] sm:$0xff]
    %v149 = vld [vmem:[#allocation9 + $0x48] sm:$0xff]
    %v150 = vld [vmem:[#allocation9 + $0x50] sm:$0xff]
    %v151 = vld [vmem:[#allocation9 + $0x58] sm:$0xff]
    %v152 = vld [vmem:[#allocation9 + $0x60] sm:$0xff]
    %v153 = vld [vmem:[#allocation9 + $0x68] sm:$0xff]
    %v154 = vld [vmem:[#allocation9 + $0x70] sm:$0xff]
    %v155 = vld [vmem:[#allocation9 + $0x78] sm:$0xff]
    %v156 = vld [vmem:[#allocation9 + $0x80] sm:$0xff]
    %v157 = vld [vmem:[#allocation9 + $0x88] sm:$0xff]
    %v158 = vld [vmem:[#allocation9 + $0x90] sm:$0xff]
    %v159 = vld [vmem:[#allocation9 + $0x98] sm:$0xff]
    %v160 = vld [vmem:[#allocation9 + $0xa0] sm:$0xff]
    %v161 = vld [vmem:[#allocation9 + $0xa8] sm:$0xff]
    %v162 = vld [vmem:[#allocation9 + $0xb0] sm:$0xff]
    %v163 = vld [vmem:[#allocation9 + $0xb8] sm:$0xff]
    %v164 = vld [vmem:[#allocation9 + $0xc0] sm:$0xff]
    %v165 = vld [vmem:[#allocation9 + $0xc8] sm:$0xff]
    %v166 = vld [vmem:[#allocation9 + $0xd0] sm:$0xff]
    %v167 = vld [vmem:[#allocation9 + $0xd8] sm:$0xff]
    %v168 = vld [vmem:[#allocation9 + $0xe0] sm:$0xff]
    %v169 = vld [vmem:[#allocation9 + $0xe8] sm:$0xff]
    %v170 = vld [vmem:[#allocation9 + $0xf0] sm:$0xff]
    %v171 = vld [vmem:[#allocation9 + $0xf8] sm:$0xff]
    %v172 = vld [vmem:[#allocation9 + $0x100] sm:$0xff]
    %v173 = vld [vmem:[#allocation9 + $0x108] sm:$0xff]
    %v174 = vld [vmem:[#allocation9 + $0x110] sm:$0xff]
    %v175 = vld [vmem:[#allocation9 + $0x118] sm:$0xff]
    %v176 = vld [vmem:[#allocation9 + $0x120] sm:$0xff]
    %v177 = vld [vmem:[#allocation9 + $0x128] sm:$0xff]
    %v178 = vld [vmem:[#allocation9 + $0x130] sm:$0xff]
    %v179 = vld [vmem:[#allocation9 + $0x138] sm:$0xff]
    %v180 = vld [vmem:[#allocation9 + $0x140] sm:$0xff]
    %v181 = vld [vmem:[#allocation9 + $0x148] sm:$0xff]
    %v182 = vld [vmem:[#allocation9 + $0x150] sm:$0xff]
    %v183 = vld [vmem:[#allocation9 + $0x158] sm:$0xff]
    %v184 = vld [vmem:[#allocation9 + $0x160] sm:$0xff]
    %v185 = vld [vmem:[#allocation9 + $0x168] sm:$0xff]
    %v186 = vld [vmem:[#allocation9 + $0x170] sm:$0xff]
    %v187 = vld [vmem:[#allocation9 + $0x178] sm:$0xff]
    %v188 = vld [vmem:[%s3] sm:$0x7]
    %v190 = vlaneseq
    %v191 = vshrl.u32 %v190, 7
    %v192 = vsub.s32 0, %v191
    %v193 = vrot.slane %v188, %v192
    %v194 = vlaneseq
    %v195 = vshrl.u32 %v194, 7
    %v196 = vsub.s32 1, %v195
    %v197 = vrot.slane %v188, %v196
    %v198 = vlaneseq
    %v199 = vshrl.u32 %v198, 7
    %v200 = vsub.s32 2, %v199
    %v201 = vrot.slane %v188, %v200
    %205 = vmatprep.subr.mxu0 %v141
    %206 = vmatpush1.msra.mxu0 %v140
    %207 = vmatprep.subr.mxu0 %v144
    %208 = vmatpush1.msra.mxu0 %v143
    %209 = vmatprep.subr.mxu0 %v147
    %210 = vmatpush1.msra.mxu0 %v146
    %211 = vmatprep.subr.mxu0 %v150
    %212 = vmatpush1.msra.mxu0 %v149
    %213 = vmatprep.subr.mxu0 %v153
    %214 = vmatpush1.msra.mxu0 %v152
    %215 = vmatprep.subr.mxu0 %v156
    %216 = vmatpush1.msra.mxu0 %v155
    %217 = vmatprep.subr.mxu0 %v159
    %218 = vmatpush1.msra.mxu0 %v158
    %219 = vmatprep.subr.mxu0 %v162
    %220 = vmatpush1.msra.mxu0 %v161
    %221 = vmatprep.subr.mxu0 %v165
    %222 = vmatpush1.msra.mxu0 %v164
    %223 = vmatprep.subr.mxu0 %v168
    %224 = vmatpush1.msra.mxu0 %v167
    %225 = vmatprep.subr.mxu0 %v171
    %226 = vmatpush1.msra.mxu0 %v170
    %227 = vmatprep.subr.mxu0 %v174
    %228 = vmatpush1.msra.mxu0 %v173
    %229 = vmatprep.subr.mxu0 %v177
    %230 = vmatpush1.msra.mxu0 %v176
    %231 = vmatprep.subr.mxu0 %v180
    %232 = vmatpush1.msra.mxu0 %v179
    %233 = vmatprep.subr.mxu0 %v183
    %234 = vmatpush1.msra.mxu0 %v182
    %235 = vmatprep.subr.mxu0 %v186
    %236 = vmatpush1.msra.mxu0 %v185
    %237 = vmatprep.subr.mxu0 0.0
    %238 = vmatpush1.msra.mxu0 0.0
    %239 = vmatprep.subr.mxu0 0.0
    %240 = vmatpush1.msra.mxu0 0.0
    %241 = vmatprep.subr.mxu0 0.0
    %242 = vmatpush1.msra.mxu0 0.0
    %243 = vmatprep.subr.mxu0 0.0
    %244 = vmatpush1.msra.mxu0 0.0
    %245 = vmatprep.subr.mxu0 0.0
    %246 = vmatpush1.msra.mxu0 0.0
    %247 = vmatprep.subr.mxu0 0.0
    %248 = vmatpush1.msra.mxu0 0.0
    %249 = vmatprep.subr.mxu0 0.0
    %250 = vmatpush1.msra.mxu0 0.0
    %251 = vmatprep.subr.mxu0 0.0
    %252 = vmatpush1.msra.mxu0 0.0
    %253 = vmatprep.subr.mxu0 0.0
    %254 = vmatpush1.msra.mxu0 0.0
    %255 = vmatprep.subr.mxu0 0.0
    %256 = vmatpush1.msra.mxu0 0.0
    %257 = vmatprep.subr.mxu0 0.0
    %258 = vmatpush1.msra.mxu0 0.0
    %259 = vmatprep.subr.mxu0 0.0
    %260 = vmatpush1.msra.mxu0 0.0
    %261 = vmatprep.subr.mxu0 0.0
    %262 = vmatpush1.msra.mxu0 0.0
    %263 = vmatprep.subr.mxu0 0.0
    %264 = vmatpush1.msra.mxu0 0.0
    %265 = vmatprep.subr.mxu0 0.0
    %266 = vmatpush1.msra.mxu0 0.0
    %267 = vmatprep.subr.mxu0 0.0
    %268 = vmatpush1.msra.mxu0 0.0
    %269 = vmatprep.mubr.f32.mxu0 0.0
    %270 = vmatmul.mubr.f32.gmra.mrb[0].mxu0 %v124
    %v271 = vpop.f32.mrb[0].mxu0
    %v272 = vadd.f32 %v193, %v271
    %v273 = vpop.f32.mrb[0].mxu0
    %v274 = vadd.f32 %v197, %v273
    %275 = vmatprep.mubr.f32.mxu0 0.0
    %276 = vmatmul.mubr.f32.gmra.mrb[0].mxu0 %v125
    %v277 = vpop.f32.mrb[0].mxu0
    %v278 = vadd.f32 %v193, %v277
    %v279 = vpop.f32.mrb[0].mxu0
    %v280 = vadd.f32 %v197, %v279
    %281 = vmatprep.mubr.f32.mxu0 0.0
    %282 = vmatmul.mubr.f32.gmra.mrb[0].mxu0 %v126
    %v283 = vpop.f32.mrb[0].mxu0
    %v284 = vadd.f32 %v193, %v283
    %v285 = vpop.f32.mrb[0].mxu0
    %v286 = vadd.f32 %v197, %v285
    %287 = vmatprep.mubr.f32.mxu0 0.0
    %288 = vmatmul.mubr.f32.gmra.mrb[0].mxu0 %v127
    %v289 = vpop.f32.mrb[0].mxu0
    %v290 = vadd.f32 %v193, %v289
    %v291 = vpop.f32.mrb[0].mxu0
    %v292 = vadd.f32 %v197, %v291
    %293 = vmatprep.mubr.f32.mxu0 0.0
    %294 = vmatmul.mubr.f32.gmra.mrb[0].mxu0 %v128
    %v295 = vpop.f32.mrb[0].mxu0
    %v296 = vadd.f32 %v193, %v295
    %v297 = vpop.f32.mrb[0].mxu0
    %v298 = vadd.f32 %v197, %v297
    %299 = vmatprep.mubr.f32.mxu0 0.0
    %300 = vmatmul.mubr.f32.gmra.mrb[0].mxu0 %v129
    %v301 = vpop.f32.mrb[0].mxu0
    %v302 = vadd.f32 %v193, %v301
    %v303 = vpop.f32.mrb[0].mxu0
    %v304 = vadd.f32 %v197, %v303
    %305 = vmatprep.mubr.f32.mxu0 0.0
    %306 = vmatmul.mubr.f32.gmra.mrb[0].mxu0 %v130
    %v307 = vpop.f32.mrb[0].mxu0
    %v308 = vadd.f32 %v193, %v307
    %v309 = vpop.f32.mrb[0].mxu0
    %v310 = vadd.f32 %v197, %v309
    %311 = vmatprep.mubr.f32.mxu0 0.0
    %312 = vmatmul.mubr.f32.gmra.mrb[0].mxu0 %v131
    %v313 = vpop.f32.mrb[0].mxu0
    %v314 = vadd.f32 %v193, %v313
    %v315 = vpop.f32.mrb[0].mxu0
    %v316 = vadd.f32 %v197, %v315
    %317 = vmatprep.mubr.f32.mxu0 0.0
    %318 = vmatmul.mubr.f32.gmra.mrb[0].mxu0 %v132
    %v319 = vpop.f32.mrb[0].mxu0
    %v320 = vadd.f32 %v193, %v319
    %v321 = vpop.f32.mrb[0].mxu0
    %v322 = vadd.f32 %v197, %v321
    %323 = vmatprep.mubr.f32.mxu0 0.0
    %324 = vmatmul.mubr.f32.gmra.mrb[0].mxu0 %v133
    %v325 = vpop.f32.mrb[0].mxu0
    %v326 = vadd.f32 %v193, %v325
    %v327 = vpop.f32.mrb[0].mxu0
    %v328 = vadd.f32 %v197, %v327
    %329 = vmatprep.mubr.f32.mxu0 0.0
    %330 = vmatmul.mubr.f32.gmra.mrb[0].mxu0 %v134
    %v331 = vpop.f32.mrb[0].mxu0
    %v332 = vadd.f32 %v193, %v331
    %v333 = vpop.f32.mrb[0].mxu0
    %v334 = vadd.f32 %v197, %v333
    %335 = vmatprep.mubr.f32.mxu0 0.0
    %336 = vmatmul.mubr.f32.gmra.mrb[0].mxu0 %v135
    %v337 = vpop.f32.mrb[0].mxu0
    %v338 = vadd.f32 %v193, %v337
    %v339 = vpop.f32.mrb[0].mxu0
    %v340 = vadd.f32 %v197, %v339
    %341 = vmatprep.mubr.f32.mxu0 0.0
    %342 = vmatmul.mubr.f32.gmra.mrb[0].mxu0 %v136
    %v343 = vpop.f32.mrb[0].mxu0
    %v344 = vadd.f32 %v193, %v343
    %v345 = vpop.f32.mrb[0].mxu0
    %v346 = vadd.f32 %v197, %v345
    %347 = vmatprep.mubr.f32.mxu0 0.0
    %348 = vmatmul.mubr.f32.gmra.mrb[0].mxu0 %v137
    %v349 = vpop.f32.mrb[0].mxu0
    %v350 = vadd.f32 %v193, %v349
    %v351 = vpop.f32.mrb[0].mxu0
    %v352 = vadd.f32 %v197, %v351
    %353 = vmatprep.mubr.f32.mxu0 0.0
    %354 = vmatmul.mubr.f32.gmra.mrb[0].mxu0 %v138
    %v355 = vpop.f32.mrb[0].mxu0
    %v356 = vadd.f32 %v193, %v355
    %v357 = vpop.f32.mrb[0].mxu0
    %v358 = vadd.f32 %v197, %v357
    %359 = vmatprep.mubr.f32.mxu0 0.0
    %360 = vmatmul.mubr.f32.gmra.mrb[0].mxu0 %v139
    %v361 = vpop.f32.mrb[0].mxu0
    %v362 = vadd.f32 %v193, %v361
    %v363 = vpop.f32.mrb[0].mxu0
    %v364 = vadd.f32 %v197, %v363
    %365 = vdwg.mxu0
    %366 = vmatprep.subr.mxu0 0.0
    %367 = vmatpush1.msra.mxu0 %v142
    %368 = vmatprep.subr.mxu0 0.0
    %369 = vmatpush1.msra.mxu0 %v145
    %370 = vmatprep.subr.mxu0 0.0
    %371 = vmatpush1.msra.mxu0 %v148
    %372 = vmatprep.subr.mxu0 0.0
    %373 = vmatpush1.msra.mxu0 %v151
    %374 = vmatprep.subr.mxu0 0.0
    %375 = vmatpush1.msra.mxu0 %v154
    %376 = vmatprep.subr.mxu0 0.0
    %377 = vmatpush1.msra.mxu0 %v157
    %378 = vmatprep.subr.mxu0 0.0
    %379 = vmatpush1.msra.mxu0 %v160
    %380 = vmatprep.subr.mxu0 0.0
    %381 = vmatpush1.msra.mxu0 %v163
    %382 = vmatprep.subr.mxu0 0.0
    %383 = vmatpush1.msra.mxu0 %v166
    %384 = vmatprep.subr.mxu0 0.0
    %385 = vmatpush1.msra.mxu0 %v169
    %386 = vmatprep.subr.mxu0 0.0
    %387 = vmatpush1.msra.mxu0 %v172
    %388 = vmatprep.subr.mxu0 0.0
    %389 = vmatpush1.msra.mxu0 %v175
    %390 = vmatprep.subr.mxu0 0.0
    %391 = vmatpush1.msra.mxu0 %v178
    %392 = vmatprep.subr.mxu0 0.0
    %393 = vmatpush1.msra.mxu0 %v181
    %394 = vmatprep.subr.mxu0 0.0
    %395 = vmatpush1.msra.mxu0 %v184
    %396 = vmatprep.subr.mxu0 0.0
    %397 = vmatpush1.msra.mxu0 %v187
    %398 = vmatprep.subr.mxu0 0.0
    %399 = vmatpush1.msra.mxu0 0.0
    %400 = vmatprep.subr.mxu0 0.0
    %401 = vmatpush1.msra.mxu0 0.0
    %402 = vmatprep.subr.mxu0 0.0
    %403 = vmatpush1.msra.mxu0 0.0
    %404 = vmatprep.subr.mxu0 0.0
    %405 = vmatpush1.msra.mxu0 0.0
    %406 = vmatprep.subr.mxu0 0.0
    %407 = vmatpush1.msra.mxu0 0.0
    %408 = vmatprep.subr.mxu0 0.0
    %409 = vmatpush1.msra.mxu0 0.0
    %410 = vmatprep.subr.mxu0 0.0
    %411 = vmatpush1.msra.mxu0 0.0
    %412 = vmatprep.subr.mxu0 0.0
    %413 = vmatpush1.msra.mxu0 0.0
    %414 = vmatprep.subr.mxu0 0.0
    %415 = vmatpush1.msra.mxu0 0.0
    %416 = vmatprep.subr.mxu0 0.0
    %417 = vmatpush1.msra.mxu0 0.0
    %418 = vmatprep.subr.mxu0 0.0
    %419 = vmatpush1.msra.mxu0 0.0
    %420 = vmatprep.subr.mxu0 0.0
    %421 = vmatpush1.msra.mxu0 0.0
    %422 = vmatprep.subr.mxu0 0.0
    %423 = vmatpush1.msra.mxu0 0.0
    %424 = vmatprep.subr.mxu0 0.0
    %425 = vmatpush1.msra.mxu0 0.0
    %426 = vmatprep.subr.mxu0 0.0
    %427 = vmatpush1.msra.mxu0 0.0
    %428 = vmatprep.subr.mxu0 0.0
    %429 = vmatpush1.msra.mxu0 0.0
    %430 = vmatprep.mubr.f32.mxu0 0.0
    %431 = vmatmul.mubr.f32.gmra.mrb[0].mxu0 %v124
    %v432 = vpop.f32.mrb[0].mxu0
    %v433 = vadd.f32 %v201, %v432
    %v434 = vpop.f32.mrb[0].mxu0
    %435 = vmatprep.mubr.f32.mxu0 0.0
    %436 = vmatmul.mubr.f32.gmra.mrb[0].mxu0 %v125
    %v437 = vpop.f32.mrb[0].mxu0
    %v438 = vadd.f32 %v201, %v437
    %v439 = vpop.f32.mrb[0].mxu0
    %440 = vmatprep.mubr.f32.mxu0 0.0
    %441 = vmatmul.mubr.f32.gmra.mrb[0].mxu0 %v126
    %v442 = vpop.f32.mrb[0].mxu0
    %v443 = vadd.f32 %v201, %v442
    %v444 = vpop.f32.mrb[0].mxu0
    %445 = vmatprep.mubr.f32.mxu0 0.0
    %446 = vmatmul.mubr.f32.gmra.mrb[0].mxu0 %v127
    %v447 = vpop.f32.mrb[0].mxu0
    %v448 = vadd.f32 %v201, %v447
    %v449 = vpop.f32.mrb[0].mxu0
    %450 = vmatprep.mubr.f32.mxu0 0.0
    %451 = vmatmul.mubr.f32.gmra.mrb[0].mxu0 %v128
    %v452 = vpop.f32.mrb[0].mxu0
    %v453 = vadd.f32 %v201, %v452
    %v454 = vpop.f32.mrb[0].mxu0
    %455 = vmatprep.mubr.f32.mxu0 0.0
    %456 = vmatmul.mubr.f32.gmra.mrb[0].mxu0 %v129
    %v457 = vpop.f32.mrb[0].mxu0
    %v458 = vadd.f32 %v201, %v457
    %v459 = vpop.f32.mrb[0].mxu0
    %460 = vmatprep.mubr.f32.mxu0 0.0
    %461 = vmatmul.mubr.f32.gmra.mrb[0].mxu0 %v130
    %v462 = vpop.f32.mrb[0].mxu0
    %v463 = vadd.f32 %v201, %v462
    %v464 = vpop.f32.mrb[0].mxu0
    %465 = vmatprep.mubr.f32.mxu0 0.0
    %466 = vmatmul.mubr.f32.gmra.mrb[0].mxu0 %v131
    %v467 = vpop.f32.mrb[0].mxu0
    %v468 = vadd.f32 %v201, %v467
    %v469 = vpop.f32.mrb[0].mxu0
    %470 = vmatprep.mubr.f32.mxu0 0.0
    %471 = vmatmul.mubr.f32.gmra.mrb[0].mxu0 %v132
    %v472 = vpop.f32.mrb[0].mxu0
    %v473 = vadd.f32 %v201, %v472
    %v474 = vpop.f32.mrb[0].mxu0
    %475 = vmatprep.mubr.f32.mxu0 0.0
    %476 = vmatmul.mubr.f32.gmra.mrb[0].mxu0 %v133
    %v477 = vpop.f32.mrb[0].mxu0
    %v478 = vadd.f32 %v201, %v477
    %v479 = vpop.f32.mrb[0].mxu0
    %480 = vmatprep.mubr.f32.mxu0 0.0
    %481 = vmatmul.mubr.f32.gmra.mrb[0].mxu0 %v134
    %v482 = vpop.f32.mrb[0].mxu0
    %v483 = vadd.f32 %v201, %v482
    %v484 = vpop.f32.mrb[0].mxu0
    %485 = vmatprep.mubr.f32.mxu0 0.0
    %486 = vmatmul.mubr.f32.gmra.mrb[0].mxu0 %v135
    %v487 = vpop.f32.mrb[0].mxu0
    %v488 = vadd.f32 %v201, %v487
    %v489 = vpop.f32.mrb[0].mxu0
    %490 = vmatprep.mubr.f32.mxu0 0.0
    %491 = vmatmul.mubr.f32.gmra.mrb[0].mxu0 %v136
    %v492 = vpop.f32.mrb[0].mxu0
    %v493 = vadd.f32 %v201, %v492
    %v494 = vpop.f32.mrb[0].mxu0
    %495 = vmatprep.mubr.f32.mxu0 0.0
    %496 = vmatmul.mubr.f32.gmra.mrb[0].mxu0 %v137
    %v497 = vpop.f32.mrb[0].mxu0
    %v498 = vadd.f32 %v201, %v497
    %v499 = vpop.f32.mrb[0].mxu0
    %500 = vmatprep.mubr.f32.mxu0 0.0
    %501 = vmatmul.mubr.f32.gmra.mrb[0].mxu0 %v138
    %v502 = vpop.f32.mrb[0].mxu0
    %v503 = vadd.f32 %v201, %v502
    %v504 = vpop.f32.mrb[0].mxu0
    %505 = vmatprep.mubr.f32.mxu0 0.0
    %506 = vmatmul.mubr.f32.gmra.mrb[0].mxu0 %v139
    %v507 = vpop.f32.mrb[0].mxu0
    %v508 = vadd.f32 %v201, %v507
    %v509 = vpop.f32.mrb[0].mxu0
    %510 = vdwg.mxu0
    %511 = vst [vmem:[#allocation2] sm:$0xff] %v272
    %512 = vst [vmem:[#allocation2 + $0x8] sm:$0xff] %v274
    %513 = vst [vmem:[#allocation2 + $0x10] sm:$0xff] %v433
    %514 = vst [vmem:[#allocation2 + $0x18] sm:$0xff] %v278
    %515 = vst [vmem:[#allocation2 + $0x20] sm:$0xff] %v280
    %516 = vst [vmem:[#allocation2 + $0x28] sm:$0xff] %v438
    %517 = vst [vmem:[#allocation2 + $0x30] sm:$0xff] %v284
    %518 = vst [vmem:[#allocation2 + $0x38] sm:$0xff] %v286
    %519 = vst [vmem:[#allocation2 + $0x40] sm:$0xff] %v443
    %520 = vst [vmem:[#allocation2 + $0x48] sm:$0xff] %v290
    %521 = vst [vmem:[#allocation2 + $0x50] sm:$0xff] %v292
    %522 = vst [vmem:[#allocation2 + $0x58] sm:$0xff] %v448
    %523 = vst [vmem:[#allocation2 + $0x60] sm:$0xff] %v296
    %524 = vst [vmem:[#allocation2 + $0x68] sm:$0xff] %v298
    %525 = vst [vmem:[#allocation2 + $0x70] sm:$0xff] %v453
    %526 = vst [vmem:[#allocation2 + $0x78] sm:$0xff] %v302
    %527 = vst [vmem:[#allocation2 + $0x80] sm:$0xff] %v304
    %528 = vst [vmem:[#allocation2 + $0x88] sm:$0xff] %v458
    %529 = vst [vmem:[#allocation2 + $0x90] sm:$0xff] %v308
    %530 = vst [vmem:[#allocation2 + $0x98] sm:$0xff] %v310
    %531 = vst [vmem:[#allocation2 + $0xa0] sm:$0xff] %v463
    %532 = vst [vmem:[#allocation2 + $0xa8] sm:$0xff] %v314
    %533 = vst [vmem:[#allocation2 + $0xb0] sm:$0xff] %v316
    %534 = vst [vmem:[#allocation2 + $0xb8] sm:$0xff] %v468
    %535 = vst [vmem:[#allocation2 + $0xc0] sm:$0xff] %v320
    %536 = vst [vmem:[#allocation2 + $0xc8] sm:$0xff] %v322
    %537 = vst [vmem:[#allocation2 + $0xd0] sm:$0xff] %v473
    %538 = vst [vmem:[#allocation2 + $0xd8] sm:$0xff] %v326
    %539 = vst [vmem:[#allocation2 + $0xe0] sm:$0xff] %v328
    %540 = vst [vmem:[#allocation2 + $0xe8] sm:$0xff] %v478
    %541 = vst [vmem:[#allocation2 + $0xf0] sm:$0xff] %v332
    %542 = vst [vmem:[#allocation2 + $0xf8] sm:$0xff] %v334
    %543 = vst [vmem:[#allocation2 + $0x100] sm:$0xff] %v483
    %544 = vst [vmem:[#allocation2 + $0x108] sm:$0xff] %v338
    %545 = vst [vmem:[#allocation2 + $0x110] sm:$0xff] %v340
    %546 = vst [vmem:[#allocation2 + $0x118] sm:$0xff] %v488
    %547 = vst [vmem:[#allocation2 + $0x120] sm:$0xff] %v344
    %548 = vst [vmem:[#allocation2 + $0x128] sm:$0xff] %v346
    %549 = vst [vmem:[#allocation2 + $0x130] sm:$0xff] %v493
    %550 = vst [vmem:[#allocation2 + $0x138] sm:$0xff] %v350
    %551 = vst [vmem:[#allocation2 + $0x140] sm:$0xff] %v352
    %552 = vst [vmem:[#allocation2 + $0x148] sm:$0xff] %v498
    %553 = vst [vmem:[#allocation2 + $0x150] sm:$0xff] %v356
    %554 = vst [vmem:[#allocation2 + $0x158] sm:$0xff] %v358
    %555 = vst [vmem:[#allocation2 + $0x160] sm:$0xff] %v503
    %556 = vst [vmem:[#allocation2 + $0x168] sm:$0xff] %v362
    %557 = vst [vmem:[#allocation2 + $0x170] sm:$0xff] %v364
    %558 = vst [vmem:[#allocation2 + $0x178] sm:$0xff] %v508
    %v559 = vld [vmem:[#allocation12] sm:$0xff]
    %v560 = vld [vmem:[#allocation12 + $0x8] sm:$0xff]
    %v561 = vld [vmem:[#allocation12 + $0x10] sm:$0xff]
    %v562 = vld [vmem:[#allocation12 + $0x18] sm:$0xff]
    %v563 = vld [vmem:[#allocation12 + $0x20] sm:$0xff]
    %v564 = vld [vmem:[#allocation12 + $0x28] sm:$0xff]
    %v565 = vld [vmem:[#allocation12 + $0x30] sm:$0xff]
    %v566 = vld [vmem:[#allocation12 + $0x38] sm:$0xff]
    %v567 = vld [vmem:[#allocation12 + $0x40] sm:$0xff]
    %v568 = vld [vmem:[#allocation12 + $0x48] sm:$0xff]
    %v569 = vld [vmem:[#allocation12 + $0x50] sm:$0xff]
    %v570 = vld [vmem:[#allocation12 + $0x58] sm:$0xff]
    %v571 = vld [vmem:[#allocation12 + $0x60] sm:$0xff]
    %v572 = vld [vmem:[#allocation12 + $0x68] sm:$0xff]
    %v573 = vld [vmem:[#allocation12 + $0x70] sm:$0xff]
    %v574 = vld [vmem:[#allocation12 + $0x78] sm:$0xff]
    %v575 = vld [vmem:[#allocation12 + $0x80] sm:$0xff]
    %v576 = vld [vmem:[#allocation12 + $0x88] sm:$0xff]
    %v577 = vld [vmem:[#allocation12 + $0x90] sm:$0xff]
    %v578 = vld [vmem:[#allocation12 + $0x98] sm:$0xff]
    %v579 = vld [vmem:[#allocation12 + $0xa0] sm:$0xff]
    %v580 = vld [vmem:[#allocation12 + $0xa8] sm:$0xff]
    %v581 = vld [vmem:[#allocation12 + $0xb0] sm:$0xff]
    %v582 = vld [vmem:[#allocation12 + $0xb8] sm:$0xff]
    %v583 = vld [vmem:[#allocation12 + $0xc0] sm:$0xff]
    %v584 = vld [vmem:[#allocation12 + $0xc8] sm:$0xff]
    %v585 = vld [vmem:[#allocation12 + $0xd0] sm:$0xff]
    %v586 = vld [vmem:[#allocation12 + $0xd8] sm:$0xff]
    %v587 = vld [vmem:[#allocation12 + $0xe0] sm:$0xff]
    %v588 = vld [vmem:[#allocation12 + $0xe8] sm:$0xff]
    %v589 = vld [vmem:[#allocation12 + $0xf0] sm:$0xff]
    %v590 = vld [vmem:[#allocation12 + $0xf8] sm:$0xff]
    %v591 = vld [vmem:[#allocation12 + $0x100] sm:$0xff]
    %v592 = vld [vmem:[#allocation12 + $0x108] sm:$0xff]
    %v593 = vld [vmem:[#allocation12 + $0x110] sm:$0xff]
    %v594 = vld [vmem:[#allocation12 + $0x118] sm:$0xff]
    %v595 = vld [vmem:[#allocation12 + $0x120] sm:$0xff]
    %v596 = vld [vmem:[#allocation12 + $0x128] sm:$0xff]
    %v597 = vld [vmem:[#allocation12 + $0x130] sm:$0xff]
    %v598 = vld [vmem:[#allocation12 + $0x138] sm:$0xff]
    %v599 = vld [vmem:[#allocation12 + $0x140] sm:$0xff]
    %v600 = vld [vmem:[#allocation12 + $0x148] sm:$0xff]
    %v601 = vld [vmem:[#allocation12 + $0x150] sm:$0xff]
    %v602 = vld [vmem:[#allocation12 + $0x158] sm:$0xff]
    %v603 = vld [vmem:[#allocation12 + $0x160] sm:$0xff]
    %v604 = vld [vmem:[#allocation12 + $0x168] sm:$0xff]
    %v605 = vld [vmem:[#allocation12 + $0x170] sm:$0xff]
    %v606 = vld [vmem:[#allocation12 + $0x178] sm:$0xff]
    %v607 = vld [vmem:[%s7] sm:$0x7]
    %v609 = vlaneseq
    %v610 = vshrl.u32 %v609, 7
    %v611 = vsub.s32 0, %v610
    %v612 = vrot.slane %v607, %v611
    %v613 = vlaneseq
    %v614 = vshrl.u32 %v613, 7
    %v615 = vsub.s32 1, %v614
    %v616 = vrot.slane %v607, %v615
    %v617 = vlaneseq
    %v618 = vshrl.u32 %v617, 7
    %v619 = vsub.s32 2, %v618
    %v620 = vrot.slane %v607, %v619
    %624 = vmatprep.subr.mxu0 %v560
    %625 = vmatpush1.msra.mxu0 %v559
    %626 = vmatprep.subr.mxu0 %v563
    %627 = vmatpush1.msra.mxu0 %v562
    %628 = vmatprep.subr.mxu0 %v566
    %629 = vmatpush1.msra.mxu0 %v565
    %630 = vmatprep.subr.mxu0 %v569
    %631 = vmatpush1.msra.mxu0 %v568
    %632 = vmatprep.subr.mxu0 %v572
    %633 = vmatpush1.msra.mxu0 %v571
    %634 = vmatprep.subr.mxu0 %v575
    %635 = vmatpush1.msra.mxu0 %v574
    %636 = vmatprep.subr.mxu0 %v578
    %637 = vmatpush1.msra.mxu0 %v577
    %638 = vmatprep.subr.mxu0 %v581
    %639 = vmatpush1.msra.mxu0 %v580
    %640 = vmatprep.subr.mxu0 %v584
    %641 = vmatpush1.msra.mxu0 %v583
    %642 = vmatprep.subr.mxu0 %v587
    %643 = vmatpush1.msra.mxu0 %v586
    %644 = vmatprep.subr.mxu0 %v590
    %645 = vmatpush1.msra.mxu0 %v589
    %646 = vmatprep.subr.mxu0 %v593
    %647 = vmatpush1.msra.mxu0 %v592
    %648 = vmatprep.subr.mxu0 %v596
    %649 = vmatpush1.msra.mxu0 %v595
    %650 = vmatprep.subr.mxu0 %v599
    %651 = vmatpush1.msra.mxu0 %v598
    %652 = vmatprep.subr.mxu0 %v602
    %653 = vmatpush1.msra.mxu0 %v601
    %654 = vmatprep.subr.mxu0 %v605
    %655 = vmatpush1.msra.mxu0 %v604
    %656 = vmatprep.subr.mxu0 0.0
    %657 = vmatpush1.msra.mxu0 0.0
    %658 = vmatprep.subr.mxu0 0.0
    %659 = vmatpush1.msra.mxu0 0.0
    %660 = vmatprep.subr.mxu0 0.0
    %661 = vmatpush1.msra.mxu0 0.0
    %662 = vmatprep.subr.mxu0 0.0
    %663 = vmatpush1.msra.mxu0 0.0
    %664 = vmatprep.subr.mxu0 0.0
    %665 = vmatpush1.msra.mxu0 0.0
    %666 = vmatprep.subr.mxu0 0.0
    %667 = vmatpush1.msra.mxu0 0.0
    %668 = vmatprep.subr.mxu0 0.0
    %669 = vmatpush1.msra.mxu0 0.0
    %670 = vmatprep.subr.mxu0 0.0
    %671 = vmatpush1.msra.mxu0 0.0
    %672 = vmatprep.subr.mxu0 0.0
    %673 = vmatpush1.msra.mxu0 0.0
    %674 = vmatprep.subr.mxu0 0.0
    %675 = vmatpush1.msra.mxu0 0.0
    %676 = vmatprep.subr.mxu0 0.0
    %677 = vmatpush1.msra.mxu0 0.0
    %678 = vmatprep.subr.mxu0 0.0
    %679 = vmatpush1.msra.mxu0 0.0
    %680 = vmatprep.subr.mxu0 0.0
    %681 = vmatpush1.msra.mxu0 0.0
    %682 = vmatprep.subr.mxu0 0.0
    %683 = vmatpush1.msra.mxu0 0.0
    %684 = vmatprep.subr.mxu0 0.0
    %685 = vmatpush1.msra.mxu0 0.0
    %686 = vmatprep.subr.mxu0 0.0
    %687 = vmatpush1.msra.mxu0 0.0
    %688 = vmatprep.mubr.f32.mxu0 0.0
    %689 = vmatmul.mubr.f32.gmra.mrb[0].mxu0 %v124
    %v690 = vpop.f32.mrb[0].mxu0
    %v691 = vadd.f32 %v612, %v690
    %v692 = vpop.f32.mrb[0].mxu0
    %v693 = vadd.f32 %v616, %v692
    %694 = vmatprep.mubr.f32.mxu0 0.0
    %695 = vmatmul.mubr.f32.gmra.mrb[0].mxu0 %v125
    %v696 = vpop.f32.mrb[0].mxu0
    %v697 = vadd.f32 %v612, %v696
    %v698 = vpop.f32.mrb[0].mxu0
    %v699 = vadd.f32 %v616, %v698
    %700 = vmatprep.mubr.f32.mxu0 0.0
    %701 = vmatmul.mubr.f32.gmra.mrb[0].mxu0 %v126
    %v702 = vpop.f32.mrb[0].mxu0
    %v703 = vadd.f32 %v612, %v702
    %v704 = vpop.f32.mrb[0].mxu0
    %v705 = vadd.f32 %v616, %v704
    %706 = vmatprep.mubr.f32.mxu0 0.0
    %707 = vmatmul.mubr.f32.gmra.mrb[0].mxu0 %v127
    %v708 = vpop.f32.mrb[0].mxu0
    %v709 = vadd.f32 %v612, %v708
    %v710 = vpop.f32.mrb[0].mxu0
    %v711 = vadd.f32 %v616, %v710
    %712 = vmatprep.mubr.f32.mxu0 0.0
    %713 = vmatmul.mubr.f32.gmra.mrb[0].mxu0 %v128
    %v714 = vpop.f32.mrb[0].mxu0
    %v715 = vadd.f32 %v612, %v714
    %v716 = vpop.f32.mrb[0].mxu0
    %v717 = vadd.f32 %v616, %v716
    %718 = vmatprep.mubr.f32.mxu0 0.0
    %719 = vmatmul.mubr.f32.gmra.mrb[0].mxu0 %v129
    %v720 = vpop.f32.mrb[0].mxu0
    %v721 = vadd.f32 %v612, %v720
    %v722 = vpop.f32.mrb[0].mxu0
    %v723 = vadd.f32 %v616, %v722
    %724 = vmatprep.mubr.f32.mxu0 0.0
    %725 = vmatmul.mubr.f32.gmra.mrb[0].mxu0 %v130
    %v726 = vpop.f32.mrb[0].mxu0
    %v727 = vadd.f32 %v612, %v726
    %v728 = vpop.f32.mrb[0].mxu0
    %v729 = vadd.f32 %v616, %v728
    %730 = vmatprep.mubr.f32.mxu0 0.0
    %731 = vmatmul.mubr.f32.gmra.mrb[0].mxu0 %v131
    %v732 = vpop.f32.mrb[0].mxu0
    %v733 = vadd.f32 %v612, %v732
    %v734 = vpop.f32.mrb[0].mxu0
    %v735 = vadd.f32 %v616, %v734
    %736 = vmatprep.mubr.f32.mxu0 0.0
    %737 = vmatmul.mubr.f32.gmra.mrb[0].mxu0 %v132
    %v738 = vpop.f32.mrb[0].mxu0
    %v739 = vadd.f32 %v612, %v738
    %v740 = vpop.f32.mrb[0].mxu0
    %v741 = vadd.f32 %v616, %v740
    %742 = vmatprep.mubr.f32.mxu0 0.0
    %743 = vmatmul.mubr.f32.gmra.mrb[0].mxu0 %v133
    %v744 = vpop.f32.mrb[0].mxu0
    %v745 = vadd.f32 %v612, %v744
    %v746 = vpop.f32.mrb[0].mxu0
    %v747 = vadd.f32 %v616, %v746
    %748 = vmatprep.mubr.f32.mxu0 0.0
    %749 = vmatmul.mubr.f32.gmra.mrb[0].mxu0 %v134
    %v750 = vpop.f32.mrb[0].mxu0
    %v751 = vadd.f32 %v612, %v750
    %v752 = vpop.f32.mrb[0].mxu0
    %v753 = vadd.f32 %v616, %v752
    %754 = vmatprep.mubr.f32.mxu0 0.0
    %755 = vmatmul.mubr.f32.gmra.mrb[0].mxu0 %v135
    %v756 = vpop.f32.mrb[0].mxu0
    %v757 = vadd.f32 %v612, %v756
    %v758 = vpop.f32.mrb[0].mxu0
    %v759 = vadd.f32 %v616, %v758
    %760 = vmatprep.mubr.f32.mxu0 0.0
    %761 = vmatmul.mubr.f32.gmra.mrb[0].mxu0 %v136
    %v762 = vpop.f32.mrb[0].mxu0
    %v763 = vadd.f32 %v612, %v762
    %v764 = vpop.f32.mrb[0].mxu0
    %v765 = vadd.f32 %v616, %v764
    %766 = vmatprep.mubr.f32.mxu0 0.0
    %767 = vmatmul.mubr.f32.gmra.mrb[0].mxu0 %v137
    %v768 = vpop.f32.mrb[0].mxu0
    %v769 = vadd.f32 %v612, %v768
    %v770 = vpop.f32.mrb[0].mxu0
    %v771 = vadd.f32 %v616, %v770
    %772 = vmatprep.mubr.f32.mxu0 0.0
    %773 = vmatmul.mubr.f32.gmra.mrb[0].mxu0 %v138
    %v774 = vpop.f32.mrb[0].mxu0
    %v775 = vadd.f32 %v612, %v774
    %v776 = vpop.f32.mrb[0].mxu0
    %v777 = vadd.f32 %v616, %v776
    %778 = vmatprep.mubr.f32.mxu0 0.0
    %779 = vmatmul.mubr.f32.gmra.mrb[0].mxu0 %v139
    %v780 = vpop.f32.mrb[0].mxu0
    %v781 = vadd.f32 %v612, %v780
    %v782 = vpop.f32.mrb[0].mxu0
    %v783 = vadd.f32 %v616, %v782
    %784 = vdwg.mxu0
    %785 = vmatprep.subr.mxu0 0.0
    %786 = vmatpush1.msra.mxu0 %v561
    %787 = vmatprep.subr.mxu0 0.0
    %788 = vmatpush1.msra.mxu0 %v564
    %789 = vmatprep.subr.mxu0 0.0
    %790 = vmatpush1.msra.mxu0 %v567
    %791 = vmatprep.subr.mxu0 0.0
    %792 = vmatpush1.msra.mxu0 %v570
    %793 = vmatprep.subr.mxu0 0.0
    %794 = vmatpush1.msra.mxu0 %v573
    %795 = vmatprep.subr.mxu0 0.0
    %796 = vmatpush1.msra.mxu0 %v576
    %797 = vmatprep.subr.mxu0 0.0
    %798 = vmatpush1.msra.mxu0 %v579
    %799 = vmatprep.subr.mxu0 0.0
    %800 = vmatpush1.msra.mxu0 %v582
    %801 = vmatprep.subr.mxu0 0.0
    %802 = vmatpush1.msra.mxu0 %v585
    %803 = vmatprep.subr.mxu0 0.0
    %804 = vmatpush1.msra.mxu0 %v588
    %805 = vmatprep.subr.mxu0 0.0
    %806 = vmatpush1.msra.mxu0 %v591
    %807 = vmatprep.subr.mxu0 0.0
    %808 = vmatpush1.msra.mxu0 %v594
    %809 = vmatprep.subr.mxu0 0.0
    %810 = vmatpush1.msra.mxu0 %v597
    %811 = vmatprep.subr.mxu0 0.0
    %812 = vmatpush1.msra.mxu0 %v600
    %813 = vmatprep.subr.mxu0 0.0
    %814 = vmatpush1.msra.mxu0 %v603
    %815 = vmatprep.subr.mxu0 0.0
    %816 = vmatpush1.msra.mxu0 %v606
    %817 = vmatprep.subr.mxu0 0.0
    %818 = vmatpush1.msra.mxu0 0.0
    %819 = vmatprep.subr.mxu0 0.0
    %820 = vmatpush1.msra.mxu0 0.0
    %821 = vmatprep.subr.mxu0 0.0
    %822 = vmatpush1.msra.mxu0 0.0
    %823 = vmatprep.subr.mxu0 0.0
    %824 = vmatpush1.msra.mxu0 0.0
    %825 = vmatprep.subr.mxu0 0.0
    %826 = vmatpush1.msra.mxu0 0.0
    %827 = vmatprep.subr.mxu0 0.0
    %828 = vmatpush1.msra.mxu0 0.0
    %829 = vmatprep.subr.mxu0 0.0
    %830 = vmatpush1.msra.mxu0 0.0
    %831 = vmatprep.subr.mxu0 0.0
    %832 = vmatpush1.msra.mxu0 0.0
    %833 = vmatprep.subr.mxu0 0.0
    %834 = vmatpush1.msra.mxu0 0.0
    %835 = vmatprep.subr.mxu0 0.0
    %836 = vmatpush1.msra.mxu0 0.0
    %837 = vmatprep.subr.mxu0 0.0
    %838 = vmatpush1.msra.mxu0 0.0
    %839 = vmatprep.subr.mxu0 0.0
    %840 = vmatpush1.msra.mxu0 0.0
    %841 = vmatprep.subr.mxu0 0.0
    %842 = vmatpush1.msra.mxu0 0.0
    %843 = vmatprep.subr.mxu0 0.0
    %844 = vmatpush1.msra.mxu0 0.0
    %845 = vmatprep.subr.mxu0 0.0
    %846 = vmatpush1.msra.mxu0 0.0
    %847 = vmatprep.subr.mxu0 0.0
    %848 = vmatpush1.msra.mxu0 0.0
    %849 = vmatprep.mubr.f32.mxu0 0.0
    %850 = vmatmul.mubr.f32.gmra.mrb[0].mxu0 %v124
    %v851 = vpop.f32.mrb[0].mxu0
    %v852 = vadd.f32 %v620, %v851
    %v853 = vpop.f32.mrb[0].mxu0
    %854 = vmatprep.mubr.f32.mxu0 0.0
    %855 = vmatmul.mubr.f32.gmra.mrb[0].mxu0 %v125
    %v856 = vpop.f32.mrb[0].mxu0
    %v857 = vadd.f32 %v620, %v856
    %v858 = vpop.f32.mrb[0].mxu0
    %859 = vmatprep.mubr.f32.mxu0 0.0
    %860 = vmatmul.mubr.f32.gmra.mrb[0].mxu0 %v126
    %v861 = vpop.f32.mrb[0].mxu0
    %v862 = vadd.f32 %v620, %v861
    %v863 = vpop.f32.mrb[0].mxu0
    %864 = vmatprep.mubr.f32.mxu0 0.0
    %865 = vmatmul.mubr.f32.gmra.mrb[0].mxu0 %v127
    %v866 = vpop.f32.mrb[0].mxu0
    %v867 = vadd.f32 %v620, %v866
    %v868 = vpop.f32.mrb[0].mxu0
    %869 = vmatprep.mubr.f32.mxu0 0.0
    %870 = vmatmul.mubr.f32.gmra.mrb[0].mxu0 %v128
    %v871 = vpop.f32.mrb[0].mxu0
    %v872 = vadd.f32 %v620, %v871
    %v873 = vpop.f32.mrb[0].mxu0
    %874 = vmatprep.mubr.f32.mxu0 0.0
    %875 = vmatmul.mubr.f32.gmra.mrb[0].mxu0 %v129
    %v876 = vpop.f32.mrb[0].mxu0
    %v877 = vadd.f32 %v620, %v876
    %v878 = vpop.f32.mrb[0].mxu0
    %879 = vmatprep.mubr.f32.mxu0 0.0
    %880 = vmatmul.mubr.f32.gmra.mrb[0].mxu0 %v130
    %v881 = vpop.f32.mrb[0].mxu0
    %v882 = vadd.f32 %v620, %v881
    %v883 = vpop.f32.mrb[0].mxu0
    %884 = vmatprep.mubr.f32.mxu0 0.0
    %885 = vmatmul.mubr.f32.gmra.mrb[0].mxu0 %v131
    %v886 = vpop.f32.mrb[0].mxu0
    %v887 = vadd.f32 %v620, %v886
    %v888 = vpop.f32.mrb[0].mxu0
    %889 = vmatprep.mubr.f32.mxu0 0.0
    %890 = vmatmul.mubr.f32.gmra.mrb[0].mxu0 %v132
    %v891 = vpop.f32.mrb[0].mxu0
    %v892 = vadd.f32 %v620, %v891
    %v893 = vpop.f32.mrb[0].mxu0
    %894 = vmatprep.mubr.f32.mxu0 0.0
    %895 = vmatmul.mubr.f32.gmra.mrb[0].mxu0 %v133
    %v896 = vpop.f32.mrb[0].mxu0
    %v897 = vadd.f32 %v620, %v896
    %v898 = vpop.f32.mrb[0].mxu0
    %899 = vmatprep.mubr.f32.mxu0 0.0
    %900 = vmatmul.mubr.f32.gmra.mrb[0].mxu0 %v134
    %v901 = vpop.f32.mrb[0].mxu0
    %v902 = vadd.f32 %v620, %v901
    %v903 = vpop.f32.mrb[0].mxu0
    %904 = vmatprep.mubr.f32.mxu0 0.0
    %905 = vmatmul.mubr.f32.gmra.mrb[0].mxu0 %v135
    %v906 = vpop.f32.mrb[0].mxu0
    %v907 = vadd.f32 %v620, %v906
    %v908 = vpop.f32.mrb[0].mxu0
    %909 = vmatprep.mubr.f32.mxu0 0.0
    %910 = vmatmul.mubr.f32.gmra.mrb[0].mxu0 %v136
    %v911 = vpop.f32.mrb[0].mxu0
    %v912 = vadd.f32 %v620, %v911
    %v913 = vpop.f32.mrb[0].mxu0
    %914 = vmatprep.mubr.f32.mxu0 0.0
    %915 = vmatmul.mubr.f32.gmra.mrb[0].mxu0 %v137
    %v916 = vpop.f32.mrb[0].mxu0
    %v917 = vadd.f32 %v620, %v916
    %v918 = vpop.f32.mrb[0].mxu0
    %919 = vmatprep.mubr.f32.mxu0 0.0
    %920 = vmatmul.mubr.f32.gmra.mrb[0].mxu0 %v138
    %v921 = vpop.f32.mrb[0].mxu0
    %v922 = vadd.f32 %v620, %v921
    %v923 = vpop.f32.mrb[0].mxu0
    %924 = vmatprep.mubr.f32.mxu0 0.0
    %925 = vmatmul.mubr.f32.gmra.mrb[0].mxu0 %v139
    %v926 = vpop.f32.mrb[0].mxu0
    %v927 = vadd.f32 %v620, %v926
    %v928 = vpop.f32.mrb[0].mxu0
    %929 = vdwg.mxu0
    %930 = vst [vmem:[#allocation3] sm:$0xff] %v691
    %931 = vst [vmem:[#allocation3 + $0x8] sm:$0xff] %v693
    %932 = vst [vmem:[#allocation3 + $0x10] sm:$0xff] %v852
    %933 = vst [vmem:[#allocation3 + $0x18] sm:$0xff] %v697
    %934 = vst [vmem:[#allocation3 + $0x20] sm:$0xff] %v699
    %935 = vst [vmem:[#allocation3 + $0x28] sm:$0xff] %v857
    %936 = vst [vmem:[#allocation3 + $0x30] sm:$0xff] %v703
    %937 = vst [vmem:[#allocation3 + $0x38] sm:$0xff] %v705
    %938 = vst [vmem:[#allocation3 + $0x40] sm:$0xff] %v862
    %939 = vst [vmem:[#allocation3 + $0x48] sm:$0xff] %v709
    %940 = vst [vmem:[#allocation3 + $0x50] sm:$0xff] %v711
    %941 = vst [vmem:[#allocation3 + $0x58] sm:$0xff] %v867
    %942 = vst [vmem:[#allocation3 + $0x60] sm:$0xff] %v715
    %943 = vst [vmem:[#allocation3 + $0x68] sm:$0xff] %v717
    %944 = vst [vmem:[#allocation3 + $0x70] sm:$0xff] %v872
    %945 = vst [vmem:[#allocation3 + $0x78] sm:$0xff] %v721
    %946 = vst [vmem:[#allocation3 + $0x80] sm:$0xff] %v723
    %947 = vst [vmem:[#allocation3 + $0x88] sm:$0xff] %v877
    %948 = vst [vmem:[#allocation3 + $0x90] sm:$0xff] %v727
    %949 = vst [vmem:[#allocation3 + $0x98] sm:$0xff] %v729
    %950 = vst [vmem:[#allocation3 + $0xa0] sm:$0xff] %v882
    %951 = vst [vmem:[#allocation3 + $0xa8] sm:$0xff] %v733
    %952 = vst [vmem:[#allocation3 + $0xb0] sm:$0xff] %v735
    %953 = vst [vmem:[#allocation3 + $0xb8] sm:$0xff] %v887
    %954 = vst [vmem:[#allocation3 + $0xc0] sm:$0xff] %v739
    %955 = vst [vmem:[#allocation3 + $0xc8] sm:$0xff] %v741
    %956 = vst [vmem:[#allocation3 + $0xd0] sm:$0xff] %v892
    %957 = vst [vmem:[#allocation3 + $0xd8] sm:$0xff] %v745
    %958 = vst [vmem:[#allocation3 + $0xe0] sm:$0xff] %v747
    %959 = vst [vmem:[#allocation3 + $0xe8] sm:$0xff] %v897
    %960 = vst [vmem:[#allocation3 + $0xf0] sm:$0xff] %v751
    %961 = vst [vmem:[#allocation3 + $0xf8] sm:$0xff] %v753
    %962 = vst [vmem:[#allocation3 + $0x100] sm:$0xff] %v902
    %963 = vst [vmem:[#allocation3 + $0x108] sm:$0xff] %v757
    %964 = vst [vmem:[#allocation3 + $0x110] sm:$0xff] %v759
    %965 = vst [vmem:[#allocation3 + $0x118] sm:$0xff] %v907
    %966 = vst [vmem:[#allocation3 + $0x120] sm:$0xff] %v763
    %967 = vst [vmem:[#allocation3 + $0x128] sm:$0xff] %v765
    %968 = vst [vmem:[#allocation3 + $0x130] sm:$0xff] %v912
    %969 = vst [vmem:[#allocation3 + $0x138] sm:$0xff] %v769
    %970 = vst [vmem:[#allocation3 + $0x140] sm:$0xff] %v771
    %971 = vst [vmem:[#allocation3 + $0x148] sm:$0xff] %v917
    %972 = vst [vmem:[#allocation3 + $0x150] sm:$0xff] %v775
    %973 = vst [vmem:[#allocation3 + $0x158] sm:$0xff] %v777
    %974 = vst [vmem:[#allocation3 + $0x160] sm:$0xff] %v922
    %975 = vst [vmem:[#allocation3 + $0x168] sm:$0xff] %v781
    %976 = vst [vmem:[#allocation3 + $0x170] sm:$0xff] %v783
    %977 = vst [vmem:[#allocation3 + $0x178] sm:$0xff] %v927
    %v978 = vld [vmem:[#allocation11] sm:$0xff]
    %v979 = vld [vmem:[#allocation11 + $0x8] sm:$0xff]
    %v980 = vld [vmem:[#allocation11 + $0x10] sm:$0xff]
    %v981 = vld [vmem:[#allocation11 + $0x18] sm:$0xff]
    %v982 = vld [vmem:[#allocation11 + $0x20] sm:$0xff]
    %v983 = vld [vmem:[#allocation11 + $0x28] sm:$0xff]
    %v984 = vld [vmem:[#allocation11 + $0x30] sm:$0xff]
    %v985 = vld [vmem:[#allocation11 + $0x38] sm:$0xff]
    %v986 = vld [vmem:[#allocation11 + $0x40] sm:$0xff]
    %v987 = vld [vmem:[#allocation11 + $0x48] sm:$0xff]
    %v988 = vld [vmem:[#allocation11 + $0x50] sm:$0xff]
    %v989 = vld [vmem:[#allocation11 + $0x58] sm:$0xff]
    %v990 = vld [vmem:[#allocation11 + $0x60] sm:$0xff]
    %v991 = vld [vmem:[#allocation11 + $0x68] sm:$0xff]
    %v992 = vld [vmem:[#allocation11 + $0x70] sm:$0xff]
    %v993 = vld [vmem:[#allocation11 + $0x78] sm:$0xff]
    %v994 = vld [vmem:[#allocation11 + $0x80] sm:$0xff]
    %v995 = vld [vmem:[#allocation11 + $0x88] sm:$0xff]
    %v996 = vld [vmem:[#allocation11 + $0x90] sm:$0xff]
    %v997 = vld [vmem:[#allocation11 + $0x98] sm:$0xff]
    %v998 = vld [vmem:[#allocation11 + $0xa0] sm:$0xff]
    %v999 = vld [vmem:[#allocation11 + $0xa8] sm:$0xff]
    %v1000 = vld [vmem:[#allocation11 + $0xb0] sm:$0xff]
    %v1001 = vld [vmem:[#allocation11 + $0xb8] sm:$0xff]
    %v1002 = vld [vmem:[#allocation11 + $0xc0] sm:$0xff]
    %v1003 = vld [vmem:[#allocation11 + $0xc8] sm:$0xff]
    %v1004 = vld [vmem:[#allocation11 + $0xd0] sm:$0xff]
    %v1005 = vld [vmem:[#allocation11 + $0xd8] sm:$0xff]
    %v1006 = vld [vmem:[#allocation11 + $0xe0] sm:$0xff]
    %v1007 = vld [vmem:[#allocation11 + $0xe8] sm:$0xff]
    %v1008 = vld [vmem:[#allocation11 + $0xf0] sm:$0xff]
    %v1009 = vld [vmem:[#allocation11 + $0xf8] sm:$0xff]
    %v1010 = vld [vmem:[#allocation11 + $0x100] sm:$0xff]
    %v1011 = vld [vmem:[#allocation11 + $0x108] sm:$0xff]
    %v1012 = vld [vmem:[#allocation11 + $0x110] sm:$0xff]
    %v1013 = vld [vmem:[#allocation11 + $0x118] sm:$0xff]
    %v1014 = vld [vmem:[#allocation11 + $0x120] sm:$0xff]
    %v1015 = vld [vmem:[#allocation11 + $0x128] sm:$0xff]
    %v1016 = vld [vmem:[#allocation11 + $0x130] sm:$0xff]
    %v1017 = vld [vmem:[#allocation11 + $0x138] sm:$0xff]
    %v1018 = vld [vmem:[#allocation11 + $0x140] sm:$0xff]
    %v1019 = vld [vmem:[#allocation11 + $0x148] sm:$0xff]
    %v1020 = vld [vmem:[#allocation11 + $0x150] sm:$0xff]
    %v1021 = vld [vmem:[#allocation11 + $0x158] sm:$0xff]
    %v1022 = vld [vmem:[#allocation11 + $0x160] sm:$0xff]
    %v1023 = vld [vmem:[#allocation11 + $0x168] sm:$0xff]
    %v1024 = vld [vmem:[#allocation11 + $0x170] sm:$0xff]
    %v1025 = vld [vmem:[#allocation11 + $0x178] sm:$0xff]
    %v1026 = vld [vmem:[#allocation14] sm:$0xff]
    %v1027 = vld [vmem:[#allocation14 + $0x8] sm:$0xff]
    %v1028 = vld [vmem:[#allocation14 + $0x10] sm:$0xff]
    %v1029 = vld [vmem:[#allocation14 + $0x18] sm:$0xff]
    %v1030 = vld [vmem:[#allocation14 + $0x20] sm:$0xff]
    %v1031 = vld [vmem:[#allocation14 + $0x28] sm:$0xff]
    %v1032 = vld [vmem:[#allocation14 + $0x30] sm:$0xff]
    %v1033 = vld [vmem:[#allocation14 + $0x38] sm:$0xff]
    %v1034 = vld [vmem:[#allocation14 + $0x40] sm:$0xff]
    %v1035 = vld [vmem:[#allocation14 + $0x48] sm:$0xff]
    %v1036 = vld [vmem:[#allocation14 + $0x50] sm:$0xff]
    %v1037 = vld [vmem:[#allocation14 + $0x58] sm:$0xff]
    %v1038 = vld [vmem:[#allocation14 + $0x60] sm:$0xff]
    %v1039 = vld [vmem:[#allocation14 + $0x68] sm:$0xff]
    %v1040 = vld [vmem:[#allocation14 + $0x70] sm:$0xff]
    %v1041 = vld [vmem:[#allocation14 + $0x78] sm:$0xff]
    %v1042 = vld [vmem:[#allocation14 + $0x80] sm:$0xff]
    %v1043 = vld [vmem:[#allocation14 + $0x88] sm:$0xff]
    %v1044 = vld [vmem:[#allocation14 + $0x90] sm:$0xff]
    %v1045 = vld [vmem:[#allocation14 + $0x98] sm:$0xff]
    %v1046 = vld [vmem:[#allocation14 + $0xa0] sm:$0xff]
    %v1047 = vld [vmem:[#allocation14 + $0xa8] sm:$0xff]
    %v1048 = vld [vmem:[#allocation14 + $0xb0] sm:$0xff]
    %v1049 = vld [vmem:[#allocation14 + $0xb8] sm:$0xff]
    %v1050 = vld [vmem:[#allocation14 + $0xc0] sm:$0xff]
    %v1051 = vld [vmem:[#allocation14 + $0xc8] sm:$0xff]
    %v1052 = vld [vmem:[#allocation14 + $0xd0] sm:$0xff]
    %v1053 = vld [vmem:[#allocation14 + $0xd8] sm:$0xff]
    %v1054 = vld [vmem:[#allocation14 + $0xe0] sm:$0xff]
    %v1055 = vld [vmem:[#allocation14 + $0xe8] sm:$0xff]
    %v1056 = vld [vmem:[#allocation14 + $0xf0] sm:$0xff]
    %v1057 = vld [vmem:[#allocation14 + $0xf8] sm:$0xff]
    %v1058 = vld [vmem:[#allocation14 + $0x100] sm:$0xff]
    %v1059 = vld [vmem:[#allocation14 + $0x108] sm:$0xff]
    %v1060 = vld [vmem:[#allocation14 + $0x110] sm:$0xff]
    %v1061 = vld [vmem:[#allocation14 + $0x118] sm:$0xff]
    %v1062 = vld [vmem:[#allocation14 + $0x120] sm:$0xff]
    %v1063 = vld [vmem:[#allocation14 + $0x128] sm:$0xff]
    %v1064 = vld [vmem:[#allocation14 + $0x130] sm:$0xff]
    %v1065 = vld [vmem:[#allocation14 + $0x138] sm:$0xff]
    %v1066 = vld [vmem:[#allocation14 + $0x140] sm:$0xff]
    %v1067 = vld [vmem:[#allocation14 + $0x148] sm:$0xff]
    %v1068 = vld [vmem:[#allocation14 + $0x150] sm:$0xff]
    %v1069 = vld [vmem:[#allocation14 + $0x158] sm:$0xff]
    %v1070 = vld [vmem:[#allocation14 + $0x160] sm:$0xff]
    %v1071 = vld [vmem:[#allocation14 + $0x168] sm:$0xff]
    %v1072 = vld [vmem:[#allocation14 + $0x170] sm:$0xff]
    %v1073 = vld [vmem:[#allocation14 + $0x178] sm:$0xff]
    %v1074 = vld [vmem:[%s4] sm:$0x7]
    %v1076 = vlaneseq
    %v1077 = vshrl.u32 %v1076, 7
    %v1078 = vsub.s32 0, %v1077
    %v1079 = vrot.slane %v1074, %v1078
    %v1080 = vlaneseq
    %v1081 = vshrl.u32 %v1080, 7
    %v1082 = vsub.s32 1, %v1081
    %v1083 = vrot.slane %v1074, %v1082
    %v1084 = vlaneseq
    %v1085 = vshrl.u32 %v1084, 7
    %v1086 = vsub.s32 2, %v1085
    %v1087 = vrot.slane %v1074, %v1086
    %v1091 = vld [vmem:[%s8] sm:$0x7]
    %v1093 = vlaneseq
    %v1094 = vshrl.u32 %v1093, 7
    %v1095 = vsub.s32 0, %v1094
    %v1096 = vrot.slane %v1091, %v1095
    %v1097 = vlaneseq
    %v1098 = vshrl.u32 %v1097, 7
    %v1099 = vsub.s32 1, %v1098
    %v1100 = vrot.slane %v1091, %v1099
    %v1101 = vlaneseq
    %v1102 = vshrl.u32 %v1101, 7
    %v1103 = vsub.s32 2, %v1102
    %v1104 = vrot.slane %v1091, %v1103
    %v1108 = vld [vmem:[#allocation2] sm:$0xff]
    %v1109 = vld [vmem:[#allocation2 + $0x8] sm:$0xff]
    %v1110 = vld [vmem:[#allocation2 + $0x10] sm:$0xff]
    %1111 = vmatprep.subr.mxu0 %v979
    %1112 = vmatpush1.msra.mxu0 %v978
    %1113 = vmatprep.subr.mxu0 %v982
    %1114 = vmatpush1.msra.mxu0 %v981
    %1115 = vmatprep.subr.mxu0 %v985
    %1116 = vmatpush1.msra.mxu0 %v984
    %1117 = vmatprep.subr.mxu0 %v988
    %1118 = vmatpush1.msra.mxu0 %v987
    %1119 = vmatprep.subr.mxu0 %v991
    %1120 = vmatpush1.msra.mxu0 %v990
    %1121 = vmatprep.subr.mxu0 %v994
    %1122 = vmatpush1.msra.mxu0 %v993
    %1123 = vmatprep.subr.mxu0 %v997
    %1124 = vmatpush1.msra.mxu0 %v996
    %1125 = vmatprep.subr.mxu0 %v1000
    %1126 = vmatpush1.msra.mxu0 %v999
    %1127 = vmatprep.subr.mxu0 %v1003
    %1128 = vmatpush1.msra.mxu0 %v1002
    %1129 = vmatprep.subr.mxu0 %v1006
    %1130 = vmatpush1.msra.mxu0 %v1005
    %1131 = vmatprep.subr.mxu0 %v1009
    %1132 = vmatpush1.msra.mxu0 %v1008
    %1133 = vmatprep.subr.mxu0 %v1012
    %1134 = vmatpush1.msra.mxu0 %v1011
    %1135 = vmatprep.subr.mxu0 %v1015
    %1136 = vmatpush1.msra.mxu0 %v1014
    %1137 = vmatprep.subr.mxu0 %v1018
    %1138 = vmatpush1.msra.mxu0 %v1017
    %1139 = vmatprep.subr.mxu0 %v1021
    %1140 = vmatpush1.msra.mxu0 %v1020
    %1141 = vmatprep.subr.mxu0 %v1024
    %1142 = vmatpush1.msra.mxu0 %v1023
    %1143 = vmatprep.subr.mxu0 0.0
    %1144 = vmatpush1.msra.mxu0 0.0
    %1145 = vmatprep.subr.mxu0 0.0
    %1146 = vmatpush1.msra.mxu0 0.0
    %1147 = vmatprep.subr.mxu0 0.0
    %1148 = vmatpush1.msra.mxu0 0.0
    %1149 = vmatprep.subr.mxu0 0.0
    %1150 = vmatpush1.msra.mxu0 0.0
    %1151 = vmatprep.subr.mxu0 0.0
    %1152 = vmatpush1.msra.mxu0 0.0
    %1153 = vmatprep.subr.mxu0 0.0
    %1154 = vmatpush1.msra.mxu0 0.0
    %1155 = vmatprep.subr.mxu0 0.0
    %1156 = vmatpush1.msra.mxu0 0.0
    %1157 = vmatprep.subr.mxu0 0.0
    %1158 = vmatpush1.msra.mxu0 0.0
    %1159 = vmatprep.subr.mxu0 0.0
    %1160 = vmatpush1.msra.mxu0 0.0
    %1161 = vmatprep.subr.mxu0 0.0
    %1162 = vmatpush1.msra.mxu0 0.0
    %1163 = vmatprep.subr.mxu0 0.0
    %1164 = vmatpush1.msra.mxu0 0.0
    %1165 = vmatprep.subr.mxu0 0.0
    %1166 = vmatpush1.msra.mxu0 0.0
    %1167 = vmatprep.subr.mxu0 0.0
    %1168 = vmatpush1.msra.mxu0 0.0
    %1169 = vmatprep.subr.mxu0 0.0
    %1170 = vmatpush1.msra.mxu0 0.0
    %1171 = vmatprep.subr.mxu0 0.0
    %1172 = vmatpush1.msra.mxu0 0.0
    %1173 = vmatprep.subr.mxu0 0.0
    %1174 = vmatpush1.msra.mxu0 0.0
    %1175 = vmatprep.mubr.f32.mxu0 0.0
    %1176 = vmatmul.mubr.f32.gmra.mrb[0].mxu0 0.0
    %v1177 = vpop.f32.mrb[0].mxu0
    %v1178 = vadd.f32 %v1079, %v1177
    %v1179 = vpop.f32.mrb[0].mxu0
    %v1180 = vadd.f32 %v1083, %v1179
    %1181 = vdwg.mxu0
    %1182 = vmatprep.subr.mxu0 0.0
    %1183 = vmatpush1.msra.mxu0 %v980
    %1184 = vmatprep.subr.mxu0 0.0
    %1185 = vmatpush1.msra.mxu0 %v983
    %1186 = vmatprep.subr.mxu0 0.0
    %1187 = vmatpush1.msra.mxu0 %v986
    %1188 = vmatprep.subr.mxu0 0.0
    %1189 = vmatpush1.msra.mxu0 %v989
    %1190 = vmatprep.subr.mxu0 0.0
    %1191 = vmatpush1.msra.mxu0 %v992
    %1192 = vmatprep.subr.mxu0 0.0
    %1193 = vmatpush1.msra.mxu0 %v995
    %1194 = vmatprep.subr.mxu0 0.0
    %1195 = vmatpush1.msra.mxu0 %v998
    %1196 = vmatprep.subr.mxu0 0.0
    %1197 = vmatpush1.msra.mxu0 %v1001
    %1198 = vmatprep.subr.mxu0 0.0
    %1199 = vmatpush1.msra.mxu0 %v1004
    %1200 = vmatprep.subr.mxu0 0.0
    %1201 = vmatpush1.msra.mxu0 %v1007
    %1202 = vmatprep.subr.mxu0 0.0
    %1203 = vmatpush1.msra.mxu0 %v1010
    %1204 = vmatprep.subr.mxu0 0.0
    %1205 = vmatpush1.msra.mxu0 %v1013
    %1206 = vmatprep.subr.mxu0 0.0
    %1207 = vmatpush1.msra.mxu0 %v1016
    %1208 = vmatprep.subr.mxu0 0.0
    %1209 = vmatpush1.msra.mxu0 %v1019
    %1210 = vmatprep.subr.mxu0 0.0
    %1211 = vmatpush1.msra.mxu0 %v1022
    %1212 = vmatprep.subr.mxu0 0.0
    %1213 = vmatpush1.msra.mxu0 %v1025
    %1214 = vmatprep.subr.mxu0 0.0
    %1215 = vmatpush1.msra.mxu0 0.0
    %1216 = vmatprep.subr.mxu0 0.0
    %1217 = vmatpush1.msra.mxu0 0.0
    %1218 = vmatprep.subr.mxu0 0.0
    %1219 = vmatpush1.msra.mxu0 0.0
    %1220 = vmatprep.subr.mxu0 0.0
    %1221 = vmatpush1.msra.mxu0 0.0
    %1222 = vmatprep.subr.mxu0 0.0
    %1223 = vmatpush1.msra.mxu0 0.0
    %1224 = vmatprep.subr.mxu0 0.0
    %1225 = vmatpush1.msra.mxu0 0.0
    %1226 = vmatprep.subr.mxu0 0.0
    %1227 = vmatpush1.msra.mxu0 0.0
    %1228 = vmatprep.subr.mxu0 0.0
    %1229 = vmatpush1.msra.mxu0 0.0
    %1230 = vmatprep.subr.mxu0 0.0
    %1231 = vmatpush1.msra.mxu0 0.0
    %1232 = vmatprep.subr.mxu0 0.0
    %1233 = vmatpush1.msra.mxu0 0.0
    %1234 = vmatprep.subr.mxu0 0.0
    %1235 = vmatpush1.msra.mxu0 0.0
    %1236 = vmatprep.subr.mxu0 0.0
    %1237 = vmatpush1.msra.mxu0 0.0
    %1238 = vmatprep.subr.mxu0 0.0
    %1239 = vmatpush1.msra.mxu0 0.0
    %1240 = vmatprep.subr.mxu0 0.0
    %1241 = vmatpush1.msra.mxu0 0.0
    %1242 = vmatprep.subr.mxu0 0.0
    %1243 = vmatpush1.msra.mxu0 0.0
    %1244 = vmatprep.subr.mxu0 0.0
    %1245 = vmatpush1.msra.mxu0 0.0
    %1246 = vmatprep.mubr.f32.mxu0 0.0
    %1247 = vmatmul.mubr.f32.gmra.mrb[0].mxu0 0.0
    %v1248 = vpop.f32.mrb[0].mxu0
    %v1249 = vadd.f32 %v1087, %v1248
    %v1250 = vpop.f32.mrb[0].mxu0
    %1251 = vdwg.mxu0
    %v1252 = vadd.f32 %v1108, %v1178
    %v1253 = vsub.f32 0.0, %v1252
    %v1254 = vmul.f32 %v1253, 1.442695
    %v1255 = vpow.pop %v1254
    %v1256 = vadd.f32 %v1255, 1.0
    %v1257 = vrcp.pop %v1256
    %v1258 = vmul.f32 1.0, %v1257
    %v1259 = vadd.f32 %v1109, %v1180
    %v1260 = vsub.f32 0.0, %v1259
    %v1261 = vmul.f32 %v1260, 1.442695
    %v1262 = vpow.pop %v1261
    %v1263 = vadd.f32 %v1262, 1.0
    %v1264 = vrcp.pop %v1263
    %v1265 = vmul.f32 1.0, %v1264
    %v1266 = vmul.f32 %v1258, %v1249
    %v1267 = vadd.f32 %v1110, %v1266
    %v1268 = vtanh.pop %v1267
    %v1269 = vsub.f32 1.0, %v1265
    %v1270 = vmul.f32 %v1269, %v1268
    %v1271 = vmul.f32 %v1265, 0.0
    %v1272 = vadd.f32 %v1270, %v1271
    %1273 = vst [vmem:[#allocation4] sm:$0xff] %v1272
    %s1274 = scalar_lea.vmem [#allocation3], 360
    %v1275 = vld [vmem:[%s1274] sm:$0xff]
    %v1276 = vld [vmem:[%s1274 + $0x8] sm:$0xff]
    %v1277 = vld [vmem:[%s1274 + $0x10] sm:$0xff]
    %1278 = vmatprep.subr.mxu0 %v1027
    %1279 = vmatpush1.msra.mxu0 %v1026
    %1280 = vmatprep.subr.mxu0 %v1030
    %1281 = vmatpush1.msra.mxu0 %v1029
    %1282 = vmatprep.subr.mxu0 %v1033
    %1283 = vmatpush1.msra.mxu0 %v1032
    %1284 = vmatprep.subr.mxu0 %v1036
    %1285 = vmatpush1.msra.mxu0 %v1035
    %1286 = vmatprep.subr.mxu0 %v1039
    %1287 = vmatpush1.msra.mxu0 %v1038
    %1288 = vmatprep.subr.mxu0 %v1042
    %1289 = vmatpush1.msra.mxu0 %v1041
    %1290 = vmatprep.subr.mxu0 %v1045
    %1291 = vmatpush1.msra.mxu0 %v1044
    %1292 = vmatprep.subr.mxu0 %v1048
    %1293 = vmatpush1.msra.mxu0 %v1047
    %1294 = vmatprep.subr.mxu0 %v1051
    %1295 = vmatpush1.msra.mxu0 %v1050
    %1296 = vmatprep.subr.mxu0 %v1054
    %1297 = vmatpush1.msra.mxu0 %v1053
    %1298 = vmatprep.subr.mxu0 %v1057
    %1299 = vmatpush1.msra.mxu0 %v1056
    %1300 = vmatprep.subr.mxu0 %v1060
    %1301 = vmatpush1.msra.mxu0 %v1059
    %1302 = vmatprep.subr.mxu0 %v1063
    %1303 = vmatpush1.msra.mxu0 %v1062
    %1304 = vmatprep.subr.mxu0 %v1066
    %1305 = vmatpush1.msra.mxu0 %v1065
    %1306 = vmatprep.subr.mxu0 %v1069
    %1307 = vmatpush1.msra.mxu0 %v1068
    %1308 = vmatprep.subr.mxu0 %v1072
    %1309 = vmatpush1.msra.mxu0 %v1071
    %1310 = vmatprep.subr.mxu0 0.0
    %1311 = vmatpush1.msra.mxu0 0.0
    %1312 = vmatprep.subr.mxu0 0.0
    %1313 = vmatpush1.msra.mxu0 0.0
    %1314 = vmatprep.subr.mxu0 0.0
    %1315 = vmatpush1.msra.mxu0 0.0
    %1316 = vmatprep.subr.mxu0 0.0
    %1317 = vmatpush1.msra.mxu0 0.0
    %1318 = vmatprep.subr.mxu0 0.0
    %1319 = vmatpush1.msra.mxu0 0.0
    %1320 = vmatprep.subr.mxu0 0.0
    %1321 = vmatpush1.msra.mxu0 0.0
    %1322 = vmatprep.subr.mxu0 0.0
    %1323 = vmatpush1.msra.mxu0 0.0
    %1324 = vmatprep.subr.mxu0 0.0
    %1325 = vmatpush1.msra.mxu0 0.0
    %1326 = vmatprep.subr.mxu0 0.0
    %1327 = vmatpush1.msra.mxu0 0.0
    %1328 = vmatprep.subr.mxu0 0.0
    %1329 = vmatpush1.msra.mxu0 0.0
    %1330 = vmatprep.subr.mxu0 0.0
    %1331 = vmatpush1.msra.mxu0 0.0
    %1332 = vmatprep.subr.mxu0 0.0
    %1333 = vmatpush1.msra.mxu0 0.0
    %1334 = vmatprep.subr.mxu0 0.0
    %1335 = vmatpush1.msra.mxu0 0.0
    %1336 = vmatprep.subr.mxu0 0.0
    %1337 = vmatpush1.msra.mxu0 0.0
    %1338 = vmatprep.subr.mxu0 0.0
    %1339 = vmatpush1.msra.mxu0 0.0
    %1340 = vmatprep.subr.mxu0 0.0
    %1341 = vmatpush1.msra.mxu0 0.0
    %1342 = vmatprep.mubr.f32.mxu0 0.0
    %1343 = vmatmul.mubr.f32.gmra.mrb[0].mxu0 0.0
    %v1344 = vpop.f32.mrb[0].mxu0
    %v1345 = vadd.f32 %v1096, %v1344
    %v1346 = vpop.f32.mrb[0].mxu0
    %v1347 = vadd.f32 %v1100, %v1346
    %1348 = vdwg.mxu0
    %1349 = vmatprep.subr.mxu0 0.0
    %1350 = vmatpush1.msra.mxu0 %v1028
    %1351 = vmatprep.subr.mxu0 0.0
    %1352 = vmatpush1.msra.mxu0 %v1031
    %1353 = vmatprep.subr.mxu0 0.0
    %1354 = vmatpush1.msra.mxu0 %v1034
    %1355 = vmatprep.subr.mxu0 0.0
    %1356 = vmatpush1.msra.mxu0 %v1037
    %1357 = vmatprep.subr.mxu0 0.0
    %1358 = vmatpush1.msra.mxu0 %v1040
    %1359 = vmatprep.subr.mxu0 0.0
    %1360 = vmatpush1.msra.mxu0 %v1043
    %1361 = vmatprep.subr.mxu0 0.0
    %1362 = vmatpush1.msra.mxu0 %v1046
    %1363 = vmatprep.subr.mxu0 0.0
    %1364 = vmatpush1.msra.mxu0 %v1049
    %1365 = vmatprep.subr.mxu0 0.0
    %1366 = vmatpush1.msra.mxu0 %v1052
    %1367 = vmatprep.subr.mxu0 0.0
    %1368 = vmatpush1.msra.mxu0 %v1055
    %1369 = vmatprep.subr.mxu0 0.0
    %1370 = vmatpush1.msra.mxu0 %v1058
    %1371 = vmatprep.subr.mxu0 0.0
    %1372 = vmatpush1.msra.mxu0 %v1061
    %1373 = vmatprep.subr.mxu0 0.0
    %1374 = vmatpush1.msra.mxu0 %v1064
    %1375 = vmatprep.subr.mxu0 0.0
    %1376 = vmatpush1.msra.mxu0 %v1067
    %1377 = vmatprep.subr.mxu0 0.0
    %1378 = vmatpush1.msra.mxu0 %v1070
    %1379 = vmatprep.subr.mxu0 0.0
    %1380 = vmatpush1.msra.mxu0 %v1073
    %1381 = vmatprep.subr.mxu0 0.0
    %1382 = vmatpush1.msra.mxu0 0.0
    %1383 = vmatprep.subr.mxu0 0.0
    %1384 = vmatpush1.msra.mxu0 0.0
    %1385 = vmatprep.subr.mxu0 0.0
    %1386 = vmatpush1.msra.mxu0 0.0
    %1387 = vmatprep.subr.mxu0 0.0
    %1388 = vmatpush1.msra.mxu0 0.0
    %1389 = vmatprep.subr.mxu0 0.0
    %1390 = vmatpush1.msra.mxu0 0.0
    %1391 = vmatprep.subr.mxu0 0.0
    %1392 = vmatpush1.msra.mxu0 0.0
    %1393 = vmatprep.subr.mxu0 0.0
    %1394 = vmatpush1.msra.mxu0 0.0
    %1395 = vmatprep.subr.mxu0 0.0
    %1396 = vmatpush1.msra.mxu0 0.0
    %1397 = vmatprep.subr.mxu0 0.0
    %1398 = vmatpush1.msra.mxu0 0.0
    %1399 = vmatprep.subr.mxu0 0.0
    %1400 = vmatpush1.msra.mxu0 0.0
    %1401 = vmatprep.subr.mxu0 0.0
    %1402 = vmatpush1.msra.mxu0 0.0
    %1403 = vmatprep.subr.mxu0 0.0
    %1404 = vmatpush1.msra.mxu0 0.0
    %1405 = vmatprep.subr.mxu0 0.0
    %1406 = vmatpush1.msra.mxu0 0.0
    %1407 = vmatprep.subr.mxu0 0.0
    %1408 = vmatpush1.msra.mxu0 0.0
    %1409 = vmatprep.subr.mxu0 0.0
    %1410 = vmatpush1.msra.mxu0 0.0
    %1411 = vmatprep.subr.mxu0 0.0
    %1412 = vmatpush1.msra.mxu0 0.0
    %1413 = vmatprep.mubr.f32.mxu0 0.0
    %1414 = vmatmul.mubr.f32.gmra.mrb[0].mxu0 0.0
    %v1415 = vpop.f32.mrb[0].mxu0
    %v1416 = vadd.f32 %v1104, %v1415
    %v1417 = vpop.f32.mrb[0].mxu0
    %1418 = vdwg.mxu0
    %v1419 = vadd.f32 %v1275, %v1345
    %v1420 = vsub.f32 0.0, %v1419
    %v1421 = vmul.f32 %v1420, 1.442695
    %v1422 = vpow.pop %v1421
    %v1423 = vadd.f32 %v1422, 1.0
    %v1424 = vrcp.pop %v1423
    %v1425 = vmul.f32 1.0, %v1424
    %v1426 = vadd.f32 %v1276, %v1347
    %v1427 = vsub.f32 0.0, %v1426
    %v1428 = vmul.f32 %v1427, 1.442695
    %v1429 = vpow.pop %v1428
    %v1430 = vadd.f32 %v1429, 1.0
    %v1431 = vrcp.pop %v1430
    %v1432 = vmul.f32 1.0, %v1431
    %v1433 = vmul.f32 %v1425, %v1416
    %v1434 = vadd.f32 %v1277, %v1433
    %v1435 = vtanh.pop %v1434
    %v1436 = vsub.f32 1.0, %v1432
    %v1437 = vmul.f32 %v1436, %v1435
    %v1438 = vmul.f32 %v1432, 0.0
    %v1439 = vadd.f32 %v1437, %v1438
    %s1440 = scalar_lea.vmem [#allocation5], 120
    %1441 = vst [vmem:[%s1440] sm:$0xff] %v1439
    %s1442 = scalar_lea.vmem [#allocation2], 24
    %v1443 = vld [vmem:[%s1442] sm:$0xff]
    %v1444 = vld [vmem:[%s1442 + $0x8] sm:$0xff]
    %v1445 = vld [vmem:[%s1442 + $0x10] sm:$0xff]
    %1446 = vmatprep.subr.mxu0 %v979
    %1447 = vmatpush1.msra.mxu0 %v978
    %1448 = vmatprep.subr.mxu0 %v982
    %1449 = vmatpush1.msra.mxu0 %v981
    %1450 = vmatprep.subr.mxu0 %v985
    %1451 = vmatpush1.msra.mxu0 %v984
    %1452 = vmatprep.subr.mxu0 %v988
    %1453 = vmatpush1.msra.mxu0 %v987
    %1454 = vmatprep.subr.mxu0 %v991
    %1455 = vmatpush1.msra.mxu0 %v990
    %1456 = vmatprep.subr.mxu0 %v994
    %1457 = vmatpush1.msra.mxu0 %v993
    %1458 = vmatprep.subr.mxu0 %v997
    %1459 = vmatpush1.msra.mxu0 %v996
    %1460 = vmatprep.subr.mxu0 %v1000
    %1461 = vmatpush1.msra.mxu0 %v999
    %1462 = vmatprep.subr.mxu0 %v1003
    %1463 = vmatpush1.msra.mxu0 %v1002
    %1464 = vmatprep.subr.mxu0 %v1006
    %1465 = vmatpush1.msra.mxu0 %v1005
    %1466 = vmatprep.subr.mxu0 %v1009
    %1467 = vmatpush1.msra.mxu0 %v1008
    %1468 = vmatprep.subr.mxu0 %v1012
    %1469 = vmatpush1.msra.mxu0 %v1011
    %1470 = vmatprep.subr.mxu0 %v1015
    %1471 = vmatpush1.msra.mxu0 %v1014
    %1472 = vmatprep.subr.mxu0 %v1018
    %1473 = vmatpush1.msra.mxu0 %v1017
    %1474 = vmatprep.subr.mxu0 %v1021
    %1475 = vmatpush1.msra.mxu0 %v1020
    %1476 = vmatprep.subr.mxu0 %v1024
    %1477 = vmatpush1.msra.mxu0 %v1023
    %1478 = vmatprep.subr.mxu0 0.0
    %1479 = vmatpush1.msra.mxu0 0.0
    %1480 = vmatprep.subr.mxu0 0.0
    %1481 = vmatpush1.msra.mxu0 0.0
    %1482 = vmatprep.subr.mxu0 0.0
    %1483 = vmatpush1.msra.mxu0 0.0
    %1484 = vmatprep.subr.mxu0 0.0
    %1485 = vmatpush1.msra.mxu0 0.0
    %1486 = vmatprep.subr.mxu0 0.0
    %1487 = vmatpush1.msra.mxu0 0.0
    %1488 = vmatprep.subr.mxu0 0.0
    %1489 = vmatpush1.msra.mxu0 0.0
    %1490 = vmatprep.subr.mxu0 0.0
    %1491 = vmatpush1.msra.mxu0 0.0
    %1492 = vmatprep.subr.mxu0 0.0
    %1493 = vmatpush1.msra.mxu0 0.0
    %1494 = vmatprep.subr.mxu0 0.0
    %1495 = vmatpush1.msra.mxu0 0.0
    %1496 = vmatprep.subr.mxu0 0.0
    %1497 = vmatpush1.msra.mxu0 0.0
    %1498 = vmatprep.subr.mxu0 0.0
    %1499 = vmatpush1.msra.mxu0 0.0
    %1500 = vmatprep.subr.mxu0 0.0
    %1501 = vmatpush1.msra.mxu0 0.0
    %1502 = vmatprep.subr.mxu0 0.0
    %1503 = vmatpush1.msra.mxu0 0.0
    %1504 = vmatprep.subr.mxu0 0.0
    %1505 = vmatpush1.msra.mxu0 0.0
    %1506 = vmatprep.subr.mxu0 0.0
    %1507 = vmatpush1.msra.mxu0 0.0
    %1508 = vmatprep.subr.mxu0 0.0
    %1509 = vmatpush1.msra.mxu0 0.0
    %1510 = vmatprep.mubr.f32.mxu0 0.0
    %1511 = vmatmul.mubr.f32.gmra.mrb[0].mxu0 %v1272
    %v1512 = vpop.f32.mrb[0].mxu0
    %v1513 = vadd.f32 %v1079, %v1512
    %v1514 = vpop.f32.mrb[0].mxu0
    %v1515 = vadd.f32 %v1083, %v1514
    %1516 = vdwg.mxu0
    %1517 = vmatprep.subr.mxu0 0.0
    %1518 = vmatpush1.msra.mxu0 %v980
    %1519 = vmatprep.subr.mxu0 0.0
    %1520 = vmatpush1.msra.mxu0 %v983
    %1521 = vmatprep.subr.mxu0 0.0
    %1522 = vmatpush1.msra.mxu0 %v986
    %1523 = vmatprep.subr.mxu0 0.0
    %1524 = vmatpush1.msra.mxu0 %v989
    %1525 = vmatprep.subr.mxu0 0.0
    %1526 = vmatpush1.msra.mxu0 %v992
    %1527 = vmatprep.subr.mxu0 0.0
    %1528 = vmatpush1.msra.mxu0 %v995
    %1529 = vmatprep.subr.mxu0 0.0
    %1530 = vmatpush1.msra.mxu0 %v998
    %1531 = vmatprep.subr.mxu0 0.0
    %1532 = vmatpush1.msra.mxu0 %v1001
    %1533 = vmatprep.subr.mxu0 0.0
    %1534 = vmatpush1.msra.mxu0 %v1004
    %1535 = vmatprep.subr.mxu0 0.0
    %1536 = vmatpush1.msra.mxu0 %v1007
    %1537 = vmatprep.subr.mxu0 0.0
    %1538 = vmatpush1.msra.mxu0 %v1010
    %1539 = vmatprep.subr.mxu0 0.0
    %1540 = vmatpush1.msra.mxu0 %v1013
    %1541 = vmatprep.subr.mxu0 0.0
    %1542 = vmatpush1.msra.mxu0 %v1016
    %1543 = vmatprep.subr.mxu0 0.0
    %1544 = vmatpush1.msra.mxu0 %v1019
    %1545 = vmatprep.subr.mxu0 0.0
    %1546 = vmatpush1.msra.mxu0 %v1022
    %1547 = vmatprep.subr.mxu0 0.0
    %1548 = vmatpush1.msra.mxu0 %v1025
    %1549 = vmatprep.subr.mxu0 0.0
    %1550 = vmatpush1.msra.mxu0 0.0
    %1551 = vmatprep.subr.mxu0 0.0
    %1552 = vmatpush1.msra.mxu0 0.0
    %1553 = vmatprep.subr.mxu0 0.0
    %1554 = vmatpush1.msra.mxu0 0.0
    %1555 = vmatprep.subr.mxu0 0.0
    %1556 = vmatpush1.msra.mxu0 0.0
    %1557 = vmatprep.subr.mxu0 0.0
    %1558 = vmatpush1.msra.mxu0 0.0
    %1559 = vmatprep.subr.mxu0 0.0
    %1560 = vmatpush1.msra.mxu0 0.0
    %1561 = vmatprep.subr.mxu0 0.0
    %1562 = vmatpush1.msra.mxu0 0.0
    %1563 = vmatprep.subr.mxu0 0.0
    %1564 = vmatpush1.msra.mxu0 0.0
    %1565 = vmatprep.subr.mxu0 0.0
    %1566 = vmatpush1.msra.mxu0 0.0
    %1567 = vmatprep.subr.mxu0 0.0
    %1568 = vmatpush1.msra.mxu0 0.0
    %1569 = vmatprep.subr.mxu0 0.0
    %1570 = vmatpush1.msra.mxu0 0.0
    %1571 = vmatprep.subr.mxu0 0.0
    %1572 = vmatpush1.msra.mxu0 0.0
    %1573 = vmatprep.subr.mxu0 0.0
    %1574 = vmatpush1.msra.mxu0 0.0
    %1575 = vmatprep.subr.mxu0 0.0
    %1576 = vmatpush1.msra.mxu0 0.0
    %1577 = vmatprep.subr.mxu0 0.0
    %1578 = vmatpush1.msra.mxu0 0.0
    %1579 = vmatprep.subr.mxu0 0.0
    %1580 = vmatpush1.msra.mxu0 0.0
    %1581 = vmatprep.mubr.f32.mxu0 0.0
    %1582 = vmatmul.mubr.f32.gmra.mrb[0].mxu0 %v1272
    %v1583 = vpop.f32.mrb[0].mxu0
    %v1584 = vadd.f32 %v1087, %v1583
    %v1585 = vpop.f32.mrb[0].mxu0
    %1586 = vdwg.mxu0
    %v1587 = vadd.f32 %v1443, %v1513
    %v1588 = vsub.f32 0.0, %v1587
    %v1589 = vmul.f32 %v1588, 1.442695
    %v1590 = vpow.pop %v1589
    %v1591 = vadd.f32 %v1590, 1.0
    %v1592 = vrcp.pop %v1591
    %v1593 = vmul.f32 1.0, %v1592
    %v1594 = vadd.f32 %v1444, %v1515
    %v1595 = vsub.f32 0.0, %v1594
    %v1596 = vmul.f32 %v1595, 1.442695
    %v1597 = vpow.pop %v1596
    %v1598 = vadd.f32 %v1597, 1.0
    %v1599 = vrcp.pop %v1598
    %v1600 = vmul.f32 1.0, %v1599
    %v1601 = vmul.f32 %v1593, %v1584
    %v1602 = vadd.f32 %v1445, %v1601
    %v1603 = vtanh.pop %v1602
    %v1604 = vsub.f32 1.0, %v1600
    %v1605 = vmul.f32 %v1604, %v1603
    %v1606 = vmul.f32 %v1600, %v1272
    %v1607 = vadd.f32 %v1605, %v1606
    %s1608 = scalar_lea.vmem [#allocation4], 8
    %1609 = vst [vmem:[%s1608] sm:$0xff] %v1607
    %s1610 = scalar_lea.vmem [#allocation3], 336
    %v1611 = vld [vmem:[%s1610] sm:$0xff]
    %v1612 = vld [vmem:[%s1610 + $0x8] sm:$0xff]
    %v1613 = vld [vmem:[%s1610 + $0x10] sm:$0xff]
    %1614 = vmatprep.subr.mxu0 %v1027
    %1615 = vmatpush1.msra.mxu0 %v1026
    %1616 = vmatprep.subr.mxu0 %v1030
    %1617 = vmatpush1.msra.mxu0 %v1029
    %1618 = vmatprep.subr.mxu0 %v1033
    %1619 = vmatpush1.msra.mxu0 %v1032
    %1620 = vmatprep.subr.mxu0 %v1036
    %1621 = vmatpush1.msra.mxu0 %v1035
    %1622 = vmatprep.subr.mxu0 %v1039
    %1623 = vmatpush1.msra.mxu0 %v1038
    %1624 = vmatprep.subr.mxu0 %v1042
    %1625 = vmatpush1.msra.mxu0 %v1041
    %1626 = vmatprep.subr.mxu0 %v1045
    %1627 = vmatpush1.msra.mxu0 %v1044
    %1628 = vmatprep.subr.mxu0 %v1048
    %1629 = vmatpush1.msra.mxu0 %v1047
    %1630 = vmatprep.subr.mxu0 %v1051
    %1631 = vmatpush1.msra.mxu0 %v1050
    %1632 = vmatprep.subr.mxu0 %v1054
    %1633 = vmatpush1.msra.mxu0 %v1053
    %1634 = vmatprep.subr.mxu0 %v1057
    %1635 = vmatpush1.msra.mxu0 %v1056
    %1636 = vmatprep.subr.mxu0 %v1060
    %1637 = vmatpush1.msra.mxu0 %v1059
    %1638 = vmatprep.subr.mxu0 %v1063
    %1639 = vmatpush1.msra.mxu0 %v1062
    %1640 = vmatprep.subr.mxu0 %v1066
    %1641 = vmatpush1.msra.mxu0 %v1065
    %1642 = vmatprep.subr.mxu0 %v1069
    %1643 = vmatpush1.msra.mxu0 %v1068
    %1644 = vmatprep.subr.mxu0 %v1072
    %1645 = vmatpush1.msra.mxu0 %v1071
    %1646 = vmatprep.subr.mxu0 0.0
    %1647 = vmatpush1.msra.mxu0 0.0
    %1648 = vmatprep.subr.mxu0 0.0
    %1649 = vmatpush1.msra.mxu0 0.0
    %1650 = vmatprep.subr.mxu0 0.0
    %1651 = vmatpush1.msra.mxu0 0.0
    %1652 = vmatprep.subr.mxu0 0.0
    %1653 = vmatpush1.msra.mxu0 0.0
    %1654 = vmatprep.subr.mxu0 0.0
    %1655 = vmatpush1.msra.mxu0 0.0
    %1656 = vmatprep.subr.mxu0 0.0
    %1657 = vmatpush1.msra.mxu0 0.0
    %1658 = vmatprep.subr.mxu0 0.0
    %1659 = vmatpush1.msra.mxu0 0.0
    %1660 = vmatprep.subr.mxu0 0.0
    %1661 = vmatpush1.msra.mxu0 0.0
    %1662 = vmatprep.subr.mxu0 0.0
    %1663 = vmatpush1.msra.mxu0 0.0
    %1664 = vmatprep.subr.mxu0 0.0
    %1665 = vmatpush1.msra.mxu0 0.0
    %1666 = vmatprep.subr.mxu0 0.0
    %1667 = vmatpush1.msra.mxu0 0.0
    %1668 = vmatprep.subr.mxu0 0.0
    %1669 = vmatpush1.msra.mxu0 0.0
    %1670 = vmatprep.subr.mxu0 0.0
    %1671 = vmatpush1.msra.mxu0 0.0
    %1672 = vmatprep.subr.mxu0 0.0
    %1673 = vmatpush1.msra.mxu0 0.0
    %1674 = vmatprep.subr.mxu0 0.0
    %1675 = vmatpush1.msra.mxu0 0.0
    %1676 = vmatprep.subr.mxu0 0.0
    %1677 = vmatpush1.msra.mxu0 0.0
    %1678 = vmatprep.mubr.f32.mxu0 0.0
    %1679 = vmatmul.mubr.f32.gmra.mrb[0].mxu0 %v1439
    %v1680 = vpop.f32.mrb[0].mxu0
    %v1681 = vadd.f32 %v1096, %v1680
    %v1682 = vpop.f32.mrb[0].mxu0
    %v1683 = vadd.f32 %v1100, %v1682
    %1684 = vdwg.mxu0
    %1685 = vmatprep.subr.mxu0 0.0
    %1686 = vmatpush1.msra.mxu0 %v1028
    %1687 = vmatprep.subr.mxu0 0.0
    %1688 = vmatpush1.msra.mxu0 %v1031
    %1689 = vmatprep.subr.mxu0 0.0
    %1690 = vmatpush1.msra.mxu0 %v1034
    %1691 = vmatprep.subr.mxu0 0.0
    %1692 = vmatpush1.msra.mxu0 %v1037
    %1693 = vmatprep.subr.mxu0 0.0
    %1694 = vmatpush1.msra.mxu0 %v1040
    %1695 = vmatprep.subr.mxu0 0.0
    %1696 = vmatpush1.msra.mxu0 %v1043
    %1697 = vmatprep.subr.mxu0 0.0
    %1698 = vmatpush1.msra.mxu0 %v1046
    %1699 = vmatprep.subr.mxu0 0.0
    %1700 = vmatpush1.msra.mxu0 %v1049
    %1701 = vmatprep.subr.mxu0 0.0
    %1702 = vmatpush1.msra.mxu0 %v1052
    %1703 = vmatprep.subr.mxu0 0.0
    %1704 = vmatpush1.msra.mxu0 %v1055
    %1705 = vmatprep.subr.mxu0 0.0
    %1706 = vmatpush1.msra.mxu0 %v1058
    %1707 = vmatprep.subr.mxu0 0.0
    %1708 = vmatpush1.msra.mxu0 %v1061
    %1709 = vmatprep.subr.mxu0 0.0
    %1710 = vmatpush1.msra.mxu0 %v1064
    %1711 = vmatprep.subr.mxu0 0.0
    %1712 = vmatpush1.msra.mxu0 %v1067
    %1713 = vmatprep.subr.mxu0 0.0
    %1714 = vmatpush1.msra.mxu0 %v1070
    %1715 = vmatprep.subr.mxu0 0.0
    %1716 = vmatpush1.msra.mxu0 %v1073
    %1717 = vmatprep.subr.mxu0 0.0
    %1718 = vmatpush1.msra.mxu0 0.0
    %1719 = vmatprep.subr.mxu0 0.0
    %1720 = vmatpush1.msra.mxu0 0.0
    %1721 = vmatprep.subr.mxu0 0.0
    %1722 = vmatpush1.msra.mxu0 0.0
    %1723 = vmatprep.subr.mxu0 0.0
    %1724 = vmatpush1.msra.mxu0 0.0
    %1725 = vmatprep.subr.mxu0 0.0
    %1726 = vmatpush1.msra.mxu0 0.0
    %1727 = vmatprep.subr.mxu0 0.0
    %1728 = vmatpush1.msra.mxu0 0.0
    %1729 = vmatprep.subr.mxu0 0.0
    %1730 = vmatpush1.msra.mxu0 0.0
    %1731 = vmatprep.subr.mxu0 0.0
    %1732 = vmatpush1.msra.mxu0 0.0
    %1733 = vmatprep.subr.mxu0 0.0
    %1734 = vmatpush1.msra.mxu0 0.0
    %1735 = vmatprep.subr.mxu0 0.0
    %1736 = vmatpush1.msra.mxu0 0.0
    %1737 = vmatprep.subr.mxu0 0.0
    %1738 = vmatpush1.msra.mxu0 0.0
    %1739 = vmatprep.subr.mxu0 0.0
    %1740 = vmatpush1.msra.mxu0 0.0
    %1741 = vmatprep.subr.mxu0 0.0
    %1742 = vmatpush1.msra.mxu0 0.0
    %1743 = vmatprep.subr.mxu0 0.0
    %1744 = vmatpush1.msra.mxu0 0.0
    %1745 = vmatprep.subr.mxu0 0.0
    %1746 = vmatpush1.msra.mxu0 0.0
    %1747 = vmatprep.subr.mxu0 0.0
    %1748 = vmatpush1.msra.mxu0 0.0
    %1749 = vmatprep.mubr.f32.mxu0 0.0
    %1750 = vmatmul.mubr.f32.gmra.mrb[0].mxu0 %v1439
    %v1751 = vpop.f32.mrb[0].mxu0
    %v1752 = vadd.f32 %v1104, %v1751
    %v1753 = vpop.f32.mrb[0].mxu0
    %1754 = vdwg.mxu0
    %v1755 = vadd.f32 %v1611, %v1681
    %v1756 = vsub.f32 0.0, %v1755
    %v1757 = vmul.f32 %v1756, 1.442695
    %v1758 = vpow.pop %v1757
    %v1759 = vadd.f32 %v1758, 1.0
    %v1760 = vrcp.pop %v1759
    %v1761 = vmul.f32 1.0, %v1760
    %v1762 = vadd.f32 %v1612, %v1683
    %v1763 = vsub.f32 0.0, %v1762
    %v1764 = vmul.f32 %v1763, 1.442695
    %v1765 = vpow.pop %v1764
    %v1766 = vadd.f32 %v1765, 1.0
    %v1767 = vrcp.pop %v1766
    %v1768 = vmul.f32 1.0, %v1767
    %v1769 = vmul.f32 %v1761, %v1752
    %v1770 = vadd.f32 %v1613, %v1769
    %v1771 = vtanh.pop %v1770
    %v1772 = vsub.f32 1.0, %v1768
    %v1773 = vmul.f32 %v1772, %v1771
    %v1774 = vmul.f32 %v1768, %v1439
    %v1775 = vadd.f32 %v1773, %v1774
    %s1776 = scalar_lea.vmem [#allocation5], 112
    %1777 = vst [vmem:[%s1776] sm:$0xff] %v1775
    %s1778 = scalar_lea.vmem [#allocation2], 48
    %v1779 = vld [vmem:[%s1778] sm:$0xff]
    %v1780 = vld [vmem:[%s1778 + $0x8] sm:$0xff]
    %v1781 = vld [vmem:[%s1778 + $0x10] sm:$0xff]
    %1782 = vmatprep.subr.mxu0 %v979
    %1783 = vmatpush1.msra.mxu0 %v978
    %1784 = vmatprep.subr.mxu0 %v982
    %1785 = vmatpush1.msra.mxu0 %v981
    %1786 = vmatprep.subr.mxu0 %v985
    %1787 = vmatpush1.msra.mxu0 %v984
    %1788 = vmatprep.subr.mxu0 %v988
    %1789 = vmatpush1.msra.mxu0 %v987
    %1790 = vmatprep.subr.mxu0 %v991
    %1791 = vmatpush1.msra.mxu0 %v990
    %1792 = vmatprep.subr.mxu0 %v994
    %1793 = vmatpush1.msra.mxu0 %v993
    %1794 = vmatprep.subr.mxu0 %v997
    %1795 = vmatpush1.msra.mxu0 %v996
    %1796 = vmatprep.subr.mxu0 %v1000
    %1797 = vmatpush1.msra.mxu0 %v999
    %1798 = vmatprep.subr.mxu0 %v1003
    %1799 = vmatpush1.msra.mxu0 %v1002
    %1800 = vmatprep.subr.mxu0 %v1006
    %1801 = vmatpush1.msra.mxu0 %v1005
    %1802 = vmatprep.subr.mxu0 %v1009
    %1803 = vmatpush1.msra.mxu0 %v1008
    %1804 = vmatprep.subr.mxu0 %v1012
    %1805 = vmatpush1.msra.mxu0 %v1011
    %1806 = vmatprep.subr.mxu0 %v1015
    %1807 = vmatpush1.msra.mxu0 %v1014
    %1808 = vmatprep.subr.mxu0 %v1018
    %1809 = vmatpush1.msra.mxu0 %v1017
    %1810 = vmatprep.subr.mxu0 %v1021
    %1811 = vmatpush1.msra.mxu0 %v1020
    %1812 = vmatprep.subr.mxu0 %v1024
    %1813 = vmatpush1.msra.mxu0 %v1023
    %1814 = vmatprep.subr.mxu0 0.0
    %1815 = vmatpush1.msra.mxu0 0.0
    %1816 = vmatprep.subr.mxu0 0.0
    %1817 = vmatpush1.msra.mxu0 0.0
    %1818 = vmatprep.subr.mxu0 0.0
    %1819 = vmatpush1.msra.mxu0 0.0
    %1820 = vmatprep.subr.mxu0 0.0
    %1821 = vmatpush1.msra.mxu0 0.0
    %1822 = vmatprep.subr.mxu0 0.0
    %1823 = vmatpush1.msra.mxu0 0.0
    %1824 = vmatprep.subr.mxu0 0.0
    %1825 = vmatpush1.msra.mxu0 0.0
    %1826 = vmatprep.subr.mxu0 0.0
    %1827 = vmatpush1.msra.mxu0 0.0
    %1828 = vmatprep.subr.mxu0 0.0
    %1829 = vmatpush1.msra.mxu0 0.0
    %1830 = vmatprep.subr.mxu0 0.0
    %1831 = vmatpush1.msra.mxu0 0.0
    %1832 = vmatprep.subr.mxu0 0.0
    %1833 = vmatpush1.msra.mxu0 0.0
    %1834 = vmatprep.subr.mxu0 0.0
    %1835 = vmatpush1.msra.mxu0 0.0
    %1836 = vmatprep.subr.mxu0 0.0
    %1837 = vmatpush1.msra.mxu0 0.0
    %1838 = vmatprep.subr.mxu0 0.0
    %1839 = vmatpush1.msra.mxu0 0.0
    %1840 = vmatprep.subr.mxu0 0.0
    %1841 = vmatpush1.msra.mxu0 0.0
    %1842 = vmatprep.subr.mxu0 0.0
    %1843 = vmatpush1.msra.mxu0 0.0
    %1844 = vmatprep.subr.mxu0 0.0
    %1845 = vmatpush1.msra.mxu0 0.0
    %1846 = vmatprep.mubr.f32.mxu0 0.0
    %1847 = vmatmul.mubr.f32.gmra.mrb[0].mxu0 %v1607
    %v1848 = vpop.f32.mrb[0].mxu0
    %v1849 = vadd.f32 %v1079, %v1848
    %v1850 = vpop.f32.mrb[0].mxu0
    %v1851 = vadd.f32 %v1083, %v1850
    %1852 = vdwg.mxu0
    %1853 = vmatprep.subr.mxu0 0.0
    %1854 = vmatpush1.msra.mxu0 %v980
    %1855 = vmatprep.subr.mxu0 0.0
    %1856 = vmatpush1.msra.mxu0 %v983
    %1857 = vmatprep.subr.mxu0 0.0
    %1858 = vmatpush1.msra.mxu0 %v986
    %1859 = vmatprep.subr.mxu0 0.0
    %1860 = vmatpush1.msra.mxu0 %v989
    %1861 = vmatprep.subr.mxu0 0.0
    %1862 = vmatpush1.msra.mxu0 %v992
    %1863 = vmatprep.subr.mxu0 0.0
    %1864 = vmatpush1.msra.mxu0 %v995
    %1865 = vmatprep.subr.mxu0 0.0
    %1866 = vmatpush1.msra.mxu0 %v998
    %1867 = vmatprep.subr.mxu0 0.0
    %1868 = vmatpush1.msra.mxu0 %v1001
    %1869 = vmatprep.subr.mxu0 0.0
    %1870 = vmatpush1.msra.mxu0 %v1004
    %1871 = vmatprep.subr.mxu0 0.0
    %1872 = vmatpush1.msra.mxu0 %v1007
    %1873 = vmatprep.subr.mxu0 0.0
    %1874 = vmatpush1.msra.mxu0 %v1010
    %1875 = vmatprep.subr.mxu0 0.0
    %1876 = vmatpush1.msra.mxu0 %v1013
    %1877 = vmatprep.subr.mxu0 0.0
    %1878 = vmatpush1.msra.mxu0 %v1016
    %1879 = vmatprep.subr.mxu0 0.0
    %1880 = vmatpush1.msra.mxu0 %v1019
    %1881 = vmatprep.subr.mxu0 0.0
    %1882 = vmatpush1.msra.mxu0 %v1022
    %1883 = vmatprep.subr.mxu0 0.0
    %1884 = vmatpush1.msra.mxu0 %v1025
    %1885 = vmatprep.subr.mxu0 0.0
    %1886 = vmatpush1.msra.mxu0 0.0
    %1887 = vmatprep.subr.mxu0 0.0
    %1888 = vmatpush1.msra.mxu0 0.0
    %1889 = vmatprep.subr.mxu0 0.0
    %1890 = vmatpush1.msra.mxu0 0.0
    %1891 = vmatprep.subr.mxu0 0.0
    %1892 = vmatpush1.msra.mxu0 0.0
    %1893 = vmatprep.subr.mxu0 0.0
    %1894 = vmatpush1.msra.mxu0 0.0
    %1895 = vmatprep.subr.mxu0 0.0
    %1896 = vmatpush1.msra.mxu0 0.0
    %1897 = vmatprep.subr.mxu0 0.0
    %1898 = vmatpush1.msra.mxu0 0.0
    %1899 = vmatprep.subr.mxu0 0.0
    %1900 = vmatpush1.msra.mxu0 0.0
    %1901 = vmatprep.subr.mxu0 0.0
    %1902 = vmatpush1.msra.mxu0 0.0
    %1903 = vmatprep.subr.mxu0 0.0
    %1904 = vmatpush1.msra.mxu0 0.0
    %1905 = vmatprep.subr.mxu0 0.0
    %1906 = vmatpush1.msra.mxu0 0.0
    %1907 = vmatprep.subr.mxu0 0.0
    %1908 = vmatpush1.msra.mxu0 0.0
    %1909 = vmatprep.subr.mxu0 0.0
    %1910 = vmatpush1.msra.mxu0 0.0
    %1911 = vmatprep.subr.mxu0 0.0
    %1912 = vmatpush1.msra.mxu0 0.0
    %1913 = vmatprep.subr.mxu0 0.0
    %1914 = vmatpush1.msra.mxu0 0.0
    %1915 = vmatprep.subr.mxu0 0.0
    %1916 = vmatpush1.msra.mxu0 0.0
    %1917 = vmatprep.mubr.f32.mxu0 0.0
    %1918 = vmatmul.mubr.f32.gmra.mrb[0].mxu0 %v1607
    %v1919 = vpop.f32.mrb[0].mxu0
    %v1920 = vadd.f32 %v1087, %v1919
    %v1921 = vpop.f32.mrb[0].mxu0
    %1922 = vdwg.mxu0
    %v1923 = vadd.f32 %v1779, %v1849
    %v1924 = vsub.f32 0.0, %v1923
    %v1925 = vmul.f32 %v1924, 1.442695
    %v1926 = vpow.pop %v1925
    %v1927 = vadd.f32 %v1926, 1.0
    %v1928 = vrcp.pop %v1927
    %v1929 = vmul.f32 1.0, %v1928
    %v1930 = vadd.f32 %v1780, %v1851
    %v1931 = vsub.f32 0.0, %v1930
    %v1932 = vmul.f32 %v1931, 1.442695
    %v1933 = vpow.pop %v1932
    %v1934 = vadd.f32 %v1933, 1.0
    %v1935 = vrcp.pop %v1934
    %v1936 = vmul.f32 1.0, %v1935
    %v1937 = vmul.f32 %v1929, %v1920
    %v1938 = vadd.f32 %v1781, %v1937
    %v1939 = vtanh.pop %v1938
    %v1940 = vsub.f32 1.0, %v1936
    %v1941 = vmul.f32 %v1940, %v1939
    %v1942 = vmul.f32 %v1936, %v1607
    %v1943 = vadd.f32 %v1941, %v1942
    %s1944 = scalar_lea.vmem [#allocation4], 16
    %1945 = vst [vmem:[%s1944] sm:$0xff] %v1943
    %s1946 = scalar_lea.vmem [#allocation3], 312
    %v1947 = vld [vmem:[%s1946] sm:$0xff]
    %v1948 = vld [vmem:[%s1946 + $0x8] sm:$0xff]
    %v1949 = vld [vmem:[%s1946 + $0x10] sm:$0xff]
    %1950 = vmatprep.subr.mxu0 %v1027
    %1951 = vmatpush1.msra.mxu0 %v1026
    %1952 = vmatprep.subr.mxu0 %v1030
    %1953 = vmatpush1.msra.mxu0 %v1029
    %1954 = vmatprep.subr.mxu0 %v1033
    %1955 = vmatpush1.msra.mxu0 %v1032
    %1956 = vmatprep.subr.mxu0 %v1036
    %1957 = vmatpush1.msra.mxu0 %v1035
    %1958 = vmatprep.subr.mxu0 %v1039
    %1959 = vmatpush1.msra.mxu0 %v1038
    %1960 = vmatprep.subr.mxu0 %v1042
    %1961 = vmatpush1.msra.mxu0 %v1041
    %1962 = vmatprep.subr.mxu0 %v1045
    %1963 = vmatpush1.msra.mxu0 %v1044
    %1964 = vmatprep.subr.mxu0 %v1048
    %1965 = vmatpush1.msra.mxu0 %v1047
    %1966 = vmatprep.subr.mxu0 %v1051
    %1967 = vmatpush1.msra.mxu0 %v1050
    %1968 = vmatprep.subr.mxu0 %v1054
    %1969 = vmatpush1.msra.mxu0 %v1053
    %1970 = vmatprep.subr.mxu0 %v1057
    %1971 = vmatpush1.msra.mxu0 %v1056
    %1972 = vmatprep.subr.mxu0 %v1060
    %1973 = vmatpush1.msra.mxu0 %v1059
    %1974 = vmatprep.subr.mxu0 %v1063
    %1975 = vmatpush1.msra.mxu0 %v1062
    %1976 = vmatprep.subr.mxu0 %v1066
    %1977 = vmatpush1.msra.mxu0 %v1065
    %1978 = vmatprep.subr.mxu0 %v1069
    %1979 = vmatpush1.msra.mxu0 %v1068
    %1980 = vmatprep.subr.mxu0 %v1072
    %1981 = vmatpush1.msra.mxu0 %v1071
    %1982 = vmatprep.subr.mxu0 0.0
    %1983 = vmatpush1.msra.mxu0 0.0
    %1984 = vmatprep.subr.mxu0 0.0
    %1985 = vmatpush1.msra.mxu0 0.0
    %1986 = vmatprep.subr.mxu0 0.0
    %1987 = vmatpush1.msra.mxu0 0.0
    %1988 = vmatprep.subr.mxu0 0.0
    %1989 = vmatpush1.msra.mxu0 0.0
    %1990 = vmatprep.subr.mxu0 0.0
    %1991 = vmatpush1.msra.mxu0 0.0
    %1992 = vmatprep.subr.mxu0 0.0
    %1993 = vmatpush1.msra.mxu0 0.0
    %1994 = vmatprep.subr.mxu0 0.0
    %1995 = vmatpush1.msra.mxu0 0.0
    %1996 = vmatprep.subr.mxu0 0.0
    %1997 = vmatpush1.msra.mxu0 0.0
    %1998 = vmatprep.subr.mxu0 0.0
    %1999 = vmatpush1.msra.mxu0 0.0
    %2000 = vmatprep.subr.mxu0 0.0
    %2001 = vmatpush1.msra.mxu0 0.0
    %2002 = vmatprep.subr.mxu0 0.0
    %2003 = vmatpush1.msra.mxu0 0.0
    %2004 = vmatprep.subr.mxu0 0.0
    %2005 = vmatpush1.msra.mxu0 0.0
    %2006 = vmatprep.subr.mxu0 0.0
    %2007 = vmatpush1.msra.mxu0 0.0
    %2008 = vmatprep.subr.mxu0 0.0
    %2009 = vmatpush1.msra.mxu0 0.0
    %2010 = vmatprep.subr.mxu0 0.0
    %2011 = vmatpush1.msra.mxu0 0.0
    %2012 = vmatprep.subr.mxu0 0.0
    %2013 = vmatpush1.msra.mxu0 0.0
    %2014 = vmatprep.mubr.f32.mxu0 0.0
    %2015 = vmatmul.mubr.f32.gmra.mrb[0].mxu0 %v1775
    %v2016 = vpop.f32.mrb[0].mxu0
    %v2017 = vadd.f32 %v1096, %v2016
    %v2018 = vpop.f32.mrb[0].mxu0
    %v2019 = vadd.f32 %v1100, %v2018
    %2020 = vdwg.mxu0
    %2021 = vmatprep.subr.mxu0 0.0
    %2022 = vmatpush1.msra.mxu0 %v1028
    %2023 = vmatprep.subr.mxu0 0.0
    %2024 = vmatpush1.msra.mxu0 %v1031
    %2025 = vmatprep.subr.mxu0 0.0
    %2026 = vmatpush1.msra.mxu0 %v1034
    %2027 = vmatprep.subr.mxu0 0.0
    %2028 = vmatpush1.msra.mxu0 %v1037
    %2029 = vmatprep.subr.mxu0 0.0
    %2030 = vmatpush1.msra.mxu0 %v1040
    %2031 = vmatprep.subr.mxu0 0.0
    %2032 = vmatpush1.msra.mxu0 %v1043
    %2033 = vmatprep.subr.mxu0 0.0
    %2034 = vmatpush1.msra.mxu0 %v1046
    %2035 = vmatprep.subr.mxu0 0.0
    %2036 = vmatpush1.msra.mxu0 %v1049
    %2037 = vmatprep.subr.mxu0 0.0
    %2038 = vmatpush1.msra.mxu0 %v1052
    %2039 = vmatprep.subr.mxu0 0.0
    %2040 = vmatpush1.msra.mxu0 %v1055
    %2041 = vmatprep.subr.mxu0 0.0
    %2042 = vmatpush1.msra.mxu0 %v1058
    %2043 = vmatprep.subr.mxu0 0.0
    %2044 = vmatpush1.msra.mxu0 %v1061
    %2045 = vmatprep.subr.mxu0 0.0
    %2046 = vmatpush1.msra.mxu0 %v1064
    %2047 = vmatprep.subr.mxu0 0.0
    %2048 = vmatpush1.msra.mxu0 %v1067
    %2049 = vmatprep.subr.mxu0 0.0
    %2050 = vmatpush1.msra.mxu0 %v1070
    %2051 = vmatprep.subr.mxu0 0.0
    %2052 = vmatpush1.msra.mxu0 %v1073
    %2053 = vmatprep.subr.mxu0 0.0
    %2054 = vmatpush1.msra.mxu0 0.0
    %2055 = vmatprep.subr.mxu0 0.0
    %2056 = vmatpush1.msra.mxu0 0.0
    %2057 = vmatprep.subr.mxu0 0.0
    %2058 = vmatpush1.msra.mxu0 0.0
    %2059 = vmatprep.subr.mxu0 0.0
    %2060 = vmatpush1.msra.mxu0 0.0
    %2061 = vmatprep.subr.mxu0 0.0
    %2062 = vmatpush1.msra.mxu0 0.0
    %2063 = vmatprep.subr.mxu0 0.0
    %2064 = vmatpush1.msra.mxu0 0.0
    %2065 = vmatprep.subr.mxu0 0.0
    %2066 = vmatpush1.msra.mxu0 0.0
    %2067 = vmatprep.subr.mxu0 0.0
    %2068 = vmatpush1.msra.mxu0 0.0
    %2069 = vmatprep.subr.mxu0 0.0
    %2070 = vmatpush1.msra.mxu0 0.0
    %2071 = vmatprep.subr.mxu0 0.0
    %2072 = vmatpush1.msra.mxu0 0.0
    %2073 = vmatprep.subr.mxu0 0.0
    %2074 = vmatpush1.msra.mxu0 0.0
    %2075 = vmatprep.subr.mxu0 0.0
    %2076 = vmatpush1.msra.mxu0 0.0
    %2077 = vmatprep.subr.mxu0 0.0
    %2078 = vmatpush1.msra.mxu0 0.0
    %2079 = vmatprep.subr.mxu0 0.0
    %2080 = vmatpush1.msra.mxu0 0.0
    %2081 = vmatprep.subr.mxu0 0.0
    %2082 = vmatpush1.msra.mxu0 0.0
    %2083 = vmatprep.subr.mxu0 0.0
    %2084 = vmatpush1.msra.mxu0 0.0
    %2085 = vmatprep.mubr.f32.mxu0 0.0
    %2086 = vmatmul.mubr.f32.gmra.mrb[0].mxu0 %v1775
    %v2087 = vpop.f32.mrb[0].mxu0
    %v2088 = vadd.f32 %v1104, %v2087
    %v2089 = vpop.f32.mrb[0].mxu0
    %2090 = vdwg.mxu0
    %v2091 = vadd.f32 %v1947, %v2017
    %v2092 = vsub.f32 0.0, %v2091
    %v2093 = vmul.f32 %v2092, 1.442695
    %v2094 = vpow.pop %v2093
    %v2095 = vadd.f32 %v2094, 1.0
    %v2096 = vrcp.pop %v2095
    %v2097 = vmul.f32 1.0, %v2096
    %v2098 = vadd.f32 %v1948, %v2019
    %v2099 = vsub.f32 0.0, %v2098
    %v2100 = vmul.f32 %v2099, 1.442695
    %v2101 = vpow.pop %v2100
    %v2102 = vadd.f32 %v2101, 1.0
    %v2103 = vrcp.pop %v2102
    %v2104 = vmul.f32 1.0, %v2103
    %v2105 = vmul.f32 %v2097, %v2088
    %v2106 = vadd.f32 %v1949, %v2105
    %v2107 = vtanh.pop %v2106
    %v2108 = vsub.f32 1.0, %v2104
    %v2109 = vmul.f32 %v2108, %v2107
    %v2110 = vmul.f32 %v2104, %v1775
    %v2111 = vadd.f32 %v2109, %v2110
    %s2112 = scalar_lea.vmem [#allocation5], 104
    %2113 = vst [vmem:[%s2112] sm:$0xff] %v2111
    %s2114 = scalar_lea.vmem [#allocation2], 72
    %v2115 = vld [vmem:[%s2114] sm:$0xff]
    %v2116 = vld [vmem:[%s2114 + $0x8] sm:$0xff]
    %v2117 = vld [vmem:[%s2114 + $0x10] sm:$0xff]
    %2118 = vmatprep.subr.mxu0 %v979
    %2119 = vmatpush1.msra.mxu0 %v978
    %2120 = vmatprep.subr.mxu0 %v982
    %2121 = vmatpush1.msra.mxu0 %v981
    %2122 = vmatprep.subr.mxu0 %v985
    %2123 = vmatpush1.msra.mxu0 %v984
    %2124 = vmatprep.subr.mxu0 %v988
    %2125 = vmatpush1.msra.mxu0 %v987
    %2126 = vmatprep.subr.mxu0 %v991
    %2127 = vmatpush1.msra.mxu0 %v990
    %2128 = vmatprep.subr.mxu0 %v994
    %2129 = vmatpush1.msra.mxu0 %v993
    %2130 = vmatprep.subr.mxu0 %v997
    %2131 = vmatpush1.msra.mxu0 %v996
    %2132 = vmatprep.subr.mxu0 %v1000
    %2133 = vmatpush1.msra.mxu0 %v999
    %2134 = vmatprep.subr.mxu0 %v1003
    %2135 = vmatpush1.msra.mxu0 %v1002
    %2136 = vmatprep.subr.mxu0 %v1006
    %2137 = vmatpush1.msra.mxu0 %v1005
    %2138 = vmatprep.subr.mxu0 %v1009
    %2139 = vmatpush1.msra.mxu0 %v1008
    %2140 = vmatprep.subr.mxu0 %v1012
    %2141 = vmatpush1.msra.mxu0 %v1011
    %2142 = vmatprep.subr.mxu0 %v1015
    %2143 = vmatpush1.msra.mxu0 %v1014
    %2144 = vmatprep.subr.mxu0 %v1018
    %2145 = vmatpush1.msra.mxu0 %v1017
    %2146 = vmatprep.subr.mxu0 %v1021
    %2147 = vmatpush1.msra.mxu0 %v1020
    %2148 = vmatprep.subr.mxu0 %v1024
    %2149 = vmatpush1.msra.mxu0 %v1023
    %2150 = vmatprep.subr.mxu0 0.0
    %2151 = vmatpush1.msra.mxu0 0.0
    %2152 = vmatprep.subr.mxu0 0.0
    %2153 = vmatpush1.msra.mxu0 0.0
    %2154 = vmatprep.subr.mxu0 0.0
    %2155 = vmatpush1.msra.mxu0 0.0
    %2156 = vmatprep.subr.mxu0 0.0
    %2157 = vmatpush1.msra.mxu0 0.0
    %2158 = vmatprep.subr.mxu0 0.0
    %2159 = vmatpush1.msra.mxu0 0.0
    %2160 = vmatprep.subr.mxu0 0.0
    %2161 = vmatpush1.msra.mxu0 0.0
    %2162 = vmatprep.subr.mxu0 0.0
    %2163 = vmatpush1.msra.mxu0 0.0
    %2164 = vmatprep.subr.mxu0 0.0
    %2165 = vmatpush1.msra.mxu0 0.0
    %2166 = vmatprep.subr.mxu0 0.0
    %2167 = vmatpush1.msra.mxu0 0.0
    %2168 = vmatprep.subr.mxu0 0.0
    %2169 = vmatpush1.msra.mxu0 0.0
    %2170 = vmatprep.subr.mxu0 0.0
    %2171 = vmatpush1.msra.mxu0 0.0
    %2172 = vmatprep.subr.mxu0 0.0
    %2173 = vmatpush1.msra.mxu0 0.0
    %2174 = vmatprep.subr.mxu0 0.0
    %2175 = vmatpush1.msra.mxu0 0.0
    %2176 = vmatprep.subr.mxu0 0.0
    %2177 = vmatpush1.msra.mxu0 0.0
    %2178 = vmatprep.subr.mxu0 0.0
    %2179 = vmatpush1.msra.mxu0 0.0
    %2180 = vmatprep.subr.mxu0 0.0
    %2181 = vmatpush1.msra.mxu0 0.0
    %2182 = vmatprep.mubr.f32.mxu0 0.0
    %2183 = vmatmul.mubr.f32.gmra.mrb[0].mxu0 %v1943
    %v2184 = vpop.f32.mrb[0].mxu0
    %v2185 = vadd.f32 %v1079, %v2184
    %v2186 = vpop.f32.mrb[0].mxu0
    %v2187 = vadd.f32 %v1083, %v2186
    %2188 = vdwg.mxu0
    %2189 = vmatprep.subr.mxu0 0.0
    %2190 = vmatpush1.msra.mxu0 %v980
    %2191 = vmatprep.subr.mxu0 0.0
    %2192 = vmatpush1.msra.mxu0 %v983
    %2193 = vmatprep.subr.mxu0 0.0
    %2194 = vmatpush1.msra.mxu0 %v986
    %2195 = vmatprep.subr.mxu0 0.0
    %2196 = vmatpush1.msra.mxu0 %v989
    %2197 = vmatprep.subr.mxu0 0.0
    %2198 = vmatpush1.msra.mxu0 %v992
    %2199 = vmatprep.subr.mxu0 0.0
    %2200 = vmatpush1.msra.mxu0 %v995
    %2201 = vmatprep.subr.mxu0 0.0
    %2202 = vmatpush1.msra.mxu0 %v998
    %2203 = vmatprep.subr.mxu0 0.0
    %2204 = vmatpush1.msra.mxu0 %v1001
    %2205 = vmatprep.subr.mxu0 0.0
    %2206 = vmatpush1.msra.mxu0 %v1004
    %2207 = vmatprep.subr.mxu0 0.0
    %2208 = vmatpush1.msra.mxu0 %v1007
    %2209 = vmatprep.subr.mxu0 0.0
    %2210 = vmatpush1.msra.mxu0 %v1010
    %2211 = vmatprep.subr.mxu0 0.0
    %2212 = vmatpush1.msra.mxu0 %v1013
    %2213 = vmatprep.subr.mxu0 0.0
    %2214 = vmatpush1.msra.mxu0 %v1016
    %2215 = vmatprep.subr.mxu0 0.0
    %2216 = vmatpush1.msra.mxu0 %v1019
    %2217 = vmatprep.subr.mxu0 0.0
    %2218 = vmatpush1.msra.mxu0 %v1022
    %2219 = vmatprep.subr.mxu0 0.0
    %2220 = vmatpush1.msra.mxu0 %v1025
    %2221 = vmatprep.subr.mxu0 0.0
    %2222 = vmatpush1.msra.mxu0 0.0
    %2223 = vmatprep.subr.mxu0 0.0
    %2224 = vmatpush1.msra.mxu0 0.0
    %2225 = vmatprep.subr.mxu0 0.0
    %2226 = vmatpush1.msra.mxu0 0.0
    %2227 = vmatprep.subr.mxu0 0.0
    %2228 = vmatpush1.msra.mxu0 0.0
    %2229 = vmatprep.subr.mxu0 0.0
    %2230 = vmatpush1.msra.mxu0 0.0
    %2231 = vmatprep.subr.mxu0 0.0
    %2232 = vmatpush1.msra.mxu0 0.0
    %2233 = vmatprep.subr.mxu0 0.0
    %2234 = vmatpush1.msra.mxu0 0.0
    %2235 = vmatprep.subr.mxu0 0.0
    %2236 = vmatpush1.msra.mxu0 0.0
    %2237 = vmatprep.subr.mxu0 0.0
    %2238 = vmatpush1.msra.mxu0 0.0
    %2239 = vmatprep.subr.mxu0 0.0
    %2240 = vmatpush1.msra.mxu0 0.0
    %2241 = vmatprep.subr.mxu0 0.0
    %2242 = vmatpush1.msra.mxu0 0.0
    %2243 = vmatprep.subr.mxu0 0.0
    %2244 = vmatpush1.msra.mxu0 0.0
    %2245 = vmatprep.subr.mxu0 0.0
    %2246 = vmatpush1.msra.mxu0 0.0
    %2247 = vmatprep.subr.mxu0 0.0
    %2248 = vmatpush1.msra.mxu0 0.0
    %2249 = vmatprep.subr.mxu0 0.0
    %2250 = vmatpush1.msra.mxu0 0.0
    %2251 = vmatprep.subr.mxu0 0.0
    %2252 = vmatpush1.msra.mxu0 0.0
    %2253 = vmatprep.mubr.f32.mxu0 0.0
    %2254 = vmatmul.mubr.f32.gmra.mrb[0].mxu0 %v1943
    %v2255 = vpop.f32.mrb[0].mxu0
    %v2256 = vadd.f32 %v1087, %v2255
    %v2257 = vpop.f32.mrb[0].mxu0
    %2258 = vdwg.mxu0
    %v2259 = vadd.f32 %v2115, %v2185
    %v2260 = vsub.f32 0.0, %v2259
    %v2261 = vmul.f32 %v2260, 1.442695
    %v2262 = vpow.pop %v2261
    %v2263 = vadd.f32 %v2262, 1.0
    %v2264 = vrcp.pop %v2263
    %v2265 = vmul.f32 1.0, %v2264
    %v2266 = vadd.f32 %v2116, %v2187
    %v2267 = vsub.f32 0.0, %v2266
    %v2268 = vmul.f32 %v2267, 1.442695
    %v2269 = vpow.pop %v2268
    %v2270 = vadd.f32 %v2269, 1.0
    %v2271 = vrcp.pop %v2270
    %v2272 = vmul.f32 1.0, %v2271
    %v2273 = vmul.f32 %v2265, %v2256
    %v2274 = vadd.f32 %v2117, %v2273
    %v2275 = vtanh.pop %v2274
    %v2276 = vsub.f32 1.0, %v2272
    %v2277 = vmul.f32 %v2276, %v2275
    %v2278 = vmul.f32 %v2272, %v1943
    %v2279 = vadd.f32 %v2277, %v2278
    %s2280 = scalar_lea.vmem [#allocation4], 24
    %2281 = vst [vmem:[%s2280] sm:$0xff] %v2279
    %s2282 = scalar_lea.vmem [#allocation3], 288
    %v2283 = vld [vmem:[%s2282] sm:$0xff]
    %v2284 = vld [vmem:[%s2282 + $0x8] sm:$0xff]
    %v2285 = vld [vmem:[%s2282 + $0x10] sm:$0xff]
    %2286 = vmatprep.subr.mxu0 %v1027
    %2287 = vmatpush1.msra.mxu0 %v1026
    %2288 = vmatprep.subr.mxu0 %v1030
    %2289 = vmatpush1.msra.mxu0 %v1029
    %2290 = vmatprep.subr.mxu0 %v1033
    %2291 = vmatpush1.msra.mxu0 %v1032
    %2292 = vmatprep.subr.mxu0 %v1036
    %2293 = vmatpush1.msra.mxu0 %v1035
    %2294 = vmatprep.subr.mxu0 %v1039
    %2295 = vmatpush1.msra.mxu0 %v1038
    %2296 = vmatprep.subr.mxu0 %v1042
    %2297 = vmatpush1.msra.mxu0 %v1041
    %2298 = vmatprep.subr.mxu0 %v1045
    %2299 = vmatpush1.msra.mxu0 %v1044
    %2300 = vmatprep.subr.mxu0 %v1048
    %2301 = vmatpush1.msra.mxu0 %v1047
    %2302 = vmatprep.subr.mxu0 %v1051
    %2303 = vmatpush1.msra.mxu0 %v1050
    %2304 = vmatprep.subr.mxu0 %v1054
    %2305 = vmatpush1.msra.mxu0 %v1053
    %2306 = vmatprep.subr.mxu0 %v1057
    %2307 = vmatpush1.msra.mxu0 %v1056
    %2308 = vmatprep.subr.mxu0 %v1060
    %2309 = vmatpush1.msra.mxu0 %v1059
    %2310 = vmatprep.subr.mxu0 %v1063
    %2311 = vmatpush1.msra.mxu0 %v1062
    %2312 = vmatprep.subr.mxu0 %v1066
    %2313 = vmatpush1.msra.mxu0 %v1065
    %2314 = vmatprep.subr.mxu0 %v1069
    %2315 = vmatpush1.msra.mxu0 %v1068
    %2316 = vmatprep.subr.mxu0 %v1072
    %2317 = vmatpush1.msra.mxu0 %v1071
    %2318 = vmatprep.subr.mxu0 0.0
    %2319 = vmatpush1.msra.mxu0 0.0
    %2320 = vmatprep.subr.mxu0 0.0
    %2321 = vmatpush1.msra.mxu0 0.0
    %2322 = vmatprep.subr.mxu0 0.0
    %2323 = vmatpush1.msra.mxu0 0.0
    %2324 = vmatprep.subr.mxu0 0.0
    %2325 = vmatpush1.msra.mxu0 0.0
    %2326 = vmatprep.subr.mxu0 0.0
    %2327 = vmatpush1.msra.mxu0 0.0
    %2328 = vmatprep.subr.mxu0 0.0
    %2329 = vmatpush1.msra.mxu0 0.0
    %2330 = vmatprep.subr.mxu0 0.0
    %2331 = vmatpush1.msra.mxu0 0.0
    %2332 = vmatprep.subr.mxu0 0.0
    %2333 = vmatpush1.msra.mxu0 0.0
    %2334 = vmatprep.subr.mxu0 0.0
    %2335 = vmatpush1.msra.mxu0 0.0
    %2336 = vmatprep.subr.mxu0 0.0
    %2337 = vmatpush1.msra.mxu0 0.0
    %2338 = vmatprep.subr.mxu0 0.0
    %2339 = vmatpush1.msra.mxu0 0.0
    %2340 = vmatprep.subr.mxu0 0.0
    %2341 = vmatpush1.msra.mxu0 0.0
    %2342 = vmatprep.subr.mxu0 0.0
    %2343 = vmatpush1.msra.mxu0 0.0
    %2344 = vmatprep.subr.mxu0 0.0
    %2345 = vmatpush1.msra.mxu0 0.0
    %2346 = vmatprep.subr.mxu0 0.0
    %2347 = vmatpush1.msra.mxu0 0.0
    %2348 = vmatprep.subr.mxu0 0.0
    %2349 = vmatpush1.msra.mxu0 0.0
    %2350 = vmatprep.mubr.f32.mxu0 0.0
    %2351 = vmatmul.mubr.f32.gmra.mrb[0].mxu0 %v2111
    %v2352 = vpop.f32.mrb[0].mxu0
    %v2353 = vadd.f32 %v1096, %v2352
    %v2354 = vpop.f32.mrb[0].mxu0
    %v2355 = vadd.f32 %v1100, %v2354
    %2356 = vdwg.mxu0
    %2357 = vmatprep.subr.mxu0 0.0
    %2358 = vmatpush1.msra.mxu0 %v1028
    %2359 = vmatprep.subr.mxu0 0.0
    %2360 = vmatpush1.msra.mxu0 %v1031
    %2361 = vmatprep.subr.mxu0 0.0
    %2362 = vmatpush1.msra.mxu0 %v1034
    %2363 = vmatprep.subr.mxu0 0.0
    %2364 = vmatpush1.msra.mxu0 %v1037
    %2365 = vmatprep.subr.mxu0 0.0
    %2366 = vmatpush1.msra.mxu0 %v1040
    %2367 = vmatprep.subr.mxu0 0.0
    %2368 = vmatpush1.msra.mxu0 %v1043
    %2369 = vmatprep.subr.mxu0 0.0
    %2370 = vmatpush1.msra.mxu0 %v1046
    %2371 = vmatprep.subr.mxu0 0.0
    %2372 = vmatpush1.msra.mxu0 %v1049
    %2373 = vmatprep.subr.mxu0 0.0
    %2374 = vmatpush1.msra.mxu0 %v1052
    %2375 = vmatprep.subr.mxu0 0.0
    %2376 = vmatpush1.msra.mxu0 %v1055
    %2377 = vmatprep.subr.mxu0 0.0
    %2378 = vmatpush1.msra.mxu0 %v1058
    %2379 = vmatprep.subr.mxu0 0.0
    %2380 = vmatpush1.msra.mxu0 %v1061
    %2381 = vmatprep.subr.mxu0 0.0
    %2382 = vmatpush1.msra.mxu0 %v1064
    %2383 = vmatprep.subr.mxu0 0.0
    %2384 = vmatpush1.msra.mxu0 %v1067
    %2385 = vmatprep.subr.mxu0 0.0
    %2386 = vmatpush1.msra.mxu0 %v1070
    %2387 = vmatprep.subr.mxu0 0.0
    %2388 = vmatpush1.msra.mxu0 %v1073
    %2389 = vmatprep.subr.mxu0 0.0
    %2390 = vmatpush1.msra.mxu0 0.0
    %2391 = vmatprep.subr.mxu0 0.0
    %2392 = vmatpush1.msra.mxu0 0.0
    %2393 = vmatprep.subr.mxu0 0.0
    %2394 = vmatpush1.msra.mxu0 0.0
    %2395 = vmatprep.subr.mxu0 0.0
    %2396 = vmatpush1.msra.mxu0 0.0
    %2397 = vmatprep.subr.mxu0 0.0
    %2398 = vmatpush1.msra.mxu0 0.0
    %2399 = vmatprep.subr.mxu0 0.0
    %2400 = vmatpush1.msra.mxu0 0.0
    %2401 = vmatprep.subr.mxu0 0.0
    %2402 = vmatpush1.msra.mxu0 0.0
    %2403 = vmatprep.subr.mxu0 0.0
    %2404 = vmatpush1.msra.mxu0 0.0
    %2405 = vmatprep.subr.mxu0 0.0
    %2406 = vmatpush1.msra.mxu0 0.0
    %2407 = vmatprep.subr.mxu0 0.0
    %2408 = vmatpush1.msra.mxu0 0.0
    %2409 = vmatprep.subr.mxu0 0.0
    %2410 = vmatpush1.msra.mxu0 0.0
    %2411 = vmatprep.subr.mxu0 0.0
    %2412 = vmatpush1.msra.mxu0 0.0
    %2413 = vmatprep.subr.mxu0 0.0
    %2414 = vmatpush1.msra.mxu0 0.0
    %2415 = vmatprep.subr.mxu0 0.0
    %2416 = vmatpush1.msra.mxu0 0.0
    %2417 = vmatprep.subr.mxu0 0.0
    %2418 = vmatpush1.msra.mxu0 0.0
    %2419 = vmatprep.subr.mxu0 0.0
    %2420 = vmatpush1.msra.mxu0 0.0
    %2421 = vmatprep.mubr.f32.mxu0 0.0
    %2422 = vmatmul.mubr.f32.gmra.mrb[0].mxu0 %v2111
    %v2423 = vpop.f32.mrb[0].mxu0
    %v2424 = vadd.f32 %v1104, %v2423
    %v2425 = vpop.f32.mrb[0].mxu0
    %2426 = vdwg.mxu0
    %v2427 = vadd.f32 %v2283, %v2353
    %v2428 = vsub.f32 0.0, %v2427
    %v2429 = vmul.f32 %v2428, 1.442695
    %v2430 = vpow.pop %v2429
    %v2431 = vadd.f32 %v2430, 1.0
    %v2432 = vrcp.pop %v2431
    %v2433 = vmul.f32 1.0, %v2432
    %v2434 = vadd.f32 %v2284, %v2355
    %v2435 = vsub.f32 0.0, %v2434
    %v2436 = vmul.f32 %v2435, 1.442695
    %v2437 = vpow.pop %v2436
    %v2438 = vadd.f32 %v2437, 1.0
    %v2439 = vrcp.pop %v2438
    %v2440 = vmul.f32 1.0, %v2439
    %v2441 = vmul.f32 %v2433, %v2424
    %v2442 = vadd.f32 %v2285, %v2441
    %v2443 = vtanh.pop %v2442
    %v2444 = vsub.f32 1.0, %v2440
    %v2445 = vmul.f32 %v2444, %v2443
    %v2446 = vmul.f32 %v2440, %v2111
    %v2447 = vadd.f32 %v2445, %v2446
    %s2448 = scalar_lea.vmem [#allocation5], 96
    %2449 = vst [vmem:[%s2448] sm:$0xff] %v2447
    %s2450 = scalar_lea.vmem [#allocation2], 96
    %v2451 = vld [vmem:[%s2450] sm:$0xff]
    %v2452 = vld [vmem:[%s2450 + $0x8] sm:$0xff]
    %v2453 = vld [vmem:[%s2450 + $0x10] sm:$0xff]
    %2454 = vmatprep.subr.mxu0 %v979
    %2455 = vmatpush1.msra.mxu0 %v978
    %2456 = vmatprep.subr.mxu0 %v982
    %2457 = vmatpush1.msra.mxu0 %v981
    %2458 = vmatprep.subr.mxu0 %v985
    %2459 = vmatpush1.msra.mxu0 %v984
    %2460 = vmatprep.subr.mxu0 %v988
    %2461 = vmatpush1.msra.mxu0 %v987
    %2462 = vmatprep.subr.mxu0 %v991
    %2463 = vmatpush1.msra.mxu0 %v990
    %2464 = vmatprep.subr.mxu0 %v994
    %2465 = vmatpush1.msra.mxu0 %v993
    %2466 = vmatprep.subr.mxu0 %v997
    %2467 = vmatpush1.msra.mxu0 %v996
    %2468 = vmatprep.subr.mxu0 %v1000
    %2469 = vmatpush1.msra.mxu0 %v999
    %2470 = vmatprep.subr.mxu0 %v1003
    %2471 = vmatpush1.msra.mxu0 %v1002
    %2472 = vmatprep.subr.mxu0 %v1006
    %2473 = vmatpush1.msra.mxu0 %v1005
    %2474 = vmatprep.subr.mxu0 %v1009
    %2475 = vmatpush1.msra.mxu0 %v1008
    %2476 = vmatprep.subr.mxu0 %v1012
    %2477 = vmatpush1.msra.mxu0 %v1011
    %2478 = vmatprep.subr.mxu0 %v1015
    %2479 = vmatpush1.msra.mxu0 %v1014
    %2480 = vmatprep.subr.mxu0 %v1018
    %2481 = vmatpush1.msra.mxu0 %v1017
    %2482 = vmatprep.subr.mxu0 %v1021
    %2483 = vmatpush1.msra.mxu0 %v1020
    %2484 = vmatprep.subr.mxu0 %v1024
    %2485 = vmatpush1.msra.mxu0 %v1023
    %2486 = vmatprep.subr.mxu0 0.0
    %2487 = vmatpush1.msra.mxu0 0.0
    %2488 = vmatprep.subr.mxu0 0.0
    %2489 = vmatpush1.msra.mxu0 0.0
    %2490 = vmatprep.subr.mxu0 0.0
    %2491 = vmatpush1.msra.mxu0 0.0
    %2492 = vmatprep.subr.mxu0 0.0
    %2493 = vmatpush1.msra.mxu0 0.0
    %2494 = vmatprep.subr.mxu0 0.0
    %2495 = vmatpush1.msra.mxu0 0.0
    %2496 = vmatprep.subr.mxu0 0.0
    %2497 = vmatpush1.msra.mxu0 0.0
    %2498 = vmatprep.subr.mxu0 0.0
    %2499 = vmatpush1.msra.mxu0 0.0
    %2500 = vmatprep.subr.mxu0 0.0
    %2501 = vmatpush1.msra.mxu0 0.0
    %2502 = vmatprep.subr.mxu0 0.0
    %2503 = vmatpush1.msra.mxu0 0.0
    %2504 = vmatprep.subr.mxu0 0.0
    %2505 = vmatpush1.msra.mxu0 0.0
    %2506 = vmatprep.subr.mxu0 0.0
    %2507 = vmatpush1.msra.mxu0 0.0
    %2508 = vmatprep.subr.mxu0 0.0
    %2509 = vmatpush1.msra.mxu0 0.0
    %2510 = vmatprep.subr.mxu0 0.0
    %2511 = vmatpush1.msra.mxu0 0.0
    %2512 = vmatprep.subr.mxu0 0.0
    %2513 = vmatpush1.msra.mxu0 0.0
    %2514 = vmatprep.subr.mxu0 0.0
    %2515 = vmatpush1.msra.mxu0 0.0
    %2516 = vmatprep.subr.mxu0 0.0
    %2517 = vmatpush1.msra.mxu0 0.0
    %2518 = vmatprep.mubr.f32.mxu0 0.0
    %2519 = vmatmul.mubr.f32.gmra.mrb[0].mxu0 %v2279
    %v2520 = vpop.f32.mrb[0].mxu0
    %v2521 = vadd.f32 %v1079, %v2520
    %v2522 = vpop.f32.mrb[0].mxu0
    %v2523 = vadd.f32 %v1083, %v2522
    %2524 = vdwg.mxu0
    %2525 = vmatprep.subr.mxu0 0.0
    %2526 = vmatpush1.msra.mxu0 %v980
    %2527 = vmatprep.subr.mxu0 0.0
    %2528 = vmatpush1.msra.mxu0 %v983
    %2529 = vmatprep.subr.mxu0 0.0
    %2530 = vmatpush1.msra.mxu0 %v986
    %2531 = vmatprep.subr.mxu0 0.0
    %2532 = vmatpush1.msra.mxu0 %v989
    %2533 = vmatprep.subr.mxu0 0.0
    %2534 = vmatpush1.msra.mxu0 %v992
    %2535 = vmatprep.subr.mxu0 0.0
    %2536 = vmatpush1.msra.mxu0 %v995
    %2537 = vmatprep.subr.mxu0 0.0
    %2538 = vmatpush1.msra.mxu0 %v998
    %2539 = vmatprep.subr.mxu0 0.0
    %2540 = vmatpush1.msra.mxu0 %v1001
    %2541 = vmatprep.subr.mxu0 0.0
    %2542 = vmatpush1.msra.mxu0 %v1004
    %2543 = vmatprep.subr.mxu0 0.0
    %2544 = vmatpush1.msra.mxu0 %v1007
    %2545 = vmatprep.subr.mxu0 0.0
    %2546 = vmatpush1.msra.mxu0 %v1010
    %2547 = vmatprep.subr.mxu0 0.0
    %2548 = vmatpush1.msra.mxu0 %v1013
    %2549 = vmatprep.subr.mxu0 0.0
    %2550 = vmatpush1.msra.mxu0 %v1016
    %2551 = vmatprep.subr.mxu0 0.0
    %2552 = vmatpush1.msra.mxu0 %v1019
    %2553 = vmatprep.subr.mxu0 0.0
    %2554 = vmatpush1.msra.mxu0 %v1022
    %2555 = vmatprep.subr.mxu0 0.0
    %2556 = vmatpush1.msra.mxu0 %v1025
    %2557 = vmatprep.subr.mxu0 0.0
    %2558 = vmatpush1.msra.mxu0 0.0
    %2559 = vmatprep.subr.mxu0 0.0
    %2560 = vmatpush1.msra.mxu0 0.0
    %2561 = vmatprep.subr.mxu0 0.0
    %2562 = vmatpush1.msra.mxu0 0.0
    %2563 = vmatprep.subr.mxu0 0.0
    %2564 = vmatpush1.msra.mxu0 0.0
    %2565 = vmatprep.subr.mxu0 0.0
    %2566 = vmatpush1.msra.mxu0 0.0
    %2567 = vmatprep.subr.mxu0 0.0
    %2568 = vmatpush1.msra.mxu0 0.0
    %2569 = vmatprep.subr.mxu0 0.0
    %2570 = vmatpush1.msra.mxu0 0.0
    %2571 = vmatprep.subr.mxu0 0.0
    %2572 = vmatpush1.msra.mxu0 0.0
    %2573 = vmatprep.subr.mxu0 0.0
    %2574 = vmatpush1.msra.mxu0 0.0
    %2575 = vmatprep.subr.mxu0 0.0
    %2576 = vmatpush1.msra.mxu0 0.0
    %2577 = vmatprep.subr.mxu0 0.0
    %2578 = vmatpush1.msra.mxu0 0.0
    %2579 = vmatprep.subr.mxu0 0.0
    %2580 = vmatpush1.msra.mxu0 0.0
    %2581 = vmatprep.subr.mxu0 0.0
    %2582 = vmatpush1.msra.mxu0 0.0
    %2583 = vmatprep.subr.mxu0 0.0
    %2584 = vmatpush1.msra.mxu0 0.0
    %2585 = vmatprep.subr.mxu0 0.0
    %2586 = vmatpush1.msra.mxu0 0.0
    %2587 = vmatprep.subr.mxu0 0.0
    %2588 = vmatpush1.msra.mxu0 0.0
    %2589 = vmatprep.mubr.f32.mxu0 0.0
    %2590 = vmatmul.mubr.f32.gmra.mrb[0].mxu0 %v2279
    %v2591 = vpop.f32.mrb[0].mxu0
    %v2592 = vadd.f32 %v1087, %v2591
    %v2593 = vpop.f32.mrb[0].mxu0
    %2594 = vdwg.mxu0
    %v2595 = vadd.f32 %v2451, %v2521
    %v2596 = vsub.f32 0.0, %v2595
    %v2597 = vmul.f32 %v2596, 1.442695
    %v2598 = vpow.pop %v2597
    %v2599 = vadd.f32 %v2598, 1.0
    %v2600 = vrcp.pop %v2599
    %v2601 = vmul.f32 1.0, %v2600
    %v2602 = vadd.f32 %v2452, %v2523
    %v2603 = vsub.f32 0.0, %v2602
    %v2604 = vmul.f32 %v2603, 1.442695
    %v2605 = vpow.pop %v2604
    %v2606 = vadd.f32 %v2605, 1.0
    %v2607 = vrcp.pop %v2606
    %v2608 = vmul.f32 1.0, %v2607
    %v2609 = vmul.f32 %v2601, %v2592
    %v2610 = vadd.f32 %v2453, %v2609
    %v2611 = vtanh.pop %v2610
    %v2612 = vsub.f32 1.0, %v2608
    %v2613 = vmul.f32 %v2612, %v2611
    %v2614 = vmul.f32 %v2608, %v2279
    %v2615 = vadd.f32 %v2613, %v2614
    %s2616 = scalar_lea.vmem [#allocation4], 32
    %2617 = vst [vmem:[%s2616] sm:$0xff] %v2615
    %s2618 = scalar_lea.vmem [#allocation3], 264
    %v2619 = vld [vmem:[%s2618] sm:$0xff]
    %v2620 = vld [vmem:[%s2618 + $0x8] sm:$0xff]
    %v2621 = vld [vmem:[%s2618 + $0x10] sm:$0xff]
    %2622 = vmatprep.subr.mxu0 %v1027
    %2623 = vmatpush1.msra.mxu0 %v1026
    %2624 = vmatprep.subr.mxu0 %v1030
    %2625 = vmatpush1.msra.mxu0 %v1029
    %2626 = vmatprep.subr.mxu0 %v1033
    %2627 = vmatpush1.msra.mxu0 %v1032
    %2628 = vmatprep.subr.mxu0 %v1036
    %2629 = vmatpush1.msra.mxu0 %v1035
    %2630 = vmatprep.subr.mxu0 %v1039
    %2631 = vmatpush1.msra.mxu0 %v1038
    %2632 = vmatprep.subr.mxu0 %v1042
    %2633 = vmatpush1.msra.mxu0 %v1041
    %2634 = vmatprep.subr.mxu0 %v1045
    %2635 = vmatpush1.msra.mxu0 %v1044
    %2636 = vmatprep.subr.mxu0 %v1048
    %2637 = vmatpush1.msra.mxu0 %v1047
    %2638 = vmatprep.subr.mxu0 %v1051
    %2639 = vmatpush1.msra.mxu0 %v1050
    %2640 = vmatprep.subr.mxu0 %v1054
    %2641 = vmatpush1.msra.mxu0 %v1053
    %2642 = vmatprep.subr.mxu0 %v1057
    %2643 = vmatpush1.msra.mxu0 %v1056
    %2644 = vmatprep.subr.mxu0 %v1060
    %2645 = vmatpush1.msra.mxu0 %v1059
    %2646 = vmatprep.subr.mxu0 %v1063
    %2647 = vmatpush1.msra.mxu0 %v1062
    %2648 = vmatprep.subr.mxu0 %v1066
    %2649 = vmatpush1.msra.mxu0 %v1065
    %2650 = vmatprep.subr.mxu0 %v1069
    %2651 = vmatpush1.msra.mxu0 %v1068
    %2652 = vmatprep.subr.mxu0 %v1072
    %2653 = vmatpush1.msra.mxu0 %v1071
    %2654 = vmatprep.subr.mxu0 0.0
    %2655 = vmatpush1.msra.mxu0 0.0
    %2656 = vmatprep.subr.mxu0 0.0
    %2657 = vmatpush1.msra.mxu0 0.0
    %2658 = vmatprep.subr.mxu0 0.0
    %2659 = vmatpush1.msra.mxu0 0.0
    %2660 = vmatprep.subr.mxu0 0.0
    %2661 = vmatpush1.msra.mxu0 0.0
    %2662 = vmatprep.subr.mxu0 0.0
    %2663 = vmatpush1.msra.mxu0 0.0
    %2664 = vmatprep.subr.mxu0 0.0
    %2665 = vmatpush1.msra.mxu0 0.0
    %2666 = vmatprep.subr.mxu0 0.0
    %2667 = vmatpush1.msra.mxu0 0.0
    %2668 = vmatprep.subr.mxu0 0.0
    %2669 = vmatpush1.msra.mxu0 0.0
    %2670 = vmatprep.subr.mxu0 0.0
    %2671 = vmatpush1.msra.mxu0 0.0
    %2672 = vmatprep.subr.mxu0 0.0
    %2673 = vmatpush1.msra.mxu0 0.0
    %2674 = vmatprep.subr.mxu0 0.0
    %2675 = vmatpush1.msra.mxu0 0.0
    %2676 = vmatprep.subr.mxu0 0.0
    %2677 = vmatpush1.msra.mxu0 0.0
    %2678 = vmatprep.subr.mxu0 0.0
    %2679 = vmatpush1.msra.mxu0 0.0
    %2680 = vmatprep.subr.mxu0 0.0
    %2681 = vmatpush1.msra.mxu0 0.0
    %2682 = vmatprep.subr.mxu0 0.0
    %2683 = vmatpush1.msra.mxu0 0.0
    %2684 = vmatprep.subr.mxu0 0.0
    %2685 = vmatpush1.msra.mxu0 0.0
    %2686 = vmatprep.mubr.f32.mxu0 0.0
    %2687 = vmatmul.mubr.f32.gmra.mrb[0].mxu0 %v2447
    %v2688 = vpop.f32.mrb[0].mxu0
    %v2689 = vadd.f32 %v1096, %v2688
    %v2690 = vpop.f32.mrb[0].mxu0
    %v2691 = vadd.f32 %v1100, %v2690
    %2692 = vdwg.mxu0
    %2693 = vmatprep.subr.mxu0 0.0
    %2694 = vmatpush1.msra.mxu0 %v1028
    %2695 = vmatprep.subr.mxu0 0.0
    %2696 = vmatpush1.msra.mxu0 %v1031
    %2697 = vmatprep.subr.mxu0 0.0
    %2698 = vmatpush1.msra.mxu0 %v1034
    %2699 = vmatprep.subr.mxu0 0.0
    %2700 = vmatpush1.msra.mxu0 %v1037
    %2701 = vmatprep.subr.mxu0 0.0
    %2702 = vmatpush1.msra.mxu0 %v1040
    %2703 = vmatprep.subr.mxu0 0.0
    %2704 = vmatpush1.msra.mxu0 %v1043
    %2705 = vmatprep.subr.mxu0 0.0
    %2706 = vmatpush1.msra.mxu0 %v1046
    %2707 = vmatprep.subr.mxu0 0.0
    %2708 = vmatpush1.msra.mxu0 %v1049
    %2709 = vmatprep.subr.mxu0 0.0
    %2710 = vmatpush1.msra.mxu0 %v1052
    %2711 = vmatprep.subr.mxu0 0.0
    %2712 = vmatpush1.msra.mxu0 %v1055
    %2713 = vmatprep.subr.mxu0 0.0
    %2714 = vmatpush1.msra.mxu0 %v1058
    %2715 = vmatprep.subr.mxu0 0.0
    %2716 = vmatpush1.msra.mxu0 %v1061
    %2717 = vmatprep.subr.mxu0 0.0
    %2718 = vmatpush1.msra.mxu0 %v1064
    %2719 = vmatprep.subr.mxu0 0.0
    %2720 = vmatpush1.msra.mxu0 %v1067
    %2721 = vmatprep.subr.mxu0 0.0
    %2722 = vmatpush1.msra.mxu0 %v1070
    %2723 = vmatprep.subr.mxu0 0.0
    %2724 = vmatpush1.msra.mxu0 %v1073
    %2725 = vmatprep.subr.mxu0 0.0
    %2726 = vmatpush1.msra.mxu0 0.0
    %2727 = vmatprep.subr.mxu0 0.0
    %2728 = vmatpush1.msra.mxu0 0.0
    %2729 = vmatprep.subr.mxu0 0.0
    %2730 = vmatpush1.msra.mxu0 0.0
    %2731 = vmatprep.subr.mxu0 0.0
    %2732 = vmatpush1.msra.mxu0 0.0
    %2733 = vmatprep.subr.mxu0 0.0
    %2734 = vmatpush1.msra.mxu0 0.0
    %2735 = vmatprep.subr.mxu0 0.0
    %2736 = vmatpush1.msra.mxu0 0.0
    %2737 = vmatprep.subr.mxu0 0.0
    %2738 = vmatpush1.msra.mxu0 0.0
    %2739 = vmatprep.subr.mxu0 0.0
    %2740 = vmatpush1.msra.mxu0 0.0
    %2741 = vmatprep.subr.mxu0 0.0
    %2742 = vmatpush1.msra.mxu0 0.0
    %2743 = vmatprep.subr.mxu0 0.0
    %2744 = vmatpush1.msra.mxu0 0.0
    %2745 = vmatprep.subr.mxu0 0.0
    %2746 = vmatpush1.msra.mxu0 0.0
    %2747 = vmatprep.subr.mxu0 0.0
    %2748 = vmatpush1.msra.mxu0 0.0
    %2749 = vmatprep.subr.mxu0 0.0
    %2750 = vmatpush1.msra.mxu0 0.0
    %2751 = vmatprep.subr.mxu0 0.0
    %2752 = vmatpush1.msra.mxu0 0.0
    %2753 = vmatprep.subr.mxu0 0.0
    %2754 = vmatpush1.msra.mxu0 0.0
    %2755 = vmatprep.subr.mxu0 0.0
    %2756 = vmatpush1.msra.mxu0 0.0
    %2757 = vmatprep.mubr.f32.mxu0 0.0
    %2758 = vmatmul.mubr.f32.gmra.mrb[0].mxu0 %v2447
    %v2759 = vpop.f32.mrb[0].mxu0
    %v2760 = vadd.f32 %v1104, %v2759
    %v2761 = vpop.f32.mrb[0].mxu0
    %2762 = vdwg.mxu0
    %v2763 = vadd.f32 %v2619, %v2689
    %v2764 = vsub.f32 0.0, %v2763
    %v2765 = vmul.f32 %v2764, 1.442695
    %v2766 = vpow.pop %v2765
    %v2767 = vadd.f32 %v2766, 1.0
    %v2768 = vrcp.pop %v2767
    %v2769 = vmul.f32 1.0, %v2768
    %v2770 = vadd.f32 %v2620, %v2691
    %v2771 = vsub.f32 0.0, %v2770
    %v2772 = vmul.f32 %v2771, 1.442695
    %v2773 = vpow.pop %v2772
    %v2774 = vadd.f32 %v2773, 1.0
    %v2775 = vrcp.pop %v2774
    %v2776 = vmul.f32 1.0, %v2775
    %v2777 = vmul.f32 %v2769, %v2760
    %v2778 = vadd.f32 %v2621, %v2777
    %v2779 = vtanh.pop %v2778
    %v2780 = vsub.f32 1.0, %v2776
    %v2781 = vmul.f32 %v2780, %v2779
    %v2782 = vmul.f32 %v2776, %v2447
    %v2783 = vadd.f32 %v2781, %v2782
    %s2784 = scalar_lea.vmem [#allocation5], 88
    %2785 = vst [vmem:[%s2784] sm:$0xff] %v2783
    %s2786 = scalar_lea.vmem [#allocation2], 120
    %v2787 = vld [vmem:[%s2786] sm:$0xff]
    %v2788 = vld [vmem:[%s2786 + $0x8] sm:$0xff]
    %v2789 = vld [vmem:[%s2786 + $0x10] sm:$0xff]
    %2790 = vmatprep.subr.mxu0 %v979
    %2791 = vmatpush1.msra.mxu0 %v978
    %2792 = vmatprep.subr.mxu0 %v982
    %2793 = vmatpush1.msra.mxu0 %v981
    %2794 = vmatprep.subr.mxu0 %v985
    %2795 = vmatpush1.msra.mxu0 %v984
    %2796 = vmatprep.subr.mxu0 %v988
    %2797 = vmatpush1.msra.mxu0 %v987
    %2798 = vmatprep.subr.mxu0 %v991
    %2799 = vmatpush1.msra.mxu0 %v990
    %2800 = vmatprep.subr.mxu0 %v994
    %2801 = vmatpush1.msra.mxu0 %v993
    %2802 = vmatprep.subr.mxu0 %v997
    %2803 = vmatpush1.msra.mxu0 %v996
    %2804 = vmatprep.subr.mxu0 %v1000
    %2805 = vmatpush1.msra.mxu0 %v999
    %2806 = vmatprep.subr.mxu0 %v1003
    %2807 = vmatpush1.msra.mxu0 %v1002
    %2808 = vmatprep.subr.mxu0 %v1006
    %2809 = vmatpush1.msra.mxu0 %v1005
    %2810 = vmatprep.subr.mxu0 %v1009
    %2811 = vmatpush1.msra.mxu0 %v1008
    %2812 = vmatprep.subr.mxu0 %v1012
    %2813 = vmatpush1.msra.mxu0 %v1011
    %2814 = vmatprep.subr.mxu0 %v1015
    %2815 = vmatpush1.msra.mxu0 %v1014
    %2816 = vmatprep.subr.mxu0 %v1018
    %2817 = vmatpush1.msra.mxu0 %v1017
    %2818 = vmatprep.subr.mxu0 %v1021
    %2819 = vmatpush1.msra.mxu0 %v1020
    %2820 = vmatprep.subr.mxu0 %v1024
    %2821 = vmatpush1.msra.mxu0 %v1023
    %2822 = vmatprep.subr.mxu0 0.0
    %2823 = vmatpush1.msra.mxu0 0.0
    %2824 = vmatprep.subr.mxu0 0.0
    %2825 = vmatpush1.msra.mxu0 0.0
    %2826 = vmatprep.subr.mxu0 0.0
    %2827 = vmatpush1.msra.mxu0 0.0
    %2828 = vmatprep.subr.mxu0 0.0
    %2829 = vmatpush1.msra.mxu0 0.0
    %2830 = vmatprep.subr.mxu0 0.0
    %2831 = vmatpush1.msra.mxu0 0.0
    %2832 = vmatprep.subr.mxu0 0.0
    %2833 = vmatpush1.msra.mxu0 0.0
    %2834 = vmatprep.subr.mxu0 0.0
    %2835 = vmatpush1.msra.mxu0 0.0
    %2836 = vmatprep.subr.mxu0 0.0
    %2837 = vmatpush1.msra.mxu0 0.0
    %2838 = vmatprep.subr.mxu0 0.0
    %2839 = vmatpush1.msra.mxu0 0.0
    %2840 = vmatprep.subr.mxu0 0.0
    %2841 = vmatpush1.msra.mxu0 0.0
    %2842 = vmatprep.subr.mxu0 0.0
    %2843 = vmatpush1.msra.mxu0 0.0
    %2844 = vmatprep.subr.mxu0 0.0
    %2845 = vmatpush1.msra.mxu0 0.0
    %2846 = vmatprep.subr.mxu0 0.0
    %2847 = vmatpush1.msra.mxu0 0.0
    %2848 = vmatprep.subr.mxu0 0.0
    %2849 = vmatpush1.msra.mxu0 0.0
    %2850 = vmatprep.subr.mxu0 0.0
    %2851 = vmatpush1.msra.mxu0 0.0
    %2852 = vmatprep.subr.mxu0 0.0
    %2853 = vmatpush1.msra.mxu0 0.0
    %2854 = vmatprep.mubr.f32.mxu0 0.0
    %2855 = vmatmul.mubr.f32.gmra.mrb[0].mxu0 %v2615
    %v2856 = vpop.f32.mrb[0].mxu0
    %v2857 = vadd.f32 %v1079, %v2856
    %v2858 = vpop.f32.mrb[0].mxu0
    %v2859 = vadd.f32 %v1083, %v2858
    %2860 = vdwg.mxu0
    %2861 = vmatprep.subr.mxu0 0.0
    %2862 = vmatpush1.msra.mxu0 %v980
    %2863 = vmatprep.subr.mxu0 0.0
    %2864 = vmatpush1.msra.mxu0 %v983
    %2865 = vmatprep.subr.mxu0 0.0
    %2866 = vmatpush1.msra.mxu0 %v986
    %2867 = vmatprep.subr.mxu0 0.0
    %2868 = vmatpush1.msra.mxu0 %v989
    %2869 = vmatprep.subr.mxu0 0.0
    %2870 = vmatpush1.msra.mxu0 %v992
    %2871 = vmatprep.subr.mxu0 0.0
    %2872 = vmatpush1.msra.mxu0 %v995
    %2873 = vmatprep.subr.mxu0 0.0
    %2874 = vmatpush1.msra.mxu0 %v998
    %2875 = vmatprep.subr.mxu0 0.0
    %2876 = vmatpush1.msra.mxu0 %v1001
    %2877 = vmatprep.subr.mxu0 0.0
    %2878 = vmatpush1.msra.mxu0 %v1004
    %2879 = vmatprep.subr.mxu0 0.0
    %2880 = vmatpush1.msra.mxu0 %v1007
    %2881 = vmatprep.subr.mxu0 0.0
    %2882 = vmatpush1.msra.mxu0 %v1010
    %2883 = vmatprep.subr.mxu0 0.0
    %2884 = vmatpush1.msra.mxu0 %v1013
    %2885 = vmatprep.subr.mxu0 0.0
    %2886 = vmatpush1.msra.mxu0 %v1016
    %2887 = vmatprep.subr.mxu0 0.0
    %2888 = vmatpush1.msra.mxu0 %v1019
    %2889 = vmatprep.subr.mxu0 0.0
    %2890 = vmatpush1.msra.mxu0 %v1022
    %2891 = vmatprep.subr.mxu0 0.0
    %2892 = vmatpush1.msra.mxu0 %v1025
    %2893 = vmatprep.subr.mxu0 0.0
    %2894 = vmatpush1.msra.mxu0 0.0
    %2895 = vmatprep.subr.mxu0 0.0
    %2896 = vmatpush1.msra.mxu0 0.0
    %2897 = vmatprep.subr.mxu0 0.0
    %2898 = vmatpush1.msra.mxu0 0.0
    %2899 = vmatprep.subr.mxu0 0.0
    %2900 = vmatpush1.msra.mxu0 0.0
    %2901 = vmatprep.subr.mxu0 0.0
    %2902 = vmatpush1.msra.mxu0 0.0
    %2903 = vmatprep.subr.mxu0 0.0
    %2904 = vmatpush1.msra.mxu0 0.0
    %2905 = vmatprep.subr.mxu0 0.0
    %2906 = vmatpush1.msra.mxu0 0.0
    %2907 = vmatprep.subr.mxu0 0.0
    %2908 = vmatpush1.msra.mxu0 0.0
    %2909 = vmatprep.subr.mxu0 0.0
    %2910 = vmatpush1.msra.mxu0 0.0
    %2911 = vmatprep.subr.mxu0 0.0
    %2912 = vmatpush1.msra.mxu0 0.0
    %2913 = vmatprep.subr.mxu0 0.0
    %2914 = vmatpush1.msra.mxu0 0.0
    %2915 = vmatprep.subr.mxu0 0.0
    %2916 = vmatpush1.msra.mxu0 0.0
    %2917 = vmatprep.subr.mxu0 0.0
    %2918 = vmatpush1.msra.mxu0 0.0
    %2919 = vmatprep.subr.mxu0 0.0
    %2920 = vmatpush1.msra.mxu0 0.0
    %2921 = vmatprep.subr.mxu0 0.0
    %2922 = vmatpush1.msra.mxu0 0.0
    %2923 = vmatprep.subr.mxu0 0.0
    %2924 = vmatpush1.msra.mxu0 0.0
    %2925 = vmatprep.mubr.f32.mxu0 0.0
    %2926 = vmatmul.mubr.f32.gmra.mrb[0].mxu0 %v2615
    %v2927 = vpop.f32.mrb[0].mxu0
    %v2928 = vadd.f32 %v1087, %v2927
    %v2929 = vpop.f32.mrb[0].mxu0
    %2930 = vdwg.mxu0
    %v2931 = vadd.f32 %v2787, %v2857
    %v2932 = vsub.f32 0.0, %v2931
    %v2933 = vmul.f32 %v2932, 1.442695
    %v2934 = vpow.pop %v2933
    %v2935 = vadd.f32 %v2934, 1.0
    %v2936 = vrcp.pop %v2935
    %v2937 = vmul.f32 1.0, %v2936
    %v2938 = vadd.f32 %v2788, %v2859
    %v2939 = vsub.f32 0.0, %v2938
    %v2940 = vmul.f32 %v2939, 1.442695
    %v2941 = vpow.pop %v2940
    %v2942 = vadd.f32 %v2941, 1.0
    %v2943 = vrcp.pop %v2942
    %v2944 = vmul.f32 1.0, %v2943
    %v2945 = vmul.f32 %v2937, %v2928
    %v2946 = vadd.f32 %v2789, %v2945
    %v2947 = vtanh.pop %v2946
    %v2948 = vsub.f32 1.0, %v2944
    %v2949 = vmul.f32 %v2948, %v2947
    %v2950 = vmul.f32 %v2944, %v2615
    %v2951 = vadd.f32 %v2949, %v2950
    %s2952 = scalar_lea.vmem [#allocation4], 40
    %2953 = vst [vmem:[%s2952] sm:$0xff] %v2951
    %s2954 = scalar_lea.vmem [#allocation3], 240
    %v2955 = vld [vmem:[%s2954] sm:$0xff]
    %v2956 = vld [vmem:[%s2954 + $0x8] sm:$0xff]
    %v2957 = vld [vmem:[%s2954 + $0x10] sm:$0xff]
    %2958 = vmatprep.subr.mxu0 %v1027
    %2959 = vmatpush1.msra.mxu0 %v1026
    %2960 = vmatprep.subr.mxu0 %v1030
    %2961 = vmatpush1.msra.mxu0 %v1029
    %2962 = vmatprep.subr.mxu0 %v1033
    %2963 = vmatpush1.msra.mxu0 %v1032
    %2964 = vmatprep.subr.mxu0 %v1036
    %2965 = vmatpush1.msra.mxu0 %v1035
    %2966 = vmatprep.subr.mxu0 %v1039
    %2967 = vmatpush1.msra.mxu0 %v1038
    %2968 = vmatprep.subr.mxu0 %v1042
    %2969 = vmatpush1.msra.mxu0 %v1041
    %2970 = vmatprep.subr.mxu0 %v1045
    %2971 = vmatpush1.msra.mxu0 %v1044
    %2972 = vmatprep.subr.mxu0 %v1048
    %2973 = vmatpush1.msra.mxu0 %v1047
    %2974 = vmatprep.subr.mxu0 %v1051
    %2975 = vmatpush1.msra.mxu0 %v1050
    %2976 = vmatprep.subr.mxu0 %v1054
    %2977 = vmatpush1.msra.mxu0 %v1053
    %2978 = vmatprep.subr.mxu0 %v1057
    %2979 = vmatpush1.msra.mxu0 %v1056
    %2980 = vmatprep.subr.mxu0 %v1060
    %2981 = vmatpush1.msra.mxu0 %v1059
    %2982 = vmatprep.subr.mxu0 %v1063
    %2983 = vmatpush1.msra.mxu0 %v1062
    %2984 = vmatprep.subr.mxu0 %v1066
    %2985 = vmatpush1.msra.mxu0 %v1065
    %2986 = vmatprep.subr.mxu0 %v1069
    %2987 = vmatpush1.msra.mxu0 %v1068
    %2988 = vmatprep.subr.mxu0 %v1072
    %2989 = vmatpush1.msra.mxu0 %v1071
    %2990 = vmatprep.subr.mxu0 0.0
    %2991 = vmatpush1.msra.mxu0 0.0
    %2992 = vmatprep.subr.mxu0 0.0
    %2993 = vmatpush1.msra.mxu0 0.0
    %2994 = vmatprep.subr.mxu0 0.0
    %2995 = vmatpush1.msra.mxu0 0.0
    %2996 = vmatprep.subr.mxu0 0.0
    %2997 = vmatpush1.msra.mxu0 0.0
    %2998 = vmatprep.subr.mxu0 0.0
    %2999 = vmatpush1.msra.mxu0 0.0
    %3000 = vmatprep.subr.mxu0 0.0
    %3001 = vmatpush1.msra.mxu0 0.0
    %3002 = vmatprep.subr.mxu0 0.0
    %3003 = vmatpush1.msra.mxu0 0.0
    %3004 = vmatprep.subr.mxu0 0.0
    %3005 = vmatpush1.msra.mxu0 0.0
    %3006 = vmatprep.subr.mxu0 0.0
    %3007 = vmatpush1.msra.mxu0 0.0
    %3008 = vmatprep.subr.mxu0 0.0
    %3009 = vmatpush1.msra.mxu0 0.0
    %3010 = vmatprep.subr.mxu0 0.0
    %3011 = vmatpush1.msra.mxu0 0.0
    %3012 = vmatprep.subr.mxu0 0.0
    %3013 = vmatpush1.msra.mxu0 0.0
    %3014 = vmatprep.subr.mxu0 0.0
    %3015 = vmatpush1.msra.mxu0 0.0
    %3016 = vmatprep.subr.mxu0 0.0
    %3017 = vmatpush1.msra.mxu0 0.0
    %3018 = vmatprep.subr.mxu0 0.0
    %3019 = vmatpush1.msra.mxu0 0.0
    %3020 = vmatprep.subr.mxu0 0.0
    %3021 = vmatpush1.msra.mxu0 0.0
    %3022 = vmatprep.mubr.f32.mxu0 0.0
    %3023 = vmatmul.mubr.f32.gmra.mrb[0].mxu0 %v2783
    %v3024 = vpop.f32.mrb[0].mxu0
    %v3025 = vadd.f32 %v1096, %v3024
    %v3026 = vpop.f32.mrb[0].mxu0
    %v3027 = vadd.f32 %v1100, %v3026
    %3028 = vdwg.mxu0
    %3029 = vmatprep.subr.mxu0 0.0
    %3030 = vmatpush1.msra.mxu0 %v1028
    %3031 = vmatprep.subr.mxu0 0.0
    %3032 = vmatpush1.msra.mxu0 %v1031
    %3033 = vmatprep.subr.mxu0 0.0
    %3034 = vmatpush1.msra.mxu0 %v1034
    %3035 = vmatprep.subr.mxu0 0.0
    %3036 = vmatpush1.msra.mxu0 %v1037
    %3037 = vmatprep.subr.mxu0 0.0
    %3038 = vmatpush1.msra.mxu0 %v1040
    %3039 = vmatprep.subr.mxu0 0.0
    %3040 = vmatpush1.msra.mxu0 %v1043
    %3041 = vmatprep.subr.mxu0 0.0
    %3042 = vmatpush1.msra.mxu0 %v1046
    %3043 = vmatprep.subr.mxu0 0.0
    %3044 = vmatpush1.msra.mxu0 %v1049
    %3045 = vmatprep.subr.mxu0 0.0
    %3046 = vmatpush1.msra.mxu0 %v1052
    %3047 = vmatprep.subr.mxu0 0.0
    %3048 = vmatpush1.msra.mxu0 %v1055
    %3049 = vmatprep.subr.mxu0 0.0
    %3050 = vmatpush1.msra.mxu0 %v1058
    %3051 = vmatprep.subr.mxu0 0.0
    %3052 = vmatpush1.msra.mxu0 %v1061
    %3053 = vmatprep.subr.mxu0 0.0
    %3054 = vmatpush1.msra.mxu0 %v1064
    %3055 = vmatprep.subr.mxu0 0.0
    %3056 = vmatpush1.msra.mxu0 %v1067
    %3057 = vmatprep.subr.mxu0 0.0
    %3058 = vmatpush1.msra.mxu0 %v1070
    %3059 = vmatprep.subr.mxu0 0.0
    %3060 = vmatpush1.msra.mxu0 %v1073
    %3061 = vmatprep.subr.mxu0 0.0
    %3062 = vmatpush1.msra.mxu0 0.0
    %3063 = vmatprep.subr.mxu0 0.0
    %3064 = vmatpush1.msra.mxu0 0.0
    %3065 = vmatprep.subr.mxu0 0.0
    %3066 = vmatpush1.msra.mxu0 0.0
    %3067 = vmatprep.subr.mxu0 0.0
    %3068 = vmatpush1.msra.mxu0 0.0
    %3069 = vmatprep.subr.mxu0 0.0
    %3070 = vmatpush1.msra.mxu0 0.0
    %3071 = vmatprep.subr.mxu0 0.0
    %3072 = vmatpush1.msra.mxu0 0.0
    %3073 = vmatprep.subr.mxu0 0.0
    %3074 = vmatpush1.msra.mxu0 0.0
    %3075 = vmatprep.subr.mxu0 0.0
    %3076 = vmatpush1.msra.mxu0 0.0
    %3077 = vmatprep.subr.mxu0 0.0
    %3078 = vmatpush1.msra.mxu0 0.0
    %3079 = vmatprep.subr.mxu0 0.0
    %3080 = vmatpush1.msra.mxu0 0.0
    %3081 = vmatprep.subr.mxu0 0.0
    %3082 = vmatpush1.msra.mxu0 0.0
    %3083 = vmatprep.subr.mxu0 0.0
    %3084 = vmatpush1.msra.mxu0 0.0
    %3085 = vmatprep.subr.mxu0 0.0
    %3086 = vmatpush1.msra.mxu0 0.0
    %3087 = vmatprep.subr.mxu0 0.0
    %3088 = vmatpush1.msra.mxu0 0.0
    %3089 = vmatprep.subr.mxu0 0.0
    %3090 = vmatpush1.msra.mxu0 0.0
    %3091 = vmatprep.subr.mxu0 0.0
    %3092 = vmatpush1.msra.mxu0 0.0
    %3093 = vmatprep.mubr.f32.mxu0 0.0
    %3094 = vmatmul.mubr.f32.gmra.mrb[0].mxu0 %v2783
    %v3095 = vpop.f32.mrb[0].mxu0
    %v3096 = vadd.f32 %v1104, %v3095
    %v3097 = vpop.f32.mrb[0].mxu0
    %3098 = vdwg.mxu0
    %v3099 = vadd.f32 %v2955, %v3025
    %v3100 = vsub.f32 0.0, %v3099
    %v3101 = vmul.f32 %v3100, 1.442695
    %v3102 = vpow.pop %v3101
    %v3103 = vadd.f32 %v3102, 1.0
    %v3104 = vrcp.pop %v3103
    %v3105 = vmul.f32 1.0, %v3104
    %v3106 = vadd.f32 %v2956, %v3027
    %v3107 = vsub.f32 0.0, %v3106
    %v3108 = vmul.f32 %v3107, 1.442695
    %v3109 = vpow.pop %v3108
    %v3110 = vadd.f32 %v3109, 1.0
    %v3111 = vrcp.pop %v3110
    %v3112 = vmul.f32 1.0, %v3111
    %v3113 = vmul.f32 %v3105, %v3096
    %v3114 = vadd.f32 %v2957, %v3113
    %v3115 = vtanh.pop %v3114
    %v3116 = vsub.f32 1.0, %v3112
    %v3117 = vmul.f32 %v3116, %v3115
    %v3118 = vmul.f32 %v3112, %v2783
    %v3119 = vadd.f32 %v3117, %v3118
    %s3120 = scalar_lea.vmem [#allocation5], 80
    %3121 = vst [vmem:[%s3120] sm:$0xff] %v3119
    %s3122 = scalar_lea.vmem [#allocation2], 144
    %v3123 = vld [vmem:[%s3122] sm:$0xff]
    %v3124 = vld [vmem:[%s3122 + $0x8] sm:$0xff]
    %v3125 = vld [vmem:[%s3122 + $0x10] sm:$0xff]
    %3126 = vmatprep.subr.mxu0 %v979
    %3127 = vmatpush1.msra.mxu0 %v978
    %3128 = vmatprep.subr.mxu0 %v982
    %3129 = vmatpush1.msra.mxu0 %v981
    %3130 = vmatprep.subr.mxu0 %v985
    %3131 = vmatpush1.msra.mxu0 %v984
    %3132 = vmatprep.subr.mxu0 %v988
    %3133 = vmatpush1.msra.mxu0 %v987
    %3134 = vmatprep.subr.mxu0 %v991
    %3135 = vmatpush1.msra.mxu0 %v990
    %3136 = vmatprep.subr.mxu0 %v994
    %3137 = vmatpush1.msra.mxu0 %v993
    %3138 = vmatprep.subr.mxu0 %v997
    %3139 = vmatpush1.msra.mxu0 %v996
    %3140 = vmatprep.subr.mxu0 %v1000
    %3141 = vmatpush1.msra.mxu0 %v999
    %3142 = vmatprep.subr.mxu0 %v1003
    %3143 = vmatpush1.msra.mxu0 %v1002
    %3144 = vmatprep.subr.mxu0 %v1006
    %3145 = vmatpush1.msra.mxu0 %v1005
    %3146 = vmatprep.subr.mxu0 %v1009
    %3147 = vmatpush1.msra.mxu0 %v1008
    %3148 = vmatprep.subr.mxu0 %v1012
    %3149 = vmatpush1.msra.mxu0 %v1011
    %3150 = vmatprep.subr.mxu0 %v1015
    %3151 = vmatpush1.msra.mxu0 %v1014
    %3152 = vmatprep.subr.mxu0 %v1018
    %3153 = vmatpush1.msra.mxu0 %v1017
    %3154 = vmatprep.subr.mxu0 %v1021
    %3155 = vmatpush1.msra.mxu0 %v1020
    %3156 = vmatprep.subr.mxu0 %v1024
    %3157 = vmatpush1.msra.mxu0 %v1023
    %3158 = vmatprep.subr.mxu0 0.0
    %3159 = vmatpush1.msra.mxu0 0.0
    %3160 = vmatprep.subr.mxu0 0.0
    %3161 = vmatpush1.msra.mxu0 0.0
    %3162 = vmatprep.subr.mxu0 0.0
    %3163 = vmatpush1.msra.mxu0 0.0
    %3164 = vmatprep.subr.mxu0 0.0
    %3165 = vmatpush1.msra.mxu0 0.0
    %3166 = vmatprep.subr.mxu0 0.0
    %3167 = vmatpush1.msra.mxu0 0.0
    %3168 = vmatprep.subr.mxu0 0.0
    %3169 = vmatpush1.msra.mxu0 0.0
    %3170 = vmatprep.subr.mxu0 0.0
    %3171 = vmatpush1.msra.mxu0 0.0
    %3172 = vmatprep.subr.mxu0 0.0
    %3173 = vmatpush1.msra.mxu0 0.0
    %3174 = vmatprep.subr.mxu0 0.0
    %3175 = vmatpush1.msra.mxu0 0.0
    %3176 = vmatprep.subr.mxu0 0.0
    %3177 = vmatpush1.msra.mxu0 0.0
    %3178 = vmatprep.subr.mxu0 0.0
    %3179 = vmatpush1.msra.mxu0 0.0
    %3180 = vmatprep.subr.mxu0 0.0
    %3181 = vmatpush1.msra.mxu0 0.0
    %3182 = vmatprep.subr.mxu0 0.0
    %3183 = vmatpush1.msra.mxu0 0.0
    %3184 = vmatprep.subr.mxu0 0.0
    %3185 = vmatpush1.msra.mxu0 0.0
    %3186 = vmatprep.subr.mxu0 0.0
    %3187 = vmatpush1.msra.mxu0 0.0
    %3188 = vmatprep.subr.mxu0 0.0
    %3189 = vmatpush1.msra.mxu0 0.0
    %3190 = vmatprep.mubr.f32.mxu0 0.0
    %3191 = vmatmul.mubr.f32.gmra.mrb[0].mxu0 %v2951
    %v3192 = vpop.f32.mrb[0].mxu0
    %v3193 = vadd.f32 %v1079, %v3192
    %v3194 = vpop.f32.mrb[0].mxu0
    %v3195 = vadd.f32 %v1083, %v3194
    %3196 = vdwg.mxu0
    %3197 = vmatprep.subr.mxu0 0.0
    %3198 = vmatpush1.msra.mxu0 %v980
    %3199 = vmatprep.subr.mxu0 0.0
    %3200 = vmatpush1.msra.mxu0 %v983
    %3201 = vmatprep.subr.mxu0 0.0
    %3202 = vmatpush1.msra.mxu0 %v986
    %3203 = vmatprep.subr.mxu0 0.0
    %3204 = vmatpush1.msra.mxu0 %v989
    %3205 = vmatprep.subr.mxu0 0.0
    %3206 = vmatpush1.msra.mxu0 %v992
    %3207 = vmatprep.subr.mxu0 0.0
    %3208 = vmatpush1.msra.mxu0 %v995
    %3209 = vmatprep.subr.mxu0 0.0
    %3210 = vmatpush1.msra.mxu0 %v998
    %3211 = vmatprep.subr.mxu0 0.0
    %3212 = vmatpush1.msra.mxu0 %v1001
    %3213 = vmatprep.subr.mxu0 0.0
    %3214 = vmatpush1.msra.mxu0 %v1004
    %3215 = vmatprep.subr.mxu0 0.0
    %3216 = vmatpush1.msra.mxu0 %v1007
    %3217 = vmatprep.subr.mxu0 0.0
    %3218 = vmatpush1.msra.mxu0 %v1010
    %3219 = vmatprep.subr.mxu0 0.0
    %3220 = vmatpush1.msra.mxu0 %v1013
    %3221 = vmatprep.subr.mxu0 0.0
    %3222 = vmatpush1.msra.mxu0 %v1016
    %3223 = vmatprep.subr.mxu0 0.0
    %3224 = vmatpush1.msra.mxu0 %v1019
    %3225 = vmatprep.subr.mxu0 0.0
    %3226 = vmatpush1.msra.mxu0 %v1022
    %3227 = vmatprep.subr.mxu0 0.0
    %3228 = vmatpush1.msra.mxu0 %v1025
    %3229 = vmatprep.subr.mxu0 0.0
    %3230 = vmatpush1.msra.mxu0 0.0
    %3231 = vmatprep.subr.mxu0 0.0
    %3232 = vmatpush1.msra.mxu0 0.0
    %3233 = vmatprep.subr.mxu0 0.0
    %3234 = vmatpush1.msra.mxu0 0.0
    %3235 = vmatprep.subr.mxu0 0.0
    %3236 = vmatpush1.msra.mxu0 0.0
    %3237 = vmatprep.subr.mxu0 0.0
    %3238 = vmatpush1.msra.mxu0 0.0
    %3239 = vmatprep.subr.mxu0 0.0
    %3240 = vmatpush1.msra.mxu0 0.0
    %3241 = vmatprep.subr.mxu0 0.0
    %3242 = vmatpush1.msra.mxu0 0.0
    %3243 = vmatprep.subr.mxu0 0.0
    %3244 = vmatpush1.msra.mxu0 0.0
    %3245 = vmatprep.subr.mxu0 0.0
    %3246 = vmatpush1.msra.mxu0 0.0
    %3247 = vmatprep.subr.mxu0 0.0
    %3248 = vmatpush1.msra.mxu0 0.0
    %3249 = vmatprep.subr.mxu0 0.0
    %3250 = vmatpush1.msra.mxu0 0.0
    %3251 = vmatprep.subr.mxu0 0.0
    %3252 = vmatpush1.msra.mxu0 0.0
    %3253 = vmatprep.subr.mxu0 0.0
    %3254 = vmatpush1.msra.mxu0 0.0
    %3255 = vmatprep.subr.mxu0 0.0
    %3256 = vmatpush1.msra.mxu0 0.0
    %3257 = vmatprep.subr.mxu0 0.0
    %3258 = vmatpush1.msra.mxu0 0.0
    %3259 = vmatprep.subr.mxu0 0.0
    %3260 = vmatpush1.msra.mxu0 0.0
    %3261 = vmatprep.mubr.f32.mxu0 0.0
    %3262 = vmatmul.mubr.f32.gmra.mrb[0].mxu0 %v2951
    %v3263 = vpop.f32.mrb[0].mxu0
    %v3264 = vadd.f32 %v1087, %v3263
    %v3265 = vpop.f32.mrb[0].mxu0
    %3266 = vdwg.mxu0
    %v3267 = vadd.f32 %v3123, %v3193
    %v3268 = vsub.f32 0.0, %v3267
    %v3269 = vmul.f32 %v3268, 1.442695
    %v3270 = vpow.pop %v3269
    %v3271 = vadd.f32 %v3270, 1.0
    %v3272 = vrcp.pop %v3271
    %v3273 = vmul.f32 1.0, %v3272
    %v3274 = vadd.f32 %v3124, %v3195
    %v3275 = vsub.f32 0.0, %v3274
    %v3276 = vmul.f32 %v3275, 1.442695
    %v3277 = vpow.pop %v3276
    %v3278 = vadd.f32 %v3277, 1.0
    %v3279 = vrcp.pop %v3278
    %v3280 = vmul.f32 1.0, %v3279
    %v3281 = vmul.f32 %v3273, %v3264
    %v3282 = vadd.f32 %v3125, %v3281
    %v3283 = vtanh.pop %v3282
    %v3284 = vsub.f32 1.0, %v3280
    %v3285 = vmul.f32 %v3284, %v3283
    %v3286 = vmul.f32 %v3280, %v2951
    %v3287 = vadd.f32 %v3285, %v3286
    %s3288 = scalar_lea.vmem [#allocation4], 48
    %3289 = vst [vmem:[%s3288] sm:$0xff] %v3287
    %s3290 = scalar_lea.vmem [#allocation3], 216
    %v3291 = vld [vmem:[%s3290] sm:$0xff]
    %v3292 = vld [vmem:[%s3290 + $0x8] sm:$0xff]
    %v3293 = vld [vmem:[%s3290 + $0x10] sm:$0xff]
    %3294 = vmatprep.subr.mxu0 %v1027
    %3295 = vmatpush1.msra.mxu0 %v1026
    %3296 = vmatprep.subr.mxu0 %v1030
    %3297 = vmatpush1.msra.mxu0 %v1029
    %3298 = vmatprep.subr.mxu0 %v1033
    %3299 = vmatpush1.msra.mxu0 %v1032
    %3300 = vmatprep.subr.mxu0 %v1036
    %3301 = vmatpush1.msra.mxu0 %v1035
    %3302 = vmatprep.subr.mxu0 %v1039
    %3303 = vmatpush1.msra.mxu0 %v1038
    %3304 = vmatprep.subr.mxu0 %v1042
    %3305 = vmatpush1.msra.mxu0 %v1041
    %3306 = vmatprep.subr.mxu0 %v1045
    %3307 = vmatpush1.msra.mxu0 %v1044
    %3308 = vmatprep.subr.mxu0 %v1048
    %3309 = vmatpush1.msra.mxu0 %v1047
    %3310 = vmatprep.subr.mxu0 %v1051
    %3311 = vmatpush1.msra.mxu0 %v1050
    %3312 = vmatprep.subr.mxu0 %v1054
    %3313 = vmatpush1.msra.mxu0 %v1053
    %3314 = vmatprep.subr.mxu0 %v1057
    %3315 = vmatpush1.msra.mxu0 %v1056
    %3316 = vmatprep.subr.mxu0 %v1060
    %3317 = vmatpush1.msra.mxu0 %v1059
    %3318 = vmatprep.subr.mxu0 %v1063
    %3319 = vmatpush1.msra.mxu0 %v1062
    %3320 = vmatprep.subr.mxu0 %v1066
    %3321 = vmatpush1.msra.mxu0 %v1065
    %3322 = vmatprep.subr.mxu0 %v1069
    %3323 = vmatpush1.msra.mxu0 %v1068
    %3324 = vmatprep.subr.mxu0 %v1072
    %3325 = vmatpush1.msra.mxu0 %v1071
    %3326 = vmatprep.subr.mxu0 0.0
    %3327 = vmatpush1.msra.mxu0 0.0
    %3328 = vmatprep.subr.mxu0 0.0
    %3329 = vmatpush1.msra.mxu0 0.0
    %3330 = vmatprep.subr.mxu0 0.0
    %3331 = vmatpush1.msra.mxu0 0.0
    %3332 = vmatprep.subr.mxu0 0.0
    %3333 = vmatpush1.msra.mxu0 0.0
    %3334 = vmatprep.subr.mxu0 0.0
    %3335 = vmatpush1.msra.mxu0 0.0
    %3336 = vmatprep.subr.mxu0 0.0
    %3337 = vmatpush1.msra.mxu0 0.0
    %3338 = vmatprep.subr.mxu0 0.0
    %3339 = vmatpush1.msra.mxu0 0.0
    %3340 = vmatprep.subr.mxu0 0.0
    %3341 = vmatpush1.msra.mxu0 0.0
    %3342 = vmatprep.subr.mxu0 0.0
    %3343 = vmatpush1.msra.mxu0 0.0
    %3344 = vmatprep.subr.mxu0 0.0
    %3345 = vmatpush1.msra.mxu0 0.0
    %3346 = vmatprep.subr.mxu0 0.0
    %3347 = vmatpush1.msra.mxu0 0.0
    %3348 = vmatprep.subr.mxu0 0.0
    %3349 = vmatpush1.msra.mxu0 0.0
    %3350 = vmatprep.subr.mxu0 0.0
    %3351 = vmatpush1.msra.mxu0 0.0
    %3352 = vmatprep.subr.mxu0 0.0
    %3353 = vmatpush1.msra.mxu0 0.0
    %3354 = vmatprep.subr.mxu0 0.0
    %3355 = vmatpush1.msra.mxu0 0.0
    %3356 = vmatprep.subr.mxu0 0.0
    %3357 = vmatpush1.msra.mxu0 0.0
    %3358 = vmatprep.mubr.f32.mxu0 0.0
    %3359 = vmatmul.mubr.f32.gmra.mrb[0].mxu0 %v3119
    %v3360 = vpop.f32.mrb[0].mxu0
    %v3361 = vadd.f32 %v1096, %v3360
    %v3362 = vpop.f32.mrb[0].mxu0
    %v3363 = vadd.f32 %v1100, %v3362
    %3364 = vdwg.mxu0
    %3365 = vmatprep.subr.mxu0 0.0
    %3366 = vmatpush1.msra.mxu0 %v1028
    %3367 = vmatprep.subr.mxu0 0.0
    %3368 = vmatpush1.msra.mxu0 %v1031
    %3369 = vmatprep.subr.mxu0 0.0
    %3370 = vmatpush1.msra.mxu0 %v1034
    %3371 = vmatprep.subr.mxu0 0.0
    %3372 = vmatpush1.msra.mxu0 %v1037
    %3373 = vmatprep.subr.mxu0 0.0
    %3374 = vmatpush1.msra.mxu0 %v1040
    %3375 = vmatprep.subr.mxu0 0.0
    %3376 = vmatpush1.msra.mxu0 %v1043
    %3377 = vmatprep.subr.mxu0 0.0
    %3378 = vmatpush1.msra.mxu0 %v1046
    %3379 = vmatprep.subr.mxu0 0.0
    %3380 = vmatpush1.msra.mxu0 %v1049
    %3381 = vmatprep.subr.mxu0 0.0
    %3382 = vmatpush1.msra.mxu0 %v1052
    %3383 = vmatprep.subr.mxu0 0.0
    %3384 = vmatpush1.msra.mxu0 %v1055
    %3385 = vmatprep.subr.mxu0 0.0
    %3386 = vmatpush1.msra.mxu0 %v1058
    %3387 = vmatprep.subr.mxu0 0.0
    %3388 = vmatpush1.msra.mxu0 %v1061
    %3389 = vmatprep.subr.mxu0 0.0
    %3390 = vmatpush1.msra.mxu0 %v1064
    %3391 = vmatprep.subr.mxu0 0.0
    %3392 = vmatpush1.msra.mxu0 %v1067
    %3393 = vmatprep.subr.mxu0 0.0
    %3394 = vmatpush1.msra.mxu0 %v1070
    %3395 = vmatprep.subr.mxu0 0.0
    %3396 = vmatpush1.msra.mxu0 %v1073
    %3397 = vmatprep.subr.mxu0 0.0
    %3398 = vmatpush1.msra.mxu0 0.0
    %3399 = vmatprep.subr.mxu0 0.0
    %3400 = vmatpush1.msra.mxu0 0.0
    %3401 = vmatprep.subr.mxu0 0.0
    %3402 = vmatpush1.msra.mxu0 0.0
    %3403 = vmatprep.subr.mxu0 0.0
    %3404 = vmatpush1.msra.mxu0 0.0
    %3405 = vmatprep.subr.mxu0 0.0
    %3406 = vmatpush1.msra.mxu0 0.0
    %3407 = vmatprep.subr.mxu0 0.0
    %3408 = vmatpush1.msra.mxu0 0.0
    %3409 = vmatprep.subr.mxu0 0.0
    %3410 = vmatpush1.msra.mxu0 0.0
    %3411 = vmatprep.subr.mxu0 0.0
    %3412 = vmatpush1.msra.mxu0 0.0
    %3413 = vmatprep.subr.mxu0 0.0
    %3414 = vmatpush1.msra.mxu0 0.0
    %3415 = vmatprep.subr.mxu0 0.0
    %3416 = vmatpush1.msra.mxu0 0.0
    %3417 = vmatprep.subr.mxu0 0.0
    %3418 = vmatpush1.msra.mxu0 0.0
    %3419 = vmatprep.subr.mxu0 0.0
    %3420 = vmatpush1.msra.mxu0 0.0
    %3421 = vmatprep.subr.mxu0 0.0
    %3422 = vmatpush1.msra.mxu0 0.0
    %3423 = vmatprep.subr.mxu0 0.0
    %3424 = vmatpush1.msra.mxu0 0.0
    %3425 = vmatprep.subr.mxu0 0.0
    %3426 = vmatpush1.msra.mxu0 0.0
    %3427 = vmatprep.subr.mxu0 0.0
    %3428 = vmatpush1.msra.mxu0 0.0
    %3429 = vmatprep.mubr.f32.mxu0 0.0
    %3430 = vmatmul.mubr.f32.gmra.mrb[0].mxu0 %v3119
    %v3431 = vpop.f32.mrb[0].mxu0
    %v3432 = vadd.f32 %v1104, %v3431
    %v3433 = vpop.f32.mrb[0].mxu0
    %3434 = vdwg.mxu0
    %v3435 = vadd.f32 %v3291, %v3361
    %v3436 = vsub.f32 0.0, %v3435
    %v3437 = vmul.f32 %v3436, 1.442695
    %v3438 = vpow.pop %v3437
    %v3439 = vadd.f32 %v3438, 1.0
    %v3440 = vrcp.pop %v3439
    %v3441 = vmul.f32 1.0, %v3440
    %v3442 = vadd.f32 %v3292, %v3363
    %v3443 = vsub.f32 0.0, %v3442
    %v3444 = vmul.f32 %v3443, 1.442695
    %v3445 = vpow.pop %v3444
    %v3446 = vadd.f32 %v3445, 1.0
    %v3447 = vrcp.pop %v3446
    %v3448 = vmul.f32 1.0, %v3447
    %v3449 = vmul.f32 %v3441, %v3432
    %v3450 = vadd.f32 %v3293, %v3449
    %v3451 = vtanh.pop %v3450
    %v3452 = vsub.f32 1.0, %v3448
    %v3453 = vmul.f32 %v3452, %v3451
    %v3454 = vmul.f32 %v3448, %v3119
    %v3455 = vadd.f32 %v3453, %v3454
    %s3456 = scalar_lea.vmem [#allocation5], 72
    %3457 = vst [vmem:[%s3456] sm:$0xff] %v3455
    %s3458 = scalar_lea.vmem [#allocation2], 168
    %v3459 = vld [vmem:[%s3458] sm:$0xff]
    %v3460 = vld [vmem:[%s3458 + $0x8] sm:$0xff]
    %v3461 = vld [vmem:[%s3458 + $0x10] sm:$0xff]
    %3462 = vmatprep.subr.mxu0 %v979
    %3463 = vmatpush1.msra.mxu0 %v978
    %3464 = vmatprep.subr.mxu0 %v982
    %3465 = vmatpush1.msra.mxu0 %v981
    %3466 = vmatprep.subr.mxu0 %v985
    %3467 = vmatpush1.msra.mxu0 %v984
    %3468 = vmatprep.subr.mxu0 %v988
    %3469 = vmatpush1.msra.mxu0 %v987
    %3470 = vmatprep.subr.mxu0 %v991
    %3471 = vmatpush1.msra.mxu0 %v990
    %3472 = vmatprep.subr.mxu0 %v994
    %3473 = vmatpush1.msra.mxu0 %v993
    %3474 = vmatprep.subr.mxu0 %v997
    %3475 = vmatpush1.msra.mxu0 %v996
    %3476 = vmatprep.subr.mxu0 %v1000
    %3477 = vmatpush1.msra.mxu0 %v999
    %3478 = vmatprep.subr.mxu0 %v1003
    %3479 = vmatpush1.msra.mxu0 %v1002
    %3480 = vmatprep.subr.mxu0 %v1006
    %3481 = vmatpush1.msra.mxu0 %v1005
    %3482 = vmatprep.subr.mxu0 %v1009
    %3483 = vmatpush1.msra.mxu0 %v1008
    %3484 = vmatprep.subr.mxu0 %v1012
    %3485 = vmatpush1.msra.mxu0 %v1011
    %3486 = vmatprep.subr.mxu0 %v1015
    %3487 = vmatpush1.msra.mxu0 %v1014
    %3488 = vmatprep.subr.mxu0 %v1018
    %3489 = vmatpush1.msra.mxu0 %v1017
    %3490 = vmatprep.subr.mxu0 %v1021
    %3491 = vmatpush1.msra.mxu0 %v1020
    %3492 = vmatprep.subr.mxu0 %v1024
    %3493 = vmatpush1.msra.mxu0 %v1023
    %3494 = vmatprep.subr.mxu0 0.0
    %3495 = vmatpush1.msra.mxu0 0.0
    %3496 = vmatprep.subr.mxu0 0.0
    %3497 = vmatpush1.msra.mxu0 0.0
    %3498 = vmatprep.subr.mxu0 0.0
    %3499 = vmatpush1.msra.mxu0 0.0
    %3500 = vmatprep.subr.mxu0 0.0
    %3501 = vmatpush1.msra.mxu0 0.0
    %3502 = vmatprep.subr.mxu0 0.0
    %3503 = vmatpush1.msra.mxu0 0.0
    %3504 = vmatprep.subr.mxu0 0.0
    %3505 = vmatpush1.msra.mxu0 0.0
    %3506 = vmatprep.subr.mxu0 0.0
    %3507 = vmatpush1.msra.mxu0 0.0
    %3508 = vmatprep.subr.mxu0 0.0
    %3509 = vmatpush1.msra.mxu0 0.0
    %3510 = vmatprep.subr.mxu0 0.0
    %3511 = vmatpush1.msra.mxu0 0.0
    %3512 = vmatprep.subr.mxu0 0.0
    %3513 = vmatpush1.msra.mxu0 0.0
    %3514 = vmatprep.subr.mxu0 0.0
    %3515 = vmatpush1.msra.mxu0 0.0
    %3516 = vmatprep.subr.mxu0 0.0
    %3517 = vmatpush1.msra.mxu0 0.0
    %3518 = vmatprep.subr.mxu0 0.0
    %3519 = vmatpush1.msra.mxu0 0.0
    %3520 = vmatprep.subr.mxu0 0.0
    %3521 = vmatpush1.msra.mxu0 0.0
    %3522 = vmatprep.subr.mxu0 0.0
    %3523 = vmatpush1.msra.mxu0 0.0
    %3524 = vmatprep.subr.mxu0 0.0
    %3525 = vmatpush1.msra.mxu0 0.0
    %3526 = vmatprep.mubr.f32.mxu0 0.0
    %3527 = vmatmul.mubr.f32.gmra.mrb[0].mxu0 %v3287
    %v3528 = vpop.f32.mrb[0].mxu0
    %v3529 = vadd.f32 %v1079, %v3528
    %v3530 = vpop.f32.mrb[0].mxu0
    %v3531 = vadd.f32 %v1083, %v3530
    %3532 = vdwg.mxu0
    %3533 = vmatprep.subr.mxu0 0.0
    %3534 = vmatpush1.msra.mxu0 %v980
    %3535 = vmatprep.subr.mxu0 0.0
    %3536 = vmatpush1.msra.mxu0 %v983
    %3537 = vmatprep.subr.mxu0 0.0
    %3538 = vmatpush1.msra.mxu0 %v986
    %3539 = vmatprep.subr.mxu0 0.0
    %3540 = vmatpush1.msra.mxu0 %v989
    %3541 = vmatprep.subr.mxu0 0.0
    %3542 = vmatpush1.msra.mxu0 %v992
    %3543 = vmatprep.subr.mxu0 0.0
    %3544 = vmatpush1.msra.mxu0 %v995
    %3545 = vmatprep.subr.mxu0 0.0
    %3546 = vmatpush1.msra.mxu0 %v998
    %3547 = vmatprep.subr.mxu0 0.0
    %3548 = vmatpush1.msra.mxu0 %v1001
    %3549 = vmatprep.subr.mxu0 0.0
    %3550 = vmatpush1.msra.mxu0 %v1004
    %3551 = vmatprep.subr.mxu0 0.0
    %3552 = vmatpush1.msra.mxu0 %v1007
    %3553 = vmatprep.subr.mxu0 0.0
    %3554 = vmatpush1.msra.mxu0 %v1010
    %3555 = vmatprep.subr.mxu0 0.0
    %3556 = vmatpush1.msra.mxu0 %v1013
    %3557 = vmatprep.subr.mxu0 0.0
    %3558 = vmatpush1.msra.mxu0 %v1016
    %3559 = vmatprep.subr.mxu0 0.0
    %3560 = vmatpush1.msra.mxu0 %v1019
    %3561 = vmatprep.subr.mxu0 0.0
    %3562 = vmatpush1.msra.mxu0 %v1022
    %3563 = vmatprep.subr.mxu0 0.0
    %3564 = vmatpush1.msra.mxu0 %v1025
    %3565 = vmatprep.subr.mxu0 0.0
    %3566 = vmatpush1.msra.mxu0 0.0
    %3567 = vmatprep.subr.mxu0 0.0
    %3568 = vmatpush1.msra.mxu0 0.0
    %3569 = vmatprep.subr.mxu0 0.0
    %3570 = vmatpush1.msra.mxu0 0.0
    %3571 = vmatprep.subr.mxu0 0.0
    %3572 = vmatpush1.msra.mxu0 0.0
    %3573 = vmatprep.subr.mxu0 0.0
    %3574 = vmatpush1.msra.mxu0 0.0
    %3575 = vmatprep.subr.mxu0 0.0
    %3576 = vmatpush1.msra.mxu0 0.0
    %3577 = vmatprep.subr.mxu0 0.0
    %3578 = vmatpush1.msra.mxu0 0.0
    %3579 = vmatprep.subr.mxu0 0.0
    %3580 = vmatpush1.msra.mxu0 0.0
    %3581 = vmatprep.subr.mxu0 0.0
    %3582 = vmatpush1.msra.mxu0 0.0
    %3583 = vmatprep.subr.mxu0 0.0
    %3584 = vmatpush1.msra.mxu0 0.0
    %3585 = vmatprep.subr.mxu0 0.0
    %3586 = vmatpush1.msra.mxu0 0.0
    %3587 = vmatprep.subr.mxu0 0.0
    %3588 = vmatpush1.msra.mxu0 0.0
    %3589 = vmatprep.subr.mxu0 0.0
    %3590 = vmatpush1.msra.mxu0 0.0
    %3591 = vmatprep.subr.mxu0 0.0
    %3592 = vmatpush1.msra.mxu0 0.0
    %3593 = vmatprep.subr.mxu0 0.0
    %3594 = vmatpush1.msra.mxu0 0.0
    %3595 = vmatprep.subr.mxu0 0.0
    %3596 = vmatpush1.msra.mxu0 0.0
    %3597 = vmatprep.mubr.f32.mxu0 0.0
    %3598 = vmatmul.mubr.f32.gmra.mrb[0].mxu0 %v3287
    %v3599 = vpop.f32.mrb[0].mxu0
    %v3600 = vadd.f32 %v1087, %v3599
    %v3601 = vpop.f32.mrb[0].mxu0
    %3602 = vdwg.mxu0
    %v3603 = vadd.f32 %v3459, %v3529
    %v3604 = vsub.f32 0.0, %v3603
    %v3605 = vmul.f32 %v3604, 1.442695
    %v3606 = vpow.pop %v3605
    %v3607 = vadd.f32 %v3606, 1.0
    %v3608 = vrcp.pop %v3607
    %v3609 = vmul.f32 1.0, %v3608
    %v3610 = vadd.f32 %v3460, %v3531
    %v3611 = vsub.f32 0.0, %v3610
    %v3612 = vmul.f32 %v3611, 1.442695
    %v3613 = vpow.pop %v3612
    %v3614 = vadd.f32 %v3613, 1.0
    %v3615 = vrcp.pop %v3614
    %v3616 = vmul.f32 1.0, %v3615
    %v3617 = vmul.f32 %v3609, %v3600
    %v3618 = vadd.f32 %v3461, %v3617
    %v3619 = vtanh.pop %v3618
    %v3620 = vsub.f32 1.0, %v3616
    %v3621 = vmul.f32 %v3620, %v3619
    %v3622 = vmul.f32 %v3616, %v3287
    %v3623 = vadd.f32 %v3621, %v3622
    %s3624 = scalar_lea.vmem [#allocation4], 56
    %3625 = vst [vmem:[%s3624] sm:$0xff] %v3623
    %s3626 = scalar_lea.vmem [#allocation3], 192
    %v3627 = vld [vmem:[%s3626] sm:$0xff]
    %v3628 = vld [vmem:[%s3626 + $0x8] sm:$0xff]
    %v3629 = vld [vmem:[%s3626 + $0x10] sm:$0xff]
    %3630 = vmatprep.subr.mxu0 %v1027
    %3631 = vmatpush1.msra.mxu0 %v1026
    %3632 = vmatprep.subr.mxu0 %v1030
    %3633 = vmatpush1.msra.mxu0 %v1029
    %3634 = vmatprep.subr.mxu0 %v1033
    %3635 = vmatpush1.msra.mxu0 %v1032
    %3636 = vmatprep.subr.mxu0 %v1036
    %3637 = vmatpush1.msra.mxu0 %v1035
    %3638 = vmatprep.subr.mxu0 %v1039
    %3639 = vmatpush1.msra.mxu0 %v1038
    %3640 = vmatprep.subr.mxu0 %v1042
    %3641 = vmatpush1.msra.mxu0 %v1041
    %3642 = vmatprep.subr.mxu0 %v1045
    %3643 = vmatpush1.msra.mxu0 %v1044
    %3644 = vmatprep.subr.mxu0 %v1048
    %3645 = vmatpush1.msra.mxu0 %v1047
    %3646 = vmatprep.subr.mxu0 %v1051
    %3647 = vmatpush1.msra.mxu0 %v1050
    %3648 = vmatprep.subr.mxu0 %v1054
    %3649 = vmatpush1.msra.mxu0 %v1053
    %3650 = vmatprep.subr.mxu0 %v1057
    %3651 = vmatpush1.msra.mxu0 %v1056
    %3652 = vmatprep.subr.mxu0 %v1060
    %3653 = vmatpush1.msra.mxu0 %v1059
    %3654 = vmatprep.subr.mxu0 %v1063
    %3655 = vmatpush1.msra.mxu0 %v1062
    %3656 = vmatprep.subr.mxu0 %v1066
    %3657 = vmatpush1.msra.mxu0 %v1065
    %3658 = vmatprep.subr.mxu0 %v1069
    %3659 = vmatpush1.msra.mxu0 %v1068
    %3660 = vmatprep.subr.mxu0 %v1072
    %3661 = vmatpush1.msra.mxu0 %v1071
    %3662 = vmatprep.subr.mxu0 0.0
    %3663 = vmatpush1.msra.mxu0 0.0
    %3664 = vmatprep.subr.mxu0 0.0
    %3665 = vmatpush1.msra.mxu0 0.0
    %3666 = vmatprep.subr.mxu0 0.0
    %3667 = vmatpush1.msra.mxu0 0.0
    %3668 = vmatprep.subr.mxu0 0.0
    %3669 = vmatpush1.msra.mxu0 0.0
    %3670 = vmatprep.subr.mxu0 0.0
    %3671 = vmatpush1.msra.mxu0 0.0
    %3672 = vmatprep.subr.mxu0 0.0
    %3673 = vmatpush1.msra.mxu0 0.0
    %3674 = vmatprep.subr.mxu0 0.0
    %3675 = vmatpush1.msra.mxu0 0.0
    %3676 = vmatprep.subr.mxu0 0.0
    %3677 = vmatpush1.msra.mxu0 0.0
    %3678 = vmatprep.subr.mxu0 0.0
    %3679 = vmatpush1.msra.mxu0 0.0
    %3680 = vmatprep.subr.mxu0 0.0
    %3681 = vmatpush1.msra.mxu0 0.0
    %3682 = vmatprep.subr.mxu0 0.0
    %3683 = vmatpush1.msra.mxu0 0.0
    %3684 = vmatprep.subr.mxu0 0.0
    %3685 = vmatpush1.msra.mxu0 0.0
    %3686 = vmatprep.subr.mxu0 0.0
    %3687 = vmatpush1.msra.mxu0 0.0
    %3688 = vmatprep.subr.mxu0 0.0
    %3689 = vmatpush1.msra.mxu0 0.0
    %3690 = vmatprep.subr.mxu0 0.0
    %3691 = vmatpush1.msra.mxu0 0.0
    %3692 = vmatprep.subr.mxu0 0.0
    %3693 = vmatpush1.msra.mxu0 0.0
    %3694 = vmatprep.mubr.f32.mxu0 0.0
    %3695 = vmatmul.mubr.f32.gmra.mrb[0].mxu0 %v3455
    %v3696 = vpop.f32.mrb[0].mxu0
    %v3697 = vadd.f32 %v1096, %v3696
    %v3698 = vpop.f32.mrb[0].mxu0
    %v3699 = vadd.f32 %v1100, %v3698
    %3700 = vdwg.mxu0
    %3701 = vmatprep.subr.mxu0 0.0
    %3702 = vmatpush1.msra.mxu0 %v1028
    %3703 = vmatprep.subr.mxu0 0.0
    %3704 = vmatpush1.msra.mxu0 %v1031
    %3705 = vmatprep.subr.mxu0 0.0
    %3706 = vmatpush1.msra.mxu0 %v1034
    %3707 = vmatprep.subr.mxu0 0.0
    %3708 = vmatpush1.msra.mxu0 %v1037
    %3709 = vmatprep.subr.mxu0 0.0
    %3710 = vmatpush1.msra.mxu0 %v1040
    %3711 = vmatprep.subr.mxu0 0.0
    %3712 = vmatpush1.msra.mxu0 %v1043
    %3713 = vmatprep.subr.mxu0 0.0
    %3714 = vmatpush1.msra.mxu0 %v1046
    %3715 = vmatprep.subr.mxu0 0.0
    %3716 = vmatpush1.msra.mxu0 %v1049
    %3717 = vmatprep.subr.mxu0 0.0
    %3718 = vmatpush1.msra.mxu0 %v1052
    %3719 = vmatprep.subr.mxu0 0.0
    %3720 = vmatpush1.msra.mxu0 %v1055
    %3721 = vmatprep.subr.mxu0 0.0
    %3722 = vmatpush1.msra.mxu0 %v1058
    %3723 = vmatprep.subr.mxu0 0.0
    %3724 = vmatpush1.msra.mxu0 %v1061
    %3725 = vmatprep.subr.mxu0 0.0
    %3726 = vmatpush1.msra.mxu0 %v1064
    %3727 = vmatprep.subr.mxu0 0.0
    %3728 = vmatpush1.msra.mxu0 %v1067
    %3729 = vmatprep.subr.mxu0 0.0
    %3730 = vmatpush1.msra.mxu0 %v1070
    %3731 = vmatprep.subr.mxu0 0.0
    %3732 = vmatpush1.msra.mxu0 %v1073
    %3733 = vmatprep.subr.mxu0 0.0
    %3734 = vmatpush1.msra.mxu0 0.0
    %3735 = vmatprep.subr.mxu0 0.0
    %3736 = vmatpush1.msra.mxu0 0.0
    %3737 = vmatprep.subr.mxu0 0.0
    %3738 = vmatpush1.msra.mxu0 0.0
    %3739 = vmatprep.subr.mxu0 0.0
    %3740 = vmatpush1.msra.mxu0 0.0
    %3741 = vmatprep.subr.mxu0 0.0
    %3742 = vmatpush1.msra.mxu0 0.0
    %3743 = vmatprep.subr.mxu0 0.0
    %3744 = vmatpush1.msra.mxu0 0.0
    %3745 = vmatprep.subr.mxu0 0.0
    %3746 = vmatpush1.msra.mxu0 0.0
    %3747 = vmatprep.subr.mxu0 0.0
    %3748 = vmatpush1.msra.mxu0 0.0
    %3749 = vmatprep.subr.mxu0 0.0
    %3750 = vmatpush1.msra.mxu0 0.0
    %3751 = vmatprep.subr.mxu0 0.0
    %3752 = vmatpush1.msra.mxu0 0.0
    %3753 = vmatprep.subr.mxu0 0.0
    %3754 = vmatpush1.msra.mxu0 0.0
    %3755 = vmatprep.subr.mxu0 0.0
    %3756 = vmatpush1.msra.mxu0 0.0
    %3757 = vmatprep.subr.mxu0 0.0
    %3758 = vmatpush1.msra.mxu0 0.0
    %3759 = vmatprep.subr.mxu0 0.0
    %3760 = vmatpush1.msra.mxu0 0.0
    %3761 = vmatprep.subr.mxu0 0.0
    %3762 = vmatpush1.msra.mxu0 0.0
    %3763 = vmatprep.subr.mxu0 0.0
    %3764 = vmatpush1.msra.mxu0 0.0
    %3765 = vmatprep.mubr.f32.mxu0 0.0
    %3766 = vmatmul.mubr.f32.gmra.mrb[0].mxu0 %v3455
    %v3767 = vpop.f32.mrb[0].mxu0
    %v3768 = vadd.f32 %v1104, %v3767
    %v3769 = vpop.f32.mrb[0].mxu0
    %3770 = vdwg.mxu0
    %v3771 = vadd.f32 %v3627, %v3697
    %v3772 = vsub.f32 0.0, %v3771
    %v3773 = vmul.f32 %v3772, 1.442695
    %v3774 = vpow.pop %v3773
    %v3775 = vadd.f32 %v3774, 1.0
    %v3776 = vrcp.pop %v3775
    %v3777 = vmul.f32 1.0, %v3776
    %v3778 = vadd.f32 %v3628, %v3699
    %v3779 = vsub.f32 0.0, %v3778
    %v3780 = vmul.f32 %v3779, 1.442695
    %v3781 = vpow.pop %v3780
    %v3782 = vadd.f32 %v3781, 1.0
    %v3783 = vrcp.pop %v3782
    %v3784 = vmul.f32 1.0, %v3783
    %v3785 = vmul.f32 %v3777, %v3768
    %v3786 = vadd.f32 %v3629, %v3785
    %v3787 = vtanh.pop %v3786
    %v3788 = vsub.f32 1.0, %v3784
    %v3789 = vmul.f32 %v3788, %v3787
    %v3790 = vmul.f32 %v3784, %v3455
    %v3791 = vadd.f32 %v3789, %v3790
    %s3792 = scalar_lea.vmem [#allocation5], 64
    %3793 = vst [vmem:[%s3792] sm:$0xff] %v3791
    %s3794 = scalar_lea.vmem [#allocation2], 192
    %v3795 = vld [vmem:[%s3794] sm:$0xff]
    %v3796 = vld [vmem:[%s3794 + $0x8] sm:$0xff]
    %v3797 = vld [vmem:[%s3794 + $0x10] sm:$0xff]
    %3798 = vmatprep.subr.mxu0 %v979
    %3799 = vmatpush1.msra.mxu0 %v978
    %3800 = vmatprep.subr.mxu0 %v982
    %3801 = vmatpush1.msra.mxu0 %v981
    %3802 = vmatprep.subr.mxu0 %v985
    %3803 = vmatpush1.msra.mxu0 %v984
    %3804 = vmatprep.subr.mxu0 %v988
    %3805 = vmatpush1.msra.mxu0 %v987
    %3806 = vmatprep.subr.mxu0 %v991
    %3807 = vmatpush1.msra.mxu0 %v990
    %3808 = vmatprep.subr.mxu0 %v994
    %3809 = vmatpush1.msra.mxu0 %v993
    %3810 = vmatprep.subr.mxu0 %v997
    %3811 = vmatpush1.msra.mxu0 %v996
    %3812 = vmatprep.subr.mxu0 %v1000
    %3813 = vmatpush1.msra.mxu0 %v999
    %3814 = vmatprep.subr.mxu0 %v1003
    %3815 = vmatpush1.msra.mxu0 %v1002
    %3816 = vmatprep.subr.mxu0 %v1006
    %3817 = vmatpush1.msra.mxu0 %v1005
    %3818 = vmatprep.subr.mxu0 %v1009
    %3819 = vmatpush1.msra.mxu0 %v1008
    %3820 = vmatprep.subr.mxu0 %v1012
    %3821 = vmatpush1.msra.mxu0 %v1011
    %3822 = vmatprep.subr.mxu0 %v1015
    %3823 = vmatpush1.msra.mxu0 %v1014
    %3824 = vmatprep.subr.mxu0 %v1018
    %3825 = vmatpush1.msra.mxu0 %v1017
    %3826 = vmatprep.subr.mxu0 %v1021
    %3827 = vmatpush1.msra.mxu0 %v1020
    %3828 = vmatprep.subr.mxu0 %v1024
    %3829 = vmatpush1.msra.mxu0 %v1023
    %3830 = vmatprep.subr.mxu0 0.0
    %3831 = vmatpush1.msra.mxu0 0.0
    %3832 = vmatprep.subr.mxu0 0.0
    %3833 = vmatpush1.msra.mxu0 0.0
    %3834 = vmatprep.subr.mxu0 0.0
    %3835 = vmatpush1.msra.mxu0 0.0
    %3836 = vmatprep.subr.mxu0 0.0
    %3837 = vmatpush1.msra.mxu0 0.0
    %3838 = vmatprep.subr.mxu0 0.0
    %3839 = vmatpush1.msra.mxu0 0.0
    %3840 = vmatprep.subr.mxu0 0.0
    %3841 = vmatpush1.msra.mxu0 0.0
    %3842 = vmatprep.subr.mxu0 0.0
    %3843 = vmatpush1.msra.mxu0 0.0
    %3844 = vmatprep.subr.mxu0 0.0
    %3845 = vmatpush1.msra.mxu0 0.0
    %3846 = vmatprep.subr.mxu0 0.0
    %3847 = vmatpush1.msra.mxu0 0.0
    %3848 = vmatprep.subr.mxu0 0.0
    %3849 = vmatpush1.msra.mxu0 0.0
    %3850 = vmatprep.subr.mxu0 0.0
    %3851 = vmatpush1.msra.mxu0 0.0
    %3852 = vmatprep.subr.mxu0 0.0
    %3853 = vmatpush1.msra.mxu0 0.0
    %3854 = vmatprep.subr.mxu0 0.0
    %3855 = vmatpush1.msra.mxu0 0.0
    %3856 = vmatprep.subr.mxu0 0.0
    %3857 = vmatpush1.msra.mxu0 0.0
    %3858 = vmatprep.subr.mxu0 0.0
    %3859 = vmatpush1.msra.mxu0 0.0
    %3860 = vmatprep.subr.mxu0 0.0
    %3861 = vmatpush1.msra.mxu0 0.0
    %3862 = vmatprep.mubr.f32.mxu0 0.0
    %3863 = vmatmul.mubr.f32.gmra.mrb[0].mxu0 %v3623
    %v3864 = vpop.f32.mrb[0].mxu0
    %v3865 = vadd.f32 %v1079, %v3864
    %v3866 = vpop.f32.mrb[0].mxu0
    %v3867 = vadd.f32 %v1083, %v3866
    %3868 = vdwg.mxu0
    %3869 = vmatprep.subr.mxu0 0.0
    %3870 = vmatpush1.msra.mxu0 %v980
    %3871 = vmatprep.subr.mxu0 0.0
    %3872 = vmatpush1.msra.mxu0 %v983
    %3873 = vmatprep.subr.mxu0 0.0
    %3874 = vmatpush1.msra.mxu0 %v986
    %3875 = vmatprep.subr.mxu0 0.0
    %3876 = vmatpush1.msra.mxu0 %v989
    %3877 = vmatprep.subr.mxu0 0.0
    %3878 = vmatpush1.msra.mxu0 %v992
    %3879 = vmatprep.subr.mxu0 0.0
    %3880 = vmatpush1.msra.mxu0 %v995
    %3881 = vmatprep.subr.mxu0 0.0
    %3882 = vmatpush1.msra.mxu0 %v998
    %3883 = vmatprep.subr.mxu0 0.0
    %3884 = vmatpush1.msra.mxu0 %v1001
    %3885 = vmatprep.subr.mxu0 0.0
    %3886 = vmatpush1.msra.mxu0 %v1004
    %3887 = vmatprep.subr.mxu0 0.0
    %3888 = vmatpush1.msra.mxu0 %v1007
    %3889 = vmatprep.subr.mxu0 0.0
    %3890 = vmatpush1.msra.mxu0 %v1010
    %3891 = vmatprep.subr.mxu0 0.0
    %3892 = vmatpush1.msra.mxu0 %v1013
    %3893 = vmatprep.subr.mxu0 0.0
    %3894 = vmatpush1.msra.mxu0 %v1016
    %3895 = vmatprep.subr.mxu0 0.0
    %3896 = vmatpush1.msra.mxu0 %v1019
    %3897 = vmatprep.subr.mxu0 0.0
    %3898 = vmatpush1.msra.mxu0 %v1022
    %3899 = vmatprep.subr.mxu0 0.0
    %3900 = vmatpush1.msra.mxu0 %v1025
    %3901 = vmatprep.subr.mxu0 0.0
    %3902 = vmatpush1.msra.mxu0 0.0
    %3903 = vmatprep.subr.mxu0 0.0
    %3904 = vmatpush1.msra.mxu0 0.0
    %3905 = vmatprep.subr.mxu0 0.0
    %3906 = vmatpush1.msra.mxu0 0.0
    %3907 = vmatprep.subr.mxu0 0.0
    %3908 = vmatpush1.msra.mxu0 0.0
    %3909 = vmatprep.subr.mxu0 0.0
    %3910 = vmatpush1.msra.mxu0 0.0
    %3911 = vmatprep.subr.mxu0 0.0
    %3912 = vmatpush1.msra.mxu0 0.0
    %3913 = vmatprep.subr.mxu0 0.0
    %3914 = vmatpush1.msra.mxu0 0.0
    %3915 = vmatprep.subr.mxu0 0.0
    %3916 = vmatpush1.msra.mxu0 0.0
    %3917 = vmatprep.subr.mxu0 0.0
    %3918 = vmatpush1.msra.mxu0 0.0
    %3919 = vmatprep.subr.mxu0 0.0
    %3920 = vmatpush1.msra.mxu0 0.0
    %3921 = vmatprep.subr.mxu0 0.0
    %3922 = vmatpush1.msra.mxu0 0.0
    %3923 = vmatprep.subr.mxu0 0.0
    %3924 = vmatpush1.msra.mxu0 0.0
    %3925 = vmatprep.subr.mxu0 0.0
    %3926 = vmatpush1.msra.mxu0 0.0
    %3927 = vmatprep.subr.mxu0 0.0
    %3928 = vmatpush1.msra.mxu0 0.0
    %3929 = vmatprep.subr.mxu0 0.0
    %3930 = vmatpush1.msra.mxu0 0.0
    %3931 = vmatprep.subr.mxu0 0.0
    %3932 = vmatpush1.msra.mxu0 0.0
    %3933 = vmatprep.mubr.f32.mxu0 0.0
    %3934 = vmatmul.mubr.f32.gmra.mrb[0].mxu0 %v3623
    %v3935 = vpop.f32.mrb[0].mxu0
    %v3936 = vadd.f32 %v1087, %v3935
    %v3937 = vpop.f32.mrb[0].mxu0
    %3938 = vdwg.mxu0
    %v3939 = vadd.f32 %v3795, %v3865
    %v3940 = vsub.f32 0.0, %v3939
    %v3941 = vmul.f32 %v3940, 1.442695
    %v3942 = vpow.pop %v3941
    %v3943 = vadd.f32 %v3942, 1.0
    %v3944 = vrcp.pop %v3943
    %v3945 = vmul.f32 1.0, %v3944
    %v3946 = vadd.f32 %v3796, %v3867
    %v3947 = vsub.f32 0.0, %v3946
    %v3948 = vmul.f32 %v3947, 1.442695
    %v3949 = vpow.pop %v3948
    %v3950 = vadd.f32 %v3949, 1.0
    %v3951 = vrcp.pop %v3950
    %v3952 = vmul.f32 1.0, %v3951
    %v3953 = vmul.f32 %v3945, %v3936
    %v3954 = vadd.f32 %v3797, %v3953
    %v3955 = vtanh.pop %v3954
    %v3956 = vsub.f32 1.0, %v3952
    %v3957 = vmul.f32 %v3956, %v3955
    %v3958 = vmul.f32 %v3952, %v3623
    %v3959 = vadd.f32 %v3957, %v3958
    %s3960 = scalar_lea.vmem [#allocation4], 64
    %3961 = vst [vmem:[%s3960] sm:$0xff] %v3959
    %s3962 = scalar_lea.vmem [#allocation3], 168
    %v3963 = vld [vmem:[%s3962] sm:$0xff]
    %v3964 = vld [vmem:[%s3962 + $0x8] sm:$0xff]
    %v3965 = vld [vmem:[%s3962 + $0x10] sm:$0xff]
    %3966 = vmatprep.subr.mxu0 %v1027
    %3967 = vmatpush1.msra.mxu0 %v1026
    %3968 = vmatprep.subr.mxu0 %v1030
    %3969 = vmatpush1.msra.mxu0 %v1029
    %3970 = vmatprep.subr.mxu0 %v1033
    %3971 = vmatpush1.msra.mxu0 %v1032
    %3972 = vmatprep.subr.mxu0 %v1036
    %3973 = vmatpush1.msra.mxu0 %v1035
    %3974 = vmatprep.subr.mxu0 %v1039
    %3975 = vmatpush1.msra.mxu0 %v1038
    %3976 = vmatprep.subr.mxu0 %v1042
    %3977 = vmatpush1.msra.mxu0 %v1041
    %3978 = vmatprep.subr.mxu0 %v1045
    %3979 = vmatpush1.msra.mxu0 %v1044
    %3980 = vmatprep.subr.mxu0 %v1048
    %3981 = vmatpush1.msra.mxu0 %v1047
    %3982 = vmatprep.subr.mxu0 %v1051
    %3983 = vmatpush1.msra.mxu0 %v1050
    %3984 = vmatprep.subr.mxu0 %v1054
    %3985 = vmatpush1.msra.mxu0 %v1053
    %3986 = vmatprep.subr.mxu0 %v1057
    %3987 = vmatpush1.msra.mxu0 %v1056
    %3988 = vmatprep.subr.mxu0 %v1060
    %3989 = vmatpush1.msra.mxu0 %v1059
    %3990 = vmatprep.subr.mxu0 %v1063
    %3991 = vmatpush1.msra.mxu0 %v1062
    %3992 = vmatprep.subr.mxu0 %v1066
    %3993 = vmatpush1.msra.mxu0 %v1065
    %3994 = vmatprep.subr.mxu0 %v1069
    %3995 = vmatpush1.msra.mxu0 %v1068
    %3996 = vmatprep.subr.mxu0 %v1072
    %3997 = vmatpush1.msra.mxu0 %v1071
    %3998 = vmatprep.subr.mxu0 0.0
    %3999 = vmatpush1.msra.mxu0 0.0
    %4000 = vmatprep.subr.mxu0 0.0
    %4001 = vmatpush1.msra.mxu0 0.0
    %4002 = vmatprep.subr.mxu0 0.0
    %4003 = vmatpush1.msra.mxu0 0.0
    %4004 = vmatprep.subr.mxu0 0.0
    %4005 = vmatpush1.msra.mxu0 0.0
    %4006 = vmatprep.subr.mxu0 0.0
    %4007 = vmatpush1.msra.mxu0 0.0
    %4008 = vmatprep.subr.mxu0 0.0
    %4009 = vmatpush1.msra.mxu0 0.0
    %4010 = vmatprep.subr.mxu0 0.0
    %4011 = vmatpush1.msra.mxu0 0.0
    %4012 = vmatprep.subr.mxu0 0.0
    %4013 = vmatpush1.msra.mxu0 0.0
    %4014 = vmatprep.subr.mxu0 0.0
    %4015 = vmatpush1.msra.mxu0 0.0
    %4016 = vmatprep.subr.mxu0 0.0
    %4017 = vmatpush1.msra.mxu0 0.0
    %4018 = vmatprep.subr.mxu0 0.0
    %4019 = vmatpush1.msra.mxu0 0.0
    %4020 = vmatprep.subr.mxu0 0.0
    %4021 = vmatpush1.msra.mxu0 0.0
    %4022 = vmatprep.subr.mxu0 0.0
    %4023 = vmatpush1.msra.mxu0 0.0
    %4024 = vmatprep.subr.mxu0 0.0
    %4025 = vmatpush1.msra.mxu0 0.0
    %4026 = vmatprep.subr.mxu0 0.0
    %4027 = vmatpush1.msra.mxu0 0.0
    %4028 = vmatprep.subr.mxu0 0.0
    %4029 = vmatpush1.msra.mxu0 0.0
    %4030 = vmatprep.mubr.f32.mxu0 0.0
    %4031 = vmatmul.mubr.f32.gmra.mrb[0].mxu0 %v3791
    %v4032 = vpop.f32.mrb[0].mxu0
    %v4033 = vadd.f32 %v1096, %v4032
    %v4034 = vpop.f32.mrb[0].mxu0
    %v4035 = vadd.f32 %v1100, %v4034
    %4036 = vdwg.mxu0
    %4037 = vmatprep.subr.mxu0 0.0
    %4038 = vmatpush1.msra.mxu0 %v1028
    %4039 = vmatprep.subr.mxu0 0.0
    %4040 = vmatpush1.msra.mxu0 %v1031
    %4041 = vmatprep.subr.mxu0 0.0
    %4042 = vmatpush1.msra.mxu0 %v1034
    %4043 = vmatprep.subr.mxu0 0.0
    %4044 = vmatpush1.msra.mxu0 %v1037
    %4045 = vmatprep.subr.mxu0 0.0
    %4046 = vmatpush1.msra.mxu0 %v1040
    %4047 = vmatprep.subr.mxu0 0.0
    %4048 = vmatpush1.msra.mxu0 %v1043
    %4049 = vmatprep.subr.mxu0 0.0
    %4050 = vmatpush1.msra.mxu0 %v1046
    %4051 = vmatprep.subr.mxu0 0.0
    %4052 = vmatpush1.msra.mxu0 %v1049
    %4053 = vmatprep.subr.mxu0 0.0
    %4054 = vmatpush1.msra.mxu0 %v1052
    %4055 = vmatprep.subr.mxu0 0.0
    %4056 = vmatpush1.msra.mxu0 %v1055
    %4057 = vmatprep.subr.mxu0 0.0
    %4058 = vmatpush1.msra.mxu0 %v1058
    %4059 = vmatprep.subr.mxu0 0.0
    %4060 = vmatpush1.msra.mxu0 %v1061
    %4061 = vmatprep.subr.mxu0 0.0
    %4062 = vmatpush1.msra.mxu0 %v1064
    %4063 = vmatprep.subr.mxu0 0.0
    %4064 = vmatpush1.msra.mxu0 %v1067
    %4065 = vmatprep.subr.mxu0 0.0
    %4066 = vmatpush1.msra.mxu0 %v1070
    %4067 = vmatprep.subr.mxu0 0.0
    %4068 = vmatpush1.msra.mxu0 %v1073
    %4069 = vmatprep.subr.mxu0 0.0
    %4070 = vmatpush1.msra.mxu0 0.0
    %4071 = vmatprep.subr.mxu0 0.0
    %4072 = vmatpush1.msra.mxu0 0.0
    %4073 = vmatprep.subr.mxu0 0.0
    %4074 = vmatpush1.msra.mxu0 0.0
    %4075 = vmatprep.subr.mxu0 0.0
    %4076 = vmatpush1.msra.mxu0 0.0
    %4077 = vmatprep.subr.mxu0 0.0
    %4078 = vmatpush1.msra.mxu0 0.0
    %4079 = vmatprep.subr.mxu0 0.0
    %4080 = vmatpush1.msra.mxu0 0.0
    %4081 = vmatprep.subr.mxu0 0.0
    %4082 = vmatpush1.msra.mxu0 0.0
    %4083 = vmatprep.subr.mxu0 0.0
    %4084 = vmatpush1.msra.mxu0 0.0
    %4085 = vmatprep.subr.mxu0 0.0
    %4086 = vmatpush1.msra.mxu0 0.0
    %4087 = vmatprep.subr.mxu0 0.0
    %4088 = vmatpush1.msra.mxu0 0.0
    %4089 = vmatprep.subr.mxu0 0.0
    %4090 = vmatpush1.msra.mxu0 0.0
    %4091 = vmatprep.subr.mxu0 0.0
    %4092 = vmatpush1.msra.mxu0 0.0
    %4093 = vmatprep.subr.mxu0 0.0
    %4094 = vmatpush1.msra.mxu0 0.0
    %4095 = vmatprep.subr.mxu0 0.0
    %4096 = vmatpush1.msra.mxu0 0.0
    %4097 = vmatprep.subr.mxu0 0.0
    %4098 = vmatpush1.msra.mxu0 0.0
    %4099 = vmatprep.subr.mxu0 0.0
    %4100 = vmatpush1.msra.mxu0 0.0
    %4101 = vmatprep.mubr.f32.mxu0 0.0
    %4102 = vmatmul.mubr.f32.gmra.mrb[0].mxu0 %v3791
    %v4103 = vpop.f32.mrb[0].mxu0
    %v4104 = vadd.f32 %v1104, %v4103
    %v4105 = vpop.f32.mrb[0].mxu0
    %4106 = vdwg.mxu0
    %v4107 = vadd.f32 %v3963, %v4033
    %v4108 = vsub.f32 0.0, %v4107
    %v4109 = vmul.f32 %v4108, 1.442695
    %v4110 = vpow.pop %v4109
    %v4111 = vadd.f32 %v4110, 1.0
    %v4112 = vrcp.pop %v4111
    %v4113 = vmul.f32 1.0, %v4112
    %v4114 = vadd.f32 %v3964, %v4035
    %v4115 = vsub.f32 0.0, %v4114
    %v4116 = vmul.f32 %v4115, 1.442695
    %v4117 = vpow.pop %v4116
    %v4118 = vadd.f32 %v4117, 1.0
    %v4119 = vrcp.pop %v4118
    %v4120 = vmul.f32 1.0, %v4119
    %v4121 = vmul.f32 %v4113, %v4104
    %v4122 = vadd.f32 %v3965, %v4121
    %v4123 = vtanh.pop %v4122
    %v4124 = vsub.f32 1.0, %v4120
    %v4125 = vmul.f32 %v4124, %v4123
    %v4126 = vmul.f32 %v4120, %v3791
    %v4127 = vadd.f32 %v4125, %v4126
    %s4128 = scalar_lea.vmem [#allocation5], 56
    %4129 = vst [vmem:[%s4128] sm:$0xff] %v4127
    %s4130 = scalar_lea.vmem [#allocation2], 216
    %v4131 = vld [vmem:[%s4130] sm:$0xff]
    %v4132 = vld [vmem:[%s4130 + $0x8] sm:$0xff]
    %v4133 = vld [vmem:[%s4130 + $0x10] sm:$0xff]
    %4134 = vmatprep.subr.mxu0 %v979
    %4135 = vmatpush1.msra.mxu0 %v978
    %4136 = vmatprep.subr.mxu0 %v982
    %4137 = vmatpush1.msra.mxu0 %v981
    %4138 = vmatprep.subr.mxu0 %v985
    %4139 = vmatpush1.msra.mxu0 %v984
    %4140 = vmatprep.subr.mxu0 %v988
    %4141 = vmatpush1.msra.mxu0 %v987
    %4142 = vmatprep.subr.mxu0 %v991
    %4143 = vmatpush1.msra.mxu0 %v990
    %4144 = vmatprep.subr.mxu0 %v994
    %4145 = vmatpush1.msra.mxu0 %v993
    %4146 = vmatprep.subr.mxu0 %v997
    %4147 = vmatpush1.msra.mxu0 %v996
    %4148 = vmatprep.subr.mxu0 %v1000
    %4149 = vmatpush1.msra.mxu0 %v999
    %4150 = vmatprep.subr.mxu0 %v1003
    %4151 = vmatpush1.msra.mxu0 %v1002
    %4152 = vmatprep.subr.mxu0 %v1006
    %4153 = vmatpush1.msra.mxu0 %v1005
    %4154 = vmatprep.subr.mxu0 %v1009
    %4155 = vmatpush1.msra.mxu0 %v1008
    %4156 = vmatprep.subr.mxu0 %v1012
    %4157 = vmatpush1.msra.mxu0 %v1011
    %4158 = vmatprep.subr.mxu0 %v1015
    %4159 = vmatpush1.msra.mxu0 %v1014
    %4160 = vmatprep.subr.mxu0 %v1018
    %4161 = vmatpush1.msra.mxu0 %v1017
    %4162 = vmatprep.subr.mxu0 %v1021
    %4163 = vmatpush1.msra.mxu0 %v1020
    %4164 = vmatprep.subr.mxu0 %v1024
    %4165 = vmatpush1.msra.mxu0 %v1023
    %4166 = vmatprep.subr.mxu0 0.0
    %4167 = vmatpush1.msra.mxu0 0.0
    %4168 = vmatprep.subr.mxu0 0.0
    %4169 = vmatpush1.msra.mxu0 0.0
    %4170 = vmatprep.subr.mxu0 0.0
    %4171 = vmatpush1.msra.mxu0 0.0
    %4172 = vmatprep.subr.mxu0 0.0
    %4173 = vmatpush1.msra.mxu0 0.0
    %4174 = vmatprep.subr.mxu0 0.0
    %4175 = vmatpush1.msra.mxu0 0.0
    %4176 = vmatprep.subr.mxu0 0.0
    %4177 = vmatpush1.msra.mxu0 0.0
    %4178 = vmatprep.subr.mxu0 0.0
    %4179 = vmatpush1.msra.mxu0 0.0
    %4180 = vmatprep.subr.mxu0 0.0
    %4181 = vmatpush1.msra.mxu0 0.0
    %4182 = vmatprep.subr.mxu0 0.0
    %4183 = vmatpush1.msra.mxu0 0.0
    %4184 = vmatprep.subr.mxu0 0.0
    %4185 = vmatpush1.msra.mxu0 0.0
    %4186 = vmatprep.subr.mxu0 0.0
    %4187 = vmatpush1.msra.mxu0 0.0
    %4188 = vmatprep.subr.mxu0 0.0
    %4189 = vmatpush1.msra.mxu0 0.0
    %4190 = vmatprep.subr.mxu0 0.0
    %4191 = vmatpush1.msra.mxu0 0.0
    %4192 = vmatprep.subr.mxu0 0.0
    %4193 = vmatpush1.msra.mxu0 0.0
    %4194 = vmatprep.subr.mxu0 0.0
    %4195 = vmatpush1.msra.mxu0 0.0
    %4196 = vmatprep.subr.mxu0 0.0
    %4197 = vmatpush1.msra.mxu0 0.0
    %4198 = vmatprep.mubr.f32.mxu0 0.0
    %4199 = vmatmul.mubr.f32.gmra.mrb[0].mxu0 %v3959
    %v4200 = vpop.f32.mrb[0].mxu0
    %v4201 = vadd.f32 %v1079, %v4200
    %v4202 = vpop.f32.mrb[0].mxu0
    %v4203 = vadd.f32 %v1083, %v4202
    %4204 = vdwg.mxu0
    %4205 = vmatprep.subr.mxu0 0.0
    %4206 = vmatpush1.msra.mxu0 %v980
    %4207 = vmatprep.subr.mxu0 0.0
    %4208 = vmatpush1.msra.mxu0 %v983
    %4209 = vmatprep.subr.mxu0 0.0
    %4210 = vmatpush1.msra.mxu0 %v986
    %4211 = vmatprep.subr.mxu0 0.0
    %4212 = vmatpush1.msra.mxu0 %v989
    %4213 = vmatprep.subr.mxu0 0.0
    %4214 = vmatpush1.msra.mxu0 %v992
    %4215 = vmatprep.subr.mxu0 0.0
    %4216 = vmatpush1.msra.mxu0 %v995
    %4217 = vmatprep.subr.mxu0 0.0
    %4218 = vmatpush1.msra.mxu0 %v998
    %4219 = vmatprep.subr.mxu0 0.0
    %4220 = vmatpush1.msra.mxu0 %v1001
    %4221 = vmatprep.subr.mxu0 0.0
    %4222 = vmatpush1.msra.mxu0 %v1004
    %4223 = vmatprep.subr.mxu0 0.0
    %4224 = vmatpush1.msra.mxu0 %v1007
    %4225 = vmatprep.subr.mxu0 0.0
    %4226 = vmatpush1.msra.mxu0 %v1010
    %4227 = vmatprep.subr.mxu0 0.0
    %4228 = vmatpush1.msra.mxu0 %v1013
    %4229 = vmatprep.subr.mxu0 0.0
    %4230 = vmatpush1.msra.mxu0 %v1016
    %4231 = vmatprep.subr.mxu0 0.0
    %4232 = vmatpush1.msra.mxu0 %v1019
    %4233 = vmatprep.subr.mxu0 0.0
    %4234 = vmatpush1.msra.mxu0 %v1022
    %4235 = vmatprep.subr.mxu0 0.0
    %4236 = vmatpush1.msra.mxu0 %v1025
    %4237 = vmatprep.subr.mxu0 0.0
    %4238 = vmatpush1.msra.mxu0 0.0
    %4239 = vmatprep.subr.mxu0 0.0
    %4240 = vmatpush1.msra.mxu0 0.0
    %4241 = vmatprep.subr.mxu0 0.0
    %4242 = vmatpush1.msra.mxu0 0.0
    %4243 = vmatprep.subr.mxu0 0.0
    %4244 = vmatpush1.msra.mxu0 0.0
    %4245 = vmatprep.subr.mxu0 0.0
    %4246 = vmatpush1.msra.mxu0 0.0
    %4247 = vmatprep.subr.mxu0 0.0
    %4248 = vmatpush1.msra.mxu0 0.0
    %4249 = vmatprep.subr.mxu0 0.0
    %4250 = vmatpush1.msra.mxu0 0.0
    %4251 = vmatprep.subr.mxu0 0.0
    %4252 = vmatpush1.msra.mxu0 0.0
    %4253 = vmatprep.subr.mxu0 0.0
    %4254 = vmatpush1.msra.mxu0 0.0
    %4255 = vmatprep.subr.mxu0 0.0
    %4256 = vmatpush1.msra.mxu0 0.0
    %4257 = vmatprep.subr.mxu0 0.0
    %4258 = vmatpush1.msra.mxu0 0.0
    %4259 = vmatprep.subr.mxu0 0.0
    %4260 = vmatpush1.msra.mxu0 0.0
    %4261 = vmatprep.subr.mxu0 0.0
    %4262 = vmatpush1.msra.mxu0 0.0
    %4263 = vmatprep.subr.mxu0 0.0
    %4264 = vmatpush1.msra.mxu0 0.0
    %4265 = vmatprep.subr.mxu0 0.0
    %4266 = vmatpush1.msra.mxu0 0.0
    %4267 = vmatprep.subr.mxu0 0.0
    %4268 = vmatpush1.msra.mxu0 0.0
    %4269 = vmatprep.mubr.f32.mxu0 0.0
    %4270 = vmatmul.mubr.f32.gmra.mrb[0].mxu0 %v3959
    %v4271 = vpop.f32.mrb[0].mxu0
    %v4272 = vadd.f32 %v1087, %v4271
    %v4273 = vpop.f32.mrb[0].mxu0
    %4274 = vdwg.mxu0
    %v4275 = vadd.f32 %v4131, %v4201
    %v4276 = vsub.f32 0.0, %v4275
    %v4277 = vmul.f32 %v4276, 1.442695
    %v4278 = vpow.pop %v4277
    %v4279 = vadd.f32 %v4278, 1.0
    %v4280 = vrcp.pop %v4279
    %v4281 = vmul.f32 1.0, %v4280
    %v4282 = vadd.f32 %v4132, %v4203
    %v4283 = vsub.f32 0.0, %v4282
    %v4284 = vmul.f32 %v4283, 1.442695
    %v4285 = vpow.pop %v4284
    %v4286 = vadd.f32 %v4285, 1.0
    %v4287 = vrcp.pop %v4286
    %v4288 = vmul.f32 1.0, %v4287
    %v4289 = vmul.f32 %v4281, %v4272
    %v4290 = vadd.f32 %v4133, %v4289
    %v4291 = vtanh.pop %v4290
    %v4292 = vsub.f32 1.0, %v4288
    %v4293 = vmul.f32 %v4292, %v4291
    %v4294 = vmul.f32 %v4288, %v3959
    %v4295 = vadd.f32 %v4293, %v4294
    %s4296 = scalar_lea.vmem [#allocation4], 72
    %4297 = vst [vmem:[%s4296] sm:$0xff] %v4295
    %s4298 = scalar_lea.vmem [#allocation3], 144
    %v4299 = vld [vmem:[%s4298] sm:$0xff]
    %v4300 = vld [vmem:[%s4298 + $0x8] sm:$0xff]
    %v4301 = vld [vmem:[%s4298 + $0x10] sm:$0xff]
    %4302 = vmatprep.subr.mxu0 %v1027
    %4303 = vmatpush1.msra.mxu0 %v1026
    %4304 = vmatprep.subr.mxu0 %v1030
    %4305 = vmatpush1.msra.mxu0 %v1029
    %4306 = vmatprep.subr.mxu0 %v1033
    %4307 = vmatpush1.msra.mxu0 %v1032
    %4308 = vmatprep.subr.mxu0 %v1036
    %4309 = vmatpush1.msra.mxu0 %v1035
    %4310 = vmatprep.subr.mxu0 %v1039
    %4311 = vmatpush1.msra.mxu0 %v1038
    %4312 = vmatprep.subr.mxu0 %v1042
    %4313 = vmatpush1.msra.mxu0 %v1041
    %4314 = vmatprep.subr.mxu0 %v1045
    %4315 = vmatpush1.msra.mxu0 %v1044
    %4316 = vmatprep.subr.mxu0 %v1048
    %4317 = vmatpush1.msra.mxu0 %v1047
    %4318 = vmatprep.subr.mxu0 %v1051
    %4319 = vmatpush1.msra.mxu0 %v1050
    %4320 = vmatprep.subr.mxu0 %v1054
    %4321 = vmatpush1.msra.mxu0 %v1053
    %4322 = vmatprep.subr.mxu0 %v1057
    %4323 = vmatpush1.msra.mxu0 %v1056
    %4324 = vmatprep.subr.mxu0 %v1060
    %4325 = vmatpush1.msra.mxu0 %v1059
    %4326 = vmatprep.subr.mxu0 %v1063
    %4327 = vmatpush1.msra.mxu0 %v1062
    %4328 = vmatprep.subr.mxu0 %v1066
    %4329 = vmatpush1.msra.mxu0 %v1065
    %4330 = vmatprep.subr.mxu0 %v1069
    %4331 = vmatpush1.msra.mxu0 %v1068
    %4332 = vmatprep.subr.mxu0 %v1072
    %4333 = vmatpush1.msra.mxu0 %v1071
    %4334 = vmatprep.subr.mxu0 0.0
    %4335 = vmatpush1.msra.mxu0 0.0
    %4336 = vmatprep.subr.mxu0 0.0
    %4337 = vmatpush1.msra.mxu0 0.0
    %4338 = vmatprep.subr.mxu0 0.0
    %4339 = vmatpush1.msra.mxu0 0.0
    %4340 = vmatprep.subr.mxu0 0.0
    %4341 = vmatpush1.msra.mxu0 0.0
    %4342 = vmatprep.subr.mxu0 0.0
    %4343 = vmatpush1.msra.mxu0 0.0
    %4344 = vmatprep.subr.mxu0 0.0
    %4345 = vmatpush1.msra.mxu0 0.0
    %4346 = vmatprep.subr.mxu0 0.0
    %4347 = vmatpush1.msra.mxu0 0.0
    %4348 = vmatprep.subr.mxu0 0.0
    %4349 = vmatpush1.msra.mxu0 0.0
    %4350 = vmatprep.subr.mxu0 0.0
    %4351 = vmatpush1.msra.mxu0 0.0
    %4352 = vmatprep.subr.mxu0 0.0
    %4353 = vmatpush1.msra.mxu0 0.0
    %4354 = vmatprep.subr.mxu0 0.0
    %4355 = vmatpush1.msra.mxu0 0.0
    %4356 = vmatprep.subr.mxu0 0.0
    %4357 = vmatpush1.msra.mxu0 0.0
    %4358 = vmatprep.subr.mxu0 0.0
    %4359 = vmatpush1.msra.mxu0 0.0
    %4360 = vmatprep.subr.mxu0 0.0
    %4361 = vmatpush1.msra.mxu0 0.0
    %4362 = vmatprep.subr.mxu0 0.0
    %4363 = vmatpush1.msra.mxu0 0.0
    %4364 = vmatprep.subr.mxu0 0.0
    %4365 = vmatpush1.msra.mxu0 0.0
    %4366 = vmatprep.mubr.f32.mxu0 0.0
    %4367 = vmatmul.mubr.f32.gmra.mrb[0].mxu0 %v4127
    %v4368 = vpop.f32.mrb[0].mxu0
    %v4369 = vadd.f32 %v1096, %v4368
    %v4370 = vpop.f32.mrb[0].mxu0
    %v4371 = vadd.f32 %v1100, %v4370
    %4372 = vdwg.mxu0
    %4373 = vmatprep.subr.mxu0 0.0
    %4374 = vmatpush1.msra.mxu0 %v1028
    %4375 = vmatprep.subr.mxu0 0.0
    %4376 = vmatpush1.msra.mxu0 %v1031
    %4377 = vmatprep.subr.mxu0 0.0
    %4378 = vmatpush1.msra.mxu0 %v1034
    %4379 = vmatprep.subr.mxu0 0.0
    %4380 = vmatpush1.msra.mxu0 %v1037
    %4381 = vmatprep.subr.mxu0 0.0
    %4382 = vmatpush1.msra.mxu0 %v1040
    %4383 = vmatprep.subr.mxu0 0.0
    %4384 = vmatpush1.msra.mxu0 %v1043
    %4385 = vmatprep.subr.mxu0 0.0
    %4386 = vmatpush1.msra.mxu0 %v1046
    %4387 = vmatprep.subr.mxu0 0.0
    %4388 = vmatpush1.msra.mxu0 %v1049
    %4389 = vmatprep.subr.mxu0 0.0
    %4390 = vmatpush1.msra.mxu0 %v1052
    %4391 = vmatprep.subr.mxu0 0.0
    %4392 = vmatpush1.msra.mxu0 %v1055
    %4393 = vmatprep.subr.mxu0 0.0
    %4394 = vmatpush1.msra.mxu0 %v1058
    %4395 = vmatprep.subr.mxu0 0.0
    %4396 = vmatpush1.msra.mxu0 %v1061
    %4397 = vmatprep.subr.mxu0 0.0
    %4398 = vmatpush1.msra.mxu0 %v1064
    %4399 = vmatprep.subr.mxu0 0.0
    %4400 = vmatpush1.msra.mxu0 %v1067
    %4401 = vmatprep.subr.mxu0 0.0
    %4402 = vmatpush1.msra.mxu0 %v1070
    %4403 = vmatprep.subr.mxu0 0.0
    %4404 = vmatpush1.msra.mxu0 %v1073
    %4405 = vmatprep.subr.mxu0 0.0
    %4406 = vmatpush1.msra.mxu0 0.0
    %4407 = vmatprep.subr.mxu0 0.0
    %4408 = vmatpush1.msra.mxu0 0.0
    %4409 = vmatprep.subr.mxu0 0.0
    %4410 = vmatpush1.msra.mxu0 0.0
    %4411 = vmatprep.subr.mxu0 0.0
    %4412 = vmatpush1.msra.mxu0 0.0
    %4413 = vmatprep.subr.mxu0 0.0
    %4414 = vmatpush1.msra.mxu0 0.0
    %4415 = vmatprep.subr.mxu0 0.0
    %4416 = vmatpush1.msra.mxu0 0.0
    %4417 = vmatprep.subr.mxu0 0.0
    %4418 = vmatpush1.msra.mxu0 0.0
    %4419 = vmatprep.subr.mxu0 0.0
    %4420 = vmatpush1.msra.mxu0 0.0
    %4421 = vmatprep.subr.mxu0 0.0
    %4422 = vmatpush1.msra.mxu0 0.0
    %4423 = vmatprep.subr.mxu0 0.0
    %4424 = vmatpush1.msra.mxu0 0.0
    %4425 = vmatprep.subr.mxu0 0.0
    %4426 = vmatpush1.msra.mxu0 0.0
    %4427 = vmatprep.subr.mxu0 0.0
    %4428 = vmatpush1.msra.mxu0 0.0
    %4429 = vmatprep.subr.mxu0 0.0
    %4430 = vmatpush1.msra.mxu0 0.0
    %4431 = vmatprep.subr.mxu0 0.0
    %4432 = vmatpush1.msra.mxu0 0.0
    %4433 = vmatprep.subr.mxu0 0.0
    %4434 = vmatpush1.msra.mxu0 0.0
    %4435 = vmatprep.subr.mxu0 0.0
    %4436 = vmatpush1.msra.mxu0 0.0
    %4437 = vmatprep.mubr.f32.mxu0 0.0
    %4438 = vmatmul.mubr.f32.gmra.mrb[0].mxu0 %v4127
    %v4439 = vpop.f32.mrb[0].mxu0
    %v4440 = vadd.f32 %v1104, %v4439
    %v4441 = vpop.f32.mrb[0].mxu0
    %4442 = vdwg.mxu0
    %v4443 = vadd.f32 %v4299, %v4369
    %v4444 = vsub.f32 0.0, %v4443
    %v4445 = vmul.f32 %v4444, 1.442695
    %v4446 = vpow.pop %v4445
    %v4447 = vadd.f32 %v4446, 1.0
    %v4448 = vrcp.pop %v4447
    %v4449 = vmul.f32 1.0, %v4448
    %v4450 = vadd.f32 %v4300, %v4371
    %v4451 = vsub.f32 0.0, %v4450
    %v4452 = vmul.f32 %v4451, 1.442695
    %v4453 = vpow.pop %v4452
    %v4454 = vadd.f32 %v4453, 1.0
    %v4455 = vrcp.pop %v4454
    %v4456 = vmul.f32 1.0, %v4455
    %v4457 = vmul.f32 %v4449, %v4440
    %v4458 = vadd.f32 %v4301, %v4457
    %v4459 = vtanh.pop %v4458
    %v4460 = vsub.f32 1.0, %v4456
    %v4461 = vmul.f32 %v4460, %v4459
    %v4462 = vmul.f32 %v4456, %v4127
    %v4463 = vadd.f32 %v4461, %v4462
    %s4464 = scalar_lea.vmem [#allocation5], 48
    %4465 = vst [vmem:[%s4464] sm:$0xff] %v4463
    %s4466 = scalar_lea.vmem [#allocation2], 240
    %v4467 = vld [vmem:[%s4466] sm:$0xff]
    %v4468 = vld [vmem:[%s4466 + $0x8] sm:$0xff]
    %v4469 = vld [vmem:[%s4466 + $0x10] sm:$0xff]
    %4470 = vmatprep.subr.mxu0 %v979
    %4471 = vmatpush1.msra.mxu0 %v978
    %4472 = vmatprep.subr.mxu0 %v982
    %4473 = vmatpush1.msra.mxu0 %v981
    %4474 = vmatprep.subr.mxu0 %v985
    %4475 = vmatpush1.msra.mxu0 %v984
    %4476 = vmatprep.subr.mxu0 %v988
    %4477 = vmatpush1.msra.mxu0 %v987
    %4478 = vmatprep.subr.mxu0 %v991
    %4479 = vmatpush1.msra.mxu0 %v990
    %4480 = vmatprep.subr.mxu0 %v994
    %4481 = vmatpush1.msra.mxu0 %v993
    %4482 = vmatprep.subr.mxu0 %v997
    %4483 = vmatpush1.msra.mxu0 %v996
    %4484 = vmatprep.subr.mxu0 %v1000
    %4485 = vmatpush1.msra.mxu0 %v999
    %4486 = vmatprep.subr.mxu0 %v1003
    %4487 = vmatpush1.msra.mxu0 %v1002
    %4488 = vmatprep.subr.mxu0 %v1006
    %4489 = vmatpush1.msra.mxu0 %v1005
    %4490 = vmatprep.subr.mxu0 %v1009
    %4491 = vmatpush1.msra.mxu0 %v1008
    %4492 = vmatprep.subr.mxu0 %v1012
    %4493 = vmatpush1.msra.mxu0 %v1011
    %4494 = vmatprep.subr.mxu0 %v1015
    %4495 = vmatpush1.msra.mxu0 %v1014
    %4496 = vmatprep.subr.mxu0 %v1018
    %4497 = vmatpush1.msra.mxu0 %v1017
    %4498 = vmatprep.subr.mxu0 %v1021
    %4499 = vmatpush1.msra.mxu0 %v1020
    %4500 = vmatprep.subr.mxu0 %v1024
    %4501 = vmatpush1.msra.mxu0 %v1023
    %4502 = vmatprep.subr.mxu0 0.0
    %4503 = vmatpush1.msra.mxu0 0.0
    %4504 = vmatprep.subr.mxu0 0.0
    %4505 = vmatpush1.msra.mxu0 0.0
    %4506 = vmatprep.subr.mxu0 0.0
    %4507 = vmatpush1.msra.mxu0 0.0
    %4508 = vmatprep.subr.mxu0 0.0
    %4509 = vmatpush1.msra.mxu0 0.0
    %4510 = vmatprep.subr.mxu0 0.0
    %4511 = vmatpush1.msra.mxu0 0.0
    %4512 = vmatprep.subr.mxu0 0.0
    %4513 = vmatpush1.msra.mxu0 0.0
    %4514 = vmatprep.subr.mxu0 0.0
    %4515 = vmatpush1.msra.mxu0 0.0
    %4516 = vmatprep.subr.mxu0 0.0
    %4517 = vmatpush1.msra.mxu0 0.0
    %4518 = vmatprep.subr.mxu0 0.0
    %4519 = vmatpush1.msra.mxu0 0.0
    %4520 = vmatprep.subr.mxu0 0.0
    %4521 = vmatpush1.msra.mxu0 0.0
    %4522 = vmatprep.subr.mxu0 0.0
    %4523 = vmatpush1.msra.mxu0 0.0
    %4524 = vmatprep.subr.mxu0 0.0
    %4525 = vmatpush1.msra.mxu0 0.0
    %4526 = vmatprep.subr.mxu0 0.0
    %4527 = vmatpush1.msra.mxu0 0.0
    %4528 = vmatprep.subr.mxu0 0.0
    %4529 = vmatpush1.msra.mxu0 0.0
    %4530 = vmatprep.subr.mxu0 0.0
    %4531 = vmatpush1.msra.mxu0 0.0
    %4532 = vmatprep.subr.mxu0 0.0
    %4533 = vmatpush1.msra.mxu0 0.0
    %4534 = vmatprep.mubr.f32.mxu0 0.0
    %4535 = vmatmul.mubr.f32.gmra.mrb[0].mxu0 %v4295
    %v4536 = vpop.f32.mrb[0].mxu0
    %v4537 = vadd.f32 %v1079, %v4536
    %v4538 = vpop.f32.mrb[0].mxu0
    %v4539 = vadd.f32 %v1083, %v4538
    %4540 = vdwg.mxu0
    %4541 = vmatprep.subr.mxu0 0.0
    %4542 = vmatpush1.msra.mxu0 %v980
    %4543 = vmatprep.subr.mxu0 0.0
    %4544 = vmatpush1.msra.mxu0 %v983
    %4545 = vmatprep.subr.mxu0 0.0
    %4546 = vmatpush1.msra.mxu0 %v986
    %4547 = vmatprep.subr.mxu0 0.0
    %4548 = vmatpush1.msra.mxu0 %v989
    %4549 = vmatprep.subr.mxu0 0.0
    %4550 = vmatpush1.msra.mxu0 %v992
    %4551 = vmatprep.subr.mxu0 0.0
    %4552 = vmatpush1.msra.mxu0 %v995
    %4553 = vmatprep.subr.mxu0 0.0
    %4554 = vmatpush1.msra.mxu0 %v998
    %4555 = vmatprep.subr.mxu0 0.0
    %4556 = vmatpush1.msra.mxu0 %v1001
    %4557 = vmatprep.subr.mxu0 0.0
    %4558 = vmatpush1.msra.mxu0 %v1004
    %4559 = vmatprep.subr.mxu0 0.0
    %4560 = vmatpush1.msra.mxu0 %v1007
    %4561 = vmatprep.subr.mxu0 0.0
    %4562 = vmatpush1.msra.mxu0 %v1010
    %4563 = vmatprep.subr.mxu0 0.0
    %4564 = vmatpush1.msra.mxu0 %v1013
    %4565 = vmatprep.subr.mxu0 0.0
    %4566 = vmatpush1.msra.mxu0 %v1016
    %4567 = vmatprep.subr.mxu0 0.0
    %4568 = vmatpush1.msra.mxu0 %v1019
    %4569 = vmatprep.subr.mxu0 0.0
    %4570 = vmatpush1.msra.mxu0 %v1022
    %4571 = vmatprep.subr.mxu0 0.0
    %4572 = vmatpush1.msra.mxu0 %v1025
    %4573 = vmatprep.subr.mxu0 0.0
    %4574 = vmatpush1.msra.mxu0 0.0
    %4575 = vmatprep.subr.mxu0 0.0
    %4576 = vmatpush1.msra.mxu0 0.0
    %4577 = vmatprep.subr.mxu0 0.0
    %4578 = vmatpush1.msra.mxu0 0.0
    %4579 = vmatprep.subr.mxu0 0.0
    %4580 = vmatpush1.msra.mxu0 0.0
    %4581 = vmatprep.subr.mxu0 0.0
    %4582 = vmatpush1.msra.mxu0 0.0
    %4583 = vmatprep.subr.mxu0 0.0
    %4584 = vmatpush1.msra.mxu0 0.0
    %4585 = vmatprep.subr.mxu0 0.0
    %4586 = vmatpush1.msra.mxu0 0.0
    %4587 = vmatprep.subr.mxu0 0.0
    %4588 = vmatpush1.msra.mxu0 0.0
    %4589 = vmatprep.subr.mxu0 0.0
    %4590 = vmatpush1.msra.mxu0 0.0
    %4591 = vmatprep.subr.mxu0 0.0
    %4592 = vmatpush1.msra.mxu0 0.0
    %4593 = vmatprep.subr.mxu0 0.0
    %4594 = vmatpush1.msra.mxu0 0.0
    %4595 = vmatprep.subr.mxu0 0.0
    %4596 = vmatpush1.msra.mxu0 0.0
    %4597 = vmatprep.subr.mxu0 0.0
    %4598 = vmatpush1.msra.mxu0 0.0
    %4599 = vmatprep.subr.mxu0 0.0
    %4600 = vmatpush1.msra.mxu0 0.0
    %4601 = vmatprep.subr.mxu0 0.0
    %4602 = vmatpush1.msra.mxu0 0.0
    %4603 = vmatprep.subr.mxu0 0.0
    %4604 = vmatpush1.msra.mxu0 0.0
    %4605 = vmatprep.mubr.f32.mxu0 0.0
    %4606 = vmatmul.mubr.f32.gmra.mrb[0].mxu0 %v4295
    %v4607 = vpop.f32.mrb[0].mxu0
    %v4608 = vadd.f32 %v1087, %v4607
    %v4609 = vpop.f32.mrb[0].mxu0
    %4610 = vdwg.mxu0
    %v4611 = vadd.f32 %v4467, %v4537
    %v4612 = vsub.f32 0.0, %v4611
    %v4613 = vmul.f32 %v4612, 1.442695
    %v4614 = vpow.pop %v4613
    %v4615 = vadd.f32 %v4614, 1.0
    %v4616 = vrcp.pop %v4615
    %v4617 = vmul.f32 1.0, %v4616
    %v4618 = vadd.f32 %v4468, %v4539
    %v4619 = vsub.f32 0.0, %v4618
    %v4620 = vmul.f32 %v4619, 1.442695
    %v4621 = vpow.pop %v4620
    %v4622 = vadd.f32 %v4621, 1.0
    %v4623 = vrcp.pop %v4622
    %v4624 = vmul.f32 1.0, %v4623
    %v4625 = vmul.f32 %v4617, %v4608
    %v4626 = vadd.f32 %v4469, %v4625
    %v4627 = vtanh.pop %v4626
    %v4628 = vsub.f32 1.0, %v4624
    %v4629 = vmul.f32 %v4628, %v4627
    %v4630 = vmul.f32 %v4624, %v4295
    %v4631 = vadd.f32 %v4629, %v4630
    %s4632 = scalar_lea.vmem [#allocation4], 80
    %4633 = vst [vmem:[%s4632] sm:$0xff] %v4631
    %s4634 = scalar_lea.vmem [#allocation3], 120
    %v4635 = vld [vmem:[%s4634] sm:$0xff]
    %v4636 = vld [vmem:[%s4634 + $0x8] sm:$0xff]
    %v4637 = vld [vmem:[%s4634 + $0x10] sm:$0xff]
    %4638 = vmatprep.subr.mxu0 %v1027
    %4639 = vmatpush1.msra.mxu0 %v1026
    %4640 = vmatprep.subr.mxu0 %v1030
    %4641 = vmatpush1.msra.mxu0 %v1029
    %4642 = vmatprep.subr.mxu0 %v1033
    %4643 = vmatpush1.msra.mxu0 %v1032
    %4644 = vmatprep.subr.mxu0 %v1036
    %4645 = vmatpush1.msra.mxu0 %v1035
    %4646 = vmatprep.subr.mxu0 %v1039
    %4647 = vmatpush1.msra.mxu0 %v1038
    %4648 = vmatprep.subr.mxu0 %v1042
    %4649 = vmatpush1.msra.mxu0 %v1041
    %4650 = vmatprep.subr.mxu0 %v1045
    %4651 = vmatpush1.msra.mxu0 %v1044
    %4652 = vmatprep.subr.mxu0 %v1048
    %4653 = vmatpush1.msra.mxu0 %v1047
    %4654 = vmatprep.subr.mxu0 %v1051
    %4655 = vmatpush1.msra.mxu0 %v1050
    %4656 = vmatprep.subr.mxu0 %v1054
    %4657 = vmatpush1.msra.mxu0 %v1053
    %4658 = vmatprep.subr.mxu0 %v1057
    %4659 = vmatpush1.msra.mxu0 %v1056
    %4660 = vmatprep.subr.mxu0 %v1060
    %4661 = vmatpush1.msra.mxu0 %v1059
    %4662 = vmatprep.subr.mxu0 %v1063
    %4663 = vmatpush1.msra.mxu0 %v1062
    %4664 = vmatprep.subr.mxu0 %v1066
    %4665 = vmatpush1.msra.mxu0 %v1065
    %4666 = vmatprep.subr.mxu0 %v1069
    %4667 = vmatpush1.msra.mxu0 %v1068
    %4668 = vmatprep.subr.mxu0 %v1072
    %4669 = vmatpush1.msra.mxu0 %v1071
    %4670 = vmatprep.subr.mxu0 0.0
    %4671 = vmatpush1.msra.mxu0 0.0
    %4672 = vmatprep.subr.mxu0 0.0
    %4673 = vmatpush1.msra.mxu0 0.0
    %4674 = vmatprep.subr.mxu0 0.0
    %4675 = vmatpush1.msra.mxu0 0.0
    %4676 = vmatprep.subr.mxu0 0.0
    %4677 = vmatpush1.msra.mxu0 0.0
    %4678 = vmatprep.subr.mxu0 0.0
    %4679 = vmatpush1.msra.mxu0 0.0
    %4680 = vmatprep.subr.mxu0 0.0
    %4681 = vmatpush1.msra.mxu0 0.0
    %4682 = vmatprep.subr.mxu0 0.0
    %4683 = vmatpush1.msra.mxu0 0.0
    %4684 = vmatprep.subr.mxu0 0.0
    %4685 = vmatpush1.msra.mxu0 0.0
    %4686 = vmatprep.subr.mxu0 0.0
    %4687 = vmatpush1.msra.mxu0 0.0
    %4688 = vmatprep.subr.mxu0 0.0
    %4689 = vmatpush1.msra.mxu0 0.0
    %4690 = vmatprep.subr.mxu0 0.0
    %4691 = vmatpush1.msra.mxu0 0.0
    %4692 = vmatprep.subr.mxu0 0.0
    %4693 = vmatpush1.msra.mxu0 0.0
    %4694 = vmatprep.subr.mxu0 0.0
    %4695 = vmatpush1.msra.mxu0 0.0
    %4696 = vmatprep.subr.mxu0 0.0
    %4697 = vmatpush1.msra.mxu0 0.0
    %4698 = vmatprep.subr.mxu0 0.0
    %4699 = vmatpush1.msra.mxu0 0.0
    %4700 = vmatprep.subr.mxu0 0.0
    %4701 = vmatpush1.msra.mxu0 0.0
    %4702 = vmatprep.mubr.f32.mxu0 0.0
    %4703 = vmatmul.mubr.f32.gmra.mrb[0].mxu0 %v4463
    %v4704 = vpop.f32.mrb[0].mxu0
    %v4705 = vadd.f32 %v1096, %v4704
    %v4706 = vpop.f32.mrb[0].mxu0
    %v4707 = vadd.f32 %v1100, %v4706
    %4708 = vdwg.mxu0
    %4709 = vmatprep.subr.mxu0 0.0
    %4710 = vmatpush1.msra.mxu0 %v1028
    %4711 = vmatprep.subr.mxu0 0.0
    %4712 = vmatpush1.msra.mxu0 %v1031
    %4713 = vmatprep.subr.mxu0 0.0
    %4714 = vmatpush1.msra.mxu0 %v1034
    %4715 = vmatprep.subr.mxu0 0.0
    %4716 = vmatpush1.msra.mxu0 %v1037
    %4717 = vmatprep.subr.mxu0 0.0
    %4718 = vmatpush1.msra.mxu0 %v1040
    %4719 = vmatprep.subr.mxu0 0.0
    %4720 = vmatpush1.msra.mxu0 %v1043
    %4721 = vmatprep.subr.mxu0 0.0
    %4722 = vmatpush1.msra.mxu0 %v1046
    %4723 = vmatprep.subr.mxu0 0.0
    %4724 = vmatpush1.msra.mxu0 %v1049
    %4725 = vmatprep.subr.mxu0 0.0
    %4726 = vmatpush1.msra.mxu0 %v1052
    %4727 = vmatprep.subr.mxu0 0.0
    %4728 = vmatpush1.msra.mxu0 %v1055
    %4729 = vmatprep.subr.mxu0 0.0
    %4730 = vmatpush1.msra.mxu0 %v1058
    %4731 = vmatprep.subr.mxu0 0.0
    %4732 = vmatpush1.msra.mxu0 %v1061
    %4733 = vmatprep.subr.mxu0 0.0
    %4734 = vmatpush1.msra.mxu0 %v1064
    %4735 = vmatprep.subr.mxu0 0.0
    %4736 = vmatpush1.msra.mxu0 %v1067
    %4737 = vmatprep.subr.mxu0 0.0
    %4738 = vmatpush1.msra.mxu0 %v1070
    %4739 = vmatprep.subr.mxu0 0.0
    %4740 = vmatpush1.msra.mxu0 %v1073
    %4741 = vmatprep.subr.mxu0 0.0
    %4742 = vmatpush1.msra.mxu0 0.0
    %4743 = vmatprep.subr.mxu0 0.0
    %4744 = vmatpush1.msra.mxu0 0.0
    %4745 = vmatprep.subr.mxu0 0.0
    %4746 = vmatpush1.msra.mxu0 0.0
    %4747 = vmatprep.subr.mxu0 0.0
    %4748 = vmatpush1.msra.mxu0 0.0
    %4749 = vmatprep.subr.mxu0 0.0
    %4750 = vmatpush1.msra.mxu0 0.0
    %4751 = vmatprep.subr.mxu0 0.0
    %4752 = vmatpush1.msra.mxu0 0.0
    %4753 = vmatprep.subr.mxu0 0.0
    %4754 = vmatpush1.msra.mxu0 0.0
    %4755 = vmatprep.subr.mxu0 0.0
    %4756 = vmatpush1.msra.mxu0 0.0
    %4757 = vmatprep.subr.mxu0 0.0
    %4758 = vmatpush1.msra.mxu0 0.0
    %4759 = vmatprep.subr.mxu0 0.0
    %4760 = vmatpush1.msra.mxu0 0.0
    %4761 = vmatprep.subr.mxu0 0.0
    %4762 = vmatpush1.msra.mxu0 0.0
    %4763 = vmatprep.subr.mxu0 0.0
    %4764 = vmatpush1.msra.mxu0 0.0
    %4765 = vmatprep.subr.mxu0 0.0
    %4766 = vmatpush1.msra.mxu0 0.0
    %4767 = vmatprep.subr.mxu0 0.0
    %4768 = vmatpush1.msra.mxu0 0.0
    %4769 = vmatprep.subr.mxu0 0.0
    %4770 = vmatpush1.msra.mxu0 0.0
    %4771 = vmatprep.subr.mxu0 0.0
    %4772 = vmatpush1.msra.mxu0 0.0
    %4773 = vmatprep.mubr.f32.mxu0 0.0
    %4774 = vmatmul.mubr.f32.gmra.mrb[0].mxu0 %v4463
    %v4775 = vpop.f32.mrb[0].mxu0
    %v4776 = vadd.f32 %v1104, %v4775
    %v4777 = vpop.f32.mrb[0].mxu0
    %4778 = vdwg.mxu0
    %v4779 = vadd.f32 %v4635, %v4705
    %v4780 = vsub.f32 0.0, %v4779
    %v4781 = vmul.f32 %v4780, 1.442695
    %v4782 = vpow.pop %v4781
    %v4783 = vadd.f32 %v4782, 1.0
    %v4784 = vrcp.pop %v4783
    %v4785 = vmul.f32 1.0, %v4784
    %v4786 = vadd.f32 %v4636, %v4707
    %v4787 = vsub.f32 0.0, %v4786
    %v4788 = vmul.f32 %v4787, 1.442695
    %v4789 = vpow.pop %v4788
    %v4790 = vadd.f32 %v4789, 1.0
    %v4791 = vrcp.pop %v4790
    %v4792 = vmul.f32 1.0, %v4791
    %v4793 = vmul.f32 %v4785, %v4776
    %v4794 = vadd.f32 %v4637, %v4793
    %v4795 = vtanh.pop %v4794
    %v4796 = vsub.f32 1.0, %v4792
    %v4797 = vmul.f32 %v4796, %v4795
    %v4798 = vmul.f32 %v4792, %v4463
    %v4799 = vadd.f32 %v4797, %v4798
    %s4800 = scalar_lea.vmem [#allocation5], 40
    %4801 = vst [vmem:[%s4800] sm:$0xff] %v4799
    %s4802 = scalar_lea.vmem [#allocation2], 264
    %v4803 = vld [vmem:[%s4802] sm:$0xff]
    %v4804 = vld [vmem:[%s4802 + $0x8] sm:$0xff]
    %v4805 = vld [vmem:[%s4802 + $0x10] sm:$0xff]
    %4806 = vmatprep.subr.mxu0 %v979
    %4807 = vmatpush1.msra.mxu0 %v978
    %4808 = vmatprep.subr.mxu0 %v982
    %4809 = vmatpush1.msra.mxu0 %v981
    %4810 = vmatprep.subr.mxu0 %v985
    %4811 = vmatpush1.msra.mxu0 %v984
    %4812 = vmatprep.subr.mxu0 %v988
    %4813 = vmatpush1.msra.mxu0 %v987
    %4814 = vmatprep.subr.mxu0 %v991
    %4815 = vmatpush1.msra.mxu0 %v990
    %4816 = vmatprep.subr.mxu0 %v994
    %4817 = vmatpush1.msra.mxu0 %v993
    %4818 = vmatprep.subr.mxu0 %v997
    %4819 = vmatpush1.msra.mxu0 %v996
    %4820 = vmatprep.subr.mxu0 %v1000
    %4821 = vmatpush1.msra.mxu0 %v999
    %4822 = vmatprep.subr.mxu0 %v1003
    %4823 = vmatpush1.msra.mxu0 %v1002
    %4824 = vmatprep.subr.mxu0 %v1006
    %4825 = vmatpush1.msra.mxu0 %v1005
    %4826 = vmatprep.subr.mxu0 %v1009
    %4827 = vmatpush1.msra.mxu0 %v1008
    %4828 = vmatprep.subr.mxu0 %v1012
    %4829 = vmatpush1.msra.mxu0 %v1011
    %4830 = vmatprep.subr.mxu0 %v1015
    %4831 = vmatpush1.msra.mxu0 %v1014
    %4832 = vmatprep.subr.mxu0 %v1018
    %4833 = vmatpush1.msra.mxu0 %v1017
    %4834 = vmatprep.subr.mxu0 %v1021
    %4835 = vmatpush1.msra.mxu0 %v1020
    %4836 = vmatprep.subr.mxu0 %v1024
    %4837 = vmatpush1.msra.mxu0 %v1023
    %4838 = vmatprep.subr.mxu0 0.0
    %4839 = vmatpush1.msra.mxu0 0.0
    %4840 = vmatprep.subr.mxu0 0.0
    %4841 = vmatpush1.msra.mxu0 0.0
    %4842 = vmatprep.subr.mxu0 0.0
    %4843 = vmatpush1.msra.mxu0 0.0
    %4844 = vmatprep.subr.mxu0 0.0
    %4845 = vmatpush1.msra.mxu0 0.0
    %4846 = vmatprep.subr.mxu0 0.0
    %4847 = vmatpush1.msra.mxu0 0.0
    %4848 = vmatprep.subr.mxu0 0.0
    %4849 = vmatpush1.msra.mxu0 0.0
    %4850 = vmatprep.subr.mxu0 0.0
    %4851 = vmatpush1.msra.mxu0 0.0
    %4852 = vmatprep.subr.mxu0 0.0
    %4853 = vmatpush1.msra.mxu0 0.0
    %4854 = vmatprep.subr.mxu0 0.0
    %4855 = vmatpush1.msra.mxu0 0.0
    %4856 = vmatprep.subr.mxu0 0.0
    %4857 = vmatpush1.msra.mxu0 0.0
    %4858 = vmatprep.subr.mxu0 0.0
    %4859 = vmatpush1.msra.mxu0 0.0
    %4860 = vmatprep.subr.mxu0 0.0
    %4861 = vmatpush1.msra.mxu0 0.0
    %4862 = vmatprep.subr.mxu0 0.0
    %4863 = vmatpush1.msra.mxu0 0.0
    %4864 = vmatprep.subr.mxu0 0.0
    %4865 = vmatpush1.msra.mxu0 0.0
    %4866 = vmatprep.subr.mxu0 0.0
    %4867 = vmatpush1.msra.mxu0 0.0
    %4868 = vmatprep.subr.mxu0 0.0
    %4869 = vmatpush1.msra.mxu0 0.0
    %4870 = vmatprep.mubr.f32.mxu0 0.0
    %4871 = vmatmul.mubr.f32.gmra.mrb[0].mxu0 %v4631
    %v4872 = vpop.f32.mrb[0].mxu0
    %v4873 = vadd.f32 %v1079, %v4872
    %v4874 = vpop.f32.mrb[0].mxu0
    %v4875 = vadd.f32 %v1083, %v4874
    %4876 = vdwg.mxu0
    %4877 = vmatprep.subr.mxu0 0.0
    %4878 = vmatpush1.msra.mxu0 %v980
    %4879 = vmatprep.subr.mxu0 0.0
    %4880 = vmatpush1.msra.mxu0 %v983
    %4881 = vmatprep.subr.mxu0 0.0
    %4882 = vmatpush1.msra.mxu0 %v986
    %4883 = vmatprep.subr.mxu0 0.0
    %4884 = vmatpush1.msra.mxu0 %v989
    %4885 = vmatprep.subr.mxu0 0.0
    %4886 = vmatpush1.msra.mxu0 %v992
    %4887 = vmatprep.subr.mxu0 0.0
    %4888 = vmatpush1.msra.mxu0 %v995
    %4889 = vmatprep.subr.mxu0 0.0
    %4890 = vmatpush1.msra.mxu0 %v998
    %4891 = vmatprep.subr.mxu0 0.0
    %4892 = vmatpush1.msra.mxu0 %v1001
    %4893 = vmatprep.subr.mxu0 0.0
    %4894 = vmatpush1.msra.mxu0 %v1004
    %4895 = vmatprep.subr.mxu0 0.0
    %4896 = vmatpush1.msra.mxu0 %v1007
    %4897 = vmatprep.subr.mxu0 0.0
    %4898 = vmatpush1.msra.mxu0 %v1010
    %4899 = vmatprep.subr.mxu0 0.0
    %4900 = vmatpush1.msra.mxu0 %v1013
    %4901 = vmatprep.subr.mxu0 0.0
    %4902 = vmatpush1.msra.mxu0 %v1016
    %4903 = vmatprep.subr.mxu0 0.0
    %4904 = vmatpush1.msra.mxu0 %v1019
    %4905 = vmatprep.subr.mxu0 0.0
    %4906 = vmatpush1.msra.mxu0 %v1022
    %4907 = vmatprep.subr.mxu0 0.0
    %4908 = vmatpush1.msra.mxu0 %v1025
    %4909 = vmatprep.subr.mxu0 0.0
    %4910 = vmatpush1.msra.mxu0 0.0
    %4911 = vmatprep.subr.mxu0 0.0
    %4912 = vmatpush1.msra.mxu0 0.0
    %4913 = vmatprep.subr.mxu0 0.0
    %4914 = vmatpush1.msra.mxu0 0.0
    %4915 = vmatprep.subr.mxu0 0.0
    %4916 = vmatpush1.msra.mxu0 0.0
    %4917 = vmatprep.subr.mxu0 0.0
    %4918 = vmatpush1.msra.mxu0 0.0
    %4919 = vmatprep.subr.mxu0 0.0
    %4920 = vmatpush1.msra.mxu0 0.0
    %4921 = vmatprep.subr.mxu0 0.0
    %4922 = vmatpush1.msra.mxu0 0.0
    %4923 = vmatprep.subr.mxu0 0.0
    %4924 = vmatpush1.msra.mxu0 0.0
    %4925 = vmatprep.subr.mxu0 0.0
    %4926 = vmatpush1.msra.mxu0 0.0
    %4927 = vmatprep.subr.mxu0 0.0
    %4928 = vmatpush1.msra.mxu0 0.0
    %4929 = vmatprep.subr.mxu0 0.0
    %4930 = vmatpush1.msra.mxu0 0.0
    %4931 = vmatprep.subr.mxu0 0.0
    %4932 = vmatpush1.msra.mxu0 0.0
    %4933 = vmatprep.subr.mxu0 0.0
    %4934 = vmatpush1.msra.mxu0 0.0
    %4935 = vmatprep.subr.mxu0 0.0
    %4936 = vmatpush1.msra.mxu0 0.0
    %4937 = vmatprep.subr.mxu0 0.0
    %4938 = vmatpush1.msra.mxu0 0.0
    %4939 = vmatprep.subr.mxu0 0.0
    %4940 = vmatpush1.msra.mxu0 0.0
    %4941 = vmatprep.mubr.f32.mxu0 0.0
    %4942 = vmatmul.mubr.f32.gmra.mrb[0].mxu0 %v4631
    %v4943 = vpop.f32.mrb[0].mxu0
    %v4944 = vadd.f32 %v1087, %v4943
    %v4945 = vpop.f32.mrb[0].mxu0
    %4946 = vdwg.mxu0
    %v4947 = vadd.f32 %v4803, %v4873
    %v4948 = vsub.f32 0.0, %v4947
    %v4949 = vmul.f32 %v4948, 1.442695
    %v4950 = vpow.pop %v4949
    %v4951 = vadd.f32 %v4950, 1.0
    %v4952 = vrcp.pop %v4951
    %v4953 = vmul.f32 1.0, %v4952
    %v4954 = vadd.f32 %v4804, %v4875
    %v4955 = vsub.f32 0.0, %v4954
    %v4956 = vmul.f32 %v4955, 1.442695
    %v4957 = vpow.pop %v4956
    %v4958 = vadd.f32 %v4957, 1.0
    %v4959 = vrcp.pop %v4958
    %v4960 = vmul.f32 1.0, %v4959
    %v4961 = vmul.f32 %v4953, %v4944
    %v4962 = vadd.f32 %v4805, %v4961
    %v4963 = vtanh.pop %v4962
    %v4964 = vsub.f32 1.0, %v4960
    %v4965 = vmul.f32 %v4964, %v4963
    %v4966 = vmul.f32 %v4960, %v4631
    %v4967 = vadd.f32 %v4965, %v4966
    %s4968 = scalar_lea.vmem [#allocation4], 88
    %4969 = vst [vmem:[%s4968] sm:$0xff] %v4967
    %s4970 = scalar_lea.vmem [#allocation3], 96
    %v4971 = vld [vmem:[%s4970] sm:$0xff]
    %v4972 = vld [vmem:[%s4970 + $0x8] sm:$0xff]
    %v4973 = vld [vmem:[%s4970 + $0x10] sm:$0xff]
    %4974 = vmatprep.subr.mxu0 %v1027
    %4975 = vmatpush1.msra.mxu0 %v1026
    %4976 = vmatprep.subr.mxu0 %v1030
    %4977 = vmatpush1.msra.mxu0 %v1029
    %4978 = vmatprep.subr.mxu0 %v1033
    %4979 = vmatpush1.msra.mxu0 %v1032
    %4980 = vmatprep.subr.mxu0 %v1036
    %4981 = vmatpush1.msra.mxu0 %v1035
    %4982 = vmatprep.subr.mxu0 %v1039
    %4983 = vmatpush1.msra.mxu0 %v1038
    %4984 = vmatprep.subr.mxu0 %v1042
    %4985 = vmatpush1.msra.mxu0 %v1041
    %4986 = vmatprep.subr.mxu0 %v1045
    %4987 = vmatpush1.msra.mxu0 %v1044
    %4988 = vmatprep.subr.mxu0 %v1048
    %4989 = vmatpush1.msra.mxu0 %v1047
    %4990 = vmatprep.subr.mxu0 %v1051
    %4991 = vmatpush1.msra.mxu0 %v1050
    %4992 = vmatprep.subr.mxu0 %v1054
    %4993 = vmatpush1.msra.mxu0 %v1053
    %4994 = vmatprep.subr.mxu0 %v1057
    %4995 = vmatpush1.msra.mxu0 %v1056
    %4996 = vmatprep.subr.mxu0 %v1060
    %4997 = vmatpush1.msra.mxu0 %v1059
    %4998 = vmatprep.subr.mxu0 %v1063
    %4999 = vmatpush1.msra.mxu0 %v1062
    %5000 = vmatprep.subr.mxu0 %v1066
    %5001 = vmatpush1.msra.mxu0 %v1065
    %5002 = vmatprep.subr.mxu0 %v1069
    %5003 = vmatpush1.msra.mxu0 %v1068
    %5004 = vmatprep.subr.mxu0 %v1072
    %5005 = vmatpush1.msra.mxu0 %v1071
    %5006 = vmatprep.subr.mxu0 0.0
    %5007 = vmatpush1.msra.mxu0 0.0
    %5008 = vmatprep.subr.mxu0 0.0
    %5009 = vmatpush1.msra.mxu0 0.0
    %5010 = vmatprep.subr.mxu0 0.0
    %5011 = vmatpush1.msra.mxu0 0.0
    %5012 = vmatprep.subr.mxu0 0.0
    %5013 = vmatpush1.msra.mxu0 0.0
    %5014 = vmatprep.subr.mxu0 0.0
    %5015 = vmatpush1.msra.mxu0 0.0
    %5016 = vmatprep.subr.mxu0 0.0
    %5017 = vmatpush1.msra.mxu0 0.0
    %5018 = vmatprep.subr.mxu0 0.0
    %5019 = vmatpush1.msra.mxu0 0.0
    %5020 = vmatprep.subr.mxu0 0.0
    %5021 = vmatpush1.msra.mxu0 0.0
    %5022 = vmatprep.subr.mxu0 0.0
    %5023 = vmatpush1.msra.mxu0 0.0
    %5024 = vmatprep.subr.mxu0 0.0
    %5025 = vmatpush1.msra.mxu0 0.0
    %5026 = vmatprep.subr.mxu0 0.0
    %5027 = vmatpush1.msra.mxu0 0.0
    %5028 = vmatprep.subr.mxu0 0.0
    %5029 = vmatpush1.msra.mxu0 0.0
    %5030 = vmatprep.subr.mxu0 0.0
    %5031 = vmatpush1.msra.mxu0 0.0
    %5032 = vmatprep.subr.mxu0 0.0
    %5033 = vmatpush1.msra.mxu0 0.0
    %5034 = vmatprep.subr.mxu0 0.0
    %5035 = vmatpush1.msra.mxu0 0.0
    %5036 = vmatprep.subr.mxu0 0.0
    %5037 = vmatpush1.msra.mxu0 0.0
    %5038 = vmatprep.mubr.f32.mxu0 0.0
    %5039 = vmatmul.mubr.f32.gmra.mrb[0].mxu0 %v4799
    %v5040 = vpop.f32.mrb[0].mxu0
    %v5041 = vadd.f32 %v1096, %v5040
    %v5042 = vpop.f32.mrb[0].mxu0
    %v5043 = vadd.f32 %v1100, %v5042
    %5044 = vdwg.mxu0
    %5045 = vmatprep.subr.mxu0 0.0
    %5046 = vmatpush1.msra.mxu0 %v1028
    %5047 = vmatprep.subr.mxu0 0.0
    %5048 = vmatpush1.msra.mxu0 %v1031
    %5049 = vmatprep.subr.mxu0 0.0
    %5050 = vmatpush1.msra.mxu0 %v1034
    %5051 = vmatprep.subr.mxu0 0.0
    %5052 = vmatpush1.msra.mxu0 %v1037
    %5053 = vmatprep.subr.mxu0 0.0
    %5054 = vmatpush1.msra.mxu0 %v1040
    %5055 = vmatprep.subr.mxu0 0.0
    %5056 = vmatpush1.msra.mxu0 %v1043
    %5057 = vmatprep.subr.mxu0 0.0
    %5058 = vmatpush1.msra.mxu0 %v1046
    %5059 = vmatprep.subr.mxu0 0.0
    %5060 = vmatpush1.msra.mxu0 %v1049
    %5061 = vmatprep.subr.mxu0 0.0
    %5062 = vmatpush1.msra.mxu0 %v1052
    %5063 = vmatprep.subr.mxu0 0.0
    %5064 = vmatpush1.msra.mxu0 %v1055
    %5065 = vmatprep.subr.mxu0 0.0
    %5066 = vmatpush1.msra.mxu0 %v1058
    %5067 = vmatprep.subr.mxu0 0.0
    %5068 = vmatpush1.msra.mxu0 %v1061
    %5069 = vmatprep.subr.mxu0 0.0
    %5070 = vmatpush1.msra.mxu0 %v1064
    %5071 = vmatprep.subr.mxu0 0.0
    %5072 = vmatpush1.msra.mxu0 %v1067
    %5073 = vmatprep.subr.mxu0 0.0
    %5074 = vmatpush1.msra.mxu0 %v1070
    %5075 = vmatprep.subr.mxu0 0.0
    %5076 = vmatpush1.msra.mxu0 %v1073
    %5077 = vmatprep.subr.mxu0 0.0
    %5078 = vmatpush1.msra.mxu0 0.0
    %5079 = vmatprep.subr.mxu0 0.0
    %5080 = vmatpush1.msra.mxu0 0.0
    %5081 = vmatprep.subr.mxu0 0.0
    %5082 = vmatpush1.msra.mxu0 0.0
    %5083 = vmatprep.subr.mxu0 0.0
    %5084 = vmatpush1.msra.mxu0 0.0
    %5085 = vmatprep.subr.mxu0 0.0
    %5086 = vmatpush1.msra.mxu0 0.0
    %5087 = vmatprep.subr.mxu0 0.0
    %5088 = vmatpush1.msra.mxu0 0.0
    %5089 = vmatprep.subr.mxu0 0.0
    %5090 = vmatpush1.msra.mxu0 0.0
    %5091 = vmatprep.subr.mxu0 0.0
    %5092 = vmatpush1.msra.mxu0 0.0
    %5093 = vmatprep.subr.mxu0 0.0
    %5094 = vmatpush1.msra.mxu0 0.0
    %5095 = vmatprep.subr.mxu0 0.0
    %5096 = vmatpush1.msra.mxu0 0.0
    %5097 = vmatprep.subr.mxu0 0.0
    %5098 = vmatpush1.msra.mxu0 0.0
    %5099 = vmatprep.subr.mxu0 0.0
    %5100 = vmatpush1.msra.mxu0 0.0
    %5101 = vmatprep.subr.mxu0 0.0
    %5102 = vmatpush1.msra.mxu0 0.0
    %5103 = vmatprep.subr.mxu0 0.0
    %5104 = vmatpush1.msra.mxu0 0.0
    %5105 = vmatprep.subr.mxu0 0.0
    %5106 = vmatpush1.msra.mxu0 0.0
    %5107 = vmatprep.subr.mxu0 0.0
    %5108 = vmatpush1.msra.mxu0 0.0
    %5109 = vmatprep.mubr.f32.mxu0 0.0
    %5110 = vmatmul.mubr.f32.gmra.mrb[0].mxu0 %v4799
    %v5111 = vpop.f32.mrb[0].mxu0
    %v5112 = vadd.f32 %v1104, %v5111
    %v5113 = vpop.f32.mrb[0].mxu0
    %5114 = vdwg.mxu0
    %v5115 = vadd.f32 %v4971, %v5041
    %v5116 = vsub.f32 0.0, %v5115
    %v5117 = vmul.f32 %v5116, 1.442695
    %v5118 = vpow.pop %v5117
    %v5119 = vadd.f32 %v5118, 1.0
    %v5120 = vrcp.pop %v5119
    %v5121 = vmul.f32 1.0, %v5120
    %v5122 = vadd.f32 %v4972, %v5043
    %v5123 = vsub.f32 0.0, %v5122
    %v5124 = vmul.f32 %v5123, 1.442695
    %v5125 = vpow.pop %v5124
    %v5126 = vadd.f32 %v5125, 1.0
    %v5127 = vrcp.pop %v5126
    %v5128 = vmul.f32 1.0, %v5127
    %v5129 = vmul.f32 %v5121, %v5112
    %v5130 = vadd.f32 %v4973, %v5129
    %v5131 = vtanh.pop %v5130
    %v5132 = vsub.f32 1.0, %v5128
    %v5133 = vmul.f32 %v5132, %v5131
    %v5134 = vmul.f32 %v5128, %v4799
    %v5135 = vadd.f32 %v5133, %v5134
    %s5136 = scalar_lea.vmem [#allocation5], 32
    %5137 = vst [vmem:[%s5136] sm:$0xff] %v5135
    %s5138 = scalar_lea.vmem [#allocation2], 288
    %v5139 = vld [vmem:[%s5138] sm:$0xff]
    %v5140 = vld [vmem:[%s5138 + $0x8] sm:$0xff]
    %v5141 = vld [vmem:[%s5138 + $0x10] sm:$0xff]
    %5142 = vmatprep.subr.mxu0 %v979
    %5143 = vmatpush1.msra.mxu0 %v978
    %5144 = vmatprep.subr.mxu0 %v982
    %5145 = vmatpush1.msra.mxu0 %v981
    %5146 = vmatprep.subr.mxu0 %v985
    %5147 = vmatpush1.msra.mxu0 %v984
    %5148 = vmatprep.subr.mxu0 %v988
    %5149 = vmatpush1.msra.mxu0 %v987
    %5150 = vmatprep.subr.mxu0 %v991
    %5151 = vmatpush1.msra.mxu0 %v990
    %5152 = vmatprep.subr.mxu0 %v994
    %5153 = vmatpush1.msra.mxu0 %v993
    %5154 = vmatprep.subr.mxu0 %v997
    %5155 = vmatpush1.msra.mxu0 %v996
    %5156 = vmatprep.subr.mxu0 %v1000
    %5157 = vmatpush1.msra.mxu0 %v999
    %5158 = vmatprep.subr.mxu0 %v1003
    %5159 = vmatpush1.msra.mxu0 %v1002
    %5160 = vmatprep.subr.mxu0 %v1006
    %5161 = vmatpush1.msra.mxu0 %v1005
    %5162 = vmatprep.subr.mxu0 %v1009
    %5163 = vmatpush1.msra.mxu0 %v1008
    %5164 = vmatprep.subr.mxu0 %v1012
    %5165 = vmatpush1.msra.mxu0 %v1011
    %5166 = vmatprep.subr.mxu0 %v1015
    %5167 = vmatpush1.msra.mxu0 %v1014
    %5168 = vmatprep.subr.mxu0 %v1018
    %5169 = vmatpush1.msra.mxu0 %v1017
    %5170 = vmatprep.subr.mxu0 %v1021
    %5171 = vmatpush1.msra.mxu0 %v1020
    %5172 = vmatprep.subr.mxu0 %v1024
    %5173 = vmatpush1.msra.mxu0 %v1023
    %5174 = vmatprep.subr.mxu0 0.0
    %5175 = vmatpush1.msra.mxu0 0.0
    %5176 = vmatprep.subr.mxu0 0.0
    %5177 = vmatpush1.msra.mxu0 0.0
    %5178 = vmatprep.subr.mxu0 0.0
    %5179 = vmatpush1.msra.mxu0 0.0
    %5180 = vmatprep.subr.mxu0 0.0
    %5181 = vmatpush1.msra.mxu0 0.0
    %5182 = vmatprep.subr.mxu0 0.0
    %5183 = vmatpush1.msra.mxu0 0.0
    %5184 = vmatprep.subr.mxu0 0.0
    %5185 = vmatpush1.msra.mxu0 0.0
    %5186 = vmatprep.subr.mxu0 0.0
    %5187 = vmatpush1.msra.mxu0 0.0
    %5188 = vmatprep.subr.mxu0 0.0
    %5189 = vmatpush1.msra.mxu0 0.0
    %5190 = vmatprep.subr.mxu0 0.0
    %5191 = vmatpush1.msra.mxu0 0.0
    %5192 = vmatprep.subr.mxu0 0.0
    %5193 = vmatpush1.msra.mxu0 0.0
    %5194 = vmatprep.subr.mxu0 0.0
    %5195 = vmatpush1.msra.mxu0 0.0
    %5196 = vmatprep.subr.mxu0 0.0
    %5197 = vmatpush1.msra.mxu0 0.0
    %5198 = vmatprep.subr.mxu0 0.0
    %5199 = vmatpush1.msra.mxu0 0.0
    %5200 = vmatprep.subr.mxu0 0.0
    %5201 = vmatpush1.msra.mxu0 0.0
    %5202 = vmatprep.subr.mxu0 0.0
    %5203 = vmatpush1.msra.mxu0 0.0
    %5204 = vmatprep.subr.mxu0 0.0
    %5205 = vmatpush1.msra.mxu0 0.0
    %5206 = vmatprep.mubr.f32.mxu0 0.0
    %5207 = vmatmul.mubr.f32.gmra.mrb[0].mxu0 %v4967
    %v5208 = vpop.f32.mrb[0].mxu0
    %v5209 = vadd.f32 %v1079, %v5208
    %v5210 = vpop.f32.mrb[0].mxu0
    %v5211 = vadd.f32 %v1083, %v5210
    %5212 = vdwg.mxu0
    %5213 = vmatprep.subr.mxu0 0.0
    %5214 = vmatpush1.msra.mxu0 %v980
    %5215 = vmatprep.subr.mxu0 0.0
    %5216 = vmatpush1.msra.mxu0 %v983
    %5217 = vmatprep.subr.mxu0 0.0
    %5218 = vmatpush1.msra.mxu0 %v986
    %5219 = vmatprep.subr.mxu0 0.0
    %5220 = vmatpush1.msra.mxu0 %v989
    %5221 = vmatprep.subr.mxu0 0.0
    %5222 = vmatpush1.msra.mxu0 %v992
    %5223 = vmatprep.subr.mxu0 0.0
    %5224 = vmatpush1.msra.mxu0 %v995
    %5225 = vmatprep.subr.mxu0 0.0
    %5226 = vmatpush1.msra.mxu0 %v998
    %5227 = vmatprep.subr.mxu0 0.0
    %5228 = vmatpush1.msra.mxu0 %v1001
    %5229 = vmatprep.subr.mxu0 0.0
    %5230 = vmatpush1.msra.mxu0 %v1004
    %5231 = vmatprep.subr.mxu0 0.0
    %5232 = vmatpush1.msra.mxu0 %v1007
    %5233 = vmatprep.subr.mxu0 0.0
    %5234 = vmatpush1.msra.mxu0 %v1010
    %5235 = vmatprep.subr.mxu0 0.0
    %5236 = vmatpush1.msra.mxu0 %v1013
    %5237 = vmatprep.subr.mxu0 0.0
    %5238 = vmatpush1.msra.mxu0 %v1016
    %5239 = vmatprep.subr.mxu0 0.0
    %5240 = vmatpush1.msra.mxu0 %v1019
    %5241 = vmatprep.subr.mxu0 0.0
    %5242 = vmatpush1.msra.mxu0 %v1022
    %5243 = vmatprep.subr.mxu0 0.0
    %5244 = vmatpush1.msra.mxu0 %v1025
    %5245 = vmatprep.subr.mxu0 0.0
    %5246 = vmatpush1.msra.mxu0 0.0
    %5247 = vmatprep.subr.mxu0 0.0
    %5248 = vmatpush1.msra.mxu0 0.0
    %5249 = vmatprep.subr.mxu0 0.0
    %5250 = vmatpush1.msra.mxu0 0.0
    %5251 = vmatprep.subr.mxu0 0.0
    %5252 = vmatpush1.msra.mxu0 0.0
    %5253 = vmatprep.subr.mxu0 0.0
    %5254 = vmatpush1.msra.mxu0 0.0
    %5255 = vmatprep.subr.mxu0 0.0
    %5256 = vmatpush1.msra.mxu0 0.0
    %5257 = vmatprep.subr.mxu0 0.0
    %5258 = vmatpush1.msra.mxu0 0.0
    %5259 = vmatprep.subr.mxu0 0.0
    %5260 = vmatpush1.msra.mxu0 0.0
    %5261 = vmatprep.subr.mxu0 0.0
    %5262 = vmatpush1.msra.mxu0 0.0
    %5263 = vmatprep.subr.mxu0 0.0
    %5264 = vmatpush1.msra.mxu0 0.0
    %5265 = vmatprep.subr.mxu0 0.0
    %5266 = vmatpush1.msra.mxu0 0.0
    %5267 = vmatprep.subr.mxu0 0.0
    %5268 = vmatpush1.msra.mxu0 0.0
    %5269 = vmatprep.subr.mxu0 0.0
    %5270 = vmatpush1.msra.mxu0 0.0
    %5271 = vmatprep.subr.mxu0 0.0
    %5272 = vmatpush1.msra.mxu0 0.0
    %5273 = vmatprep.subr.mxu0 0.0
    %5274 = vmatpush1.msra.mxu0 0.0
    %5275 = vmatprep.subr.mxu0 0.0
    %5276 = vmatpush1.msra.mxu0 0.0
    %5277 = vmatprep.mubr.f32.mxu0 0.0
    %5278 = vmatmul.mubr.f32.gmra.mrb[0].mxu0 %v4967
    %v5279 = vpop.f32.mrb[0].mxu0
    %v5280 = vadd.f32 %v1087, %v5279
    %v5281 = vpop.f32.mrb[0].mxu0
    %5282 = vdwg.mxu0
    %v5283 = vadd.f32 %v5139, %v5209
    %v5284 = vsub.f32 0.0, %v5283
    %v5285 = vmul.f32 %v5284, 1.442695
    %v5286 = vpow.pop %v5285
    %v5287 = vadd.f32 %v5286, 1.0
    %v5288 = vrcp.pop %v5287
    %v5289 = vmul.f32 1.0, %v5288
    %v5290 = vadd.f32 %v5140, %v5211
    %v5291 = vsub.f32 0.0, %v5290
    %v5292 = vmul.f32 %v5291, 1.442695
    %v5293 = vpow.pop %v5292
    %v5294 = vadd.f32 %v5293, 1.0
    %v5295 = vrcp.pop %v5294
    %v5296 = vmul.f32 1.0, %v5295
    %v5297 = vmul.f32 %v5289, %v5280
    %v5298 = vadd.f32 %v5141, %v5297
    %v5299 = vtanh.pop %v5298
    %v5300 = vsub.f32 1.0, %v5296
    %v5301 = vmul.f32 %v5300, %v5299
    %v5302 = vmul.f32 %v5296, %v4967
    %v5303 = vadd.f32 %v5301, %v5302
    %s5304 = scalar_lea.vmem [#allocation4], 96
    %5305 = vst [vmem:[%s5304] sm:$0xff] %v5303
    %s5306 = scalar_lea.vmem [#allocation3], 72
    %v5307 = vld [vmem:[%s5306] sm:$0xff]
    %v5308 = vld [vmem:[%s5306 + $0x8] sm:$0xff]
    %v5309 = vld [vmem:[%s5306 + $0x10] sm:$0xff]
    %5310 = vmatprep.subr.mxu0 %v1027
    %5311 = vmatpush1.msra.mxu0 %v1026
    %5312 = vmatprep.subr.mxu0 %v1030
    %5313 = vmatpush1.msra.mxu0 %v1029
    %5314 = vmatprep.subr.mxu0 %v1033
    %5315 = vmatpush1.msra.mxu0 %v1032
    %5316 = vmatprep.subr.mxu0 %v1036
    %5317 = vmatpush1.msra.mxu0 %v1035
    %5318 = vmatprep.subr.mxu0 %v1039
    %5319 = vmatpush1.msra.mxu0 %v1038
    %5320 = vmatprep.subr.mxu0 %v1042
    %5321 = vmatpush1.msra.mxu0 %v1041
    %5322 = vmatprep.subr.mxu0 %v1045
    %5323 = vmatpush1.msra.mxu0 %v1044
    %5324 = vmatprep.subr.mxu0 %v1048
    %5325 = vmatpush1.msra.mxu0 %v1047
    %5326 = vmatprep.subr.mxu0 %v1051
    %5327 = vmatpush1.msra.mxu0 %v1050
    %5328 = vmatprep.subr.mxu0 %v1054
    %5329 = vmatpush1.msra.mxu0 %v1053
    %5330 = vmatprep.subr.mxu0 %v1057
    %5331 = vmatpush1.msra.mxu0 %v1056
    %5332 = vmatprep.subr.mxu0 %v1060
    %5333 = vmatpush1.msra.mxu0 %v1059
    %5334 = vmatprep.subr.mxu0 %v1063
    %5335 = vmatpush1.msra.mxu0 %v1062
    %5336 = vmatprep.subr.mxu0 %v1066
    %5337 = vmatpush1.msra.mxu0 %v1065
    %5338 = vmatprep.subr.mxu0 %v1069
    %5339 = vmatpush1.msra.mxu0 %v1068
    %5340 = vmatprep.subr.mxu0 %v1072
    %5341 = vmatpush1.msra.mxu0 %v1071
    %5342 = vmatprep.subr.mxu0 0.0
    %5343 = vmatpush1.msra.mxu0 0.0
    %5344 = vmatprep.subr.mxu0 0.0
    %5345 = vmatpush1.msra.mxu0 0.0
    %5346 = vmatprep.subr.mxu0 0.0
    %5347 = vmatpush1.msra.mxu0 0.0
    %5348 = vmatprep.subr.mxu0 0.0
    %5349 = vmatpush1.msra.mxu0 0.0
    %5350 = vmatprep.subr.mxu0 0.0
    %5351 = vmatpush1.msra.mxu0 0.0
    %5352 = vmatprep.subr.mxu0 0.0
    %5353 = vmatpush1.msra.mxu0 0.0
    %5354 = vmatprep.subr.mxu0 0.0
    %5355 = vmatpush1.msra.mxu0 0.0
    %5356 = vmatprep.subr.mxu0 0.0
    %5357 = vmatpush1.msra.mxu0 0.0
    %5358 = vmatprep.subr.mxu0 0.0
    %5359 = vmatpush1.msra.mxu0 0.0
    %5360 = vmatprep.subr.mxu0 0.0
    %5361 = vmatpush1.msra.mxu0 0.0
    %5362 = vmatprep.subr.mxu0 0.0
    %5363 = vmatpush1.msra.mxu0 0.0
    %5364 = vmatprep.subr.mxu0 0.0
    %5365 = vmatpush1.msra.mxu0 0.0
    %5366 = vmatprep.subr.mxu0 0.0
    %5367 = vmatpush1.msra.mxu0 0.0
    %5368 = vmatprep.subr.mxu0 0.0
    %5369 = vmatpush1.msra.mxu0 0.0
    %5370 = vmatprep.subr.mxu0 0.0
    %5371 = vmatpush1.msra.mxu0 0.0
    %5372 = vmatprep.subr.mxu0 0.0
    %5373 = vmatpush1.msra.mxu0 0.0
    %5374 = vmatprep.mubr.f32.mxu0 0.0
    %5375 = vmatmul.mubr.f32.gmra.mrb[0].mxu0 %v5135
    %v5376 = vpop.f32.mrb[0].mxu0
    %v5377 = vadd.f32 %v1096, %v5376
    %v5378 = vpop.f32.mrb[0].mxu0
    %v5379 = vadd.f32 %v1100, %v5378
    %5380 = vdwg.mxu0
    %5381 = vmatprep.subr.mxu0 0.0
    %5382 = vmatpush1.msra.mxu0 %v1028
    %5383 = vmatprep.subr.mxu0 0.0
    %5384 = vmatpush1.msra.mxu0 %v1031
    %5385 = vmatprep.subr.mxu0 0.0
    %5386 = vmatpush1.msra.mxu0 %v1034
    %5387 = vmatprep.subr.mxu0 0.0
    %5388 = vmatpush1.msra.mxu0 %v1037
    %5389 = vmatprep.subr.mxu0 0.0
    %5390 = vmatpush1.msra.mxu0 %v1040
    %5391 = vmatprep.subr.mxu0 0.0
    %5392 = vmatpush1.msra.mxu0 %v1043
    %5393 = vmatprep.subr.mxu0 0.0
    %5394 = vmatpush1.msra.mxu0 %v1046
    %5395 = vmatprep.subr.mxu0 0.0
    %5396 = vmatpush1.msra.mxu0 %v1049
    %5397 = vmatprep.subr.mxu0 0.0
    %5398 = vmatpush1.msra.mxu0 %v1052
    %5399 = vmatprep.subr.mxu0 0.0
    %5400 = vmatpush1.msra.mxu0 %v1055
    %5401 = vmatprep.subr.mxu0 0.0
    %5402 = vmatpush1.msra.mxu0 %v1058
    %5403 = vmatprep.subr.mxu0 0.0
    %5404 = vmatpush1.msra.mxu0 %v1061
    %5405 = vmatprep.subr.mxu0 0.0
    %5406 = vmatpush1.msra.mxu0 %v1064
    %5407 = vmatprep.subr.mxu0 0.0
    %5408 = vmatpush1.msra.mxu0 %v1067
    %5409 = vmatprep.subr.mxu0 0.0
    %5410 = vmatpush1.msra.mxu0 %v1070
    %5411 = vmatprep.subr.mxu0 0.0
    %5412 = vmatpush1.msra.mxu0 %v1073
    %5413 = vmatprep.subr.mxu0 0.0
    %5414 = vmatpush1.msra.mxu0 0.0
    %5415 = vmatprep.subr.mxu0 0.0
    %5416 = vmatpush1.msra.mxu0 0.0
    %5417 = vmatprep.subr.mxu0 0.0
    %5418 = vmatpush1.msra.mxu0 0.0
    %5419 = vmatprep.subr.mxu0 0.0
    %5420 = vmatpush1.msra.mxu0 0.0
    %5421 = vmatprep.subr.mxu0 0.0
    %5422 = vmatpush1.msra.mxu0 0.0
    %5423 = vmatprep.subr.mxu0 0.0
    %5424 = vmatpush1.msra.mxu0 0.0
    %5425 = vmatprep.subr.mxu0 0.0
    %5426 = vmatpush1.msra.mxu0 0.0
    %5427 = vmatprep.subr.mxu0 0.0
    %5428 = vmatpush1.msra.mxu0 0.0
    %5429 = vmatprep.subr.mxu0 0.0
    %5430 = vmatpush1.msra.mxu0 0.0
    %5431 = vmatprep.subr.mxu0 0.0
    %5432 = vmatpush1.msra.mxu0 0.0
    %5433 = vmatprep.subr.mxu0 0.0
    %5434 = vmatpush1.msra.mxu0 0.0
    %5435 = vmatprep.subr.mxu0 0.0
    %5436 = vmatpush1.msra.mxu0 0.0
    %5437 = vmatprep.subr.mxu0 0.0
    %5438 = vmatpush1.msra.mxu0 0.0
    %5439 = vmatprep.subr.mxu0 0.0
    %5440 = vmatpush1.msra.mxu0 0.0
    %5441 = vmatprep.subr.mxu0 0.0
    %5442 = vmatpush1.msra.mxu0 0.0
    %5443 = vmatprep.subr.mxu0 0.0
    %5444 = vmatpush1.msra.mxu0 0.0
    %5445 = vmatprep.mubr.f32.mxu0 0.0
    %5446 = vmatmul.mubr.f32.gmra.mrb[0].mxu0 %v5135
    %v5447 = vpop.f32.mrb[0].mxu0
    %v5448 = vadd.f32 %v1104, %v5447
    %v5449 = vpop.f32.mrb[0].mxu0
    %5450 = vdwg.mxu0
    %v5451 = vadd.f32 %v5307, %v5377
    %v5452 = vsub.f32 0.0, %v5451
    %v5453 = vmul.f32 %v5452, 1.442695
    %v5454 = vpow.pop %v5453
    %v5455 = vadd.f32 %v5454, 1.0
    %v5456 = vrcp.pop %v5455
    %v5457 = vmul.f32 1.0, %v5456
    %v5458 = vadd.f32 %v5308, %v5379
    %v5459 = vsub.f32 0.0, %v5458
    %v5460 = vmul.f32 %v5459, 1.442695
    %v5461 = vpow.pop %v5460
    %v5462 = vadd.f32 %v5461, 1.0
    %v5463 = vrcp.pop %v5462
    %v5464 = vmul.f32 1.0, %v5463
    %v5465 = vmul.f32 %v5457, %v5448
    %v5466 = vadd.f32 %v5309, %v5465
    %v5467 = vtanh.pop %v5466
    %v5468 = vsub.f32 1.0, %v5464
    %v5469 = vmul.f32 %v5468, %v5467
    %v5470 = vmul.f32 %v5464, %v5135
    %v5471 = vadd.f32 %v5469, %v5470
    %s5472 = scalar_lea.vmem [#allocation5], 24
    %5473 = vst [vmem:[%s5472] sm:$0xff] %v5471
    %s5474 = scalar_lea.vmem [#allocation2], 312
    %v5475 = vld [vmem:[%s5474] sm:$0xff]
    %v5476 = vld [vmem:[%s5474 + $0x8] sm:$0xff]
    %v5477 = vld [vmem:[%s5474 + $0x10] sm:$0xff]
    %5478 = vmatprep.subr.mxu0 %v979
    %5479 = vmatpush1.msra.mxu0 %v978
    %5480 = vmatprep.subr.mxu0 %v982
    %5481 = vmatpush1.msra.mxu0 %v981
    %5482 = vmatprep.subr.mxu0 %v985
    %5483 = vmatpush1.msra.mxu0 %v984
    %5484 = vmatprep.subr.mxu0 %v988
    %5485 = vmatpush1.msra.mxu0 %v987
    %5486 = vmatprep.subr.mxu0 %v991
    %5487 = vmatpush1.msra.mxu0 %v990
    %5488 = vmatprep.subr.mxu0 %v994
    %5489 = vmatpush1.msra.mxu0 %v993
    %5490 = vmatprep.subr.mxu0 %v997
    %5491 = vmatpush1.msra.mxu0 %v996
    %5492 = vmatprep.subr.mxu0 %v1000
    %5493 = vmatpush1.msra.mxu0 %v999
    %5494 = vmatprep.subr.mxu0 %v1003
    %5495 = vmatpush1.msra.mxu0 %v1002
    %5496 = vmatprep.subr.mxu0 %v1006
    %5497 = vmatpush1.msra.mxu0 %v1005
    %5498 = vmatprep.subr.mxu0 %v1009
    %5499 = vmatpush1.msra.mxu0 %v1008
    %5500 = vmatprep.subr.mxu0 %v1012
    %5501 = vmatpush1.msra.mxu0 %v1011
    %5502 = vmatprep.subr.mxu0 %v1015
    %5503 = vmatpush1.msra.mxu0 %v1014
    %5504 = vmatprep.subr.mxu0 %v1018
    %5505 = vmatpush1.msra.mxu0 %v1017
    %5506 = vmatprep.subr.mxu0 %v1021
    %5507 = vmatpush1.msra.mxu0 %v1020
    %5508 = vmatprep.subr.mxu0 %v1024
    %5509 = vmatpush1.msra.mxu0 %v1023
    %5510 = vmatprep.subr.mxu0 0.0
    %5511 = vmatpush1.msra.mxu0 0.0
    %5512 = vmatprep.subr.mxu0 0.0
    %5513 = vmatpush1.msra.mxu0 0.0
    %5514 = vmatprep.subr.mxu0 0.0
    %5515 = vmatpush1.msra.mxu0 0.0
    %5516 = vmatprep.subr.mxu0 0.0
    %5517 = vmatpush1.msra.mxu0 0.0
    %5518 = vmatprep.subr.mxu0 0.0
    %5519 = vmatpush1.msra.mxu0 0.0
    %5520 = vmatprep.subr.mxu0 0.0
    %5521 = vmatpush1.msra.mxu0 0.0
    %5522 = vmatprep.subr.mxu0 0.0
    %5523 = vmatpush1.msra.mxu0 0.0
    %5524 = vmatprep.subr.mxu0 0.0
    %5525 = vmatpush1.msra.mxu0 0.0
    %5526 = vmatprep.subr.mxu0 0.0
    %5527 = vmatpush1.msra.mxu0 0.0
    %5528 = vmatprep.subr.mxu0 0.0
    %5529 = vmatpush1.msra.mxu0 0.0
    %5530 = vmatprep.subr.mxu0 0.0
    %5531 = vmatpush1.msra.mxu0 0.0
    %5532 = vmatprep.subr.mxu0 0.0
    %5533 = vmatpush1.msra.mxu0 0.0
    %5534 = vmatprep.subr.mxu0 0.0
    %5535 = vmatpush1.msra.mxu0 0.0
    %5536 = vmatprep.subr.mxu0 0.0
    %5537 = vmatpush1.msra.mxu0 0.0
    %5538 = vmatprep.subr.mxu0 0.0
    %5539 = vmatpush1.msra.mxu0 0.0
    %5540 = vmatprep.subr.mxu0 0.0
    %5541 = vmatpush1.msra.mxu0 0.0
    %5542 = vmatprep.mubr.f32.mxu0 0.0
    %5543 = vmatmul.mubr.f32.gmra.mrb[0].mxu0 %v5303
    %v5544 = vpop.f32.mrb[0].mxu0
    %v5545 = vadd.f32 %v1079, %v5544
    %v5546 = vpop.f32.mrb[0].mxu0
    %v5547 = vadd.f32 %v1083, %v5546
    %5548 = vdwg.mxu0
    %5549 = vmatprep.subr.mxu0 0.0
    %5550 = vmatpush1.msra.mxu0 %v980
    %5551 = vmatprep.subr.mxu0 0.0
    %5552 = vmatpush1.msra.mxu0 %v983
    %5553 = vmatprep.subr.mxu0 0.0
    %5554 = vmatpush1.msra.mxu0 %v986
    %5555 = vmatprep.subr.mxu0 0.0
    %5556 = vmatpush1.msra.mxu0 %v989
    %5557 = vmatprep.subr.mxu0 0.0
    %5558 = vmatpush1.msra.mxu0 %v992
    %5559 = vmatprep.subr.mxu0 0.0
    %5560 = vmatpush1.msra.mxu0 %v995
    %5561 = vmatprep.subr.mxu0 0.0
    %5562 = vmatpush1.msra.mxu0 %v998
    %5563 = vmatprep.subr.mxu0 0.0
    %5564 = vmatpush1.msra.mxu0 %v1001
    %5565 = vmatprep.subr.mxu0 0.0
    %5566 = vmatpush1.msra.mxu0 %v1004
    %5567 = vmatprep.subr.mxu0 0.0
    %5568 = vmatpush1.msra.mxu0 %v1007
    %5569 = vmatprep.subr.mxu0 0.0
    %5570 = vmatpush1.msra.mxu0 %v1010
    %5571 = vmatprep.subr.mxu0 0.0
    %5572 = vmatpush1.msra.mxu0 %v1013
    %5573 = vmatprep.subr.mxu0 0.0
    %5574 = vmatpush1.msra.mxu0 %v1016
    %5575 = vmatprep.subr.mxu0 0.0
    %5576 = vmatpush1.msra.mxu0 %v1019
    %5577 = vmatprep.subr.mxu0 0.0
    %5578 = vmatpush1.msra.mxu0 %v1022
    %5579 = vmatprep.subr.mxu0 0.0
    %5580 = vmatpush1.msra.mxu0 %v1025
    %5581 = vmatprep.subr.mxu0 0.0
    %5582 = vmatpush1.msra.mxu0 0.0
    %5583 = vmatprep.subr.mxu0 0.0
    %5584 = vmatpush1.msra.mxu0 0.0
    %5585 = vmatprep.subr.mxu0 0.0
    %5586 = vmatpush1.msra.mxu0 0.0
    %5587 = vmatprep.subr.mxu0 0.0
    %5588 = vmatpush1.msra.mxu0 0.0
    %5589 = vmatprep.subr.mxu0 0.0
    %5590 = vmatpush1.msra.mxu0 0.0
    %5591 = vmatprep.subr.mxu0 0.0
    %5592 = vmatpush1.msra.mxu0 0.0
    %5593 = vmatprep.subr.mxu0 0.0
    %5594 = vmatpush1.msra.mxu0 0.0
    %5595 = vmatprep.subr.mxu0 0.0
    %5596 = vmatpush1.msra.mxu0 0.0
    %5597 = vmatprep.subr.mxu0 0.0
    %5598 = vmatpush1.msra.mxu0 0.0
    %5599 = vmatprep.subr.mxu0 0.0
    %5600 = vmatpush1.msra.mxu0 0.0
    %5601 = vmatprep.subr.mxu0 0.0
    %5602 = vmatpush1.msra.mxu0 0.0
    %5603 = vmatprep.subr.mxu0 0.0
    %5604 = vmatpush1.msra.mxu0 0.0
    %5605 = vmatprep.subr.mxu0 0.0
    %5606 = vmatpush1.msra.mxu0 0.0
    %5607 = vmatprep.subr.mxu0 0.0
    %5608 = vmatpush1.msra.mxu0 0.0
    %5609 = vmatprep.subr.mxu0 0.0
    %5610 = vmatpush1.msra.mxu0 0.0
    %5611 = vmatprep.subr.mxu0 0.0
    %5612 = vmatpush1.msra.mxu0 0.0
    %5613 = vmatprep.mubr.f32.mxu0 0.0
    %5614 = vmatmul.mubr.f32.gmra.mrb[0].mxu0 %v5303
    %v5615 = vpop.f32.mrb[0].mxu0
    %v5616 = vadd.f32 %v1087, %v5615
    %v5617 = vpop.f32.mrb[0].mxu0
    %5618 = vdwg.mxu0
    %v5619 = vadd.f32 %v5475, %v5545
    %v5620 = vsub.f32 0.0, %v5619
    %v5621 = vmul.f32 %v5620, 1.442695
    %v5622 = vpow.pop %v5621
    %v5623 = vadd.f32 %v5622, 1.0
    %v5624 = vrcp.pop %v5623
    %v5625 = vmul.f32 1.0, %v5624
    %v5626 = vadd.f32 %v5476, %v5547
    %v5627 = vsub.f32 0.0, %v5626
    %v5628 = vmul.f32 %v5627, 1.442695
    %v5629 = vpow.pop %v5628
    %v5630 = vadd.f32 %v5629, 1.0
    %v5631 = vrcp.pop %v5630
    %v5632 = vmul.f32 1.0, %v5631
    %v5633 = vmul.f32 %v5625, %v5616
    %v5634 = vadd.f32 %v5477, %v5633
    %v5635 = vtanh.pop %v5634
    %v5636 = vsub.f32 1.0, %v5632
    %v5637 = vmul.f32 %v5636, %v5635
    %v5638 = vmul.f32 %v5632, %v5303
    %v5639 = vadd.f32 %v5637, %v5638
    %s5640 = scalar_lea.vmem [#allocation4], 104
    %5641 = vst [vmem:[%s5640] sm:$0xff] %v5639
    %s5642 = scalar_lea.vmem [#allocation3], 48
    %v5643 = vld [vmem:[%s5642] sm:$0xff]
    %v5644 = vld [vmem:[%s5642 + $0x8] sm:$0xff]
    %v5645 = vld [vmem:[%s5642 + $0x10] sm:$0xff]
    %5646 = vmatprep.subr.mxu0 %v1027
    %5647 = vmatpush1.msra.mxu0 %v1026
    %5648 = vmatprep.subr.mxu0 %v1030
    %5649 = vmatpush1.msra.mxu0 %v1029
    %5650 = vmatprep.subr.mxu0 %v1033
    %5651 = vmatpush1.msra.mxu0 %v1032
    %5652 = vmatprep.subr.mxu0 %v1036
    %5653 = vmatpush1.msra.mxu0 %v1035
    %5654 = vmatprep.subr.mxu0 %v1039
    %5655 = vmatpush1.msra.mxu0 %v1038
    %5656 = vmatprep.subr.mxu0 %v1042
    %5657 = vmatpush1.msra.mxu0 %v1041
    %5658 = vmatprep.subr.mxu0 %v1045
    %5659 = vmatpush1.msra.mxu0 %v1044
    %5660 = vmatprep.subr.mxu0 %v1048
    %5661 = vmatpush1.msra.mxu0 %v1047
    %5662 = vmatprep.subr.mxu0 %v1051
    %5663 = vmatpush1.msra.mxu0 %v1050
    %5664 = vmatprep.subr.mxu0 %v1054
    %5665 = vmatpush1.msra.mxu0 %v1053
    %5666 = vmatprep.subr.mxu0 %v1057
    %5667 = vmatpush1.msra.mxu0 %v1056
    %5668 = vmatprep.subr.mxu0 %v1060
    %5669 = vmatpush1.msra.mxu0 %v1059
    %5670 = vmatprep.subr.mxu0 %v1063
    %5671 = vmatpush1.msra.mxu0 %v1062
    %5672 = vmatprep.subr.mxu0 %v1066
    %5673 = vmatpush1.msra.mxu0 %v1065
    %5674 = vmatprep.subr.mxu0 %v1069
    %5675 = vmatpush1.msra.mxu0 %v1068
    %5676 = vmatprep.subr.mxu0 %v1072
    %5677 = vmatpush1.msra.mxu0 %v1071
    %5678 = vmatprep.subr.mxu0 0.0
    %5679 = vmatpush1.msra.mxu0 0.0
    %5680 = vmatprep.subr.mxu0 0.0
    %5681 = vmatpush1.msra.mxu0 0.0
    %5682 = vmatprep.subr.mxu0 0.0
    %5683 = vmatpush1.msra.mxu0 0.0
    %5684 = vmatprep.subr.mxu0 0.0
    %5685 = vmatpush1.msra.mxu0 0.0
    %5686 = vmatprep.subr.mxu0 0.0
    %5687 = vmatpush1.msra.mxu0 0.0
    %5688 = vmatprep.subr.mxu0 0.0
    %5689 = vmatpush1.msra.mxu0 0.0
    %5690 = vmatprep.subr.mxu0 0.0
    %5691 = vmatpush1.msra.mxu0 0.0
    %5692 = vmatprep.subr.mxu0 0.0
    %5693 = vmatpush1.msra.mxu0 0.0
    %5694 = vmatprep.subr.mxu0 0.0
    %5695 = vmatpush1.msra.mxu0 0.0
    %5696 = vmatprep.subr.mxu0 0.0
    %5697 = vmatpush1.msra.mxu0 0.0
    %5698 = vmatprep.subr.mxu0 0.0
    %5699 = vmatpush1.msra.mxu0 0.0
    %5700 = vmatprep.subr.mxu0 0.0
    %5701 = vmatpush1.msra.mxu0 0.0
    %5702 = vmatprep.subr.mxu0 0.0
    %5703 = vmatpush1.msra.mxu0 0.0
    %5704 = vmatprep.subr.mxu0 0.0
    %5705 = vmatpush1.msra.mxu0 0.0
    %5706 = vmatprep.subr.mxu0 0.0
    %5707 = vmatpush1.msra.mxu0 0.0
    %5708 = vmatprep.subr.mxu0 0.0
    %5709 = vmatpush1.msra.mxu0 0.0
    %5710 = vmatprep.mubr.f32.mxu0 0.0
    %5711 = vmatmul.mubr.f32.gmra.mrb[0].mxu0 %v5471
    %v5712 = vpop.f32.mrb[0].mxu0
    %v5713 = vadd.f32 %v1096, %v5712
    %v5714 = vpop.f32.mrb[0].mxu0
    %v5715 = vadd.f32 %v1100, %v5714
    %5716 = vdwg.mxu0
    %5717 = vmatprep.subr.mxu0 0.0
    %5718 = vmatpush1.msra.mxu0 %v1028
    %5719 = vmatprep.subr.mxu0 0.0
    %5720 = vmatpush1.msra.mxu0 %v1031
    %5721 = vmatprep.subr.mxu0 0.0
    %5722 = vmatpush1.msra.mxu0 %v1034
    %5723 = vmatprep.subr.mxu0 0.0
    %5724 = vmatpush1.msra.mxu0 %v1037
    %5725 = vmatprep.subr.mxu0 0.0
    %5726 = vmatpush1.msra.mxu0 %v1040
    %5727 = vmatprep.subr.mxu0 0.0
    %5728 = vmatpush1.msra.mxu0 %v1043
    %5729 = vmatprep.subr.mxu0 0.0
    %5730 = vmatpush1.msra.mxu0 %v1046
    %5731 = vmatprep.subr.mxu0 0.0
    %5732 = vmatpush1.msra.mxu0 %v1049
    %5733 = vmatprep.subr.mxu0 0.0
    %5734 = vmatpush1.msra.mxu0 %v1052
    %5735 = vmatprep.subr.mxu0 0.0
    %5736 = vmatpush1.msra.mxu0 %v1055
    %5737 = vmatprep.subr.mxu0 0.0
    %5738 = vmatpush1.msra.mxu0 %v1058
    %5739 = vmatprep.subr.mxu0 0.0
    %5740 = vmatpush1.msra.mxu0 %v1061
    %5741 = vmatprep.subr.mxu0 0.0
    %5742 = vmatpush1.msra.mxu0 %v1064
    %5743 = vmatprep.subr.mxu0 0.0
    %5744 = vmatpush1.msra.mxu0 %v1067
    %5745 = vmatprep.subr.mxu0 0.0
    %5746 = vmatpush1.msra.mxu0 %v1070
    %5747 = vmatprep.subr.mxu0 0.0
    %5748 = vmatpush1.msra.mxu0 %v1073
    %5749 = vmatprep.subr.mxu0 0.0
    %5750 = vmatpush1.msra.mxu0 0.0
    %5751 = vmatprep.subr.mxu0 0.0
    %5752 = vmatpush1.msra.mxu0 0.0
    %5753 = vmatprep.subr.mxu0 0.0
    %5754 = vmatpush1.msra.mxu0 0.0
    %5755 = vmatprep.subr.mxu0 0.0
    %5756 = vmatpush1.msra.mxu0 0.0
    %5757 = vmatprep.subr.mxu0 0.0
    %5758 = vmatpush1.msra.mxu0 0.0
    %5759 = vmatprep.subr.mxu0 0.0
    %5760 = vmatpush1.msra.mxu0 0.0
    %5761 = vmatprep.subr.mxu0 0.0
    %5762 = vmatpush1.msra.mxu0 0.0
    %5763 = vmatprep.subr.mxu0 0.0
    %5764 = vmatpush1.msra.mxu0 0.0
    %5765 = vmatprep.subr.mxu0 0.0
    %5766 = vmatpush1.msra.mxu0 0.0
    %5767 = vmatprep.subr.mxu0 0.0
    %5768 = vmatpush1.msra.mxu0 0.0
    %5769 = vmatprep.subr.mxu0 0.0
    %5770 = vmatpush1.msra.mxu0 0.0
    %5771 = vmatprep.subr.mxu0 0.0
    %5772 = vmatpush1.msra.mxu0 0.0
    %5773 = vmatprep.subr.mxu0 0.0
    %5774 = vmatpush1.msra.mxu0 0.0
    %5775 = vmatprep.subr.mxu0 0.0
    %5776 = vmatpush1.msra.mxu0 0.0
    %5777 = vmatprep.subr.mxu0 0.0
    %5778 = vmatpush1.msra.mxu0 0.0
    %5779 = vmatprep.subr.mxu0 0.0
    %5780 = vmatpush1.msra.mxu0 0.0
    %5781 = vmatprep.mubr.f32.mxu0 0.0
    %5782 = vmatmul.mubr.f32.gmra.mrb[0].mxu0 %v5471
    %v5783 = vpop.f32.mrb[0].mxu0
    %v5784 = vadd.f32 %v1104, %v5783
    %v5785 = vpop.f32.mrb[0].mxu0
    %5786 = vdwg.mxu0
    %v5787 = vadd.f32 %v5643, %v5713
    %v5788 = vsub.f32 0.0, %v5787
    %v5789 = vmul.f32 %v5788, 1.442695
    %v5790 = vpow.pop %v5789
    %v5791 = vadd.f32 %v5790, 1.0
    %v5792 = vrcp.pop %v5791
    %v5793 = vmul.f32 1.0, %v5792
    %v5794 = vadd.f32 %v5644, %v5715
    %v5795 = vsub.f32 0.0, %v5794
    %v5796 = vmul.f32 %v5795, 1.442695
    %v5797 = vpow.pop %v5796
    %v5798 = vadd.f32 %v5797, 1.0
    %v5799 = vrcp.pop %v5798
    %v5800 = vmul.f32 1.0, %v5799
    %v5801 = vmul.f32 %v5793, %v5784
    %v5802 = vadd.f32 %v5645, %v5801
    %v5803 = vtanh.pop %v5802
    %v5804 = vsub.f32 1.0, %v5800
    %v5805 = vmul.f32 %v5804, %v5803
    %v5806 = vmul.f32 %v5800, %v5471
    %v5807 = vadd.f32 %v5805, %v5806
    %s5808 = scalar_lea.vmem [#allocation5], 16
    %5809 = vst [vmem:[%s5808] sm:$0xff] %v5807
    %s5810 = scalar_lea.vmem [#allocation2], 336
    %v5811 = vld [vmem:[%s5810] sm:$0xff]
    %v5812 = vld [vmem:[%s5810 + $0x8] sm:$0xff]
    %v5813 = vld [vmem:[%s5810 + $0x10] sm:$0xff]
    %5814 = vmatprep.subr.mxu0 %v979
    %5815 = vmatpush1.msra.mxu0 %v978
    %5816 = vmatprep.subr.mxu0 %v982
    %5817 = vmatpush1.msra.mxu0 %v981
    %5818 = vmatprep.subr.mxu0 %v985
    %5819 = vmatpush1.msra.mxu0 %v984
    %5820 = vmatprep.subr.mxu0 %v988
    %5821 = vmatpush1.msra.mxu0 %v987
    %5822 = vmatprep.subr.mxu0 %v991
    %5823 = vmatpush1.msra.mxu0 %v990
    %5824 = vmatprep.subr.mxu0 %v994
    %5825 = vmatpush1.msra.mxu0 %v993
    %5826 = vmatprep.subr.mxu0 %v997
    %5827 = vmatpush1.msra.mxu0 %v996
    %5828 = vmatprep.subr.mxu0 %v1000
    %5829 = vmatpush1.msra.mxu0 %v999
    %5830 = vmatprep.subr.mxu0 %v1003
    %5831 = vmatpush1.msra.mxu0 %v1002
    %5832 = vmatprep.subr.mxu0 %v1006
    %5833 = vmatpush1.msra.mxu0 %v1005
    %5834 = vmatprep.subr.mxu0 %v1009
    %5835 = vmatpush1.msra.mxu0 %v1008
    %5836 = vmatprep.subr.mxu0 %v1012
    %5837 = vmatpush1.msra.mxu0 %v1011
    %5838 = vmatprep.subr.mxu0 %v1015
    %5839 = vmatpush1.msra.mxu0 %v1014
    %5840 = vmatprep.subr.mxu0 %v1018
    %5841 = vmatpush1.msra.mxu0 %v1017
    %5842 = vmatprep.subr.mxu0 %v1021
    %5843 = vmatpush1.msra.mxu0 %v1020
    %5844 = vmatprep.subr.mxu0 %v1024
    %5845 = vmatpush1.msra.mxu0 %v1023
    %5846 = vmatprep.subr.mxu0 0.0
    %5847 = vmatpush1.msra.mxu0 0.0
    %5848 = vmatprep.subr.mxu0 0.0
    %5849 = vmatpush1.msra.mxu0 0.0
    %5850 = vmatprep.subr.mxu0 0.0
    %5851 = vmatpush1.msra.mxu0 0.0
    %5852 = vmatprep.subr.mxu0 0.0
    %5853 = vmatpush1.msra.mxu0 0.0
    %5854 = vmatprep.subr.mxu0 0.0
    %5855 = vmatpush1.msra.mxu0 0.0
    %5856 = vmatprep.subr.mxu0 0.0
    %5857 = vmatpush1.msra.mxu0 0.0
    %5858 = vmatprep.subr.mxu0 0.0
    %5859 = vmatpush1.msra.mxu0 0.0
    %5860 = vmatprep.subr.mxu0 0.0
    %5861 = vmatpush1.msra.mxu0 0.0
    %5862 = vmatprep.subr.mxu0 0.0
    %5863 = vmatpush1.msra.mxu0 0.0
    %5864 = vmatprep.subr.mxu0 0.0
    %5865 = vmatpush1.msra.mxu0 0.0
    %5866 = vmatprep.subr.mxu0 0.0
    %5867 = vmatpush1.msra.mxu0 0.0
    %5868 = vmatprep.subr.mxu0 0.0
    %5869 = vmatpush1.msra.mxu0 0.0
    %5870 = vmatprep.subr.mxu0 0.0
    %5871 = vmatpush1.msra.mxu0 0.0
    %5872 = vmatprep.subr.mxu0 0.0
    %5873 = vmatpush1.msra.mxu0 0.0
    %5874 = vmatprep.subr.mxu0 0.0
    %5875 = vmatpush1.msra.mxu0 0.0
    %5876 = vmatprep.subr.mxu0 0.0
    %5877 = vmatpush1.msra.mxu0 0.0
    %5878 = vmatprep.mubr.f32.mxu0 0.0
    %5879 = vmatmul.mubr.f32.gmra.mrb[0].mxu0 %v5639
    %v5880 = vpop.f32.mrb[0].mxu0
    %v5881 = vadd.f32 %v1079, %v5880
    %v5882 = vpop.f32.mrb[0].mxu0
    %v5883 = vadd.f32 %v1083, %v5882
    %5884 = vdwg.mxu0
    %5885 = vmatprep.subr.mxu0 0.0
    %5886 = vmatpush1.msra.mxu0 %v980
    %5887 = vmatprep.subr.mxu0 0.0
    %5888 = vmatpush1.msra.mxu0 %v983
    %5889 = vmatprep.subr.mxu0 0.0
    %5890 = vmatpush1.msra.mxu0 %v986
    %5891 = vmatprep.subr.mxu0 0.0
    %5892 = vmatpush1.msra.mxu0 %v989
    %5893 = vmatprep.subr.mxu0 0.0
    %5894 = vmatpush1.msra.mxu0 %v992
    %5895 = vmatprep.subr.mxu0 0.0
    %5896 = vmatpush1.msra.mxu0 %v995
    %5897 = vmatprep.subr.mxu0 0.0
    %5898 = vmatpush1.msra.mxu0 %v998
    %5899 = vmatprep.subr.mxu0 0.0
    %5900 = vmatpush1.msra.mxu0 %v1001
    %5901 = vmatprep.subr.mxu0 0.0
    %5902 = vmatpush1.msra.mxu0 %v1004
    %5903 = vmatprep.subr.mxu0 0.0
    %5904 = vmatpush1.msra.mxu0 %v1007
    %5905 = vmatprep.subr.mxu0 0.0
    %5906 = vmatpush1.msra.mxu0 %v1010
    %5907 = vmatprep.subr.mxu0 0.0
    %5908 = vmatpush1.msra.mxu0 %v1013
    %5909 = vmatprep.subr.mxu0 0.0
    %5910 = vmatpush1.msra.mxu0 %v1016
    %5911 = vmatprep.subr.mxu0 0.0
    %5912 = vmatpush1.msra.mxu0 %v1019
    %5913 = vmatprep.subr.mxu0 0.0
    %5914 = vmatpush1.msra.mxu0 %v1022
    %5915 = vmatprep.subr.mxu0 0.0
    %5916 = vmatpush1.msra.mxu0 %v1025
    %5917 = vmatprep.subr.mxu0 0.0
    %5918 = vmatpush1.msra.mxu0 0.0
    %5919 = vmatprep.subr.mxu0 0.0
    %5920 = vmatpush1.msra.mxu0 0.0
    %5921 = vmatprep.subr.mxu0 0.0
    %5922 = vmatpush1.msra.mxu0 0.0
    %5923 = vmatprep.subr.mxu0 0.0
    %5924 = vmatpush1.msra.mxu0 0.0
    %5925 = vmatprep.subr.mxu0 0.0
    %5926 = vmatpush1.msra.mxu0 0.0
    %5927 = vmatprep.subr.mxu0 0.0
    %5928 = vmatpush1.msra.mxu0 0.0
    %5929 = vmatprep.subr.mxu0 0.0
    %5930 = vmatpush1.msra.mxu0 0.0
    %5931 = vmatprep.subr.mxu0 0.0
    %5932 = vmatpush1.msra.mxu0 0.0
    %5933 = vmatprep.subr.mxu0 0.0
    %5934 = vmatpush1.msra.mxu0 0.0
    %5935 = vmatprep.subr.mxu0 0.0
    %5936 = vmatpush1.msra.mxu0 0.0
    %5937 = vmatprep.subr.mxu0 0.0
    %5938 = vmatpush1.msra.mxu0 0.0
    %5939 = vmatprep.subr.mxu0 0.0
    %5940 = vmatpush1.msra.mxu0 0.0
    %5941 = vmatprep.subr.mxu0 0.0
    %5942 = vmatpush1.msra.mxu0 0.0
    %5943 = vmatprep.subr.mxu0 0.0
    %5944 = vmatpush1.msra.mxu0 0.0
    %5945 = vmatprep.subr.mxu0 0.0
    %5946 = vmatpush1.msra.mxu0 0.0
    %5947 = vmatprep.subr.mxu0 0.0
    %5948 = vmatpush1.msra.mxu0 0.0
    %5949 = vmatprep.mubr.f32.mxu0 0.0
    %5950 = vmatmul.mubr.f32.gmra.mrb[0].mxu0 %v5639
    %v5951 = vpop.f32.mrb[0].mxu0
    %v5952 = vadd.f32 %v1087, %v5951
    %v5953 = vpop.f32.mrb[0].mxu0
    %5954 = vdwg.mxu0
    %v5955 = vadd.f32 %v5811, %v5881
    %v5956 = vsub.f32 0.0, %v5955
    %v5957 = vmul.f32 %v5956, 1.442695
    %v5958 = vpow.pop %v5957
    %v5959 = vadd.f32 %v5958, 1.0
    %v5960 = vrcp.pop %v5959
    %v5961 = vmul.f32 1.0, %v5960
    %v5962 = vadd.f32 %v5812, %v5883
    %v5963 = vsub.f32 0.0, %v5962
    %v5964 = vmul.f32 %v5963, 1.442695
    %v5965 = vpow.pop %v5964
    %v5966 = vadd.f32 %v5965, 1.0
    %v5967 = vrcp.pop %v5966
    %v5968 = vmul.f32 1.0, %v5967
    %v5969 = vmul.f32 %v5961, %v5952
    %v5970 = vadd.f32 %v5813, %v5969
    %v5971 = vtanh.pop %v5970
    %v5972 = vsub.f32 1.0, %v5968
    %v5973 = vmul.f32 %v5972, %v5971
    %v5974 = vmul.f32 %v5968, %v5639
    %v5975 = vadd.f32 %v5973, %v5974
    %s5976 = scalar_lea.vmem [#allocation4], 112
    %5977 = vst [vmem:[%s5976] sm:$0xff] %v5975
    %s5978 = scalar_lea.vmem [#allocation3], 24
    %v5979 = vld [vmem:[%s5978] sm:$0xff]
    %v5980 = vld [vmem:[%s5978 + $0x8] sm:$0xff]
    %v5981 = vld [vmem:[%s5978 + $0x10] sm:$0xff]
    %5982 = vmatprep.subr.mxu0 %v1027
    %5983 = vmatpush1.msra.mxu0 %v1026
    %5984 = vmatprep.subr.mxu0 %v1030
    %5985 = vmatpush1.msra.mxu0 %v1029
    %5986 = vmatprep.subr.mxu0 %v1033
    %5987 = vmatpush1.msra.mxu0 %v1032
    %5988 = vmatprep.subr.mxu0 %v1036
    %5989 = vmatpush1.msra.mxu0 %v1035
    %5990 = vmatprep.subr.mxu0 %v1039
    %5991 = vmatpush1.msra.mxu0 %v1038
    %5992 = vmatprep.subr.mxu0 %v1042
    %5993 = vmatpush1.msra.mxu0 %v1041
    %5994 = vmatprep.subr.mxu0 %v1045
    %5995 = vmatpush1.msra.mxu0 %v1044
    %5996 = vmatprep.subr.mxu0 %v1048
    %5997 = vmatpush1.msra.mxu0 %v1047
    %5998 = vmatprep.subr.mxu0 %v1051
    %5999 = vmatpush1.msra.mxu0 %v1050
    %6000 = vmatprep.subr.mxu0 %v1054
    %6001 = vmatpush1.msra.mxu0 %v1053
    %6002 = vmatprep.subr.mxu0 %v1057
    %6003 = vmatpush1.msra.mxu0 %v1056
    %6004 = vmatprep.subr.mxu0 %v1060
    %6005 = vmatpush1.msra.mxu0 %v1059
    %6006 = vmatprep.subr.mxu0 %v1063
    %6007 = vmatpush1.msra.mxu0 %v1062
    %6008 = vmatprep.subr.mxu0 %v1066
    %6009 = vmatpush1.msra.mxu0 %v1065
    %6010 = vmatprep.subr.mxu0 %v1069
    %6011 = vmatpush1.msra.mxu0 %v1068
    %6012 = vmatprep.subr.mxu0 %v1072
    %6013 = vmatpush1.msra.mxu0 %v1071
    %6014 = vmatprep.subr.mxu0 0.0
    %6015 = vmatpush1.msra.mxu0 0.0
    %6016 = vmatprep.subr.mxu0 0.0
    %6017 = vmatpush1.msra.mxu0 0.0
    %6018 = vmatprep.subr.mxu0 0.0
    %6019 = vmatpush1.msra.mxu0 0.0
    %6020 = vmatprep.subr.mxu0 0.0
    %6021 = vmatpush1.msra.mxu0 0.0
    %6022 = vmatprep.subr.mxu0 0.0
    %6023 = vmatpush1.msra.mxu0 0.0
    %6024 = vmatprep.subr.mxu0 0.0
    %6025 = vmatpush1.msra.mxu0 0.0
    %6026 = vmatprep.subr.mxu0 0.0
    %6027 = vmatpush1.msra.mxu0 0.0
    %6028 = vmatprep.subr.mxu0 0.0
    %6029 = vmatpush1.msra.mxu0 0.0
    %6030 = vmatprep.subr.mxu0 0.0
    %6031 = vmatpush1.msra.mxu0 0.0
    %6032 = vmatprep.subr.mxu0 0.0
    %6033 = vmatpush1.msra.mxu0 0.0
    %6034 = vmatprep.subr.mxu0 0.0
    %6035 = vmatpush1.msra.mxu0 0.0
    %6036 = vmatprep.subr.mxu0 0.0
    %6037 = vmatpush1.msra.mxu0 0.0
    %6038 = vmatprep.subr.mxu0 0.0
    %6039 = vmatpush1.msra.mxu0 0.0
    %6040 = vmatprep.subr.mxu0 0.0
    %6041 = vmatpush1.msra.mxu0 0.0
    %6042 = vmatprep.subr.mxu0 0.0
    %6043 = vmatpush1.msra.mxu0 0.0
    %6044 = vmatprep.subr.mxu0 0.0
    %6045 = vmatpush1.msra.mxu0 0.0
    %6046 = vmatprep.mubr.f32.mxu0 0.0
    %6047 = vmatmul.mubr.f32.gmra.mrb[0].mxu0 %v5807
    %v6048 = vpop.f32.mrb[0].mxu0
    %v6049 = vadd.f32 %v1096, %v6048
    %v6050 = vpop.f32.mrb[0].mxu0
    %v6051 = vadd.f32 %v1100, %v6050
    %6052 = vdwg.mxu0
    %6053 = vmatprep.subr.mxu0 0.0
    %6054 = vmatpush1.msra.mxu0 %v1028
    %6055 = vmatprep.subr.mxu0 0.0
    %6056 = vmatpush1.msra.mxu0 %v1031
    %6057 = vmatprep.subr.mxu0 0.0
    %6058 = vmatpush1.msra.mxu0 %v1034
    %6059 = vmatprep.subr.mxu0 0.0
    %6060 = vmatpush1.msra.mxu0 %v1037
    %6061 = vmatprep.subr.mxu0 0.0
    %6062 = vmatpush1.msra.mxu0 %v1040
    %6063 = vmatprep.subr.mxu0 0.0
    %6064 = vmatpush1.msra.mxu0 %v1043
    %6065 = vmatprep.subr.mxu0 0.0
    %6066 = vmatpush1.msra.mxu0 %v1046
    %6067 = vmatprep.subr.mxu0 0.0
    %6068 = vmatpush1.msra.mxu0 %v1049
    %6069 = vmatprep.subr.mxu0 0.0
    %6070 = vmatpush1.msra.mxu0 %v1052
    %6071 = vmatprep.subr.mxu0 0.0
    %6072 = vmatpush1.msra.mxu0 %v1055
    %6073 = vmatprep.subr.mxu0 0.0
    %6074 = vmatpush1.msra.mxu0 %v1058
    %6075 = vmatprep.subr.mxu0 0.0
    %6076 = vmatpush1.msra.mxu0 %v1061
    %6077 = vmatprep.subr.mxu0 0.0
    %6078 = vmatpush1.msra.mxu0 %v1064
    %6079 = vmatprep.subr.mxu0 0.0
    %6080 = vmatpush1.msra.mxu0 %v1067
    %6081 = vmatprep.subr.mxu0 0.0
    %6082 = vmatpush1.msra.mxu0 %v1070
    %6083 = vmatprep.subr.mxu0 0.0
    %6084 = vmatpush1.msra.mxu0 %v1073
    %6085 = vmatprep.subr.mxu0 0.0
    %6086 = vmatpush1.msra.mxu0 0.0
    %6087 = vmatprep.subr.mxu0 0.0
    %6088 = vmatpush1.msra.mxu0 0.0
    %6089 = vmatprep.subr.mxu0 0.0
    %6090 = vmatpush1.msra.mxu0 0.0
    %6091 = vmatprep.subr.mxu0 0.0
    %6092 = vmatpush1.msra.mxu0 0.0
    %6093 = vmatprep.subr.mxu0 0.0
    %6094 = vmatpush1.msra.mxu0 0.0
    %6095 = vmatprep.subr.mxu0 0.0
    %6096 = vmatpush1.msra.mxu0 0.0
    %6097 = vmatprep.subr.mxu0 0.0
    %6098 = vmatpush1.msra.mxu0 0.0
    %6099 = vmatprep.subr.mxu0 0.0
    %6100 = vmatpush1.msra.mxu0 0.0
    %6101 = vmatprep.subr.mxu0 0.0
    %6102 = vmatpush1.msra.mxu0 0.0
    %6103 = vmatprep.subr.mxu0 0.0
    %6104 = vmatpush1.msra.mxu0 0.0
    %6105 = vmatprep.subr.mxu0 0.0
    %6106 = vmatpush1.msra.mxu0 0.0
    %6107 = vmatprep.subr.mxu0 0.0
    %6108 = vmatpush1.msra.mxu0 0.0
    %6109 = vmatprep.subr.mxu0 0.0
    %6110 = vmatpush1.msra.mxu0 0.0
    %6111 = vmatprep.subr.mxu0 0.0
    %6112 = vmatpush1.msra.mxu0 0.0
    %6113 = vmatprep.subr.mxu0 0.0
    %6114 = vmatpush1.msra.mxu0 0.0
    %6115 = vmatprep.subr.mxu0 0.0
    %6116 = vmatpush1.msra.mxu0 0.0
    %6117 = vmatprep.mubr.f32.mxu0 0.0
    %6118 = vmatmul.mubr.f32.gmra.mrb[0].mxu0 %v5807
    %v6119 = vpop.f32.mrb[0].mxu0
    %v6120 = vadd.f32 %v1104, %v6119
    %v6121 = vpop.f32.mrb[0].mxu0
    %6122 = vdwg.mxu0
    %v6123 = vadd.f32 %v5979, %v6049
    %v6124 = vsub.f32 0.0, %v6123
    %v6125 = vmul.f32 %v6124, 1.442695
    %v6126 = vpow.pop %v6125
    %v6127 = vadd.f32 %v6126, 1.0
    %v6128 = vrcp.pop %v6127
    %v6129 = vmul.f32 1.0, %v6128
    %v6130 = vadd.f32 %v5980, %v6051
    %v6131 = vsub.f32 0.0, %v6130
    %v6132 = vmul.f32 %v6131, 1.442695
    %v6133 = vpow.pop %v6132
    %v6134 = vadd.f32 %v6133, 1.0
    %v6135 = vrcp.pop %v6134
    %v6136 = vmul.f32 1.0, %v6135
    %v6137 = vmul.f32 %v6129, %v6120
    %v6138 = vadd.f32 %v5981, %v6137
    %v6139 = vtanh.pop %v6138
    %v6140 = vsub.f32 1.0, %v6136
    %v6141 = vmul.f32 %v6140, %v6139
    %v6142 = vmul.f32 %v6136, %v5807
    %v6143 = vadd.f32 %v6141, %v6142
    %s6144 = scalar_lea.vmem [#allocation5], 8
    %6145 = vst [vmem:[%s6144] sm:$0xff] %v6143
    %s6146 = scalar_lea.vmem [#allocation2], 360
    %v6147 = vld [vmem:[%s6146] sm:$0xff]
    %v6148 = vld [vmem:[%s6146 + $0x8] sm:$0xff]
    %v6149 = vld [vmem:[%s6146 + $0x10] sm:$0xff]
    %6150 = vmatprep.subr.mxu0 %v979
    %6151 = vmatpush1.msra.mxu0 %v978
    %6152 = vmatprep.subr.mxu0 %v982
    %6153 = vmatpush1.msra.mxu0 %v981
    %6154 = vmatprep.subr.mxu0 %v985
    %6155 = vmatpush1.msra.mxu0 %v984
    %6156 = vmatprep.subr.mxu0 %v988
    %6157 = vmatpush1.msra.mxu0 %v987
    %6158 = vmatprep.subr.mxu0 %v991
    %6159 = vmatpush1.msra.mxu0 %v990
    %6160 = vmatprep.subr.mxu0 %v994
    %6161 = vmatpush1.msra.mxu0 %v993
    %6162 = vmatprep.subr.mxu0 %v997
    %6163 = vmatpush1.msra.mxu0 %v996
    %6164 = vmatprep.subr.mxu0 %v1000
    %6165 = vmatpush1.msra.mxu0 %v999
    %6166 = vmatprep.subr.mxu0 %v1003
    %6167 = vmatpush1.msra.mxu0 %v1002
    %6168 = vmatprep.subr.mxu0 %v1006
    %6169 = vmatpush1.msra.mxu0 %v1005
    %6170 = vmatprep.subr.mxu0 %v1009
    %6171 = vmatpush1.msra.mxu0 %v1008
    %6172 = vmatprep.subr.mxu0 %v1012
    %6173 = vmatpush1.msra.mxu0 %v1011
    %6174 = vmatprep.subr.mxu0 %v1015
    %6175 = vmatpush1.msra.mxu0 %v1014
    %6176 = vmatprep.subr.mxu0 %v1018
    %6177 = vmatpush1.msra.mxu0 %v1017
    %6178 = vmatprep.subr.mxu0 %v1021
    %6179 = vmatpush1.msra.mxu0 %v1020
    %6180 = vmatprep.subr.mxu0 %v1024
    %6181 = vmatpush1.msra.mxu0 %v1023
    %6182 = vmatprep.subr.mxu0 0.0
    %6183 = vmatpush1.msra.mxu0 0.0
    %6184 = vmatprep.subr.mxu0 0.0
    %6185 = vmatpush1.msra.mxu0 0.0
    %6186 = vmatprep.subr.mxu0 0.0
    %6187 = vmatpush1.msra.mxu0 0.0
    %6188 = vmatprep.subr.mxu0 0.0
    %6189 = vmatpush1.msra.mxu0 0.0
    %6190 = vmatprep.subr.mxu0 0.0
    %6191 = vmatpush1.msra.mxu0 0.0
    %6192 = vmatprep.subr.mxu0 0.0
    %6193 = vmatpush1.msra.mxu0 0.0
    %6194 = vmatprep.subr.mxu0 0.0
    %6195 = vmatpush1.msra.mxu0 0.0
    %6196 = vmatprep.subr.mxu0 0.0
    %6197 = vmatpush1.msra.mxu0 0.0
    %6198 = vmatprep.subr.mxu0 0.0
    %6199 = vmatpush1.msra.mxu0 0.0
    %6200 = vmatprep.subr.mxu0 0.0
    %6201 = vmatpush1.msra.mxu0 0.0
    %6202 = vmatprep.subr.mxu0 0.0
    %6203 = vmatpush1.msra.mxu0 0.0
    %6204 = vmatprep.subr.mxu0 0.0
    %6205 = vmatpush1.msra.mxu0 0.0
    %6206 = vmatprep.subr.mxu0 0.0
    %6207 = vmatpush1.msra.mxu0 0.0
    %6208 = vmatprep.subr.mxu0 0.0
    %6209 = vmatpush1.msra.mxu0 0.0
    %6210 = vmatprep.subr.mxu0 0.0
    %6211 = vmatpush1.msra.mxu0 0.0
    %6212 = vmatprep.subr.mxu0 0.0
    %6213 = vmatpush1.msra.mxu0 0.0
    %6214 = vmatprep.mubr.f32.mxu0 0.0
    %6215 = vmatmul.mubr.f32.gmra.mrb[0].mxu0 %v5975
    %v6216 = vpop.f32.mrb[0].mxu0
    %v6217 = vadd.f32 %v1079, %v6216
    %v6218 = vpop.f32.mrb[0].mxu0
    %v6219 = vadd.f32 %v1083, %v6218
    %6220 = vdwg.mxu0
    %6221 = vmatprep.subr.mxu0 0.0
    %6222 = vmatpush1.msra.mxu0 %v980
    %6223 = vmatprep.subr.mxu0 0.0
    %6224 = vmatpush1.msra.mxu0 %v983
    %6225 = vmatprep.subr.mxu0 0.0
    %6226 = vmatpush1.msra.mxu0 %v986
    %6227 = vmatprep.subr.mxu0 0.0
    %6228 = vmatpush1.msra.mxu0 %v989
    %6229 = vmatprep.subr.mxu0 0.0
    %6230 = vmatpush1.msra.mxu0 %v992
    %6231 = vmatprep.subr.mxu0 0.0
    %6232 = vmatpush1.msra.mxu0 %v995
    %6233 = vmatprep.subr.mxu0 0.0
    %6234 = vmatpush1.msra.mxu0 %v998
    %6235 = vmatprep.subr.mxu0 0.0
    %6236 = vmatpush1.msra.mxu0 %v1001
    %6237 = vmatprep.subr.mxu0 0.0
    %6238 = vmatpush1.msra.mxu0 %v1004
    %6239 = vmatprep.subr.mxu0 0.0
    %6240 = vmatpush1.msra.mxu0 %v1007
    %6241 = vmatprep.subr.mxu0 0.0
    %6242 = vmatpush1.msra.mxu0 %v1010
    %6243 = vmatprep.subr.mxu0 0.0
    %6244 = vmatpush1.msra.mxu0 %v1013
    %6245 = vmatprep.subr.mxu0 0.0
    %6246 = vmatpush1.msra.mxu0 %v1016
    %6247 = vmatprep.subr.mxu0 0.0
    %6248 = vmatpush1.msra.mxu0 %v1019
    %6249 = vmatprep.subr.mxu0 0.0
    %6250 = vmatpush1.msra.mxu0 %v1022
    %6251 = vmatprep.subr.mxu0 0.0
    %6252 = vmatpush1.msra.mxu0 %v1025
    %6253 = vmatprep.subr.mxu0 0.0
    %6254 = vmatpush1.msra.mxu0 0.0
    %6255 = vmatprep.subr.mxu0 0.0
    %6256 = vmatpush1.msra.mxu0 0.0
    %6257 = vmatprep.subr.mxu0 0.0
    %6258 = vmatpush1.msra.mxu0 0.0
    %6259 = vmatprep.subr.mxu0 0.0
    %6260 = vmatpush1.msra.mxu0 0.0
    %6261 = vmatprep.subr.mxu0 0.0
    %6262 = vmatpush1.msra.mxu0 0.0
    %6263 = vmatprep.subr.mxu0 0.0
    %6264 = vmatpush1.msra.mxu0 0.0
    %6265 = vmatprep.subr.mxu0 0.0
    %6266 = vmatpush1.msra.mxu0 0.0
    %6267 = vmatprep.subr.mxu0 0.0
    %6268 = vmatpush1.msra.mxu0 0.0
    %6269 = vmatprep.subr.mxu0 0.0
    %6270 = vmatpush1.msra.mxu0 0.0
    %6271 = vmatprep.subr.mxu0 0.0
    %6272 = vmatpush1.msra.mxu0 0.0
    %6273 = vmatprep.subr.mxu0 0.0
    %6274 = vmatpush1.msra.mxu0 0.0
    %6275 = vmatprep.subr.mxu0 0.0
    %6276 = vmatpush1.msra.mxu0 0.0
    %6277 = vmatprep.subr.mxu0 0.0
    %6278 = vmatpush1.msra.mxu0 0.0
    %6279 = vmatprep.subr.mxu0 0.0
    %6280 = vmatpush1.msra.mxu0 0.0
    %6281 = vmatprep.subr.mxu0 0.0
    %6282 = vmatpush1.msra.mxu0 0.0
    %6283 = vmatprep.subr.mxu0 0.0
    %6284 = vmatpush1.msra.mxu0 0.0
    %6285 = vmatprep.mubr.f32.mxu0 0.0
    %6286 = vmatmul.mubr.f32.gmra.mrb[0].mxu0 %v5975
    %v6287 = vpop.f32.mrb[0].mxu0
    %v6288 = vadd.f32 %v1087, %v6287
    %v6289 = vpop.f32.mrb[0].mxu0
    %6290 = vdwg.mxu0
    %v6291 = vadd.f32 %v6147, %v6217
    %v6292 = vsub.f32 0.0, %v6291
    %v6293 = vmul.f32 %v6292, 1.442695
    %v6294 = vpow.pop %v6293
    %v6295 = vadd.f32 %v6294, 1.0
    %v6296 = vrcp.pop %v6295
    %v6297 = vmul.f32 1.0, %v6296
    %v6298 = vadd.f32 %v6148, %v6219
    %v6299 = vsub.f32 0.0, %v6298
    %v6300 = vmul.f32 %v6299, 1.442695
    %v6301 = vpow.pop %v6300
    %v6302 = vadd.f32 %v6301, 1.0
    %v6303 = vrcp.pop %v6302
    %v6304 = vmul.f32 1.0, %v6303
    %v6305 = vmul.f32 %v6297, %v6288
    %v6306 = vadd.f32 %v6149, %v6305
    %v6307 = vtanh.pop %v6306
    %v6308 = vsub.f32 1.0, %v6304
    %v6309 = vmul.f32 %v6308, %v6307
    %v6310 = vmul.f32 %v6304, %v5975
    %v6311 = vadd.f32 %v6309, %v6310
    %s6312 = scalar_lea.vmem [#allocation4], 120
    %6313 = vst [vmem:[%s6312] sm:$0xff] %v6311
    %v6314 = vld [vmem:[#allocation3] sm:$0xff]
    %v6315 = vld [vmem:[#allocation3 + $0x8] sm:$0xff]
    %v6316 = vld [vmem:[#allocation3 + $0x10] sm:$0xff]
    %6317 = vmatprep.subr.mxu0 %v1027
    %6318 = vmatpush1.msra.mxu0 %v1026
    %6319 = vmatprep.subr.mxu0 %v1030
    %6320 = vmatpush1.msra.mxu0 %v1029
    %6321 = vmatprep.subr.mxu0 %v1033
    %6322 = vmatpush1.msra.mxu0 %v1032
    %6323 = vmatprep.subr.mxu0 %v1036
    %6324 = vmatpush1.msra.mxu0 %v1035
    %6325 = vmatprep.subr.mxu0 %v1039
    %6326 = vmatpush1.msra.mxu0 %v1038
    %6327 = vmatprep.subr.mxu0 %v1042
    %6328 = vmatpush1.msra.mxu0 %v1041
    %6329 = vmatprep.subr.mxu0 %v1045
    %6330 = vmatpush1.msra.mxu0 %v1044
    %6331 = vmatprep.subr.mxu0 %v1048
    %6332 = vmatpush1.msra.mxu0 %v1047
    %6333 = vmatprep.subr.mxu0 %v1051
    %6334 = vmatpush1.msra.mxu0 %v1050
    %6335 = vmatprep.subr.mxu0 %v1054
    %6336 = vmatpush1.msra.mxu0 %v1053
    %6337 = vmatprep.subr.mxu0 %v1057
    %6338 = vmatpush1.msra.mxu0 %v1056
    %6339 = vmatprep.subr.mxu0 %v1060
    %6340 = vmatpush1.msra.mxu0 %v1059
    %6341 = vmatprep.subr.mxu0 %v1063
    %6342 = vmatpush1.msra.mxu0 %v1062
    %6343 = vmatprep.subr.mxu0 %v1066
    %6344 = vmatpush1.msra.mxu0 %v1065
    %6345 = vmatprep.subr.mxu0 %v1069
    %6346 = vmatpush1.msra.mxu0 %v1068
    %6347 = vmatprep.subr.mxu0 %v1072
    %6348 = vmatpush1.msra.mxu0 %v1071
    %6349 = vmatprep.subr.mxu0 0.0
    %6350 = vmatpush1.msra.mxu0 0.0
    %6351 = vmatprep.subr.mxu0 0.0
    %6352 = vmatpush1.msra.mxu0 0.0
    %6353 = vmatprep.subr.mxu0 0.0
    %6354 = vmatpush1.msra.mxu0 0.0
    %6355 = vmatprep.subr.mxu0 0.0
    %6356 = vmatpush1.msra.mxu0 0.0
    %6357 = vmatprep.subr.mxu0 0.0
    %6358 = vmatpush1.msra.mxu0 0.0
    %6359 = vmatprep.subr.mxu0 0.0
    %6360 = vmatpush1.msra.mxu0 0.0
    %6361 = vmatprep.subr.mxu0 0.0
    %6362 = vmatpush1.msra.mxu0 0.0
    %6363 = vmatprep.subr.mxu0 0.0
    %6364 = vmatpush1.msra.mxu0 0.0
    %6365 = vmatprep.subr.mxu0 0.0
    %6366 = vmatpush1.msra.mxu0 0.0
    %6367 = vmatprep.subr.mxu0 0.0
    %6368 = vmatpush1.msra.mxu0 0.0
    %6369 = vmatprep.subr.mxu0 0.0
    %6370 = vmatpush1.msra.mxu0 0.0
    %6371 = vmatprep.subr.mxu0 0.0
    %6372 = vmatpush1.msra.mxu0 0.0
    %6373 = vmatprep.subr.mxu0 0.0
    %6374 = vmatpush1.msra.mxu0 0.0
    %6375 = vmatprep.subr.mxu0 0.0
    %6376 = vmatpush1.msra.mxu0 0.0
    %6377 = vmatprep.subr.mxu0 0.0
    %6378 = vmatpush1.msra.mxu0 0.0
    %6379 = vmatprep.subr.mxu0 0.0
    %6380 = vmatpush1.msra.mxu0 0.0
    %6381 = vmatprep.mubr.f32.mxu0 0.0
    %6382 = vmatmul.mubr.f32.gmra.mrb[0].mxu0 %v6143
    %v6383 = vpop.f32.mrb[0].mxu0
    %v6384 = vadd.f32 %v1096, %v6383
    %v6385 = vpop.f32.mrb[0].mxu0
    %v6386 = vadd.f32 %v1100, %v6385
    %6387 = vdwg.mxu0
    %6388 = vmatprep.subr.mxu0 0.0
    %6389 = vmatpush1.msra.mxu0 %v1028
    %6390 = vmatprep.subr.mxu0 0.0
    %6391 = vmatpush1.msra.mxu0 %v1031
    %6392 = vmatprep.subr.mxu0 0.0
    %6393 = vmatpush1.msra.mxu0 %v1034
    %6394 = vmatprep.subr.mxu0 0.0
    %6395 = vmatpush1.msra.mxu0 %v1037
    %6396 = vmatprep.subr.mxu0 0.0
    %6397 = vmatpush1.msra.mxu0 %v1040
    %6398 = vmatprep.subr.mxu0 0.0
    %6399 = vmatpush1.msra.mxu0 %v1043
    %6400 = vmatprep.subr.mxu0 0.0
    %6401 = vmatpush1.msra.mxu0 %v1046
    %6402 = vmatprep.subr.mxu0 0.0
    %6403 = vmatpush1.msra.mxu0 %v1049
    %6404 = vmatprep.subr.mxu0 0.0
    %6405 = vmatpush1.msra.mxu0 %v1052
    %6406 = vmatprep.subr.mxu0 0.0
    %6407 = vmatpush1.msra.mxu0 %v1055
    %6408 = vmatprep.subr.mxu0 0.0
    %6409 = vmatpush1.msra.mxu0 %v1058
    %6410 = vmatprep.subr.mxu0 0.0
    %6411 = vmatpush1.msra.mxu0 %v1061
    %6412 = vmatprep.subr.mxu0 0.0
    %6413 = vmatpush1.msra.mxu0 %v1064
    %6414 = vmatprep.subr.mxu0 0.0
    %6415 = vmatpush1.msra.mxu0 %v1067
    %6416 = vmatprep.subr.mxu0 0.0
    %6417 = vmatpush1.msra.mxu0 %v1070
    %6418 = vmatprep.subr.mxu0 0.0
    %6419 = vmatpush1.msra.mxu0 %v1073
    %6420 = vmatprep.subr.mxu0 0.0
    %6421 = vmatpush1.msra.mxu0 0.0
    %6422 = vmatprep.subr.mxu0 0.0
    %6423 = vmatpush1.msra.mxu0 0.0
    %6424 = vmatprep.subr.mxu0 0.0
    %6425 = vmatpush1.msra.mxu0 0.0
    %6426 = vmatprep.subr.mxu0 0.0
    %6427 = vmatpush1.msra.mxu0 0.0
    %6428 = vmatprep.subr.mxu0 0.0
    %6429 = vmatpush1.msra.mxu0 0.0
    %6430 = vmatprep.subr.mxu0 0.0
    %6431 = vmatpush1.msra.mxu0 0.0
    %6432 = vmatprep.subr.mxu0 0.0
    %6433 = vmatpush1.msra.mxu0 0.0
    %6434 = vmatprep.subr.mxu0 0.0
    %6435 = vmatpush1.msra.mxu0 0.0
    %6436 = vmatprep.subr.mxu0 0.0
    %6437 = vmatpush1.msra.mxu0 0.0
    %6438 = vmatprep.subr.mxu0 0.0
    %6439 = vmatpush1.msra.mxu0 0.0
    %6440 = vmatprep.subr.mxu0 0.0
    %6441 = vmatpush1.msra.mxu0 0.0
    %6442 = vmatprep.subr.mxu0 0.0
    %6443 = vmatpush1.msra.mxu0 0.0
    %6444 = vmatprep.subr.mxu0 0.0
    %6445 = vmatpush1.msra.mxu0 0.0
    %6446 = vmatprep.subr.mxu0 0.0
    %6447 = vmatpush1.msra.mxu0 0.0
    %6448 = vmatprep.subr.mxu0 0.0
    %6449 = vmatpush1.msra.mxu0 0.0
    %6450 = vmatprep.subr.mxu0 0.0
    %6451 = vmatpush1.msra.mxu0 0.0
    %6452 = vmatprep.mubr.f32.mxu0 0.0
    %6453 = vmatmul.mubr.f32.gmra.mrb[0].mxu0 %v6143
    %v6454 = vpop.f32.mrb[0].mxu0
    %v6455 = vadd.f32 %v1104, %v6454
    %v6456 = vpop.f32.mrb[0].mxu0
    %6457 = vdwg.mxu0
    %v6458 = vadd.f32 %v6314, %v6384
    %v6459 = vsub.f32 0.0, %v6458
    %v6460 = vmul.f32 %v6459, 1.442695
    %v6461 = vpow.pop %v6460
    %v6462 = vadd.f32 %v6461, 1.0
    %v6463 = vrcp.pop %v6462
    %v6464 = vmul.f32 1.0, %v6463
    %v6465 = vadd.f32 %v6315, %v6386
    %v6466 = vsub.f32 0.0, %v6465
    %v6467 = vmul.f32 %v6466, 1.442695
    %v6468 = vpow.pop %v6467
    %v6469 = vadd.f32 %v6468, 1.0
    %v6470 = vrcp.pop %v6469
    %v6471 = vmul.f32 1.0, %v6470
    %v6472 = vmul.f32 %v6464, %v6455
    %v6473 = vadd.f32 %v6316, %v6472
    %v6474 = vtanh.pop %v6473
    %v6475 = vsub.f32 1.0, %v6471
    %v6476 = vmul.f32 %v6475, %v6474
    %v6477 = vmul.f32 %v6471, %v6143
    %v6478 = vadd.f32 %v6476, %v6477
    %6479 = vst [vmem:[#allocation5] sm:$0xff] %v6478
    %v6480 = vld [vmem:[#allocation4] sm:$0xff]
    %v6481 = vld [vmem:[#allocation4 + $0x8] sm:$0xff]
    %v6482 = vld [vmem:[#allocation4 + $0x10] sm:$0xff]
    %v6483 = vld [vmem:[#allocation4 + $0x18] sm:$0xff]
    %v6484 = vld [vmem:[#allocation4 + $0x20] sm:$0xff]
    %v6485 = vld [vmem:[#allocation4 + $0x28] sm:$0xff]
    %v6486 = vld [vmem:[#allocation4 + $0x30] sm:$0xff]
    %v6487 = vld [vmem:[#allocation4 + $0x38] sm:$0xff]
    %v6488 = vld [vmem:[#allocation4 + $0x40] sm:$0xff]
    %v6489 = vld [vmem:[#allocation4 + $0x48] sm:$0xff]
    %v6490 = vld [vmem:[#allocation4 + $0x50] sm:$0xff]
    %v6491 = vld [vmem:[#allocation4 + $0x58] sm:$0xff]
    %v6492 = vld [vmem:[#allocation4 + $0x60] sm:$0xff]
    %v6493 = vld [vmem:[#allocation4 + $0x68] sm:$0xff]
    %v6494 = vld [vmem:[#allocation4 + $0x70] sm:$0xff]
    %v6495 = vld [vmem:[#allocation4 + $0x78] sm:$0xff]
    %v6496 = vld [vmem:[#allocation5] sm:$0xff]
    %v6497 = vld [vmem:[#allocation5 + $0x8] sm:$0xff]
    %v6498 = vld [vmem:[#allocation5 + $0x10] sm:$0xff]
    %v6499 = vld [vmem:[#allocation5 + $0x18] sm:$0xff]
    %v6500 = vld [vmem:[#allocation5 + $0x20] sm:$0xff]
    %v6501 = vld [vmem:[#allocation5 + $0x28] sm:$0xff]
    %v6502 = vld [vmem:[#allocation5 + $0x30] sm:$0xff]
    %v6503 = vld [vmem:[#allocation5 + $0x38] sm:$0xff]
    %v6504 = vld [vmem:[#allocation5 + $0x40] sm:$0xff]
    %v6505 = vld [vmem:[#allocation5 + $0x48] sm:$0xff]
    %v6506 = vld [vmem:[#allocation5 + $0x50] sm:$0xff]
    %v6507 = vld [vmem:[#allocation5 + $0x58] sm:$0xff]
    %v6508 = vld [vmem:[#allocation5 + $0x60] sm:$0xff]
    %v6509 = vld [vmem:[#allocation5 + $0x68] sm:$0xff]
    %v6510 = vld [vmem:[#allocation5 + $0x70] sm:$0xff]
    %v6511 = vld [vmem:[#allocation5 + $0x78] sm:$0xff]
    %v6512 = vld [vmem:[#allocation15] sm:$0xff]
    %v6513 = vld [vmem:[#allocation15 + $0x8] sm:$0xff]
    %v6514 = vld [vmem:[#allocation15 + $0x10] sm:$0xff]
    %v6515 = vld [vmem:[#allocation15 + $0x18] sm:$0xff]
    %v6516 = vld [vmem:[#allocation15 + $0x20] sm:$0xff]
    %v6517 = vld [vmem:[#allocation15 + $0x28] sm:$0xff]
    %v6518 = vld [vmem:[#allocation15 + $0x30] sm:$0xff]
    %v6519 = vld [vmem:[#allocation15 + $0x38] sm:$0xff]
    %v6520 = vld [vmem:[#allocation15 + $0x40] sm:$0xff]
    %v6521 = vld [vmem:[#allocation15 + $0x48] sm:$0xff]
    %v6522 = vld [vmem:[#allocation15 + $0x50] sm:$0xff]
    %v6523 = vld [vmem:[#allocation15 + $0x58] sm:$0xff]
    %v6524 = vld [vmem:[#allocation15 + $0x60] sm:$0xff]
    %v6525 = vld [vmem:[#allocation15 + $0x68] sm:$0xff]
    %v6526 = vld [vmem:[#allocation15 + $0x70] sm:$0xff]
    %v6527 = vld [vmem:[#allocation15 + $0x78] sm:$0xff]
    %v6528 = vld [vmem:[#allocation15 + $0x80] sm:$0xff]
    %v6529 = vld [vmem:[#allocation15 + $0x88] sm:$0xff]
    %v6530 = vld [vmem:[#allocation15 + $0x90] sm:$0xff]
    %v6531 = vld [vmem:[#allocation15 + $0x98] sm:$0xff]
    %v6532 = vld [vmem:[#allocation15 + $0xa0] sm:$0xff]
    %v6533 = vld [vmem:[#allocation15 + $0xa8] sm:$0xff]
    %v6534 = vld [vmem:[#allocation15 + $0xb0] sm:$0xff]
    %v6535 = vld [vmem:[#allocation15 + $0xb8] sm:$0xff]
    %v6536 = vld [vmem:[#allocation15 + $0xc0] sm:$0xff]
    %v6537 = vld [vmem:[#allocation15 + $0xc8] sm:$0xff]
    %v6538 = vld [vmem:[#allocation15 + $0xd0] sm:$0xff]
    %v6539 = vld [vmem:[#allocation15 + $0xd8] sm:$0xff]
    %v6540 = vld [vmem:[#allocation15 + $0xe0] sm:$0xff]
    %v6541 = vld [vmem:[#allocation15 + $0xe8] sm:$0xff]
    %v6542 = vld [vmem:[#allocation15 + $0xf0] sm:$0xff]
    %v6543 = vld [vmem:[#allocation15 + $0xf8] sm:$0xff]
    %v6544 = vld [vmem:[#allocation15 + $0x100] sm:$0xff]
    %v6545 = vld [vmem:[#allocation15 + $0x108] sm:$0xff]
    %v6546 = vld [vmem:[#allocation15 + $0x110] sm:$0xff]
    %v6547 = vld [vmem:[#allocation15 + $0x118] sm:$0xff]
    %v6548 = vld [vmem:[#allocation15 + $0x120] sm:$0xff]
    %v6549 = vld [vmem:[#allocation15 + $0x128] sm:$0xff]
    %v6550 = vld [vmem:[#allocation15 + $0x130] sm:$0xff]
    %v6551 = vld [vmem:[#allocation15 + $0x138] sm:$0xff]
    %v6552 = vld [vmem:[#allocation15 + $0x140] sm:$0xff]
    %v6553 = vld [vmem:[#allocation15 + $0x148] sm:$0xff]
    %v6554 = vld [vmem:[#allocation15 + $0x150] sm:$0xff]
    %v6555 = vld [vmem:[#allocation15 + $0x158] sm:$0xff]
    %v6556 = vld [vmem:[#allocation15 + $0x160] sm:$0xff]
    %v6557 = vld [vmem:[#allocation15 + $0x168] sm:$0xff]
    %v6558 = vld [vmem:[#allocation15 + $0x170] sm:$0xff]
    %v6559 = vld [vmem:[#allocation15 + $0x178] sm:$0xff]
    %v6560 = vld [vmem:[#allocation15 + $0x180] sm:$0xff]
    %v6561 = vld [vmem:[#allocation15 + $0x188] sm:$0xff]
    %v6562 = vld [vmem:[#allocation15 + $0x190] sm:$0xff]
    %v6563 = vld [vmem:[#allocation15 + $0x198] sm:$0xff]
    %v6564 = vld [vmem:[#allocation15 + $0x1a0] sm:$0xff]
    %v6565 = vld [vmem:[#allocation15 + $0x1a8] sm:$0xff]
    %v6566 = vld [vmem:[#allocation15 + $0x1b0] sm:$0xff]
    %v6567 = vld [vmem:[#allocation15 + $0x1b8] sm:$0xff]
    %v6568 = vld [vmem:[#allocation15 + $0x1c0] sm:$0xff]
    %v6569 = vld [vmem:[#allocation15 + $0x1c8] sm:$0xff]
    %v6570 = vld [vmem:[#allocation15 + $0x1d0] sm:$0xff]
    %v6571 = vld [vmem:[#allocation15 + $0x1d8] sm:$0xff]
    %v6572 = vld [vmem:[#allocation15 + $0x1e0] sm:$0xff]
    %v6573 = vld [vmem:[#allocation15 + $0x1e8] sm:$0xff]
    %v6574 = vld [vmem:[#allocation15 + $0x1f0] sm:$0xff]
    %v6575 = vld [vmem:[#allocation15 + $0x1f8] sm:$0xff]
    %6576 = vmatprep.subr.mxu0 %v6545
    %6577 = vmatpush1.msra.mxu0 %v6544
    %6578 = vmatprep.subr.mxu0 %v6547
    %6579 = vmatpush1.msra.mxu0 %v6546
    %6580 = vmatprep.subr.mxu0 %v6549
    %6581 = vmatpush1.msra.mxu0 %v6548
    %6582 = vmatprep.subr.mxu0 %v6551
    %6583 = vmatpush1.msra.mxu0 %v6550
    %6584 = vmatprep.subr.mxu0 %v6553
    %6585 = vmatpush1.msra.mxu0 %v6552
    %6586 = vmatprep.subr.mxu0 %v6555
    %6587 = vmatpush1.msra.mxu0 %v6554
    %6588 = vmatprep.subr.mxu0 %v6557
    %6589 = vmatpush1.msra.mxu0 %v6556
    %6590 = vmatprep.subr.mxu0 %v6559
    %6591 = vmatpush1.msra.mxu0 %v6558
    %6592 = vmatprep.subr.mxu0 %v6561
    %6593 = vmatpush1.msra.mxu0 %v6560
    %6594 = vmatprep.subr.mxu0 %v6563
    %6595 = vmatpush1.msra.mxu0 %v6562
    %6596 = vmatprep.subr.mxu0 %v6565
    %6597 = vmatpush1.msra.mxu0 %v6564
    %6598 = vmatprep.subr.mxu0 %v6567
    %6599 = vmatpush1.msra.mxu0 %v6566
    %6600 = vmatprep.subr.mxu0 %v6569
    %6601 = vmatpush1.msra.mxu0 %v6568
    %6602 = vmatprep.subr.mxu0 %v6571
    %6603 = vmatpush1.msra.mxu0 %v6570
    %6604 = vmatprep.subr.mxu0 %v6573
    %6605 = vmatpush1.msra.mxu0 %v6572
    %6606 = vmatprep.subr.mxu0 %v6575
    %6607 = vmatpush1.msra.mxu0 %v6574
    %6608 = vmatprep.subr.mxu0 0.0
    %6609 = vmatpush1.msra.mxu0 0.0
    %6610 = vmatprep.subr.mxu0 0.0
    %6611 = vmatpush1.msra.mxu0 0.0
    %6612 = vmatprep.subr.mxu0 0.0
    %6613 = vmatpush1.msra.mxu0 0.0
    %6614 = vmatprep.subr.mxu0 0.0
    %6615 = vmatpush1.msra.mxu0 0.0
    %6616 = vmatprep.subr.mxu0 0.0
    %6617 = vmatpush1.msra.mxu0 0.0
    %6618 = vmatprep.subr.mxu0 0.0
    %6619 = vmatpush1.msra.mxu0 0.0
    %6620 = vmatprep.subr.mxu0 0.0
    %6621 = vmatpush1.msra.mxu0 0.0
    %6622 = vmatprep.subr.mxu0 0.0
    %6623 = vmatpush1.msra.mxu0 0.0
    %6624 = vmatprep.subr.mxu0 0.0
    %6625 = vmatpush1.msra.mxu0 0.0
    %6626 = vmatprep.subr.mxu0 0.0
    %6627 = vmatpush1.msra.mxu0 0.0
    %6628 = vmatprep.subr.mxu0 0.0
    %6629 = vmatpush1.msra.mxu0 0.0
    %6630 = vmatprep.subr.mxu0 0.0
    %6631 = vmatpush1.msra.mxu0 0.0
    %6632 = vmatprep.subr.mxu0 0.0
    %6633 = vmatpush1.msra.mxu0 0.0
    %6634 = vmatprep.subr.mxu0 0.0
    %6635 = vmatpush1.msra.mxu0 0.0
    %6636 = vmatprep.subr.mxu0 0.0
    %6637 = vmatpush1.msra.mxu0 0.0
    %6638 = vmatprep.subr.mxu0 0.0
    %6639 = vmatpush1.msra.mxu0 0.0
    %6640 = vmatprep.mubr.f32.mxu0 0.0
    %6641 = vmatmul.mubr.f32.gmra.mrb[0].mxu0 %v6496
    %v6642 = vpop.f32.mrb[0].mxu0
    %v6643 = vadd.f32 0.0, %v6642
    %v6644 = vpop.f32.mrb[0].mxu0
    %v6645 = vadd.f32 0.0, %v6644
    %6646 = vmatprep.mubr.f32.mxu0 0.0
    %6647 = vmatmul.mubr.f32.gmra.mrb[0].mxu0 %v6497
    %v6648 = vpop.f32.mrb[0].mxu0
    %v6649 = vadd.f32 0.0, %v6648
    %v6650 = vpop.f32.mrb[0].mxu0
    %v6651 = vadd.f32 0.0, %v6650
    %6652 = vmatprep.mubr.f32.mxu0 0.0
    %6653 = vmatmul.mubr.f32.gmra.mrb[0].mxu0 %v6498
    %v6654 = vpop.f32.mrb[0].mxu0
    %v6655 = vadd.f32 0.0, %v6654
    %v6656 = vpop.f32.mrb[0].mxu0
    %v6657 = vadd.f32 0.0, %v6656
    %6658 = vmatprep.mubr.f32.mxu0 0.0
    %6659 = vmatmul.mubr.f32.gmra.mrb[0].mxu0 %v6499
    %v6660 = vpop.f32.mrb[0].mxu0
    %v6661 = vadd.f32 0.0, %v6660
    %v6662 = vpop.f32.mrb[0].mxu0
    %v6663 = vadd.f32 0.0, %v6662
    %6664 = vmatprep.mubr.f32.mxu0 0.0
    %6665 = vmatmul.mubr.f32.gmra.mrb[0].mxu0 %v6500
    %v6666 = vpop.f32.mrb[0].mxu0
    %v6667 = vadd.f32 0.0, %v6666
    %v6668 = vpop.f32.mrb[0].mxu0
    %v6669 = vadd.f32 0.0, %v6668
    %6670 = vmatprep.mubr.f32.mxu0 0.0
    %6671 = vmatmul.mubr.f32.gmra.mrb[0].mxu0 %v6501
    %v6672 = vpop.f32.mrb[0].mxu0
    %v6673 = vadd.f32 0.0, %v6672
    %v6674 = vpop.f32.mrb[0].mxu0
    %v6675 = vadd.f32 0.0, %v6674
    %6676 = vmatprep.mubr.f32.mxu0 0.0
    %6677 = vmatmul.mubr.f32.gmra.mrb[0].mxu0 %v6502
    %v6678 = vpop.f32.mrb[0].mxu0
    %v6679 = vadd.f32 0.0, %v6678
    %v6680 = vpop.f32.mrb[0].mxu0
    %v6681 = vadd.f32 0.0, %v6680
    %6682 = vmatprep.mubr.f32.mxu0 0.0
    %6683 = vmatmul.mubr.f32.gmra.mrb[0].mxu0 %v6503
    %v6684 = vpop.f32.mrb[0].mxu0
    %v6685 = vadd.f32 0.0, %v6684
    %v6686 = vpop.f32.mrb[0].mxu0
    %v6687 = vadd.f32 0.0, %v6686
    %6688 = vmatprep.mubr.f32.mxu0 0.0
    %6689 = vmatmul.mubr.f32.gmra.mrb[0].mxu0 %v6504
    %v6690 = vpop.f32.mrb[0].mxu0
    %v6691 = vadd.f32 0.0, %v6690
    %v6692 = vpop.f32.mrb[0].mxu0
    %v6693 = vadd.f32 0.0, %v6692
    %6694 = vmatprep.mubr.f32.mxu0 0.0
    %6695 = vmatmul.mubr.f32.gmra.mrb[0].mxu0 %v6505
    %v6696 = vpop.f32.mrb[0].mxu0
    %v6697 = vadd.f32 0.0, %v6696
    %v6698 = vpop.f32.mrb[0].mxu0
    %v6699 = vadd.f32 0.0, %v6698
    %6700 = vmatprep.mubr.f32.mxu0 0.0
    %6701 = vmatmul.mubr.f32.gmra.mrb[0].mxu0 %v6506
    %v6702 = vpop.f32.mrb[0].mxu0
    %v6703 = vadd.f32 0.0, %v6702
    %v6704 = vpop.f32.mrb[0].mxu0
    %v6705 = vadd.f32 0.0, %v6704
    %6706 = vmatprep.mubr.f32.mxu0 0.0
    %6707 = vmatmul.mubr.f32.gmra.mrb[0].mxu0 %v6507
    %v6708 = vpop.f32.mrb[0].mxu0
    %v6709 = vadd.f32 0.0, %v6708
    %v6710 = vpop.f32.mrb[0].mxu0
    %v6711 = vadd.f32 0.0, %v6710
    %6712 = vmatprep.mubr.f32.mxu0 0.0
    %6713 = vmatmul.mubr.f32.gmra.mrb[0].mxu0 %v6508
    %v6714 = vpop.f32.mrb[0].mxu0
    %v6715 = vadd.f32 0.0, %v6714
    %v6716 = vpop.f32.mrb[0].mxu0
    %v6717 = vadd.f32 0.0, %v6716
    %6718 = vmatprep.mubr.f32.mxu0 0.0
    %6719 = vmatmul.mubr.f32.gmra.mrb[0].mxu0 %v6509
    %v6720 = vpop.f32.mrb[0].mxu0
    %v6721 = vadd.f32 0.0, %v6720
    %v6722 = vpop.f32.mrb[0].mxu0
    %v6723 = vadd.f32 0.0, %v6722
    %6724 = vmatprep.mubr.f32.mxu0 0.0
    %6725 = vmatmul.mubr.f32.gmra.mrb[0].mxu0 %v6510
    %v6726 = vpop.f32.mrb[0].mxu0
    %v6727 = vadd.f32 0.0, %v6726
    %v6728 = vpop.f32.mrb[0].mxu0
    %v6729 = vadd.f32 0.0, %v6728
    %6730 = vmatprep.mubr.f32.mxu0 0.0
    %6731 = vmatmul.mubr.f32.gmra.mrb[0].mxu0 %v6511
    %v6732 = vpop.f32.mrb[0].mxu0
    %v6733 = vadd.f32 0.0, %v6732
    %v6734 = vpop.f32.mrb[0].mxu0
    %v6735 = vadd.f32 0.0, %v6734
    %6736 = vdwg.mxu0
    %6737 = vmatprep.subr.mxu0 %v6513
    %6738 = vmatpush1.msra.mxu0 %v6512
    %6739 = vmatprep.subr.mxu0 %v6515
    %6740 = vmatpush1.msra.mxu0 %v6514
    %6741 = vmatprep.subr.mxu0 %v6517
    %6742 = vmatpush1.msra.mxu0 %v6516
    %6743 = vmatprep.subr.mxu0 %v6519
    %6744 = vmatpush1.msra.mxu0 %v6518
    %6745 = vmatprep.subr.mxu0 %v6521
    %6746 = vmatpush1.msra.mxu0 %v6520
    %6747 = vmatprep.subr.mxu0 %v6523
    %6748 = vmatpush1.msra.mxu0 %v6522
    %6749 = vmatprep.subr.mxu0 %v6525
    %6750 = vmatpush1.msra.mxu0 %v6524
    %6751 = vmatprep.subr.mxu0 %v6527
    %6752 = vmatpush1.msra.mxu0 %v6526
    %6753 = vmatprep.subr.mxu0 %v6529
    %6754 = vmatpush1.msra.mxu0 %v6528
    %6755 = vmatprep.subr.mxu0 %v6531
    %6756 = vmatpush1.msra.mxu0 %v6530
    %6757 = vmatprep.subr.mxu0 %v6533
    %6758 = vmatpush1.msra.mxu0 %v6532
    %6759 = vmatprep.subr.mxu0 %v6535
    %6760 = vmatpush1.msra.mxu0 %v6534
    %6761 = vmatprep.subr.mxu0 %v6537
    %6762 = vmatpush1.msra.mxu0 %v6536
    %6763 = vmatprep.subr.mxu0 %v6539
    %6764 = vmatpush1.msra.mxu0 %v6538
    %6765 = vmatprep.subr.mxu0 %v6541
    %6766 = vmatpush1.msra.mxu0 %v6540
    %6767 = vmatprep.subr.mxu0 %v6543
    %6768 = vmatpush1.msra.mxu0 %v6542
    %6769 = vmatprep.subr.mxu0 0.0
    %6770 = vmatpush1.msra.mxu0 0.0
    %6771 = vmatprep.subr.mxu0 0.0
    %6772 = vmatpush1.msra.mxu0 0.0
    %6773 = vmatprep.subr.mxu0 0.0
    %6774 = vmatpush1.msra.mxu0 0.0
    %6775 = vmatprep.subr.mxu0 0.0
    %6776 = vmatpush1.msra.mxu0 0.0
    %6777 = vmatprep.subr.mxu0 0.0
    %6778 = vmatpush1.msra.mxu0 0.0
    %6779 = vmatprep.subr.mxu0 0.0
    %6780 = vmatpush1.msra.mxu0 0.0
    %6781 = vmatprep.subr.mxu0 0.0
    %6782 = vmatpush1.msra.mxu0 0.0
    %6783 = vmatprep.subr.mxu0 0.0
    %6784 = vmatpush1.msra.mxu0 0.0
    %6785 = vmatprep.subr.mxu0 0.0
    %6786 = vmatpush1.msra.mxu0 0.0
    %6787 = vmatprep.subr.mxu0 0.0
    %6788 = vmatpush1.msra.mxu0 0.0
    %6789 = vmatprep.subr.mxu0 0.0
    %6790 = vmatpush1.msra.mxu0 0.0
    %6791 = vmatprep.subr.mxu0 0.0
    %6792 = vmatpush1.msra.mxu0 0.0
    %6793 = vmatprep.subr.mxu0 0.0
    %6794 = vmatpush1.msra.mxu0 0.0
    %6795 = vmatprep.subr.mxu0 0.0
    %6796 = vmatpush1.msra.mxu0 0.0
    %6797 = vmatprep.subr.mxu0 0.0
    %6798 = vmatpush1.msra.mxu0 0.0
    %6799 = vmatprep.subr.mxu0 0.0
    %6800 = vmatpush1.msra.mxu0 0.0
    %6801 = vmatprep.mubr.f32.mxu0 0.0
    %6802 = vmatmul.mubr.f32.gmra.mrb[0].mxu0 %v6480
    %v6803 = vpop.f32.mrb[0].mxu0
    %v6804 = vadd.f32 %v6643, %v6803
    %v6805 = vpop.f32.mrb[0].mxu0
    %v6806 = vadd.f32 %v6645, %v6805
    %6807 = vmatprep.mubr.f32.mxu0 0.0
    %6808 = vmatmul.mubr.f32.gmra.mrb[0].mxu0 %v6481
    %v6809 = vpop.f32.mrb[0].mxu0
    %v6810 = vadd.f32 %v6649, %v6809
    %v6811 = vpop.f32.mrb[0].mxu0
    %v6812 = vadd.f32 %v6651, %v6811
    %6813 = vmatprep.mubr.f32.mxu0 0.0
    %6814 = vmatmul.mubr.f32.gmra.mrb[0].mxu0 %v6482
    %v6815 = vpop.f32.mrb[0].mxu0
    %v6816 = vadd.f32 %v6655, %v6815
    %v6817 = vpop.f32.mrb[0].mxu0
    %v6818 = vadd.f32 %v6657, %v6817
    %6819 = vmatprep.mubr.f32.mxu0 0.0
    %6820 = vmatmul.mubr.f32.gmra.mrb[0].mxu0 %v6483
    %v6821 = vpop.f32.mrb[0].mxu0
    %v6822 = vadd.f32 %v6661, %v6821
    %v6823 = vpop.f32.mrb[0].mxu0
    %v6824 = vadd.f32 %v6663, %v6823
    %6825 = vmatprep.mubr.f32.mxu0 0.0
    %6826 = vmatmul.mubr.f32.gmra.mrb[0].mxu0 %v6484
    %v6827 = vpop.f32.mrb[0].mxu0
    %v6828 = vadd.f32 %v6667, %v6827
    %v6829 = vpop.f32.mrb[0].mxu0
    %v6830 = vadd.f32 %v6669, %v6829
    %6831 = vmatprep.mubr.f32.mxu0 0.0
    %6832 = vmatmul.mubr.f32.gmra.mrb[0].mxu0 %v6485
    %v6833 = vpop.f32.mrb[0].mxu0
    %v6834 = vadd.f32 %v6673, %v6833
    %v6835 = vpop.f32.mrb[0].mxu0
    %v6836 = vadd.f32 %v6675, %v6835
    %6837 = vmatprep.mubr.f32.mxu0 0.0
    %6838 = vmatmul.mubr.f32.gmra.mrb[0].mxu0 %v6486
    %v6839 = vpop.f32.mrb[0].mxu0
    %v6840 = vadd.f32 %v6679, %v6839
    %v6841 = vpop.f32.mrb[0].mxu0
    %v6842 = vadd.f32 %v6681, %v6841
    %6843 = vmatprep.mubr.f32.mxu0 0.0
    %6844 = vmatmul.mubr.f32.gmra.mrb[0].mxu0 %v6487
    %v6845 = vpop.f32.mrb[0].mxu0
    %v6846 = vadd.f32 %v6685, %v6845
    %v6847 = vpop.f32.mrb[0].mxu0
    %v6848 = vadd.f32 %v6687, %v6847
    %6849 = vmatprep.mubr.f32.mxu0 0.0
    %6850 = vmatmul.mubr.f32.gmra.mrb[0].mxu0 %v6488
    %v6851 = vpop.f32.mrb[0].mxu0
    %v6852 = vadd.f32 %v6691, %v6851
    %v6853 = vpop.f32.mrb[0].mxu0
    %v6854 = vadd.f32 %v6693, %v6853
    %6855 = vmatprep.mubr.f32.mxu0 0.0
    %6856 = vmatmul.mubr.f32.gmra.mrb[0].mxu0 %v6489
    %v6857 = vpop.f32.mrb[0].mxu0
    %v6858 = vadd.f32 %v6697, %v6857
    %v6859 = vpop.f32.mrb[0].mxu0
    %v6860 = vadd.f32 %v6699, %v6859
    %6861 = vmatprep.mubr.f32.mxu0 0.0
    %6862 = vmatmul.mubr.f32.gmra.mrb[0].mxu0 %v6490
    %v6863 = vpop.f32.mrb[0].mxu0
    %v6864 = vadd.f32 %v6703, %v6863
    %v6865 = vpop.f32.mrb[0].mxu0
    %v6866 = vadd.f32 %v6705, %v6865
    %6867 = vmatprep.mubr.f32.mxu0 0.0
    %6868 = vmatmul.mubr.f32.gmra.mrb[0].mxu0 %v6491
    %v6869 = vpop.f32.mrb[0].mxu0
    %v6870 = vadd.f32 %v6709, %v6869
    %v6871 = vpop.f32.mrb[0].mxu0
    %v6872 = vadd.f32 %v6711, %v6871
    %6873 = vmatprep.mubr.f32.mxu0 0.0
    %6874 = vmatmul.mubr.f32.gmra.mrb[0].mxu0 %v6492
    %v6875 = vpop.f32.mrb[0].mxu0
    %v6876 = vadd.f32 %v6715, %v6875
    %v6877 = vpop.f32.mrb[0].mxu0
    %v6878 = vadd.f32 %v6717, %v6877
    %6879 = vmatprep.mubr.f32.mxu0 0.0
    %6880 = vmatmul.mubr.f32.gmra.mrb[0].mxu0 %v6493
    %v6881 = vpop.f32.mrb[0].mxu0
    %v6882 = vadd.f32 %v6721, %v6881
    %v6883 = vpop.f32.mrb[0].mxu0
    %v6884 = vadd.f32 %v6723, %v6883
    %6885 = vmatprep.mubr.f32.mxu0 0.0
    %6886 = vmatmul.mubr.f32.gmra.mrb[0].mxu0 %v6494
    %v6887 = vpop.f32.mrb[0].mxu0
    %v6888 = vadd.f32 %v6727, %v6887
    %v6889 = vpop.f32.mrb[0].mxu0
    %v6890 = vadd.f32 %v6729, %v6889
    %6891 = vmatprep.mubr.f32.mxu0 0.0
    %6892 = vmatmul.mubr.f32.gmra.mrb[0].mxu0 %v6495
    %v6893 = vpop.f32.mrb[0].mxu0
    %v6894 = vadd.f32 %v6733, %v6893
    %v6895 = vpop.f32.mrb[0].mxu0
    %v6896 = vadd.f32 %v6735, %v6895
    %6897 = vdwg.mxu0
    %v6898 = vld [vmem:[%s10] sm:$0x3]
    %v6900 = vlaneseq
    %v6901 = vshrl.u32 %v6900, 7
    %v6902 = vsub.s32 0, %v6901
    %v6903 = vrot.slane %v6898, %v6902
    %v6904 = vlaneseq
    %v6905 = vshrl.u32 %v6904, 7
    %v6906 = vsub.s32 1, %v6905
    %v6907 = vrot.slane %v6898, %v6906
    %v6910 = vadd.f32 %v6804, %v6903
    %v6911 = vadd.f32 %v6806, %v6907
    %v6912 = vadd.f32 %v6810, %v6903
    %v6913 = vadd.f32 %v6812, %v6907
    %v6914 = vadd.f32 %v6816, %v6903
    %v6915 = vadd.f32 %v6818, %v6907
    %v6916 = vadd.f32 %v6822, %v6903
    %v6917 = vadd.f32 %v6824, %v6907
    %v6918 = vadd.f32 %v6828, %v6903
    %v6919 = vadd.f32 %v6830, %v6907
    %v6920 = vadd.f32 %v6834, %v6903
    %v6921 = vadd.f32 %v6836, %v6907
    %v6922 = vadd.f32 %v6840, %v6903
    %v6923 = vadd.f32 %v6842, %v6907
    %v6924 = vadd.f32 %v6846, %v6903
    %v6925 = vadd.f32 %v6848, %v6907
    %v6926 = vadd.f32 %v6852, %v6903
    %v6927 = vadd.f32 %v6854, %v6907
    %v6928 = vadd.f32 %v6858, %v6903
    %v6929 = vadd.f32 %v6860, %v6907
    %v6930 = vadd.f32 %v6864, %v6903
    %v6931 = vadd.f32 %v6866, %v6907
    %v6932 = vadd.f32 %v6870, %v6903
    %v6933 = vadd.f32 %v6872, %v6907
    %v6934 = vadd.f32 %v6876, %v6903
    %v6935 = vadd.f32 %v6878, %v6907
    %v6936 = vadd.f32 %v6882, %v6903
    %v6937 = vadd.f32 %v6884, %v6907
    %v6938 = vadd.f32 %v6888, %v6903
    %v6939 = vadd.f32 %v6890, %v6907
    %v6940 = vadd.f32 %v6894, %v6903
    %v6941 = vadd.f32 %v6896, %v6907
    %v6942 = vtanh.pop %v6910
    %v6943 = vtanh.pop %v6911
    %v6944 = vtanh.pop %v6912
    %v6945 = vtanh.pop %v6913
    %v6946 = vtanh.pop %v6914
    %v6947 = vtanh.pop %v6915
    %v6948 = vtanh.pop %v6916
    %v6949 = vtanh.pop %v6917
    %v6950 = vtanh.pop %v6918
    %v6951 = vtanh.pop %v6919
    %v6952 = vtanh.pop %v6920
    %v6953 = vtanh.pop %v6921
    %v6954 = vtanh.pop %v6922
    %v6955 = vtanh.pop %v6923
    %v6956 = vtanh.pop %v6924
    %v6957 = vtanh.pop %v6925
    %v6958 = vtanh.pop %v6926
    %v6959 = vtanh.pop %v6927
    %v6960 = vtanh.pop %v6928
    %v6961 = vtanh.pop %v6929
    %v6962 = vtanh.pop %v6930
    %v6963 = vtanh.pop %v6931
    %v6964 = vtanh.pop %v6932
    %v6965 = vtanh.pop %v6933
    %v6966 = vtanh.pop %v6934
    %v6967 = vtanh.pop %v6935
    %v6968 = vtanh.pop %v6936
    %v6969 = vtanh.pop %v6937
    %v6970 = vtanh.pop %v6938
    %v6971 = vtanh.pop %v6939
    %v6972 = vtanh.pop %v6940
    %v6973 = vtanh.pop %v6941
    %v6974 = vld [vmem:[%s11] sm:$0x3]
    %v6976 = vlaneseq
    %v6977 = vshrl.u32 %v6976, 7
    %v6978 = vsub.s32 0, %v6977
    %v6979 = vrot.slane %v6974, %v6978
    %v6980 = vlaneseq
    %v6981 = vshrl.u32 %v6980, 7
    %v6982 = vsub.s32 1, %v6981
    %v6983 = vrot.slane %v6974, %v6982
    %v6986 = vmul.f32 %v6942, %v6979
    %v6987 = vmul.f32 %v6943, %v6983
    %v6988 = vmul.f32 %v6944, %v6979
    %v6989 = vmul.f32 %v6945, %v6983
    %v6990 = vmul.f32 %v6946, %v6979
    %v6991 = vmul.f32 %v6947, %v6983
    %v6992 = vmul.f32 %v6948, %v6979
    %v6993 = vmul.f32 %v6949, %v6983
    %v6994 = vmul.f32 %v6950, %v6979
    %v6995 = vmul.f32 %v6951, %v6983
    %v6996 = vmul.f32 %v6952, %v6979
    %v6997 = vmul.f32 %v6953, %v6983
    %v6998 = vmul.f32 %v6954, %v6979
    %v6999 = vmul.f32 %v6955, %v6983
    %v7000 = vmul.f32 %v6956, %v6979
    %v7001 = vmul.f32 %v6957, %v6983
    %v7002 = vmul.f32 %v6958, %v6979
    %v7003 = vmul.f32 %v6959, %v6983
    %v7004 = vmul.f32 %v6960, %v6979
    %v7005 = vmul.f32 %v6961, %v6983
    %v7006 = vmul.f32 %v6962, %v6979
    %v7007 = vmul.f32 %v6963, %v6983
    %v7008 = vmul.f32 %v6964, %v6979
    %v7009 = vmul.f32 %v6965, %v6983
    %v7010 = vmul.f32 %v6966, %v6979
    %v7011 = vmul.f32 %v6967, %v6983
    %v7012 = vmul.f32 %v6968, %v6979
    %v7013 = vmul.f32 %v6969, %v6983
    %v7014 = vmul.f32 %v6970, %v6979
    %v7015 = vmul.f32 %v6971, %v6983
    %v7016 = vmul.f32 %v6972, %v6979
    %v7017 = vmul.f32 %v6973, %v6983
    %v7018 = vadd.f32 %v6986, %v6987
    %7019 = vadd.xlane.f32.xlu0 %v7018
    %v7020 = vpop.xlane.xlu0 %7019
    %v7021 = vadd.f32 %v6988, %v6989
    %7022 = vadd.xlane.f32.xlu0 %v7021
    %v7023 = vpop.xlane.xlu0 %7022
    %v7024 = vadd.f32 %v6990, %v6991
    %7025 = vadd.xlane.f32.xlu0 %v7024
    %v7026 = vpop.xlane.xlu0 %7025
    %v7027 = vadd.f32 %v6992, %v6993
    %7028 = vadd.xlane.f32.xlu0 %v7027
    %v7029 = vpop.xlane.xlu0 %7028
    %v7030 = vadd.f32 %v6994, %v6995
    %7031 = vadd.xlane.f32.xlu0 %v7030
    %v7032 = vpop.xlane.xlu0 %7031
    %v7033 = vadd.f32 %v6996, %v6997
    %7034 = vadd.xlane.f32.xlu0 %v7033
    %v7035 = vpop.xlane.xlu0 %7034
    %v7036 = vadd.f32 %v6998, %v6999
    %7037 = vadd.xlane.f32.xlu0 %v7036
    %v7038 = vpop.xlane.xlu0 %7037
    %v7039 = vadd.f32 %v7000, %v7001
    %7040 = vadd.xlane.f32.xlu0 %v7039
    %v7041 = vpop.xlane.xlu0 %7040
    %v7042 = vadd.f32 %v7002, %v7003
    %7043 = vadd.xlane.f32.xlu0 %v7042
    %v7044 = vpop.xlane.xlu0 %7043
    %v7045 = vadd.f32 %v7004, %v7005
    %7046 = vadd.xlane.f32.xlu0 %v7045
    %v7047 = vpop.xlane.xlu0 %7046
    %v7048 = vadd.f32 %v7006, %v7007
    %7049 = vadd.xlane.f32.xlu0 %v7048
    %v7050 = vpop.xlane.xlu0 %7049
    %v7051 = vadd.f32 %v7008, %v7009
    %7052 = vadd.xlane.f32.xlu0 %v7051
    %v7053 = vpop.xlane.xlu0 %7052
    %v7054 = vadd.f32 %v7010, %v7011
    %7055 = vadd.xlane.f32.xlu0 %v7054
    %v7056 = vpop.xlane.xlu0 %7055
    %v7057 = vadd.f32 %v7012, %v7013
    %7058 = vadd.xlane.f32.xlu0 %v7057
    %v7059 = vpop.xlane.xlu0 %7058
    %v7060 = vadd.f32 %v7014, %v7015
    %7061 = vadd.xlane.f32.xlu0 %v7060
    %v7062 = vpop.xlane.xlu0 %7061
    %v7063 = vadd.f32 %v7016, %v7017
    %7064 = vadd.xlane.f32.xlu0 %v7063
    %v7065 = vpop.xlane.xlu0 %7064
    %v7066 = vtanh.pop %v7020
    %v7067 = vtanh.pop %v7023
    %v7068 = vtanh.pop %v7026
    %v7069 = vtanh.pop %v7029
    %v7070 = vtanh.pop %v7032
    %v7071 = vtanh.pop %v7035
    %v7072 = vtanh.pop %v7038
    %v7073 = vtanh.pop %v7041
    %v7074 = vtanh.pop %v7044
    %v7075 = vtanh.pop %v7047
    %v7076 = vtanh.pop %v7050
    %v7077 = vtanh.pop %v7053
    %v7078 = vtanh.pop %v7056
    %v7079 = vtanh.pop %v7059
    %v7080 = vtanh.pop %v7062
    %v7081 = vtanh.pop %v7065
    %v7082 = vmax.f32 %v7066, %v7070
    %v7083 = vmax.f32 %v7067, %v7071
    %v7084 = vmax.f32 %v7068, %v7072
    %v7085 = vmax.f32 %v7069, %v7073
    %v7086 = vmax.f32 %v7082, %v7074
    %v7087 = vmax.f32 %v7083, %v7075
    %v7088 = vmax.f32 %v7084, %v7076
    %v7089 = vmax.f32 %v7085, %v7077
    %v7090 = vmax.f32 %v7086, %v7078
    %v7091 = vmax.f32 %v7087, %v7079
    %v7092 = vmax.f32 %v7088, %v7080
    %v7093 = vmax.f32 %v7089, %v7081
    %v7094 = vmax.f32 %v7090, %v7091
    %v7095 = vmax.f32 %v7092, %v7093
    %v7096 = vmax.f32 %v7094, %v7095
    %v7097 = vsub.f32 %v7066, %v7096
    %v7098 = vsub.f32 %v7067, %v7096
    %v7099 = vsub.f32 %v7068, %v7096
    %v7100 = vsub.f32 %v7069, %v7096
    %v7101 = vsub.f32 %v7070, %v7096
    %v7102 = vsub.f32 %v7071, %v7096
    %v7103 = vsub.f32 %v7072, %v7096
    %v7104 = vsub.f32 %v7073, %v7096
    %v7105 = vsub.f32 %v7074, %v7096
    %v7106 = vsub.f32 %v7075, %v7096
    %v7107 = vsub.f32 %v7076, %v7096
    %v7108 = vsub.f32 %v7077, %v7096
    %v7109 = vsub.f32 %v7078, %v7096
    %v7110 = vsub.f32 %v7079, %v7096
    %v7111 = vsub.f32 %v7080, %v7096
    %v7112 = vsub.f32 %v7081, %v7096
    %v7113 = vmul.f32 %v7097, 1.442695
    %v7114 = vpow.pop %v7113
    %v7115 = vmul.f32 %v7098, 1.442695
    %v7116 = vpow.pop %v7115
    %v7117 = vmul.f32 %v7099, 1.442695
    %v7118 = vpow.pop %v7117
    %v7119 = vmul.f32 %v7100, 1.442695
    %v7120 = vpow.pop %v7119
    %v7121 = vmul.f32 %v7101, 1.442695
    %v7122 = vpow.pop %v7121
    %v7123 = vmul.f32 %v7102, 1.442695
    %v7124 = vpow.pop %v7123
    %v7125 = vmul.f32 %v7103, 1.442695
    %v7126 = vpow.pop %v7125
    %v7127 = vmul.f32 %v7104, 1.442695
    %v7128 = vpow.pop %v7127
    %v7129 = vmul.f32 %v7105, 1.442695
    %v7130 = vpow.pop %v7129
    %v7131 = vmul.f32 %v7106, 1.442695
    %v7132 = vpow.pop %v7131
    %v7133 = vmul.f32 %v7107, 1.442695
    %v7134 = vpow.pop %v7133
    %v7135 = vmul.f32 %v7108, 1.442695
    %v7136 = vpow.pop %v7135
    %v7137 = vmul.f32 %v7109, 1.442695
    %v7138 = vpow.pop %v7137
    %v7139 = vmul.f32 %v7110, 1.442695
    %v7140 = vpow.pop %v7139
    %v7141 = vmul.f32 %v7111, 1.442695
    %v7142 = vpow.pop %v7141
    %v7143 = vmul.f32 %v7112, 1.442695
    %v7144 = vpow.pop %v7143
    %v7145 = vadd.f32 %v7114, %v7116
    %v7146 = vadd.f32 %v7145, %v7118
    %v7147 = vadd.f32 %v7146, %v7120
    %v7148 = vadd.f32 %v7147, %v7122
    %v7149 = vadd.f32 %v7148, %v7124
    %v7150 = vadd.f32 %v7149, %v7126
    %v7151 = vadd.f32 %v7150, %v7128
    %v7152 = vadd.f32 %v7151, %v7130
    %v7153 = vadd.f32 %v7152, %v7132
    %v7154 = vadd.f32 %v7153, %v7134
    %v7155 = vadd.f32 %v7154, %v7136
    %v7156 = vadd.f32 %v7155, %v7138
    %v7157 = vadd.f32 %v7156, %v7140
    %v7158 = vadd.f32 %v7157, %v7142
    %v7159 = vadd.f32 %v7158, %v7144
    %v7160 = vrcp.pop %v7159
    %v7161 = vmul.f32 %v7114, %v7160
    %v7162 = vmul.f32 %v7116, %v7160
    %v7163 = vmul.f32 %v7118, %v7160
    %v7164 = vmul.f32 %v7120, %v7160
    %v7165 = vmul.f32 %v7122, %v7160
    %v7166 = vmul.f32 %v7124, %v7160
    %v7167 = vmul.f32 %v7126, %v7160
    %v7168 = vmul.f32 %v7128, %v7160
    %v7169 = vmul.f32 %v7130, %v7160
    %v7170 = vmul.f32 %v7132, %v7160
    %v7171 = vmul.f32 %v7134, %v7160
    %v7172 = vmul.f32 %v7136, %v7160
    %v7173 = vmul.f32 %v7138, %v7160
    %v7174 = vmul.f32 %v7140, %v7160
    %v7175 = vmul.f32 %v7142, %v7160
    %v7176 = vmul.f32 %v7144, %v7160
    %v7177 = vmul.f32 %v6480, %v7161
    %v7178 = vmul.f32 %v6481, %v7162
    %v7179 = vmul.f32 %v6482, %v7163
    %v7180 = vmul.f32 %v6483, %v7164
    %v7181 = vmul.f32 %v6484, %v7165
    %v7182 = vmul.f32 %v6485, %v7166
    %v7183 = vmul.f32 %v6486, %v7167
    %v7184 = vmul.f32 %v6487, %v7168
    %v7185 = vmul.f32 %v6488, %v7169
    %v7186 = vmul.f32 %v6489, %v7170
    %v7187 = vmul.f32 %v6490, %v7171
    %v7188 = vmul.f32 %v6491, %v7172
    %v7189 = vmul.f32 %v6492, %v7173
    %v7190 = vmul.f32 %v6493, %v7174
    %v7191 = vmul.f32 %v6494, %v7175
    %v7192 = vmul.f32 %v6495, %v7176
    %v7193 = vadd.f32 %v7177, %v7178
    %v7194 = vadd.f32 %v7193, %v7179
    %v7195 = vadd.f32 %v7194, %v7180
    %v7196 = vadd.f32 %v7195, %v7181
    %v7197 = vadd.f32 %v7196, %v7182
    %v7198 = vadd.f32 %v7197, %v7183
    %v7199 = vadd.f32 %v7198, %v7184
    %v7200 = vadd.f32 %v7199, %v7185
    %v7201 = vadd.f32 %v7200, %v7186
    %v7202 = vadd.f32 %v7201, %v7187
    %v7203 = vadd.f32 %v7202, %v7188
    %v7204 = vadd.f32 %v7203, %v7189
    %v7205 = vadd.f32 %v7204, %v7190
    %v7206 = vadd.f32 %v7205, %v7191
    %v7207 = vadd.f32 %v7206, %v7192
    %7208 = vst [vmem:[#allocation17] sm:$0xff] %v7207
    %v7209 = vmul.f32 %v6496, %v7161
    %v7210 = vmul.f32 %v6497, %v7162
    %v7211 = vmul.f32 %v6498, %v7163
    %v7212 = vmul.f32 %v6499, %v7164
    %v7213 = vmul.f32 %v6500, %v7165
    %v7214 = vmul.f32 %v6501, %v7166
    %v7215 = vmul.f32 %v6502, %v7167
    %v7216 = vmul.f32 %v6503, %v7168
    %v7217 = vmul.f32 %v6504, %v7169
    %v7218 = vmul.f32 %v6505, %v7170
    %v7219 = vmul.f32 %v6506, %v7171
    %v7220 = vmul.f32 %v6507, %v7172
    %v7221 = vmul.f32 %v6508, %v7173
    %v7222 = vmul.f32 %v6509, %v7174
    %v7223 = vmul.f32 %v6510, %v7175
    %v7224 = vmul.f32 %v6511, %v7176
    %v7225 = vadd.f32 %v7209, %v7210
    %v7226 = vadd.f32 %v7225, %v7211
    %v7227 = vadd.f32 %v7226, %v7212
    %v7228 = vadd.f32 %v7227, %v7213
    %v7229 = vadd.f32 %v7228, %v7214
    %v7230 = vadd.f32 %v7229, %v7215
    %v7231 = vadd.f32 %v7230, %v7216
    %v7232 = vadd.f32 %v7231, %v7217
    %v7233 = vadd.f32 %v7232, %v7218
    %v7234 = vadd.f32 %v7233, %v7219
    %v7235 = vadd.f32 %v7234, %v7220
    %v7236 = vadd.f32 %v7235, %v7221
    %v7237 = vadd.f32 %v7236, %v7222
    %v7238 = vadd.f32 %v7237, %v7223
    %v7239 = vadd.f32 %v7238, %v7224
    %7240 = vst [vmem:[#allocation17 + $0x8] sm:$0xff] %v7239
    // Predicated region
    $region74: #{tpu_custom_call.1} parent=1 // pred_check
      _
    $region75: #{tpu_custom_call.1} parent=1 // pred_check_branch
      %7242 = sbr.rel (0) target = $region77
    $region76: #{tpu_custom_call.1} parent=1 // pred_region
      %s7244 = ssub.s32 256, 256
      %7245 = vsyncadd [#allocation8], %s7244
      %s7247 = sshll.u32 [#allocation17], 4
      %s7248 = int_to_ptr.vmem [resolvable:$true] %s7247
      %7250 = dma.vmem_to_hbm [thread:$0]  %s7248, 256, %s12, [#allocation8]
    $region77: #{tpu_custom_call.1} parent=1 // pred_fallthru
      _
    // Predicated region
    $region78: #{tpu_custom_call.1} parent=1 // pred_check
      _
    $region79: #{tpu_custom_call.1} parent=1 // pred_check_branch
      %7252 = sbr.rel (0) target = $region81
    $region80: #{tpu_custom_call.1} parent=1 // pred_region
      %7253 = dma.done [#allocation8], 256
    $region81: #{tpu_custom_call.1} parent=1 // pred_fallthru
      _
    %7254 = vsyncpa [#allocation7], 1
    %7255 = vsyncpa [#allocation10], 1
    %7256 = vsyncpa [#allocation13], 1
    %7257 = vsyncpa [#allocation16], 1
    %7258 = vsyncpa [#allocation8], 1

</llo_original>
